<compile_context>
chip_gen: v6e
topology: v6e:2x2x1
jax: 0.10.0
libtpu: 0.0.40
codegen_flags: <defaults>
</compile_context>

<pallas_src>
import functools

import jax
import jax.numpy as jnp
from jax.experimental import pallas as pl
from jax.experimental.pallas import tpu as pltpu

EPS = 1e-5


# --------------------------- fused Block kernel ----------------------------
def _dwconv_strip(pad_ref, w_taps, row0, n_rows, W, C):
    """Depthwise 3x3 conv (stride 1) for output rows [row0, row0 + n_rows).

    Taps are sliced directly from the zero-padded VMEM scratch Ref so the live
    set is one (n_rows, W, C) tap plus the accumulator strip (no spills).
    """
    acc = jnp.zeros((n_rows, W, C), jnp.float32)
    for dy in range(3):
        for dx in range(3):
            tap = pad_ref[row0 + dy:row0 + dy + n_rows, dx:dx + W, :]
            acc = acc + tap * w_taps[dy][dx]
    return acc


def _block_kernel(x_ref, dw1_ref, pw1_ref, dw2_ref, pw2_ref, skw_ref, bias_ref,
                  o_ref, pad1, pad2, pool,
                  *, Nb, H, W, Ho, Wo, Cin, Cout, Hs):
    f32 = jnp.float32
    bf16 = jnp.bfloat16

    # --- constant padding borders: zeros for conv inputs, -inf for maxpool. ---
    # Rewritten per step (cheap: borders only, interiors are written anyway) so
    # the kernel stays correct when the grid is split across TensorCores.
    pad1[0:1, :, :] = jnp.zeros((1, W + 2, Cin), f32)
    pad1[H + 1:H + 2, :, :] = jnp.zeros((1, W + 2, Cin), f32)
    pad1[1:H + 1, 0:1, :] = jnp.zeros((H, 1, Cin), f32)
    pad1[1:H + 1, W + 1:W + 2, :] = jnp.zeros((H, 1, Cin), f32)
    pad2[0:1, :, :] = jnp.zeros((1, W + 2, Cout), f32)
    pad2[H + 1:H + 2, :, :] = jnp.zeros((1, W + 2, Cout), f32)
    pad2[1:H + 1, 0:1, :] = jnp.zeros((H, 1, Cout), f32)
    pad2[1:H + 1, W + 1:W + 2, :] = jnp.zeros((H, 1, Cout), f32)
    # The 3x3 / stride-2 pool taps only ever read row 0 / col 0 of the padding.
    pool[0:1, :, :] = jnp.full((1, W + 2, Cout), -jnp.inf, f32)
    pool[1:H + 1, 0:1, :] = jnp.full((H, 1, Cout), -jnp.inf, f32)

    # --- step-invariant operands (loaded / sliced once). ----------------------
    w1 = dw1_ref[...]                                   # (3, 3, Cin)  f32
    w2 = dw2_ref[...]                                   # (3, 3, Cout) f32
    w1_taps = [[w1[dy, dx, :] for dx in range(3)] for dy in range(3)]
    w2_taps = [[w2[dy, dx, :] for dx in range(3)] for dy in range(3)]
    pw1 = pw1_ref[...]                                  # (Cin, Cout)  bf16 (*BN1 scale)
    pw2 = pw2_ref[...]                                  # (Cout, Cout) bf16 (*BN2 scale)
    skw = skw_ref[...]                                  # (Cin, Cout)  bf16 (*skipBN scale)
    bias = bias_ref[...]                                # (3, Cout)    f32
    b1, b2, bsk = bias[0:1, :], bias[1:2, :], bias[2:3, :]

    n_strips = H // Hs
    pooled = []
    for b in range(Nb):
        # -- ReLU(x) into the zero-padded dw1 input (pad(relu) == relu(pad)). --
        pad1[1:H + 1, 1:W + 1, :] = jnp.maximum(
            x_ref[b, :, :, :], 0.0).astype(f32)

        # -- SepConv1 + BN1 + ReLU -> zero-padded dw2 input, strip by strip. ---
        for s in range(n_strips):
            r = s * Hs
            acc = _dwconv_strip(pad1, w1_taps, r, Hs, W, Cin)
            t = jnp.dot(acc.reshape(Hs * W, Cin).astype(bf16), pw1,
                        preferred_element_type=jnp.float32) + b1
            pad2[1 + r:1 + r + Hs, 1:W + 1, :] = (
                jnp.maximum(t, 0.0).reshape(Hs, W, Cout))

        # -- SepConv2 + BN2 -> -inf padded maxpool input, strip by strip. ------
        for s in range(n_strips):
            r = s * Hs
            acc = _dwconv_strip(pad2, w2_taps, r, Hs, W, Cout)
            t = jnp.dot(acc.reshape(Hs * W, Cout).astype(bf16), pw2,
                        preferred_element_type=jnp.float32) + b2
            pool[1 + r:1 + r + Hs, 1:W + 1, :] = t.reshape(Hs, W, Cout)

        # -- MaxPool2d(3, stride=2, pad=1): strided taps from VMEM scratch. ----
        m = None
        for dy in range(3):
            for dx in range(3):
                tap = pool[pl.ds(dy, Ho, stride=2), pl.ds(dx, Wo, stride=2), :]
                m = tap if m is None else jnp.maximum(m, tap)
        pooled.append(m)

    # --- skip path: stride-2 subsample + 1x1 conv (+ folded BN), one matmul. --
    xs = x_ref[:, pl.ds(0, Ho, stride=2), pl.ds(0, Wo, stride=2), :]
    skip = jnp.dot(xs.reshape(Nb * Ho * Wo, Cin).astype(bf16), skw,
                   preferred_element_type=jnp.float32) + bsk
    skip = skip.reshape(Nb, Ho, Wo, Cout)

    # --- residual add, stored into the lane-dense (Ho, Wo*Cout) output. -------
    for b in range(Nb):
        y = pooled[b] + skip[b]                          # (Ho, Wo, Cout) f32
        for wo in range(Wo):
            o_ref[b, :, wo * Cout:(wo + 1) * Cout] = (
                y[:, wo, :].astype(o_ref.dtype))


def block_forward(x, p, *, images_per_step=1):
    """Fused Xception Block forward: one pallas_call, grid over image blocks."""
    N, H, W, Cin = x.shape
    Cout = p["pw1"].shape[1]
    Ho, Wo = H // 2, W // 2
    nb = images_per_step
    assert N % nb == 0 and H % 2 == 0 and W % 2 == 0
    Hs = 8 if H % 8 == 0 else H                      # strip height for dw convs

    # Fold the (inference-mode) BN scales into the MXU weights, cast to bf16;
    # keep the shifts as a single packed f32 bias operand.
    s1, b1 = p["bn1"]
    s2, b2 = p["bn2"]
    sks, skb = p["skbn"]
    pw1 = (p["pw1"] * s1[None, :]).astype(jnp.bfloat16)
    pw2 = (p["pw2"] * s2[None, :]).astype(jnp.bfloat16)
    skw = (p["skip_w"] * sks[None, :]).astype(jnp.bfloat16)
    bias = jnp.stack([b1, b2, skb]).astype(jnp.float32)          # (3, Cout)

    def rep_spec(shape):  # replicated (weight / bias) operand: same block each step
        return pl.BlockSpec(shape, lambda n: (0,) * len(shape))

    kern = functools.partial(_block_kernel, Nb=nb, H=H, W=W, Ho=Ho, Wo=Wo,
                             Cin=Cin, Cout=Cout, Hs=Hs)
    out = pl.pallas_call(
        kern,
        # Lane-dense output: last dim Wo*Cout (>=128) -> dense VMEM buffer and
        # dense write-back DMA; same memory layout as (N, Ho, Wo, Cout).
        out_shape=jax.ShapeDtypeStruct((N, Ho, Wo * Cout), x.dtype),
        grid=(N // nb,),
        in_specs=[
            pl.BlockSpec((nb, H, W, Cin), lambda n: (n, 0, 0, 0)),
            rep_spec((3, 3, Cin)), rep_spec((Cin, Cout)),
            rep_spec((3, 3, Cout)), rep_spec((Cout, Cout)),
            rep_spec((Cin, Cout)), rep_spec((3, Cout)),
        ],
        out_specs=pl.BlockSpec((nb, Ho, Wo * Cout), lambda n: (n, 0, 0)),
        scratch_shapes=[
            pltpu.VMEM((H + 2, W + 2, Cin), jnp.float32),   # zero-padded dw1 in
            pltpu.VMEM((H + 2, W + 2, Cout), jnp.float32),  # zero-padded dw2 in
            pltpu.VMEM((H + 2, W + 2, Cout), jnp.float32),  # -inf padded pool in
        ],
        compiler_params=pltpu.CompilerParams(
            dimension_semantics=("parallel",)),
    )(x, p["dw1"], pw1, p["dw2"], pw2, skw, bias)
    return out.reshape(N, Ho, Wo, Cout)


# --------------------------- pure-JAX reference ----------------------------
def block_forward_ref(x, p):
    def bn(y, scale, shift):
        return y * scale + shift

    def relu_sepconv_dw(y, w):
        c = y.shape[-1]
        return jax.lax.conv_general_dilated(
            jax.nn.relu(y), w.reshape(3, 3, 1, c), (1, 1), ((1, 1), (1, 1)),
            dimension_numbers=("NHWC", "HWIO", "NHWC"), feature_group_count=c)

    def pw(y, w):
        return jnp.einsum("nhwc,cd->nhwd", y, w)

    t = bn(pw(relu_sepconv_dw(x, p["dw1"]), p["pw1"]), *p["bn1"])
    t = bn(pw(relu_sepconv_dw(t, p["dw2"]), p["pw2"]), *p["bn2"])
    t = jax.lax.reduce_window(t, -jnp.inf, jax.lax.max,
                              (1, 3, 3, 1), (1, 2, 2, 1),
                              ((0, 0), (1, 1), (1, 1), (0, 0)))
    s = bn(pw(x[:, ::2, ::2, :], p["skip_w"]), *p["skbn"])
    return t + s


# --------------------------- parameter init --------------------------------
def init_params(key, cin, cout):
    ks = jax.random.split(key, 17)

    def bn_fold(kg, kb, km, kv, c):
        gamma = 1.0 + 0.1 * jax.random.normal(kg, (c,), jnp.float32)
        beta = 0.1 * jax.random.normal(kb, (c,), jnp.float32)
        mean = 0.1 * jax.random.normal(km, (c,), jnp.float32)
        var = jax.random.uniform(kv, (c,), jnp.float32, minval=0.5, maxval=1.5)
        scale = gamma / jnp.sqrt(var + EPS)
        shift = beta - mean * scale
        return scale, shift

    p = {
        "dw1": 0.2 * jax.random.normal(ks[0], (3, 3, cin), jnp.float32),
        "pw1": 0.2 * jax.random.normal(ks[1], (cin, cout), jnp.float32),
        "dw2": 0.2 * jax.random.normal(ks[2], (3, 3, cout), jnp.float32),
        "pw2": 0.2 * jax.random.normal(ks[3], (cout, cout), jnp.float32),
        "skip_w": 0.2 * jax.random.normal(ks[4], (cin, cout), jnp.float32),
        "bn1": bn_fold(ks[5], ks[6], ks[7], ks[8], cout),
        "bn2": bn_fold(ks[9], ks[10], ks[11], ks[12], cout),
        "skbn": bn_fold(ks[13], ks[14], ks[15], ks[16], cout),
    }
    return p


if __name__ == "__main__":
    N, H, W = 4, 16, 16
    CIN, COUT = 16, 32

    key = jax.random.PRNGKey(0)
    kx, kp = jax.random.split(key)
    # PyTorch input would be NCHW = (4, 16, 16, 16); carried here as NHWC so
    # channels land on the TPU lane axis.
    x = jax.random.normal(kx, (N, H, W, CIN), jnp.float32)
    params = init_params(kp, CIN, COUT)

    fwd = jax.jit(functools.partial(block_forward, images_per_step=2))
    out = jax.block_until_ready(fwd(x, params))

    ref = block_forward_ref(x, params)
    err = float(jnp.max(jnp.abs(out - ref)))
    ref_mag = float(jnp.max(jnp.abs(ref)))
    assert out.shape == (N, H // 2, W // 2, COUT), out.shape
    # MXU operands are bf16 (f32 accumulation) -> allow a bf16-sized tolerance.
    assert err <= 1e-2 + 2e-2 * ref_mag, f"max abs err {err} (ref max {ref_mag})"
    print("KERNEL_OK")
</pallas_src>

<mosaic_0001>
module attributes {stable_mosaic.version = 11 : i64} {
  func.func @_block_kernel(%arg0: i32, %arg1: memref<2x16x16x16xf32, #tpu.memory_space<vmem>>, %arg2: memref<3x3x16xf32, #tpu.memory_space<vmem>>, %arg3: memref<16x32xbf16, #tpu.memory_space<vmem>>, %arg4: memref<3x3x32xf32, #tpu.memory_space<vmem>>, %arg5: memref<32x32xbf16, #tpu.memory_space<vmem>>, %arg6: memref<16x32xbf16, #tpu.memory_space<vmem>>, %arg7: memref<3x32xf32, #tpu.memory_space<vmem>>, %arg8: memref<2x8x256xf32, #tpu.memory_space<vmem>>, %arg9: memref<18x18x16xf32, #tpu.memory_space<vmem>>, %arg10: memref<18x18x32xf32, #tpu.memory_space<vmem>>, %arg11: memref<18x18x32xf32, #tpu.memory_space<vmem>>) attributes {dimension_semantics = [#tpu.dimension_semantics<parallel>], iteration_bounds = array<i64: 2>, scalar_prefetch = 0 : i64, scratch_operands = 3 : i64, tpu.core_type = #tpu.core_type<tc>, window_params = [{transform_indices = @transform_0, window_bounds = array<i64: 2, 16, 16, 16>}, {pipeline_mode = #tpu.pipeline_mode<synchronous>, transform_indices = @transform_1, window_bounds = array<i64: 3, 3, 16>}, {pipeline_mode = #tpu.pipeline_mode<synchronous>, transform_indices = @transform_2, window_bounds = array<i64: 16, 32>}, {pipeline_mode = #tpu.pipeline_mode<synchronous>, transform_indices = @transform_3, window_bounds = array<i64: 3, 3, 32>}, {pipeline_mode = #tpu.pipeline_mode<synchronous>, transform_indices = @transform_4, window_bounds = array<i64: 32, 32>}, {pipeline_mode = #tpu.pipeline_mode<synchronous>, transform_indices = @transform_5, window_bounds = array<i64: 16, 32>}, {pipeline_mode = #tpu.pipeline_mode<synchronous>, transform_indices = @transform_6, window_bounds = array<i64: 3, 32>}, {transform_indices = @transform_7, window_bounds = array<i64: 2, 8, 256>}]} {
    %cst = arith.constant 0.000000e+00 : f32
    %0 = vector.broadcast %cst : f32 to vector<1x18x16xf32>
    %c0 = arith.constant 0 : index
    %c0_0 = arith.constant 0 : index
    %c0_1 = arith.constant 0 : index
    %1 = vector.load %arg9[%c0, %c0_0, %c0_1] : memref<18x18x16xf32, #tpu.memory_space<vmem>>, vector<1x18x16xf32>
    tpu.vector_store %arg9[%c0, %c0_0, %c0_1], %0 {strides = array<i32>} : memref<18x18x16xf32, #tpu.memory_space<vmem>>, vector<1x18x16xf32>,
    %cst_2 = arith.constant 0.000000e+00 : f32
    %2 = vector.broadcast %cst_2 : f32 to vector<1x18x16xf32>
    %c17 = arith.constant 17 : index
    %c0_3 = arith.constant 0 : index
    %c0_4 = arith.constant 0 : index
    %3 = vector.load %arg9[%c17, %c0_3, %c0_4] : memref<18x18x16xf32, #tpu.memory_space<vmem>>, vector<1x18x16xf32>
    tpu.vector_store %arg9[%c17, %c0_3, %c0_4], %2 {strides = array<i32>} : memref<18x18x16xf32, #tpu.memory_space<vmem>>, vector<1x18x16xf32>,
    %cst_5 = arith.constant 0.000000e+00 : f32
    %4 = vector.broadcast %cst_5 : f32 to vector<16x1x16xf32>
    %c1 = arith.constant 1 : index
    %c0_6 = arith.constant 0 : index
    %c0_7 = arith.constant 0 : index
    %5 = vector.load %arg9[%c1, %c0_6, %c0_7] : memref<18x18x16xf32, #tpu.memory_space<vmem>>, vector<16x1x16xf32>
    tpu.vector_store %arg9[%c1, %c0_6, %c0_7], %4 {strides = array<i32>} : memref<18x18x16xf32, #tpu.memory_space<vmem>>, vector<16x1x16xf32>,
    %cst_8 = arith.constant 0.000000e+00 : f32
    %6 = vector.broadcast %cst_8 : f32 to vector<16x1x16xf32>
    %c1_9 = arith.constant 1 : index
    %c17_10 = arith.constant 17 : index
    %c0_11 = arith.constant 0 : index
    %7 = vector.load %arg9[%c1_9, %c17_10, %c0_11] : memref<18x18x16xf32, #tpu.memory_space<vmem>>, vector<16x1x16xf32>
    tpu.vector_store %arg9[%c1_9, %c17_10, %c0_11], %6 {strides = array<i32>} : memref<18x18x16xf32, #tpu.memory_space<vmem>>, vector<16x1x16xf32>,
    %cst_12 = arith.constant 0.000000e+00 : f32
    %8 = vector.broadcast %cst_12 : f32 to vector<1x18x32xf32>
    %c0_13 = arith.constant 0 : index
    %c0_14 = arith.constant 0 : index
    %c0_15 = arith.constant 0 : index
    %9 = vector.load %arg10[%c0_13, %c0_14, %c0_15] : memref<18x18x32xf32, #tpu.memory_space<vmem>>, vector<1x18x32xf32>
    tpu.vector_store %arg10[%c0_13, %c0_14, %c0_15], %8 {strides = array<i32>} : memref<18x18x32xf32, #tpu.memory_space<vmem>>, vector<1x18x32xf32>,
    %cst_16 = arith.constant 0.000000e+00 : f32
    %10 = vector.broadcast %cst_16 : f32 to vector<1x18x32xf32>
    %c17_17 = arith.constant 17 : index
    %c0_18 = arith.constant 0 : index
    %c0_19 = arith.constant 0 : index
    %11 = vector.load %arg10[%c17_17, %c0_18, %c0_19] : memref<18x18x32xf32, #tpu.memory_space<vmem>>, vector<1x18x32xf32>
    tpu.vector_store %arg10[%c17_17, %c0_18, %c0_19], %10 {strides = array<i32>} : memref<18x18x32xf32, #tpu.memory_space<vmem>>, vector<1x18x32xf32>,
    %cst_20 = arith.constant 0.000000e+00 : f32
    %12 = vector.broadcast %cst_20 : f32 to vector<16x1x32xf32>
    %c1_21 = arith.constant 1 : index
    %c0_22 = arith.constant 0 : index
    %c0_23 = arith.constant 0 : index
    %13 = vector.load %arg10[%c1_21, %c0_22, %c0_23] : memref<18x18x32xf32, #tpu.memory_space<vmem>>, vector<16x1x32xf32>
    tpu.vector_store %arg10[%c1_21, %c0_22, %c0_23], %12 {strides = array<i32>} : memref<18x18x32xf32, #tpu.memory_space<vmem>>, vector<16x1x32xf32>,
    %cst_24 = arith.constant 0.000000e+00 : f32
    %14 = vector.broadcast %cst_24 : f32 to vector<16x1x32xf32>
    %c1_25 = arith.constant 1 : index
    %c17_26 = arith.constant 17 : index
    %c0_27 = arith.constant 0 : index
    %15 = vector.load %arg10[%c1_25, %c17_26, %c0_27] : memref<18x18x32xf32, #tpu.memory_space<vmem>>, vector<16x1x32xf32>
    tpu.vector_store %arg10[%c1_25, %c17_26, %c0_27], %14 {strides = array<i32>} : memref<18x18x32xf32, #tpu.memory_space<vmem>>, vector<16x1x32xf32>,
    %cst_28 = arith.constant 0xFF800000 : f32
    %16 = vector.broadcast %cst_28 : f32 to vector<1x18x32xf32>
    %c0_29 = arith.constant 0 : index
    %c0_30 = arith.constant 0 : index
    %c0_31 = arith.constant 0 : index
    %17 = vector.load %arg11[%c0_29, %c0_30, %c0_31] : memref<18x18x32xf32, #tpu.memory_space<vmem>>, vector<1x18x32xf32>
    tpu.vector_store %arg11[%c0_29, %c0_30, %c0_31], %16 {strides = array<i32>} : memref<18x18x32xf32, #tpu.memory_space<vmem>>, vector<1x18x32xf32>,
    %cst_32 = arith.constant 0xFF800000 : f32
    %18 = vector.broadcast %cst_32 : f32 to vector<16x1x32xf32>
    %c1_33 = arith.constant 1 : index
    %c0_34 = arith.constant 0 : index
    %c0_35 = arith.constant 0 : index
    %19 = vector.load %arg11[%c1_33, %c0_34, %c0_35] : memref<18x18x32xf32, #tpu.memory_space<vmem>>, vector<16x1x32xf32>
    tpu.vector_store %arg11[%c1_33, %c0_34, %c0_35], %18 {strides = array<i32>} : memref<18x18x32xf32, #tpu.memory_space<vmem>>, vector<16x1x32xf32>,
    %c0_36 = arith.constant 0 : index
    %c0_37 = arith.constant 0 : index
    %c0_38 = arith.constant 0 : index
    %20 = vector.load %arg2[%c0_36, %c0_37, %c0_38] : memref<3x3x16xf32, #tpu.memory_space<vmem>>, vector<3x3x16xf32>
    %c0_39 = arith.constant 0 : index
    %c0_40 = arith.constant 0 : index
    %c0_41 = arith.constant 0 : index
    %21 = vector.load %arg4[%c0_39, %c0_40, %c0_41] : memref<3x3x32xf32, #tpu.memory_space<vmem>>, vector<3x3x32xf32>
    %22 = vector.extract_strided_slice %20 {offsets = [0, 0, 0], sizes = [1, 1, 16], strides = [1, 1, 1]} : vector<3x3x16xf32> to vector<1x1x16xf32>
    %23 = vector.shape_cast %22 : vector<1x1x16xf32> to vector<16xf32>
    %24 = vector.extract_strided_slice %20 {offsets = [0, 1, 0], sizes = [1, 1, 16], strides = [1, 1, 1]} : vector<3x3x16xf32> to vector<1x1x16xf32>
    %25 = vector.shape_cast %24 : vector<1x1x16xf32> to vector<16xf32>
    %26 = vector.extract_strided_slice %20 {offsets = [0, 2, 0], sizes = [1, 1, 16], strides = [1, 1, 1]} : vector<3x3x16xf32> to vector<1x1x16xf32>
    %27 = vector.shape_cast %26 : vector<1x1x16xf32> to vector<16xf32>
    %28 = vector.extract_strided_slice %20 {offsets = [1, 0, 0], sizes = [1, 1, 16], strides = [1, 1, 1]} : vector<3x3x16xf32> to vector<1x1x16xf32>
    %29 = vector.shape_cast %28 : vector<1x1x16xf32> to vector<16xf32>
    %30 = vector.extract_strided_slice %20 {offsets = [1, 1, 0], sizes = [1, 1, 16], strides = [1, 1, 1]} : vector<3x3x16xf32> to vector<1x1x16xf32>
    %31 = vector.shape_cast %30 : vector<1x1x16xf32> to vector<16xf32>
    %32 = vector.extract_strided_slice %20 {offsets = [1, 2, 0], sizes = [1, 1, 16], strides = [1, 1, 1]} : vector<3x3x16xf32> to vector<1x1x16xf32>
    %33 = vector.shape_cast %32 : vector<1x1x16xf32> to vector<16xf32>
    %34 = vector.extract_strided_slice %20 {offsets = [2, 0, 0], sizes = [1, 1, 16], strides = [1, 1, 1]} : vector<3x3x16xf32> to vector<1x1x16xf32>
    %35 = vector.shape_cast %34 : vector<1x1x16xf32> to vector<16xf32>
    %36 = vector.extract_strided_slice %20 {offsets = [2, 1, 0], sizes = [1, 1, 16], strides = [1, 1, 1]} : vector<3x3x16xf32> to vector<1x1x16xf32>
    %37 = vector.shape_cast %36 : vector<1x1x16xf32> to vector<16xf32>
    %38 = vector.extract_strided_slice %20 {offsets = [2, 2, 0], sizes = [1, 1, 16], strides = [1, 1, 1]} : vector<3x3x16xf32> to vector<1x1x16xf32>
    %39 = vector.shape_cast %38 : vector<1x1x16xf32> to vector<16xf32>
    %40 = vector.extract_strided_slice %21 {offsets = [0, 0, 0], sizes = [1, 1, 32], strides = [1, 1, 1]} : vector<3x3x32xf32> to vector<1x1x32xf32>
    %41 = vector.shape_cast %40 : vector<1x1x32xf32> to vector<32xf32>
    %42 = vector.extract_strided_slice %21 {offsets = [0, 1, 0], sizes = [1, 1, 32], strides = [1, 1, 1]} : vector<3x3x32xf32> to vector<1x1x32xf32>
    %43 = vector.shape_cast %42 : vector<1x1x32xf32> to vector<32xf32>
    %44 = vector.extract_strided_slice %21 {offsets = [0, 2, 0], sizes = [1, 1, 32], strides = [1, 1, 1]} : vector<3x3x32xf32> to vector<1x1x32xf32>
    %45 = vector.shape_cast %44 : vector<1x1x32xf32> to vector<32xf32>
    %46 = vector.extract_strided_slice %21 {offsets = [1, 0, 0], sizes = [1, 1, 32], strides = [1, 1, 1]} : vector<3x3x32xf32> to vector<1x1x32xf32>
    %47 = vector.shape_cast %46 : vector<1x1x32xf32> to vector<32xf32>
    %48 = vector.extract_strided_slice %21 {offsets = [1, 1, 0], sizes = [1, 1, 32], strides = [1, 1, 1]} : vector<3x3x32xf32> to vector<1x1x32xf32>
    %49 = vector.shape_cast %48 : vector<1x1x32xf32> to vector<32xf32>
    %50 = vector.extract_strided_slice %21 {offsets = [1, 2, 0], sizes = [1, 1, 32], strides = [1, 1, 1]} : vector<3x3x32xf32> to vector<1x1x32xf32>
    %51 = vector.shape_cast %50 : vector<1x1x32xf32> to vector<32xf32>
    %52 = vector.extract_strided_slice %21 {offsets = [2, 0, 0], sizes = [1, 1, 32], strides = [1, 1, 1]} : vector<3x3x32xf32> to vector<1x1x32xf32>
    %53 = vector.shape_cast %52 : vector<1x1x32xf32> to vector<32xf32>
    %54 = vector.extract_strided_slice %21 {offsets = [2, 1, 0], sizes = [1, 1, 32], strides = [1, 1, 1]} : vector<3x3x32xf32> to vector<1x1x32xf32>
    %55 = vector.shape_cast %54 : vector<1x1x32xf32> to vector<32xf32>
    %56 = vector.extract_strided_slice %21 {offsets = [2, 2, 0], sizes = [1, 1, 32], strides = [1, 1, 1]} : vector<3x3x32xf32> to vector<1x1x32xf32>
    %57 = vector.shape_cast %56 : vector<1x1x32xf32> to vector<32xf32>
    %c0_42 = arith.constant 0 : index
    %c0_43 = arith.constant 0 : index
    %58 = vector.load %arg3[%c0_42, %c0_43] : memref<16x32xbf16, #tpu.memory_space<vmem>>, vector<16x32xbf16>
    %c0_44 = arith.constant 0 : index
    %c0_45 = arith.constant 0 : index
    %59 = vector.load %arg5[%c0_44, %c0_45] : memref<32x32xbf16, #tpu.memory_space<vmem>>, vector<32x32xbf16>
    %c0_46 = arith.constant 0 : index
    %c0_47 = arith.constant 0 : index
    %60 = vector.load %arg6[%c0_46, %c0_47] : memref<16x32xbf16, #tpu.memory_space<vmem>>, vector<16x32xbf16>
    %c0_48 = arith.constant 0 : index
    %c0_49 = arith.constant 0 : index
    %61 = vector.load %arg7[%c0_48, %c0_49] : memref<3x32xf32, #tpu.memory_space<vmem>>, vector<3x32xf32>
    %62 = vector.extract_strided_slice %61 {offsets = [0, 0], sizes = [1, 32], strides = [1, 1]} : vector<3x32xf32> to vector<1x32xf32>
    %63 = vector.extract_strided_slice %61 {offsets = [1, 0], sizes = [1, 32], strides = [1, 1]} : vector<3x32xf32> to vector<1x32xf32>
    %64 = vector.extract_strided_slice %61 {offsets = [2, 0], sizes = [1, 32], strides = [1, 1]} : vector<3x32xf32> to vector<1x32xf32>
    %c0_50 = arith.constant 0 : index
    %c0_51 = arith.constant 0 : index
    %c0_52 = arith.constant 0 : index
    %c0_53 = arith.constant 0 : index
    %65 = vector.load %arg1[%c0_50, %c0_51, %c0_52, %c0_53] : memref<2x16x16x16xf32, #tpu.memory_space<vmem>>, vector<1x16x16x16xf32>
    %66 = vector.shape_cast %65 : vector<1x16x16x16xf32> to vector<16x16x16xf32>
    %cst_54 = arith.constant 0.000000e+00 : f32
    %67 = vector.broadcast %cst_54 : f32 to vector<16x16x16xf32>
    %68 = arith.maximumf %66, %67 : vector<16x16x16xf32>
    %c1_55 = arith.constant 1 : index
    %c1_56 = arith.constant 1 : index
    %c0_57 = arith.constant 0 : index
    %69 = vector.load %arg9[%c1_55, %c1_56, %c0_57] : memref<18x18x16xf32, #tpu.memory_space<vmem>>, vector<16x16x16xf32>
    tpu.vector_store %arg9[%c1_55, %c1_56, %c0_57], %68 {strides = array<i32>} : memref<18x18x16xf32, #tpu.memory_space<vmem>>, vector<16x16x16xf32>,
    %cst_58 = arith.constant 0.000000e+00 : f32
    %70 = vector.broadcast %cst_58 : f32 to vector<8x16x16xf32>
    %c0_59 = arith.constant 0 : index
    %c0_60 = arith.constant 0 : index
    %c0_61 = arith.constant 0 : index
    %71 = vector.load %arg9[%c0_59, %c0_60, %c0_61] : memref<18x18x16xf32, #tpu.memory_space<vmem>>, vector<8x16x16xf32>
    %72 = vector.shape_cast %23 : vector<16xf32> to vector<1x1x16xf32>
    %73 = vector.broadcast %72 : vector<1x1x16xf32> to vector<8x16x16xf32>
    %74 = arith.mulf %71, %73 : vector<8x16x16xf32>
    %75 = arith.addf %70, %74 : vector<8x16x16xf32>
    %c0_62 = arith.constant 0 : index
    %c1_63 = arith.constant 1 : index
    %c0_64 = arith.constant 0 : index
    %76 = vector.load %arg9[%c0_62, %c1_63, %c0_64] : memref<18x18x16xf32, #tpu.memory_space<vmem>>, vector<8x16x16xf32>
    %77 = vector.shape_cast %25 : vector<16xf32> to vector<1x1x16xf32>
    %78 = vector.broadcast %77 : vector<1x1x16xf32> to vector<8x16x16xf32>
    %79 = arith.mulf %76, %78 : vector<8x16x16xf32>
    %80 = arith.addf %75, %79 : vector<8x16x16xf32>
    %c0_65 = arith.constant 0 : index
    %c2 = arith.constant 2 : index
    %c0_66 = arith.constant 0 : index
    %81 = vector.load %arg9[%c0_65, %c2, %c0_66] : memref<18x18x16xf32, #tpu.memory_space<vmem>>, vector<8x16x16xf32>
    %82 = vector.shape_cast %27 : vector<16xf32> to vector<1x1x16xf32>
    %83 = vector.broadcast %82 : vector<1x1x16xf32> to vector<8x16x16xf32>
    %84 = arith.mulf %81, %83 : vector<8x16x16xf32>
    %85 = arith.addf %80, %84 : vector<8x16x16xf32>
    %c1_67 = arith.constant 1 : index
    %c0_68 = arith.constant 0 : index
    %c0_69 = arith.constant 0 : index
    %86 = vector.load %arg9[%c1_67, %c0_68, %c0_69] : memref<18x18x16xf32, #tpu.memory_space<vmem>>, vector<8x16x16xf32>
    %87 = vector.shape_cast %29 : vector<16xf32> to vector<1x1x16xf32>
    %88 = vector.broadcast %87 : vector<1x1x16xf32> to vector<8x16x16xf32>
    %89 = arith.mulf %86, %88 : vector<8x16x16xf32>
    %90 = arith.addf %85, %89 : vector<8x16x16xf32>
    %c1_70 = arith.constant 1 : index
    %c1_71 = arith.constant 1 : index
    %c0_72 = arith.constant 0 : index
    %91 = vector.load %arg9[%c1_70, %c1_71, %c0_72] : memref<18x18x16xf32, #tpu.memory_space<vmem>>, vector<8x16x16xf32>
    %92 = vector.shape_cast %31 : vector<16xf32> to vector<1x1x16xf32>
    %93 = vector.broadcast %92 : vector<1x1x16xf32> to vector<8x16x16xf32>
    %94 = arith.mulf %91, %93 : vector<8x16x16xf32>
    %95 = arith.addf %90, %94 : vector<8x16x16xf32>
    %c1_73 = arith.constant 1 : index
    %c2_74 = arith.constant 2 : index
    %c0_75 = arith.constant 0 : index
    %96 = vector.load %arg9[%c1_73, %c2_74, %c0_75] : memref<18x18x16xf32, #tpu.memory_space<vmem>>, vector<8x16x16xf32>
    %97 = vector.shape_cast %33 : vector<16xf32> to vector<1x1x16xf32>
    %98 = vector.broadcast %97 : vector<1x1x16xf32> to vector<8x16x16xf32>
    %99 = arith.mulf %96, %98 : vector<8x16x16xf32>
    %100 = arith.addf %95, %99 : vector<8x16x16xf32>
    %c2_76 = arith.constant 2 : index
    %c0_77 = arith.constant 0 : index
    %c0_78 = arith.constant 0 : index
    %101 = vector.load %arg9[%c2_76, %c0_77, %c0_78] : memref<18x18x16xf32, #tpu.memory_space<vmem>>, vector<8x16x16xf32>
    %102 = vector.shape_cast %35 : vector<16xf32> to vector<1x1x16xf32>
    %103 = vector.broadcast %102 : vector<1x1x16xf32> to vector<8x16x16xf32>
    %104 = arith.mulf %101, %103 : vector<8x16x16xf32>
    %105 = arith.addf %100, %104 : vector<8x16x16xf32>
    %c2_79 = arith.constant 2 : index
    %c1_80 = arith.constant 1 : index
    %c0_81 = arith.constant 0 : index
    %106 = vector.load %arg9[%c2_79, %c1_80, %c0_81] : memref<18x18x16xf32, #tpu.memory_space<vmem>>, vector<8x16x16xf32>
    %107 = vector.shape_cast %37 : vector<16xf32> to vector<1x1x16xf32>
    %108 = vector.broadcast %107 : vector<1x1x16xf32> to vector<8x16x16xf32>
    %109 = arith.mulf %106, %108 : vector<8x16x16xf32>
    %110 = arith.addf %105, %109 : vector<8x16x16xf32>
    %c2_82 = arith.constant 2 : index
    %c2_83 = arith.constant 2 : index
    %c0_84 = arith.constant 0 : index
    %111 = vector.load %arg9[%c2_82, %c2_83, %c0_84] : memref<18x18x16xf32, #tpu.memory_space<vmem>>, vector<8x16x16xf32>
    %112 = vector.shape_cast %39 : vector<16xf32> to vector<1x1x16xf32>
    %113 = vector.broadcast %112 : vector<1x1x16xf32> to vector<8x16x16xf32>
    %114 = arith.mulf %111, %113 : vector<8x16x16xf32>
    %115 = arith.addf %110, %114 : vector<8x16x16xf32>
    %116 = vector.shape_cast %115 : vector<8x16x16xf32> to vector<128x16xf32>
    %117 = arith.truncf %116 : vector<128x16xf32> to vector<128x16xbf16>
    %cst_85 = arith.constant dense<0.000000e+00> : vector<128x32xf32>
    %118 = tpu.matmul %117, %58, %cst_85 {dimension_numbers = #tpu.dot_dimension_numbers<[1], [0], [0], [1], [0, 0, 1, 1], [], []>} : vector<128x16xbf16>, vector<16x32xbf16>, vector<128x32xf32> -> vector<128x32xf32>
    %119 = vector.broadcast %62 : vector<1x32xf32> to vector<128x32xf32>
    %120 = arith.addf %118, %119 : vector<128x32xf32>
    %cst_86 = arith.constant 0.000000e+00 : f32
    %121 = vector.broadcast %cst_86 : f32 to vector<128x32xf32>
    %122 = arith.maximumf %120, %121 : vector<128x32xf32>
    %123 = vector.shape_cast %122 : vector<128x32xf32> to vector<8x16x32xf32>
    %c1_87 = arith.constant 1 : index
    %c1_88 = arith.constant 1 : index
    %c0_89 = arith.constant 0 : index
    %124 = vector.load %arg10[%c1_87, %c1_88, %c0_89] : memref<18x18x32xf32, #tpu.memory_space<vmem>>, vector<8x16x32xf32>
    tpu.vector_store %arg10[%c1_87, %c1_88, %c0_89], %123 {strides = array<i32>} : memref<18x18x32xf32, #tpu.memory_space<vmem>>, vector<8x16x32xf32>,
    %cst_90 = arith.constant 0.000000e+00 : f32
    %125 = vector.broadcast %cst_90 : f32 to vector<8x16x16xf32>
    %c8 = arith.constant 8 : index
    %c0_91 = arith.constant 0 : index
    %c0_92 = arith.constant 0 : index
    %126 = vector.load %arg9[%c8, %c0_91, %c0_92] : memref<18x18x16xf32, #tpu.memory_space<vmem>>, vector<8x16x16xf32>
    %127 = vector.shape_cast %23 : vector<16xf32> to vector<1x1x16xf32>
    %128 = vector.broadcast %127 : vector<1x1x16xf32> to vector<8x16x16xf32>
    %129 = arith.mulf %126, %128 : vector<8x16x16xf32>
    %130 = arith.addf %125, %129 : vector<8x16x16xf32>
    %c8_93 = arith.constant 8 : index
    %c1_94 = arith.constant 1 : index
    %c0_95 = arith.constant 0 : index
    %131 = vector.load %arg9[%c8_93, %c1_94, %c0_95] : memref<18x18x16xf32, #tpu.memory_space<vmem>>, vector<8x16x16xf32>
    %132 = vector.shape_cast %25 : vector<16xf32> to vector<1x1x16xf32>
    %133 = vector.broadcast %132 : vector<1x1x16xf32> to vector<8x16x16xf32>
    %134 = arith.mulf %131, %133 : vector<8x16x16xf32>
    %135 = arith.addf %130, %134 : vector<8x16x16xf32>
    %c8_96 = arith.constant 8 : index
    %c2_97 = arith.constant 2 : index
    %c0_98 = arith.constant 0 : index
    %136 = vector.load %arg9[%c8_96, %c2_97, %c0_98] : memref<18x18x16xf32, #tpu.memory_space<vmem>>, vector<8x16x16xf32>
    %137 = vector.shape_cast %27 : vector<16xf32> to vector<1x1x16xf32>
    %138 = vector.broadcast %137 : vector<1x1x16xf32> to vector<8x16x16xf32>
    %139 = arith.mulf %136, %138 : vector<8x16x16xf32>
    %140 = arith.addf %135, %139 : vector<8x16x16xf32>
    %c9 = arith.constant 9 : index
    %c0_99 = arith.constant 0 : index
    %c0_100 = arith.constant 0 : index
    %141 = vector.load %arg9[%c9, %c0_99, %c0_100] : memref<18x18x16xf32, #tpu.memory_space<vmem>>, vector<8x16x16xf32>
    %142 = vector.shape_cast %29 : vector<16xf32> to vector<1x1x16xf32>
    %143 = vector.broadcast %142 : vector<1x1x16xf32> to vector<8x16x16xf32>
    %144 = arith.mulf %141, %143 : vector<8x16x16xf32>
    %145 = arith.addf %140, %144 : vector<8x16x16xf32>
    %c9_101 = arith.constant 9 : index
    %c1_102 = arith.constant 1 : index
    %c0_103 = arith.constant 0 : index
    %146 = vector.load %arg9[%c9_101, %c1_102, %c0_103] : memref<18x18x16xf32, #tpu.memory_space<vmem>>, vector<8x16x16xf32>
    %147 = vector.shape_cast %31 : vector<16xf32> to vector<1x1x16xf32>
    %148 = vector.broadcast %147 : vector<1x1x16xf32> to vector<8x16x16xf32>
    %149 = arith.mulf %146, %148 : vector<8x16x16xf32>
    %150 = arith.addf %145, %149 : vector<8x16x16xf32>
    %c9_104 = arith.constant 9 : index
    %c2_105 = arith.constant 2 : index
    %c0_106 = arith.constant 0 : index
    %151 = vector.load %arg9[%c9_104, %c2_105, %c0_106] : memref<18x18x16xf32, #tpu.memory_space<vmem>>, vector<8x16x16xf32>
    %152 = vector.shape_cast %33 : vector<16xf32> to vector<1x1x16xf32>
    %153 = vector.broadcast %152 : vector<1x1x16xf32> to vector<8x16x16xf32>
    %154 = arith.mulf %151, %153 : vector<8x16x16xf32>
    %155 = arith.addf %150, %154 : vector<8x16x16xf32>
    %c10 = arith.constant 10 : index
    %c0_107 = arith.constant 0 : index
    %c0_108 = arith.constant 0 : index
    %156 = vector.load %arg9[%c10, %c0_107, %c0_108] : memref<18x18x16xf32, #tpu.memory_space<vmem>>, vector<8x16x16xf32>
    %157 = vector.shape_cast %35 : vector<16xf32> to vector<1x1x16xf32>
    %158 = vector.broadcast %157 : vector<1x1x16xf32> to vector<8x16x16xf32>
    %159 = arith.mulf %156, %158 : vector<8x16x16xf32>
    %160 = arith.addf %155, %159 : vector<8x16x16xf32>
    %c10_109 = arith.constant 10 : index
    %c1_110 = arith.constant 1 : index
    %c0_111 = arith.constant 0 : index
    %161 = vector.load %arg9[%c10_109, %c1_110, %c0_111] : memref<18x18x16xf32, #tpu.memory_space<vmem>>, vector<8x16x16xf32>
    %162 = vector.shape_cast %37 : vector<16xf32> to vector<1x1x16xf32>
    %163 = vector.broadcast %162 : vector<1x1x16xf32> to vector<8x16x16xf32>
    %164 = arith.mulf %161, %163 : vector<8x16x16xf32>
    %165 = arith.addf %160, %164 : vector<8x16x16xf32>
    %c10_112 = arith.constant 10 : index
    %c2_113 = arith.constant 2 : index
    %c0_114 = arith.constant 0 : index
    %166 = vector.load %arg9[%c10_112, %c2_113, %c0_114] : memref<18x18x16xf32, #tpu.memory_space<vmem>>, vector<8x16x16xf32>
    %167 = vector.shape_cast %39 : vector<16xf32> to vector<1x1x16xf32>
    %168 = vector.broadcast %167 : vector<1x1x16xf32> to vector<8x16x16xf32>
    %169 = arith.mulf %166, %168 : vector<8x16x16xf32>
    %170 = arith.addf %165, %169 : vector<8x16x16xf32>
    %171 = vector.shape_cast %170 : vector<8x16x16xf32> to vector<128x16xf32>
    %172 = arith.truncf %171 : vector<128x16xf32> to vector<128x16xbf16>
    %cst_115 = arith.constant dense<0.000000e+00> : vector<128x32xf32>
    %173 = tpu.matmul %172, %58, %cst_115 {dimension_numbers = #tpu.dot_dimension_numbers<[1], [0], [0], [1], [0, 0, 1, 1], [], []>} : vector<128x16xbf16>, vector<16x32xbf16>, vector<128x32xf32> -> vector<128x32xf32>
    %174 = vector.broadcast %62 : vector<1x32xf32> to vector<128x32xf32>
    %175 = arith.addf %173, %174 : vector<128x32xf32>
    %cst_116 = arith.constant 0.000000e+00 : f32
    %176 = vector.broadcast %cst_116 : f32 to vector<128x32xf32>
    %177 = arith.maximumf %175, %176 : vector<128x32xf32>
    %178 = vector.shape_cast %177 : vector<128x32xf32> to vector<8x16x32xf32>
    %c9_117 = arith.constant 9 : index
    %c1_118 = arith.constant 1 : index
    %c0_119 = arith.constant 0 : index
    %179 = vector.load %arg10[%c9_117, %c1_118, %c0_119] : memref<18x18x32xf32, #tpu.memory_space<vmem>>, vector<8x16x32xf32>
    tpu.vector_store %arg10[%c9_117, %c1_118, %c0_119], %178 {strides = array<i32>} : memref<18x18x32xf32, #tpu.memory_space<vmem>>, vector<8x16x32xf32>,
    %cst_120 = arith.constant 0.000000e+00 : f32
    %180 = vector.broadcast %cst_120 : f32 to vector<8x16x32xf32>
    %c0_121 = arith.constant 0 : index
    %c0_122 = arith.constant 0 : index
    %c0_123 = arith.constant 0 : index
    %181 = vector.load %arg10[%c0_121, %c0_122, %c0_123] : memref<18x18x32xf32, #tpu.memory_space<vmem>>, vector<8x16x32xf32>
    %182 = vector.shape_cast %41 : vector<32xf32> to vector<1x1x32xf32>
    %183 = vector.broadcast %182 : vector<1x1x32xf32> to vector<8x16x32xf32>
    %184 = arith.mulf %181, %183 : vector<8x16x32xf32>
    %185 = arith.addf %180, %184 : vector<8x16x32xf32>
    %c0_124 = arith.constant 0 : index
    %c1_125 = arith.constant 1 : index
    %c0_126 = arith.constant 0 : index
    %186 = vector.load %arg10[%c0_124, %c1_125, %c0_126] : memref<18x18x32xf32, #tpu.memory_space<vmem>>, vector<8x16x32xf32>
    %187 = vector.shape_cast %43 : vector<32xf32> to vector<1x1x32xf32>
    %188 = vector.broadcast %187 : vector<1x1x32xf32> to vector<8x16x32xf32>
    %189 = arith.mulf %186, %188 : vector<8x16x32xf32>
    %190 = arith.addf %185, %189 : vector<8x16x32xf32>
    %c0_127 = arith.constant 0 : index
    %c2_128 = arith.constant 2 : index
    %c0_129 = arith.constant 0 : index
    %191 = vector.load %arg10[%c0_127, %c2_128, %c0_129] : memref<18x18x32xf32, #tpu.memory_space<vmem>>, vector<8x16x32xf32>
    %192 = vector.shape_cast %45 : vector<32xf32> to vector<1x1x32xf32>
    %193 = vector.broadcast %192 : vector<1x1x32xf32> to vector<8x16x32xf32>
    %194 = arith.mulf %191, %193 : vector<8x16x32xf32>
    %195 = arith.addf %190, %194 : vector<8x16x32xf32>
    %c1_130 = arith.constant 1 : index
    %c0_131 = arith.constant 0 : index
    %c0_132 = arith.constant 0 : index
    %196 = vector.load %arg10[%c1_130, %c0_131, %c0_132] : memref<18x18x32xf32, #tpu.memory_space<vmem>>, vector<8x16x32xf32>
    %197 = vector.shape_cast %47 : vector<32xf32> to vector<1x1x32xf32>
    %198 = vector.broadcast %197 : vector<1x1x32xf32> to vector<8x16x32xf32>
    %199 = arith.mulf %196, %198 : vector<8x16x32xf32>
    %200 = arith.addf %195, %199 : vector<8x16x32xf32>
    %c1_133 = arith.constant 1 : index
    %c1_134 = arith.constant 1 : index
    %c0_135 = arith.constant 0 : index
    %201 = vector.load %arg10[%c1_133, %c1_134, %c0_135] : memref<18x18x32xf32, #tpu.memory_space<vmem>>, vector<8x16x32xf32>
    %202 = vector.shape_cast %49 : vector<32xf32> to vector<1x1x32xf32>
    %203 = vector.broadcast %202 : vector<1x1x32xf32> to vector<8x16x32xf32>
    %204 = arith.mulf %201, %203 : vector<8x16x32xf32>
    %205 = arith.addf %200, %204 : vector<8x16x32xf32>
    %c1_136 = arith.constant 1 : index
    %c2_137 = arith.constant 2 : index
    %c0_138 = arith.constant 0 : index
    %206 = vector.load %arg10[%c1_136, %c2_137, %c0_138] : memref<18x18x32xf32, #tpu.memory_space<vmem>>, vector<8x16x32xf32>
    %207 = vector.shape_cast %51 : vector<32xf32> to vector<1x1x32xf32>
    %208 = vector.broadcast %207 : vector<1x1x32xf32> to vector<8x16x32xf32>
    %209 = arith.mulf %206, %208 : vector<8x16x32xf32>
    %210 = arith.addf %205, %209 : vector<8x16x32xf32>
    %c2_139 = arith.constant 2 : index
    %c0_140 = arith.constant 0 : index
    %c0_141 = arith.constant 0 : index
    %211 = vector.load %arg10[%c2_139, %c0_140, %c0_141] : memref<18x18x32xf32, #tpu.memory_space<vmem>>, vector<8x16x32xf32>
    %212 = vector.shape_cast %53 : vector<32xf32> to vector<1x1x32xf32>
    %213 = vector.broadcast %212 : vector<1x1x32xf32> to vector<8x16x32xf32>
    %214 = arith.mulf %211, %213 : vector<8x16x32xf32>
    %215 = arith.addf %210, %214 : vector<8x16x32xf32>
    %c2_142 = arith.constant 2 : index
    %c1_143 = arith.constant 1 : index
    %c0_144 = arith.constant 0 : index
    %216 = vector.load %arg10[%c2_142, %c1_143, %c0_144] : memref<18x18x32xf32, #tpu.memory_space<vmem>>, vector<8x16x32xf32>
    %217 = vector.shape_cast %55 : vector<32xf32> to vector<1x1x32xf32>
    %218 = vector.broadcast %217 : vector<1x1x32xf32> to vector<8x16x32xf32>
    %219 = arith.mulf %216, %218 : vector<8x16x32xf32>
    %220 = arith.addf %215, %219 : vector<8x16x32xf32>
    %c2_145 = arith.constant 2 : index
    %c2_146 = arith.constant 2 : index
    %c0_147 = arith.constant 0 : index
    %221 = vector.load %arg10[%c2_145, %c2_146, %c0_147] : memref<18x18x32xf32, #tpu.memory_space<vmem>>, vector<8x16x32xf32>
    %222 = vector.shape_cast %57 : vector<32xf32> to vector<1x1x32xf32>
    %223 = vector.broadcast %222 : vector<1x1x32xf32> to vector<8x16x32xf32>
    %224 = arith.mulf %221, %223 : vector<8x16x32xf32>
    %225 = arith.addf %220, %224 : vector<8x16x32xf32>
    %226 = vector.shape_cast %225 : vector<8x16x32xf32> to vector<128x32xf32>
    %227 = arith.truncf %226 : vector<128x32xf32> to vector<128x32xbf16>
    %cst_148 = arith.constant dense<0.000000e+00> : vector<128x32xf32>
    %228 = tpu.matmul %227, %59, %cst_148 {dimension_numbers = #tpu.dot_dimension_numbers<[1], [0], [0], [1], [0, 0, 1, 1], [], []>} : vector<128x32xbf16>, vector<32x32xbf16>, vector<128x32xf32> -> vector<128x32xf32>
    %229 = vector.broadcast %63 : vector<1x32xf32> to vector<128x32xf32>
    %230 = arith.addf %228, %229 : vector<128x32xf32>
    %231 = vector.shape_cast %230 : vector<128x32xf32> to vector<8x16x32xf32>
    %c1_149 = arith.constant 1 : index
    %c1_150 = arith.constant 1 : index
    %c0_151 = arith.constant 0 : index
    %232 = vector.load %arg11[%c1_149, %c1_150, %c0_151] : memref<18x18x32xf32, #tpu.memory_space<vmem>>, vector<8x16x32xf32>
    tpu.vector_store %arg11[%c1_149, %c1_150, %c0_151], %231 {strides = array<i32>} : memref<18x18x32xf32, #tpu.memory_space<vmem>>, vector<8x16x32xf32>,
    %cst_152 = arith.constant 0.000000e+00 : f32
    %233 = vector.broadcast %cst_152 : f32 to vector<8x16x32xf32>
    %c8_153 = arith.constant 8 : index
    %c0_154 = arith.constant 0 : index
    %c0_155 = arith.constant 0 : index
    %234 = vector.load %arg10[%c8_153, %c0_154, %c0_155] : memref<18x18x32xf32, #tpu.memory_space<vmem>>, vector<8x16x32xf32>
    %235 = vector.shape_cast %41 : vector<32xf32> to vector<1x1x32xf32>
    %236 = vector.broadcast %235 : vector<1x1x32xf32> to vector<8x16x32xf32>
    %237 = arith.mulf %234, %236 : vector<8x16x32xf32>
    %238 = arith.addf %233, %237 : vector<8x16x32xf32>
    %c8_156 = arith.constant 8 : index
    %c1_157 = arith.constant 1 : index
    %c0_158 = arith.constant 0 : index
    %239 = vector.load %arg10[%c8_156, %c1_157, %c0_158] : memref<18x18x32xf32, #tpu.memory_space<vmem>>, vector<8x16x32xf32>
    %240 = vector.shape_cast %43 : vector<32xf32> to vector<1x1x32xf32>
    %241 = vector.broadcast %240 : vector<1x1x32xf32> to vector<8x16x32xf32>
    %242 = arith.mulf %239, %241 : vector<8x16x32xf32>
    %243 = arith.addf %238, %242 : vector<8x16x32xf32>
    %c8_159 = arith.constant 8 : index
    %c2_160 = arith.constant 2 : index
    %c0_161 = arith.constant 0 : index
    %244 = vector.load %arg10[%c8_159, %c2_160, %c0_161] : memref<18x18x32xf32, #tpu.memory_space<vmem>>, vector<8x16x32xf32>
    %245 = vector.shape_cast %45 : vector<32xf32> to vector<1x1x32xf32>
    %246 = vector.broadcast %245 : vector<1x1x32xf32> to vector<8x16x32xf32>
    %247 = arith.mulf %244, %246 : vector<8x16x32xf32>
    %248 = arith.addf %243, %247 : vector<8x16x32xf32>
    %c9_162 = arith.constant 9 : index
    %c0_163 = arith.constant 0 : index
    %c0_164 = arith.constant 0 : index
    %249 = vector.load %arg10[%c9_162, %c0_163, %c0_164] : memref<18x18x32xf32, #tpu.memory_space<vmem>>, vector<8x16x32xf32>
    %250 = vector.shape_cast %47 : vector<32xf32> to vector<1x1x32xf32>
    %251 = vector.broadcast %250 : vector<1x1x32xf32> to vector<8x16x32xf32>
    %252 = arith.mulf %249, %251 : vector<8x16x32xf32>
    %253 = arith.addf %248, %252 : vector<8x16x32xf32>
    %c9_165 = arith.constant 9 : index
    %c1_166 = arith.constant 1 : index
    %c0_167 = arith.constant 0 : index
    %254 = vector.load %arg10[%c9_165, %c1_166, %c0_167] : memref<18x18x32xf32, #tpu.memory_space<vmem>>, vector<8x16x32xf32>
    %255 = vector.shape_cast %49 : vector<32xf32> to vector<1x1x32xf32>
    %256 = vector.broadcast %255 : vector<1x1x32xf32> to vector<8x16x32xf32>
    %257 = arith.mulf %254, %256 : vector<8x16x32xf32>
    %258 = arith.addf %253, %257 : vector<8x16x32xf32>
    %c9_168 = arith.constant 9 : index
    %c2_169 = arith.constant 2 : index
    %c0_170 = arith.constant 0 : index
    %259 = vector.load %arg10[%c9_168, %c2_169, %c0_170] : memref<18x18x32xf32, #tpu.memory_space<vmem>>, vector<8x16x32xf32>
    %260 = vector.shape_cast %51 : vector<32xf32> to vector<1x1x32xf32>
    %261 = vector.broadcast %260 : vector<1x1x32xf32> to vector<8x16x32xf32>
    %262 = arith.mulf %259, %261 : vector<8x16x32xf32>
    %263 = arith.addf %258, %262 : vector<8x16x32xf32>
    %c10_171 = arith.constant 10 : index
    %c0_172 = arith.constant 0 : index
    %c0_173 = arith.constant 0 : index
    %264 = vector.load %arg10[%c10_171, %c0_172, %c0_173] : memref<18x18x32xf32, #tpu.memory_space<vmem>>, vector<8x16x32xf32>
    %265 = vector.shape_cast %53 : vector<32xf32> to vector<1x1x32xf32>
    %266 = vector.broadcast %265 : vector<1x1x32xf32> to vector<8x16x32xf32>
    %267 = arith.mulf %264, %266 : vector<8x16x32xf32>
    %268 = arith.addf %263, %267 : vector<8x16x32xf32>
    %c10_174 = arith.constant 10 : index
    %c1_175 = arith.constant 1 : index
    %c0_176 = arith.constant 0 : index
    %269 = vector.load %arg10[%c10_174, %c1_175, %c0_176] : memref<18x18x32xf32, #tpu.memory_space<vmem>>, vector<8x16x32xf32>
    %270 = vector.shape_cast %55 : vector<32xf32> to vector<1x1x32xf32>
    %271 = vector.broadcast %270 : vector<1x1x32xf32> to vector<8x16x32xf32>
    %272 = arith.mulf %269, %271 : vector<8x16x32xf32>
    %273 = arith.addf %268, %272 : vector<8x16x32xf32>
    %c10_177 = arith.constant 10 : index
    %c2_178 = arith.constant 2 : index
    %c0_179 = arith.constant 0 : index
    %274 = vector.load %arg10[%c10_177, %c2_178, %c0_179] : memref<18x18x32xf32, #tpu.memory_space<vmem>>, vector<8x16x32xf32>
    %275 = vector.shape_cast %57 : vector<32xf32> to vector<1x1x32xf32>
    %276 = vector.broadcast %275 : vector<1x1x32xf32> to vector<8x16x32xf32>
    %277 = arith.mulf %274, %276 : vector<8x16x32xf32>
    %278 = arith.addf %273, %277 : vector<8x16x32xf32>
    %279 = vector.shape_cast %278 : vector<8x16x32xf32> to vector<128x32xf32>
    %280 = arith.truncf %279 : vector<128x32xf32> to vector<128x32xbf16>
    %cst_180 = arith.constant dense<0.000000e+00> : vector<128x32xf32>
    %281 = tpu.matmul %280, %59, %cst_180 {dimension_numbers = #tpu.dot_dimension_numbers<[1], [0], [0], [1], [0, 0, 1, 1], [], []>} : vector<128x32xbf16>, vector<32x32xbf16>, vector<128x32xf32> -> vector<128x32xf32>
    %282 = vector.broadcast %63 : vector<1x32xf32> to vector<128x32xf32>
    %283 = arith.addf %281, %282 : vector<128x32xf32>
    %284 = vector.shape_cast %283 : vector<128x32xf32> to vector<8x16x32xf32>
    %c9_181 = arith.constant 9 : index
    %c1_182 = arith.constant 1 : index
    %c0_183 = arith.constant 0 : index
    %285 = vector.load %arg11[%c9_181, %c1_182, %c0_183] : memref<18x18x32xf32, #tpu.memory_space<vmem>>, vector<8x16x32xf32>
    tpu.vector_store %arg11[%c9_181, %c1_182, %c0_183], %284 {strides = array<i32>} : memref<18x18x32xf32, #tpu.memory_space<vmem>>, vector<8x16x32xf32>,
    %c0_184 = arith.constant 0 : index
    %c0_185 = arith.constant 0 : index
    %c0_186 = arith.constant 0 : index
    %286 = tpu.strided_load %arg11[%c0_184, %c0_185, %c0_186] {strides = array<i32: 2, 2, 1>} : memref<18x18x32xf32, #tpu.memory_space<vmem>>, vector<8x8x32xf32>
    %c0_187 = arith.constant 0 : index
    %c1_188 = arith.constant 1 : index
    %c0_189 = arith.constant 0 : index
    %287 = tpu.strided_load %arg11[%c0_187, %c1_188, %c0_189] {strides = array<i32: 2, 2, 1>} : memref<18x18x32xf32, #tpu.memory_space<vmem>>, vector<8x8x32xf32>
    %288 = arith.maximumf %286, %287 : vector<8x8x32xf32>
    %c0_190 = arith.constant 0 : index
    %c2_191 = arith.constant 2 : index
    %c0_192 = arith.constant 0 : index
    %289 = tpu.strided_load %arg11[%c0_190, %c2_191, %c0_192] {strides = array<i32: 2, 2, 1>} : memref<18x18x32xf32, #tpu.memory_space<vmem>>, vector<8x8x32xf32>
    %290 = arith.maximumf %288, %289 : vector<8x8x32xf32>
    %c1_193 = arith.constant 1 : index
    %c0_194 = arith.constant 0 : index
    %c0_195 = arith.constant 0 : index
    %291 = tpu.strided_load %arg11[%c1_193, %c0_194, %c0_195] {strides = array<i32: 2, 2, 1>} : memref<18x18x32xf32, #tpu.memory_space<vmem>>, vector<8x8x32xf32>
    %292 = arith.maximumf %290, %291 : vector<8x8x32xf32>
    %c1_196 = arith.constant 1 : index
    %c1_197 = arith.constant 1 : index
    %c0_198 = arith.constant 0 : index
    %293 = tpu.strided_load %arg11[%c1_196, %c1_197, %c0_198] {strides = array<i32: 2, 2, 1>} : memref<18x18x32xf32, #tpu.memory_space<vmem>>, vector<8x8x32xf32>
    %294 = arith.maximumf %292, %293 : vector<8x8x32xf32>
    %c1_199 = arith.constant 1 : index
    %c2_200 = arith.constant 2 : index
    %c0_201 = arith.constant 0 : index
    %295 = tpu.strided_load %arg11[%c1_199, %c2_200, %c0_201] {strides = array<i32: 2, 2, 1>} : memref<18x18x32xf32, #tpu.memory_space<vmem>>, vector<8x8x32xf32>
    %296 = arith.maximumf %294, %295 : vector<8x8x32xf32>
    %c2_202 = arith.constant 2 : index
    %c0_203 = arith.constant 0 : index
    %c0_204 = arith.constant 0 : index
    %297 = tpu.strided_load %arg11[%c2_202, %c0_203, %c0_204] {strides = array<i32: 2, 2, 1>} : memref<18x18x32xf32, #tpu.memory_space<vmem>>, vector<8x8x32xf32>
    %298 = arith.maximumf %296, %297 : vector<8x8x32xf32>
    %c2_205 = arith.constant 2 : index
    %c1_206 = arith.constant 1 : index
    %c0_207 = arith.constant 0 : index
    %299 = tpu.strided_load %arg11[%c2_205, %c1_206, %c0_207] {strides = array<i32: 2, 2, 1>} : memref<18x18x32xf32, #tpu.memory_space<vmem>>, vector<8x8x32xf32>
    %300 = arith.maximumf %298, %299 : vector<8x8x32xf32>
    %c2_208 = arith.constant 2 : index
    %c2_209 = arith.constant 2 : index
    %c0_210 = arith.constant 0 : index
    %301 = tpu.strided_load %arg11[%c2_208, %c2_209, %c0_210] {strides = array<i32: 2, 2, 1>} : memref<18x18x32xf32, #tpu.memory_space<vmem>>, vector<8x8x32xf32>
    %302 = arith.maximumf %300, %301 : vector<8x8x32xf32>
    %c1_211 = arith.constant 1 : index
    %c0_212 = arith.constant 0 : index
    %c0_213 = arith.constant 0 : index
    %c0_214 = arith.constant 0 : index
    %303 = vector.load %arg1[%c1_211, %c0_212, %c0_213, %c0_214] : memref<2x16x16x16xf32, #tpu.memory_space<vmem>>, vector<1x16x16x16xf32>
    %304 = vector.shape_cast %303 : vector<1x16x16x16xf32> to vector<16x16x16xf32>
    %cst_215 = arith.constant 0.000000e+00 : f32
    %305 = vector.broadcast %cst_215 : f32 to vector<16x16x16xf32>
    %306 = arith.maximumf %304, %305 : vector<16x16x16xf32>
    %c1_216 = arith.constant 1 : index
    %c1_217 = arith.constant 1 : index
    %c0_218 = arith.constant 0 : index
    %307 = vector.load %arg9[%c1_216, %c1_217, %c0_218] : memref<18x18x16xf32, #tpu.memory_space<vmem>>, vector<16x16x16xf32>
    tpu.vector_store %arg9[%c1_216, %c1_217, %c0_218], %306 {strides = array<i32>} : memref<18x18x16xf32, #tpu.memory_space<vmem>>, vector<16x16x16xf32>,
    %cst_219 = arith.constant 0.000000e+00 : f32
    %308 = vector.broadcast %cst_219 : f32 to vector<8x16x16xf32>
    %c0_220 = arith.constant 0 : index
    %c0_221 = arith.constant 0 : index
    %c0_222 = arith.constant 0 : index
    %309 = vector.load %arg9[%c0_220, %c0_221, %c0_222] : memref<18x18x16xf32, #tpu.memory_space<vmem>>, vector<8x16x16xf32>
    %310 = vector.shape_cast %23 : vector<16xf32> to vector<1x1x16xf32>
    %311 = vector.broadcast %310 : vector<1x1x16xf32> to vector<8x16x16xf32>
    %312 = arith.mulf %309, %311 : vector<8x16x16xf32>
    %313 = arith.addf %308, %312 : vector<8x16x16xf32>
    %c0_223 = arith.constant 0 : index
    %c1_224 = arith.constant 1 : index
    %c0_225 = arith.constant 0 : index
    %314 = vector.load %arg9[%c0_223, %c1_224, %c0_225] : memref<18x18x16xf32, #tpu.memory_space<vmem>>, vector<8x16x16xf32>
    %315 = vector.shape_cast %25 : vector<16xf32> to vector<1x1x16xf32>
    %316 = vector.broadcast %315 : vector<1x1x16xf32> to vector<8x16x16xf32>
    %317 = arith.mulf %314, %316 : vector<8x16x16xf32>
    %318 = arith.addf %313, %317 : vector<8x16x16xf32>
    %c0_226 = arith.constant 0 : index
    %c2_227 = arith.constant 2 : index
    %c0_228 = arith.constant 0 : index
    %319 = vector.load %arg9[%c0_226, %c2_227, %c0_228] : memref<18x18x16xf32, #tpu.memory_space<vmem>>, vector<8x16x16xf32>
    %320 = vector.shape_cast %27 : vector<16xf32> to vector<1x1x16xf32>
    %321 = vector.broadcast %320 : vector<1x1x16xf32> to vector<8x16x16xf32>
    %322 = arith.mulf %319, %321 : vector<8x16x16xf32>
    %323 = arith.addf %318, %322 : vector<8x16x16xf32>
    %c1_229 = arith.constant 1 : index
    %c0_230 = arith.constant 0 : index
    %c0_231 = arith.constant 0 : index
    %324 = vector.load %arg9[%c1_229, %c0_230, %c0_231] : memref<18x18x16xf32, #tpu.memory_space<vmem>>, vector<8x16x16xf32>
    %325 = vector.shape_cast %29 : vector<16xf32> to vector<1x1x16xf32>
    %326 = vector.broadcast %325 : vector<1x1x16xf32> to vector<8x16x16xf32>
    %327 = arith.mulf %324, %326 : vector<8x16x16xf32>
    %328 = arith.addf %323, %327 : vector<8x16x16xf32>
    %c1_232 = arith.constant 1 : index
    %c1_233 = arith.constant 1 : index
    %c0_234 = arith.constant 0 : index
    %329 = vector.load %arg9[%c1_232, %c1_233, %c0_234] : memref<18x18x16xf32, #tpu.memory_space<vmem>>, vector<8x16x16xf32>
    %330 = vector.shape_cast %31 : vector<16xf32> to vector<1x1x16xf32>
    %331 = vector.broadcast %330 : vector<1x1x16xf32> to vector<8x16x16xf32>
    %332 = arith.mulf %329, %331 : vector<8x16x16xf32>
    %333 = arith.addf %328, %332 : vector<8x16x16xf32>
    %c1_235 = arith.constant 1 : index
    %c2_236 = arith.constant 2 : index
    %c0_237 = arith.constant 0 : index
    %334 = vector.load %arg9[%c1_235, %c2_236, %c0_237] : memref<18x18x16xf32, #tpu.memory_space<vmem>>, vector<8x16x16xf32>
    %335 = vector.shape_cast %33 : vector<16xf32> to vector<1x1x16xf32>
    %336 = vector.broadcast %335 : vector<1x1x16xf32> to vector<8x16x16xf32>
    %337 = arith.mulf %334, %336 : vector<8x16x16xf32>
    %338 = arith.addf %333, %337 : vector<8x16x16xf32>
    %c2_238 = arith.constant 2 : index
    %c0_239 = arith.constant 0 : index
    %c0_240 = arith.constant 0 : index
    %339 = vector.load %arg9[%c2_238, %c0_239, %c0_240] : memref<18x18x16xf32, #tpu.memory_space<vmem>>, vector<8x16x16xf32>
    %340 = vector.shape_cast %35 : vector<16xf32> to vector<1x1x16xf32>
    %341 = vector.broadcast %340 : vector<1x1x16xf32> to vector<8x16x16xf32>
    %342 = arith.mulf %339, %341 : vector<8x16x16xf32>
    %343 = arith.addf %338, %342 : vector<8x16x16xf32>
    %c2_241 = arith.constant 2 : index
    %c1_242 = arith.constant 1 : index
    %c0_243 = arith.constant 0 : index
    %344 = vector.load %arg9[%c2_241, %c1_242, %c0_243] : memref<18x18x16xf32, #tpu.memory_space<vmem>>, vector<8x16x16xf32>
    %345 = vector.shape_cast %37 : vector<16xf32> to vector<1x1x16xf32>
    %346 = vector.broadcast %345 : vector<1x1x16xf32> to vector<8x16x16xf32>
    %347 = arith.mulf %344, %346 : vector<8x16x16xf32>
    %348 = arith.addf %343, %347 : vector<8x16x16xf32>
    %c2_244 = arith.constant 2 : index
    %c2_245 = arith.constant 2 : index
    %c0_246 = arith.constant 0 : index
    %349 = vector.load %arg9[%c2_244, %c2_245, %c0_246] : memref<18x18x16xf32, #tpu.memory_space<vmem>>, vector<8x16x16xf32>
    %350 = vector.shape_cast %39 : vector<16xf32> to vector<1x1x16xf32>
    %351 = vector.broadcast %350 : vector<1x1x16xf32> to vector<8x16x16xf32>
    %352 = arith.mulf %349, %351 : vector<8x16x16xf32>
    %353 = arith.addf %348, %352 : vector<8x16x16xf32>
    %354 = vector.shape_cast %353 : vector<8x16x16xf32> to vector<128x16xf32>
    %355 = arith.truncf %354 : vector<128x16xf32> to vector<128x16xbf16>
    %cst_247 = arith.constant dense<0.000000e+00> : vector<128x32xf32>
    %356 = tpu.matmul %355, %58, %cst_247 {dimension_numbers = #tpu.dot_dimension_numbers<[1], [0], [0], [1], [0, 0, 1, 1], [], []>} : vector<128x16xbf16>, vector<16x32xbf16>, vector<128x32xf32> -> vector<128x32xf32>
    %357 = vector.broadcast %62 : vector<1x32xf32> to vector<128x32xf32>
    %358 = arith.addf %356, %357 : vector<128x32xf32>
    %cst_248 = arith.constant 0.000000e+00 : f32
    %359 = vector.broadcast %cst_248 : f32 to vector<128x32xf32>
    %360 = arith.maximumf %358, %359 : vector<128x32xf32>
    %361 = vector.shape_cast %360 : vector<128x32xf32> to vector<8x16x32xf32>
    %c1_249 = arith.constant 1 : index
    %c1_250 = arith.constant 1 : index
    %c0_251 = arith.constant 0 : index
    %362 = vector.load %arg10[%c1_249, %c1_250, %c0_251] : memref<18x18x32xf32, #tpu.memory_space<vmem>>, vector<8x16x32xf32>
    tpu.vector_store %arg10[%c1_249, %c1_250, %c0_251], %361 {strides = array<i32>} : memref<18x18x32xf32, #tpu.memory_space<vmem>>, vector<8x16x32xf32>,
    %cst_252 = arith.constant 0.000000e+00 : f32
    %363 = vector.broadcast %cst_252 : f32 to vector<8x16x16xf32>
    %c8_253 = arith.constant 8 : index
    %c0_254 = arith.constant 0 : index
    %c0_255 = arith.constant 0 : index
    %364 = vector.load %arg9[%c8_253, %c0_254, %c0_255] : memref<18x18x16xf32, #tpu.memory_space<vmem>>, vector<8x16x16xf32>
    %365 = vector.shape_cast %23 : vector<16xf32> to vector<1x1x16xf32>
    %366 = vector.broadcast %365 : vector<1x1x16xf32> to vector<8x16x16xf32>
    %367 = arith.mulf %364, %366 : vector<8x16x16xf32>
    %368 = arith.addf %363, %367 : vector<8x16x16xf32>
    %c8_256 = arith.constant 8 : index
    %c1_257 = arith.constant 1 : index
    %c0_258 = arith.constant 0 : index
    %369 = vector.load %arg9[%c8_256, %c1_257, %c0_258] : memref<18x18x16xf32, #tpu.memory_space<vmem>>, vector<8x16x16xf32>
    %370 = vector.shape_cast %25 : vector<16xf32> to vector<1x1x16xf32>
    %371 = vector.broadcast %370 : vector<1x1x16xf32> to vector<8x16x16xf32>
    %372 = arith.mulf %369, %371 : vector<8x16x16xf32>
    %373 = arith.addf %368, %372 : vector<8x16x16xf32>
    %c8_259 = arith.constant 8 : index
    %c2_260 = arith.constant 2 : index
    %c0_261 = arith.constant 0 : index
    %374 = vector.load %arg9[%c8_259, %c2_260, %c0_261] : memref<18x18x16xf32, #tpu.memory_space<vmem>>, vector<8x16x16xf32>
    %375 = vector.shape_cast %27 : vector<16xf32> to vector<1x1x16xf32>
    %376 = vector.broadcast %375 : vector<1x1x16xf32> to vector<8x16x16xf32>
    %377 = arith.mulf %374, %376 : vector<8x16x16xf32>
    %378 = arith.addf %373, %377 : vector<8x16x16xf32>
    %c9_262 = arith.constant 9 : index
    %c0_263 = arith.constant 0 : index
    %c0_264 = arith.constant 0 : index
    %379 = vector.load %arg9[%c9_262, %c0_263, %c0_264] : memref<18x18x16xf32, #tpu.memory_space<vmem>>, vector<8x16x16xf32>
    %380 = vector.shape_cast %29 : vector<16xf32> to vector<1x1x16xf32>
    %381 = vector.broadcast %380 : vector<1x1x16xf32> to vector<8x16x16xf32>
    %382 = arith.mulf %379, %381 : vector<8x16x16xf32>
    %383 = arith.addf %378, %382 : vector<8x16x16xf32>
    %c9_265 = arith.constant 9 : index
    %c1_266 = arith.constant 1 : index
    %c0_267 = arith.constant 0 : index
    %384 = vector.load %arg9[%c9_265, %c1_266, %c0_267] : memref<18x18x16xf32, #tpu.memory_space<vmem>>, vector<8x16x16xf32>
    %385 = vector.shape_cast %31 : vector<16xf32> to vector<1x1x16xf32>
    %386 = vector.broadcast %385 : vector<1x1x16xf32> to vector<8x16x16xf32>
    %387 = arith.mulf %384, %386 : vector<8x16x16xf32>
    %388 = arith.addf %383, %387 : vector<8x16x16xf32>
    %c9_268 = arith.constant 9 : index
    %c2_269 = arith.constant 2 : index
    %c0_270 = arith.constant 0 : index
    %389 = vector.load %arg9[%c9_268, %c2_269, %c0_270] : memref<18x18x16xf32, #tpu.memory_space<vmem>>, vector<8x16x16xf32>
    %390 = vector.shape_cast %33 : vector<16xf32> to vector<1x1x16xf32>
    %391 = vector.broadcast %390 : vector<1x1x16xf32> to vector<8x16x16xf32>
    %392 = arith.mulf %389, %391 : vector<8x16x16xf32>
    %393 = arith.addf %388, %392 : vector<8x16x16xf32>
    %c10_271 = arith.constant 10 : index
    %c0_272 = arith.constant 0 : index
    %c0_273 = arith.constant 0 : index
    %394 = vector.load %arg9[%c10_271, %c0_272, %c0_273] : memref<18x18x16xf32, #tpu.memory_space<vmem>>, vector<8x16x16xf32>
    %395 = vector.shape_cast %35 : vector<16xf32> to vector<1x1x16xf32>
    %396 = vector.broadcast %395 : vector<1x1x16xf32> to vector<8x16x16xf32>
    %397 = arith.mulf %394, %396 : vector<8x16x16xf32>
    %398 = arith.addf %393, %397 : vector<8x16x16xf32>
    %c10_274 = arith.constant 10 : index
    %c1_275 = arith.constant 1 : index
    %c0_276 = arith.constant 0 : index
    %399 = vector.load %arg9[%c10_274, %c1_275, %c0_276] : memref<18x18x16xf32, #tpu.memory_space<vmem>>, vector<8x16x16xf32>
    %400 = vector.shape_cast %37 : vector<16xf32> to vector<1x1x16xf32>
    %401 = vector.broadcast %400 : vector<1x1x16xf32> to vector<8x16x16xf32>
    %402 = arith.mulf %399, %401 : vector<8x16x16xf32>
    %403 = arith.addf %398, %402 : vector<8x16x16xf32>
    %c10_277 = arith.constant 10 : index
    %c2_278 = arith.constant 2 : index
    %c0_279 = arith.constant 0 : index
    %404 = vector.load %arg9[%c10_277, %c2_278, %c0_279] : memref<18x18x16xf32, #tpu.memory_space<vmem>>, vector<8x16x16xf32>
    %405 = vector.shape_cast %39 : vector<16xf32> to vector<1x1x16xf32>
    %406 = vector.broadcast %405 : vector<1x1x16xf32> to vector<8x16x16xf32>
    %407 = arith.mulf %404, %406 : vector<8x16x16xf32>
    %408 = arith.addf %403, %407 : vector<8x16x16xf32>
    %409 = vector.shape_cast %408 : vector<8x16x16xf32> to vector<128x16xf32>
    %410 = arith.truncf %409 : vector<128x16xf32> to vector<128x16xbf16>
    %cst_280 = arith.constant dense<0.000000e+00> : vector<128x32xf32>
    %411 = tpu.matmul %410, %58, %cst_280 {dimension_numbers = #tpu.dot_dimension_numbers<[1], [0], [0], [1], [0, 0, 1, 1], [], []>} : vector<128x16xbf16>, vector<16x32xbf16>, vector<128x32xf32> -> vector<128x32xf32>
    %412 = vector.broadcast %62 : vector<1x32xf32> to vector<128x32xf32>
    %413 = arith.addf %411, %412 : vector<128x32xf32>
    %cst_281 = arith.constant 0.000000e+00 : f32
    %414 = vector.broadcast %cst_281 : f32 to vector<128x32xf32>
    %415 = arith.maximumf %413, %414 : vector<128x32xf32>
    %416 = vector.shape_cast %415 : vector<128x32xf32> to vector<8x16x32xf32>
    %c9_282 = arith.constant 9 : index
    %c1_283 = arith.constant 1 : index
    %c0_284 = arith.constant 0 : index
    %417 = vector.load %arg10[%c9_282, %c1_283, %c0_284] : memref<18x18x32xf32, #tpu.memory_space<vmem>>, vector<8x16x32xf32>
    tpu.vector_store %arg10[%c9_282, %c1_283, %c0_284], %416 {strides = array<i32>} : memref<18x18x32xf32, #tpu.memory_space<vmem>>, vector<8x16x32xf32>,
    %cst_285 = arith.constant 0.000000e+00 : f32
    %418 = vector.broadcast %cst_285 : f32 to vector<8x16x32xf32>
    %c0_286 = arith.constant 0 : index
    %c0_287 = arith.constant 0 : index
    %c0_288 = arith.constant 0 : index
    %419 = vector.load %arg10[%c0_286, %c0_287, %c0_288] : memref<18x18x32xf32, #tpu.memory_space<vmem>>, vector<8x16x32xf32>
    %420 = vector.shape_cast %41 : vector<32xf32> to vector<1x1x32xf32>
    %421 = vector.broadcast %420 : vector<1x1x32xf32> to vector<8x16x32xf32>
    %422 = arith.mulf %419, %421 : vector<8x16x32xf32>
    %423 = arith.addf %418, %422 : vector<8x16x32xf32>
    %c0_289 = arith.constant 0 : index
    %c1_290 = arith.constant 1 : index
    %c0_291 = arith.constant 0 : index
    %424 = vector.load %arg10[%c0_289, %c1_290, %c0_291] : memref<18x18x32xf32, #tpu.memory_space<vmem>>, vector<8x16x32xf32>
    %425 = vector.shape_cast %43 : vector<32xf32> to vector<1x1x32xf32>
    %426 = vector.broadcast %425 : vector<1x1x32xf32> to vector<8x16x32xf32>
    %427 = arith.mulf %424, %426 : vector<8x16x32xf32>
    %428 = arith.addf %423, %427 : vector<8x16x32xf32>
    %c0_292 = arith.constant 0 : index
    %c2_293 = arith.constant 2 : index
    %c0_294 = arith.constant 0 : index
    %429 = vector.load %arg10[%c0_292, %c2_293, %c0_294] : memref<18x18x32xf32, #tpu.memory_space<vmem>>, vector<8x16x32xf32>
    %430 = vector.shape_cast %45 : vector<32xf32> to vector<1x1x32xf32>
    %431 = vector.broadcast %430 : vector<1x1x32xf32> to vector<8x16x32xf32>
    %432 = arith.mulf %429, %431 : vector<8x16x32xf32>
    %433 = arith.addf %428, %432 : vector<8x16x32xf32>
    %c1_295 = arith.constant 1 : index
    %c0_296 = arith.constant 0 : index
    %c0_297 = arith.constant 0 : index
    %434 = vector.load %arg10[%c1_295, %c0_296, %c0_297] : memref<18x18x32xf32, #tpu.memory_space<vmem>>, vector<8x16x32xf32>
    %435 = vector.shape_cast %47 : vector<32xf32> to vector<1x1x32xf32>
    %436 = vector.broadcast %435 : vector<1x1x32xf32> to vector<8x16x32xf32>
    %437 = arith.mulf %434, %436 : vector<8x16x32xf32>
    %438 = arith.addf %433, %437 : vector<8x16x32xf32>
    %c1_298 = arith.constant 1 : index
    %c1_299 = arith.constant 1 : index
    %c0_300 = arith.constant 0 : index
    %439 = vector.load %arg10[%c1_298, %c1_299, %c0_300] : memref<18x18x32xf32, #tpu.memory_space<vmem>>, vector<8x16x32xf32>
    %440 = vector.shape_cast %49 : vector<32xf32> to vector<1x1x32xf32>
    %441 = vector.broadcast %440 : vector<1x1x32xf32> to vector<8x16x32xf32>
    %442 = arith.mulf %439, %441 : vector<8x16x32xf32>
    %443 = arith.addf %438, %442 : vector<8x16x32xf32>
    %c1_301 = arith.constant 1 : index
    %c2_302 = arith.constant 2 : index
    %c0_303 = arith.constant 0 : index
    %444 = vector.load %arg10[%c1_301, %c2_302, %c0_303] : memref<18x18x32xf32, #tpu.memory_space<vmem>>, vector<8x16x32xf32>
    %445 = vector.shape_cast %51 : vector<32xf32> to vector<1x1x32xf32>
    %446 = vector.broadcast %445 : vector<1x1x32xf32> to vector<8x16x32xf32>
    %447 = arith.mulf %444, %446 : vector<8x16x32xf32>
    %448 = arith.addf %443, %447 : vector<8x16x32xf32>
    %c2_304 = arith.constant 2 : index
    %c0_305 = arith.constant 0 : index
    %c0_306 = arith.constant 0 : index
    %449 = vector.load %arg10[%c2_304, %c0_305, %c0_306] : memref<18x18x32xf32, #tpu.memory_space<vmem>>, vector<8x16x32xf32>
    %450 = vector.shape_cast %53 : vector<32xf32> to vector<1x1x32xf32>
    %451 = vector.broadcast %450 : vector<1x1x32xf32> to vector<8x16x32xf32>
    %452 = arith.mulf %449, %451 : vector<8x16x32xf32>
    %453 = arith.addf %448, %452 : vector<8x16x32xf32>
    %c2_307 = arith.constant 2 : index
    %c1_308 = arith.constant 1 : index
    %c0_309 = arith.constant 0 : index
    %454 = vector.load %arg10[%c2_307, %c1_308, %c0_309] : memref<18x18x32xf32, #tpu.memory_space<vmem>>, vector<8x16x32xf32>
    %455 = vector.shape_cast %55 : vector<32xf32> to vector<1x1x32xf32>
    %456 = vector.broadcast %455 : vector<1x1x32xf32> to vector<8x16x32xf32>
    %457 = arith.mulf %454, %456 : vector<8x16x32xf32>
    %458 = arith.addf %453, %457 : vector<8x16x32xf32>
    %c2_310 = arith.constant 2 : index
    %c2_311 = arith.constant 2 : index
    %c0_312 = arith.constant 0 : index
    %459 = vector.load %arg10[%c2_310, %c2_311, %c0_312] : memref<18x18x32xf32, #tpu.memory_space<vmem>>, vector<8x16x32xf32>
    %460 = vector.shape_cast %57 : vector<32xf32> to vector<1x1x32xf32>
    %461 = vector.broadcast %460 : vector<1x1x32xf32> to vector<8x16x32xf32>
    %462 = arith.mulf %459, %461 : vector<8x16x32xf32>
    %463 = arith.addf %458, %462 : vector<8x16x32xf32>
    %464 = vector.shape_cast %463 : vector<8x16x32xf32> to vector<128x32xf32>
    %465 = arith.truncf %464 : vector<128x32xf32> to vector<128x32xbf16>
    %cst_313 = arith.constant dense<0.000000e+00> : vector<128x32xf32>
    %466 = tpu.matmul %465, %59, %cst_313 {dimension_numbers = #tpu.dot_dimension_numbers<[1], [0], [0], [1], [0, 0, 1, 1], [], []>} : vector<128x32xbf16>, vector<32x32xbf16>, vector<128x32xf32> -> vector<128x32xf32>
    %467 = vector.broadcast %63 : vector<1x32xf32> to vector<128x32xf32>
    %468 = arith.addf %466, %467 : vector<128x32xf32>
    %469 = vector.shape_cast %468 : vector<128x32xf32> to vector<8x16x32xf32>
    %c1_314 = arith.constant 1 : index
    %c1_315 = arith.constant 1 : index
    %c0_316 = arith.constant 0 : index
    %470 = vector.load %arg11[%c1_314, %c1_315, %c0_316] : memref<18x18x32xf32, #tpu.memory_space<vmem>>, vector<8x16x32xf32>
    tpu.vector_store %arg11[%c1_314, %c1_315, %c0_316], %469 {strides = array<i32>} : memref<18x18x32xf32, #tpu.memory_space<vmem>>, vector<8x16x32xf32>,
    %cst_317 = arith.constant 0.000000e+00 : f32
    %471 = vector.broadcast %cst_317 : f32 to vector<8x16x32xf32>
    %c8_318 = arith.constant 8 : index
    %c0_319 = arith.constant 0 : index
    %c0_320 = arith.constant 0 : index
    %472 = vector.load %arg10[%c8_318, %c0_319, %c0_320] : memref<18x18x32xf32, #tpu.memory_space<vmem>>, vector<8x16x32xf32>
    %473 = vector.shape_cast %41 : vector<32xf32> to vector<1x1x32xf32>
    %474 = vector.broadcast %473 : vector<1x1x32xf32> to vector<8x16x32xf32>
    %475 = arith.mulf %472, %474 : vector<8x16x32xf32>
    %476 = arith.addf %471, %475 : vector<8x16x32xf32>
    %c8_321 = arith.constant 8 : index
    %c1_322 = arith.constant 1 : index
    %c0_323 = arith.constant 0 : index
    %477 = vector.load %arg10[%c8_321, %c1_322, %c0_323] : memref<18x18x32xf32, #tpu.memory_space<vmem>>, vector<8x16x32xf32>
    %478 = vector.shape_cast %43 : vector<32xf32> to vector<1x1x32xf32>
    %479 = vector.broadcast %478 : vector<1x1x32xf32> to vector<8x16x32xf32>
    %480 = arith.mulf %477, %479 : vector<8x16x32xf32>
    %481 = arith.addf %476, %480 : vector<8x16x32xf32>
    %c8_324 = arith.constant 8 : index
    %c2_325 = arith.constant 2 : index
    %c0_326 = arith.constant 0 : index
    %482 = vector.load %arg10[%c8_324, %c2_325, %c0_326] : memref<18x18x32xf32, #tpu.memory_space<vmem>>, vector<8x16x32xf32>
    %483 = vector.shape_cast %45 : vector<32xf32> to vector<1x1x32xf32>
    %484 = vector.broadcast %483 : vector<1x1x32xf32> to vector<8x16x32xf32>
    %485 = arith.mulf %482, %484 : vector<8x16x32xf32>
    %486 = arith.addf %481, %485 : vector<8x16x32xf32>
    %c9_327 = arith.constant 9 : index
    %c0_328 = arith.constant 0 : index
    %c0_329 = arith.constant 0 : index
    %487 = vector.load %arg10[%c9_327, %c0_328, %c0_329] : memref<18x18x32xf32, #tpu.memory_space<vmem>>, vector<8x16x32xf32>
    %488 = vector.shape_cast %47 : vector<32xf32> to vector<1x1x32xf32>
    %489 = vector.broadcast %488 : vector<1x1x32xf32> to vector<8x16x32xf32>
    %490 = arith.mulf %487, %489 : vector<8x16x32xf32>
    %491 = arith.addf %486, %490 : vector<8x16x32xf32>
    %c9_330 = arith.constant 9 : index
    %c1_331 = arith.constant 1 : index
    %c0_332 = arith.constant 0 : index
    %492 = vector.load %arg10[%c9_330, %c1_331, %c0_332] : memref<18x18x32xf32, #tpu.memory_space<vmem>>, vector<8x16x32xf32>
    %493 = vector.shape_cast %49 : vector<32xf32> to vector<1x1x32xf32>
    %494 = vector.broadcast %493 : vector<1x1x32xf32> to vector<8x16x32xf32>
    %495 = arith.mulf %492, %494 : vector<8x16x32xf32>
    %496 = arith.addf %491, %495 : vector<8x16x32xf32>
    %c9_333 = arith.constant 9 : index
    %c2_334 = arith.constant 2 : index
    %c0_335 = arith.constant 0 : index
    %497 = vector.load %arg10[%c9_333, %c2_334, %c0_335] : memref<18x18x32xf32, #tpu.memory_space<vmem>>, vector<8x16x32xf32>
    %498 = vector.shape_cast %51 : vector<32xf32> to vector<1x1x32xf32>
    %499 = vector.broadcast %498 : vector<1x1x32xf32> to vector<8x16x32xf32>
    %500 = arith.mulf %497, %499 : vector<8x16x32xf32>
    %501 = arith.addf %496, %500 : vector<8x16x32xf32>
    %c10_336 = arith.constant 10 : index
    %c0_337 = arith.constant 0 : index
    %c0_338 = arith.constant 0 : index
    %502 = vector.load %arg10[%c10_336, %c0_337, %c0_338] : memref<18x18x32xf32, #tpu.memory_space<vmem>>, vector<8x16x32xf32>
    %503 = vector.shape_cast %53 : vector<32xf32> to vector<1x1x32xf32>
    %504 = vector.broadcast %503 : vector<1x1x32xf32> to vector<8x16x32xf32>
    %505 = arith.mulf %502, %504 : vector<8x16x32xf32>
    %506 = arith.addf %501, %505 : vector<8x16x32xf32>
    %c10_339 = arith.constant 10 : index
    %c1_340 = arith.constant 1 : index
    %c0_341 = arith.constant 0 : index
    %507 = vector.load %arg10[%c10_339, %c1_340, %c0_341] : memref<18x18x32xf32, #tpu.memory_space<vmem>>, vector<8x16x32xf32>
    %508 = vector.shape_cast %55 : vector<32xf32> to vector<1x1x32xf32>
    %509 = vector.broadcast %508 : vector<1x1x32xf32> to vector<8x16x32xf32>
    %510 = arith.mulf %507, %509 : vector<8x16x32xf32>
    %511 = arith.addf %506, %510 : vector<8x16x32xf32>
    %c10_342 = arith.constant 10 : index
    %c2_343 = arith.constant 2 : index
    %c0_344 = arith.constant 0 : index
    %512 = vector.load %arg10[%c10_342, %c2_343, %c0_344] : memref<18x18x32xf32, #tpu.memory_space<vmem>>, vector<8x16x32xf32>
    %513 = vector.shape_cast %57 : vector<32xf32> to vector<1x1x32xf32>
    %514 = vector.broadcast %513 : vector<1x1x32xf32> to vector<8x16x32xf32>
    %515 = arith.mulf %512, %514 : vector<8x16x32xf32>
    %516 = arith.addf %511, %515 : vector<8x16x32xf32>
    %517 = vector.shape_cast %516 : vector<8x16x32xf32> to vector<128x32xf32>
    %518 = arith.truncf %517 : vector<128x32xf32> to vector<128x32xbf16>
    %cst_345 = arith.constant dense<0.000000e+00> : vector<128x32xf32>
    %519 = tpu.matmul %518, %59, %cst_345 {dimension_numbers = #tpu.dot_dimension_numbers<[1], [0], [0], [1], [0, 0, 1, 1], [], []>} : vector<128x32xbf16>, vector<32x32xbf16>, vector<128x32xf32> -> vector<128x32xf32>
    %520 = vector.broadcast %63 : vector<1x32xf32> to vector<128x32xf32>
    %521 = arith.addf %519, %520 : vector<128x32xf32>
    %522 = vector.shape_cast %521 : vector<128x32xf32> to vector<8x16x32xf32>
    %c9_346 = arith.constant 9 : index
    %c1_347 = arith.constant 1 : index
    %c0_348 = arith.constant 0 : index
    %523 = vector.load %arg11[%c9_346, %c1_347, %c0_348] : memref<18x18x32xf32, #tpu.memory_space<vmem>>, vector<8x16x32xf32>
    tpu.vector_store %arg11[%c9_346, %c1_347, %c0_348], %522 {strides = array<i32>} : memref<18x18x32xf32, #tpu.memory_space<vmem>>, vector<8x16x32xf32>,
    %c0_349 = arith.constant 0 : index
    %c0_350 = arith.constant 0 : index
    %c0_351 = arith.constant 0 : index
    %524 = tpu.strided_load %arg11[%c0_349, %c0_350, %c0_351] {strides = array<i32: 2, 2, 1>} : memref<18x18x32xf32, #tpu.memory_space<vmem>>, vector<8x8x32xf32>
    %c0_352 = arith.constant 0 : index
    %c1_353 = arith.constant 1 : index
    %c0_354 = arith.constant 0 : index
    %525 = tpu.strided_load %arg11[%c0_352, %c1_353, %c0_354] {strides = array<i32: 2, 2, 1>} : memref<18x18x32xf32, #tpu.memory_space<vmem>>, vector<8x8x32xf32>
    %526 = arith.maximumf %524, %525 : vector<8x8x32xf32>
    %c0_355 = arith.constant 0 : index
    %c2_356 = arith.constant 2 : index
    %c0_357 = arith.constant 0 : index
    %527 = tpu.strided_load %arg11[%c0_355, %c2_356, %c0_357] {strides = array<i32: 2, 2, 1>} : memref<18x18x32xf32, #tpu.memory_space<vmem>>, vector<8x8x32xf32>
    %528 = arith.maximumf %526, %527 : vector<8x8x32xf32>
    %c1_358 = arith.constant 1 : index
    %c0_359 = arith.constant 0 : index
    %c0_360 = arith.constant 0 : index
    %529 = tpu.strided_load %arg11[%c1_358, %c0_359, %c0_360] {strides = array<i32: 2, 2, 1>} : memref<18x18x32xf32, #tpu.memory_space<vmem>>, vector<8x8x32xf32>
    %530 = arith.maximumf %528, %529 : vector<8x8x32xf32>
    %c1_361 = arith.constant 1 : index
    %c1_362 = arith.constant 1 : index
    %c0_363 = arith.constant 0 : index
    %531 = tpu.strided_load %arg11[%c1_361, %c1_362, %c0_363] {strides = array<i32: 2, 2, 1>} : memref<18x18x32xf32, #tpu.memory_space<vmem>>, vector<8x8x32xf32>
    %532 = arith.maximumf %530, %531 : vector<8x8x32xf32>
    %c1_364 = arith.constant 1 : index
    %c2_365 = arith.constant 2 : index
    %c0_366 = arith.constant 0 : index
    %533 = tpu.strided_load %arg11[%c1_364, %c2_365, %c0_366] {strides = array<i32: 2, 2, 1>} : memref<18x18x32xf32, #tpu.memory_space<vmem>>, vector<8x8x32xf32>
    %534 = arith.maximumf %532, %533 : vector<8x8x32xf32>
    %c2_367 = arith.constant 2 : index
    %c0_368 = arith.constant 0 : index
    %c0_369 = arith.constant 0 : index
    %535 = tpu.strided_load %arg11[%c2_367, %c0_368, %c0_369] {strides = array<i32: 2, 2, 1>} : memref<18x18x32xf32, #tpu.memory_space<vmem>>, vector<8x8x32xf32>
    %536 = arith.maximumf %534, %535 : vector<8x8x32xf32>
    %c2_370 = arith.constant 2 : index
    %c1_371 = arith.constant 1 : index
    %c0_372 = arith.constant 0 : index
    %537 = tpu.strided_load %arg11[%c2_370, %c1_371, %c0_372] {strides = array<i32: 2, 2, 1>} : memref<18x18x32xf32, #tpu.memory_space<vmem>>, vector<8x8x32xf32>
    %538 = arith.maximumf %536, %537 : vector<8x8x32xf32>
    %c2_373 = arith.constant 2 : index
    %c2_374 = arith.constant 2 : index
    %c0_375 = arith.constant 0 : index
    %539 = tpu.strided_load %arg11[%c2_373, %c2_374, %c0_375] {strides = array<i32: 2, 2, 1>} : memref<18x18x32xf32, #tpu.memory_space<vmem>>, vector<8x8x32xf32>
    %540 = arith.maximumf %538, %539 : vector<8x8x32xf32>
    %c0_376 = arith.constant 0 : index
    %c0_377 = arith.constant 0 : index
    %c0_378 = arith.constant 0 : index
    %c0_379 = arith.constant 0 : index
    %541 = tpu.strided_load %arg1[%c0_376, %c0_377, %c0_378, %c0_379] {strides = array<i32: 1, 2, 2, 1>} : memref<2x16x16x16xf32, #tpu.memory_space<vmem>>, vector<2x8x8x16xf32>
    %542 = vector.shape_cast %541 : vector<2x8x8x16xf32> to vector<128x16xf32>
    %543 = arith.truncf %542 : vector<128x16xf32> to vector<128x16xbf16>
    %cst_380 = arith.constant dense<0.000000e+00> : vector<128x32xf32>
    %544 = tpu.matmul %543, %60, %cst_380 {dimension_numbers = #tpu.dot_dimension_numbers<[1], [0], [0], [1], [0, 0, 1, 1], [], []>} : vector<128x16xbf16>, vector<16x32xbf16>, vector<128x32xf32> -> vector<128x32xf32>
    %545 = vector.broadcast %64 : vector<1x32xf32> to vector<128x32xf32>
    %546 = arith.addf %544, %545 : vector<128x32xf32>
    %547 = vector.shape_cast %546 : vector<128x32xf32> to vector<2x8x8x32xf32>
    %548 = vector.extract_strided_slice %547 {offsets = [0, 0, 0, 0], sizes = [1, 8, 8, 32], strides = [1, 1, 1, 1]} : vector<2x8x8x32xf32> to vector<1x8x8x32xf32>
    %549 = vector.shape_cast %548 : vector<1x8x8x32xf32> to vector<8x8x32xf32>
    %550 = arith.addf %302, %549 : vector<8x8x32xf32>
    %551 = vector.extract_strided_slice %550 {offsets = [0, 0, 0], sizes = [8, 1, 32], strides = [1, 1, 1]} : vector<8x8x32xf32> to vector<8x1x32xf32>
    %552 = vector.shape_cast %551 : vector<8x1x32xf32> to vector<8x32xf32>
    %c0_381 = arith.constant 0 : index
    %c0_382 = arith.constant 0 : index
    %c0_383 = arith.constant 0 : index
    %553 = vector.load %arg8[%c0_381, %c0_382, %c0_383] : memref<2x8x256xf32, #tpu.memory_space<vmem>>, vector<1x8x32xf32>
    %554 = vector.shape_cast %553 : vector<1x8x32xf32> to vector<8x32xf32>
    %555 = vector.shape_cast %552 : vector<8x32xf32> to vector<1x8x32xf32>
    tpu.vector_store %arg8[%c0_381, %c0_382, %c0_383], %555 {strides = array<i32>} : memref<2x8x256xf32, #tpu.memory_space<vmem>>, vector<1x8x32xf32>,
    %556 = vector.extract_strided_slice %550 {offsets = [0, 1, 0], sizes = [8, 1, 32], strides = [1, 1, 1]} : vector<8x8x32xf32> to vector<8x1x32xf32>
    %557 = vector.shape_cast %556 : vector<8x1x32xf32> to vector<8x32xf32>
    %c0_384 = arith.constant 0 : index
    %c0_385 = arith.constant 0 : index
    %c32 = arith.constant 32 : index
    %558 = vector.load %arg8[%c0_384, %c0_385, %c32] : memref<2x8x256xf32, #tpu.memory_space<vmem>>, vector<1x8x32xf32>
    %559 = vector.shape_cast %558 : vector<1x8x32xf32> to vector<8x32xf32>
    %560 = vector.shape_cast %557 : vector<8x32xf32> to vector<1x8x32xf32>
    tpu.vector_store %arg8[%c0_384, %c0_385, %c32], %560 {strides = array<i32>} : memref<2x8x256xf32, #tpu.memory_space<vmem>>, vector<1x8x32xf32>,
    %561 = vector.extract_strided_slice %550 {offsets = [0, 2, 0], sizes = [8, 1, 32], strides = [1, 1, 1]} : vector<8x8x32xf32> to vector<8x1x32xf32>
    %562 = vector.shape_cast %561 : vector<8x1x32xf32> to vector<8x32xf32>
    %c0_386 = arith.constant 0 : index
    %c0_387 = arith.constant 0 : index
    %c64 = arith.constant 64 : index
    %563 = vector.load %arg8[%c0_386, %c0_387, %c64] : memref<2x8x256xf32, #tpu.memory_space<vmem>>, vector<1x8x32xf32>
    %564 = vector.shape_cast %563 : vector<1x8x32xf32> to vector<8x32xf32>
    %565 = vector.shape_cast %562 : vector<8x32xf32> to vector<1x8x32xf32>
    tpu.vector_store %arg8[%c0_386, %c0_387, %c64], %565 {strides = array<i32>} : memref<2x8x256xf32, #tpu.memory_space<vmem>>, vector<1x8x32xf32>,
    %566 = vector.extract_strided_slice %550 {offsets = [0, 3, 0], sizes = [8, 1, 32], strides = [1, 1, 1]} : vector<8x8x32xf32> to vector<8x1x32xf32>
    %567 = vector.shape_cast %566 : vector<8x1x32xf32> to vector<8x32xf32>
    %c0_388 = arith.constant 0 : index
    %c0_389 = arith.constant 0 : index
    %c96 = arith.constant 96 : index
    %568 = vector.load %arg8[%c0_388, %c0_389, %c96] : memref<2x8x256xf32, #tpu.memory_space<vmem>>, vector<1x8x32xf32>
    %569 = vector.shape_cast %568 : vector<1x8x32xf32> to vector<8x32xf32>
    %570 = vector.shape_cast %567 : vector<8x32xf32> to vector<1x8x32xf32>
    tpu.vector_store %arg8[%c0_388, %c0_389, %c96], %570 {strides = array<i32>} : memref<2x8x256xf32, #tpu.memory_space<vmem>>, vector<1x8x32xf32>,
    %571 = vector.extract_strided_slice %550 {offsets = [0, 4, 0], sizes = [8, 1, 32], strides = [1, 1, 1]} : vector<8x8x32xf32> to vector<8x1x32xf32>
    %572 = vector.shape_cast %571 : vector<8x1x32xf32> to vector<8x32xf32>
    %c0_390 = arith.constant 0 : index
    %c0_391 = arith.constant 0 : index
    %c128 = arith.constant 128 : index
    %573 = vector.load %arg8[%c0_390, %c0_391, %c128] : memref<2x8x256xf32, #tpu.memory_space<vmem>>, vector<1x8x32xf32>
    %574 = vector.shape_cast %573 : vector<1x8x32xf32> to vector<8x32xf32>
    %575 = vector.shape_cast %572 : vector<8x32xf32> to vector<1x8x32xf32>
    tpu.vector_store %arg8[%c0_390, %c0_391, %c128], %575 {strides = array<i32>} : memref<2x8x256xf32, #tpu.memory_space<vmem>>, vector<1x8x32xf32>,
    %576 = vector.extract_strided_slice %550 {offsets = [0, 5, 0], sizes = [8, 1, 32], strides = [1, 1, 1]} : vector<8x8x32xf32> to vector<8x1x32xf32>
    %577 = vector.shape_cast %576 : vector<8x1x32xf32> to vector<8x32xf32>
    %c0_392 = arith.constant 0 : index
    %c0_393 = arith.constant 0 : index
    %c160 = arith.constant 160 : index
    %578 = vector.load %arg8[%c0_392, %c0_393, %c160] : memref<2x8x256xf32, #tpu.memory_space<vmem>>, vector<1x8x32xf32>
    %579 = vector.shape_cast %578 : vector<1x8x32xf32> to vector<8x32xf32>
    %580 = vector.shape_cast %577 : vector<8x32xf32> to vector<1x8x32xf32>
    tpu.vector_store %arg8[%c0_392, %c0_393, %c160], %580 {strides = array<i32>} : memref<2x8x256xf32, #tpu.memory_space<vmem>>, vector<1x8x32xf32>,
    %581 = vector.extract_strided_slice %550 {offsets = [0, 6, 0], sizes = [8, 1, 32], strides = [1, 1, 1]} : vector<8x8x32xf32> to vector<8x1x32xf32>
    %582 = vector.shape_cast %581 : vector<8x1x32xf32> to vector<8x32xf32>
    %c0_394 = arith.constant 0 : index
    %c0_395 = arith.constant 0 : index
    %c192 = arith.constant 192 : index
    %583 = vector.load %arg8[%c0_394, %c0_395, %c192] : memref<2x8x256xf32, #tpu.memory_space<vmem>>, vector<1x8x32xf32>
    %584 = vector.shape_cast %583 : vector<1x8x32xf32> to vector<8x32xf32>
    %585 = vector.shape_cast %582 : vector<8x32xf32> to vector<1x8x32xf32>
    tpu.vector_store %arg8[%c0_394, %c0_395, %c192], %585 {strides = array<i32>} : memref<2x8x256xf32, #tpu.memory_space<vmem>>, vector<1x8x32xf32>,
    %586 = vector.extract_strided_slice %550 {offsets = [0, 7, 0], sizes = [8, 1, 32], strides = [1, 1, 1]} : vector<8x8x32xf32> to vector<8x1x32xf32>
    %587 = vector.shape_cast %586 : vector<8x1x32xf32> to vector<8x32xf32>
    %c0_396 = arith.constant 0 : index
    %c0_397 = arith.constant 0 : index
    %c224 = arith.constant 224 : index
    %588 = vector.load %arg8[%c0_396, %c0_397, %c224] : memref<2x8x256xf32, #tpu.memory_space<vmem>>, vector<1x8x32xf32>
    %589 = vector.shape_cast %588 : vector<1x8x32xf32> to vector<8x32xf32>
    %590 = vector.shape_cast %587 : vector<8x32xf32> to vector<1x8x32xf32>
    tpu.vector_store %arg8[%c0_396, %c0_397, %c224], %590 {strides = array<i32>} : memref<2x8x256xf32, #tpu.memory_space<vmem>>, vector<1x8x32xf32>,
    %591 = vector.extract_strided_slice %547 {offsets = [1, 0, 0, 0], sizes = [1, 8, 8, 32], strides = [1, 1, 1, 1]} : vector<2x8x8x32xf32> to vector<1x8x8x32xf32>
    %592 = vector.shape_cast %591 : vector<1x8x8x32xf32> to vector<8x8x32xf32>
    %593 = arith.addf %540, %592 : vector<8x8x32xf32>
    %594 = vector.extract_strided_slice %593 {offsets = [0, 0, 0], sizes = [8, 1, 32], strides = [1, 1, 1]} : vector<8x8x32xf32> to vector<8x1x32xf32>
    %595 = vector.shape_cast %594 : vector<8x1x32xf32> to vector<8x32xf32>
    %c1_398 = arith.constant 1 : index
    %c0_399 = arith.constant 0 : index
    %c0_400 = arith.constant 0 : index
    %596 = vector.load %arg8[%c1_398, %c0_399, %c0_400] : memref<2x8x256xf32, #tpu.memory_space<vmem>>, vector<1x8x32xf32>
    %597 = vector.shape_cast %596 : vector<1x8x32xf32> to vector<8x32xf32>
    %598 = vector.shape_cast %595 : vector<8x32xf32> to vector<1x8x32xf32>
    tpu.vector_store %arg8[%c1_398, %c0_399, %c0_400], %598 {strides = array<i32>} : memref<2x8x256xf32, #tpu.memory_space<vmem>>, vector<1x8x32xf32>,
    %599 = vector.extract_strided_slice %593 {offsets = [0, 1, 0], sizes = [8, 1, 32], strides = [1, 1, 1]} : vector<8x8x32xf32> to vector<8x1x32xf32>
    %600 = vector.shape_cast %599 : vector<8x1x32xf32> to vector<8x32xf32>
    %c1_401 = arith.constant 1 : index
    %c0_402 = arith.constant 0 : index
    %c32_403 = arith.constant 32 : index
    %601 = vector.load %arg8[%c1_401, %c0_402, %c32_403] : memref<2x8x256xf32, #tpu.memory_space<vmem>>, vector<1x8x32xf32>
    %602 = vector.shape_cast %601 : vector<1x8x32xf32> to vector<8x32xf32>
    %603 = vector.shape_cast %600 : vector<8x32xf32> to vector<1x8x32xf32>
    tpu.vector_store %arg8[%c1_401, %c0_402, %c32_403], %603 {strides = array<i32>} : memref<2x8x256xf32, #tpu.memory_space<vmem>>, vector<1x8x32xf32>,
    %604 = vector.extract_strided_slice %593 {offsets = [0, 2, 0], sizes = [8, 1, 32], strides = [1, 1, 1]} : vector<8x8x32xf32> to vector<8x1x32xf32>
    %605 = vector.shape_cast %604 : vector<8x1x32xf32> to vector<8x32xf32>
    %c1_404 = arith.constant 1 : index
    %c0_405 = arith.constant 0 : index
    %c64_406 = arith.constant 64 : index
    %606 = vector.load %arg8[%c1_404, %c0_405, %c64_406] : memref<2x8x256xf32, #tpu.memory_space<vmem>>, vector<1x8x32xf32>
    %607 = vector.shape_cast %606 : vector<1x8x32xf32> to vector<8x32xf32>
    %608 = vector.shape_cast %605 : vector<8x32xf32> to vector<1x8x32xf32>
    tpu.vector_store %arg8[%c1_404, %c0_405, %c64_406], %608 {strides = array<i32>} : memref<2x8x256xf32, #tpu.memory_space<vmem>>, vector<1x8x32xf32>,
    %609 = vector.extract_strided_slice %593 {offsets = [0, 3, 0], sizes = [8, 1, 32], strides = [1, 1, 1]} : vector<8x8x32xf32> to vector<8x1x32xf32>
    %610 = vector.shape_cast %609 : vector<8x1x32xf32> to vector<8x32xf32>
    %c1_407 = arith.constant 1 : index
    %c0_408 = arith.constant 0 : index
    %c96_409 = arith.constant 96 : index
    %611 = vector.load %arg8[%c1_407, %c0_408, %c96_409] : memref<2x8x256xf32, #tpu.memory_space<vmem>>, vector<1x8x32xf32>
    %612 = vector.shape_cast %611 : vector<1x8x32xf32> to vector<8x32xf32>
    %613 = vector.shape_cast %610 : vector<8x32xf32> to vector<1x8x32xf32>
    tpu.vector_store %arg8[%c1_407, %c0_408, %c96_409], %613 {strides = array<i32>} : memref<2x8x256xf32, #tpu.memory_space<vmem>>, vector<1x8x32xf32>,
    %614 = vector.extract_strided_slice %593 {offsets = [0, 4, 0], sizes = [8, 1, 32], strides = [1, 1, 1]} : vector<8x8x32xf32> to vector<8x1x32xf32>
    %615 = vector.shape_cast %614 : vector<8x1x32xf32> to vector<8x32xf32>
    %c1_410 = arith.constant 1 : index
    %c0_411 = arith.constant 0 : index
    %c128_412 = arith.constant 128 : index
    %616 = vector.load %arg8[%c1_410, %c0_411, %c128_412] : memref<2x8x256xf32, #tpu.memory_space<vmem>>, vector<1x8x32xf32>
    %617 = vector.shape_cast %616 : vector<1x8x32xf32> to vector<8x32xf32>
    %618 = vector.shape_cast %615 : vector<8x32xf32> to vector<1x8x32xf32>
    tpu.vector_store %arg8[%c1_410, %c0_411, %c128_412], %618 {strides = array<i32>} : memref<2x8x256xf32, #tpu.memory_space<vmem>>, vector<1x8x32xf32>,
    %619 = vector.extract_strided_slice %593 {offsets = [0, 5, 0], sizes = [8, 1, 32], strides = [1, 1, 1]} : vector<8x8x32xf32> to vector<8x1x32xf32>
    %620 = vector.shape_cast %619 : vector<8x1x32xf32> to vector<8x32xf32>
    %c1_413 = arith.constant 1 : index
    %c0_414 = arith.constant 0 : index
    %c160_415 = arith.constant 160 : index
    %621 = vector.load %arg8[%c1_413, %c0_414, %c160_415] : memref<2x8x256xf32, #tpu.memory_space<vmem>>, vector<1x8x32xf32>
    %622 = vector.shape_cast %621 : vector<1x8x32xf32> to vector<8x32xf32>
    %623 = vector.shape_cast %620 : vector<8x32xf32> to vector<1x8x32xf32>
    tpu.vector_store %arg8[%c1_413, %c0_414, %c160_415], %623 {strides = array<i32>} : memref<2x8x256xf32, #tpu.memory_space<vmem>>, vector<1x8x32xf32>,
    %624 = vector.extract_strided_slice %593 {offsets = [0, 6, 0], sizes = [8, 1, 32], strides = [1, 1, 1]} : vector<8x8x32xf32> to vector<8x1x32xf32>
    %625 = vector.shape_cast %624 : vector<8x1x32xf32> to vector<8x32xf32>
    %c1_416 = arith.constant 1 : index
    %c0_417 = arith.constant 0 : index
    %c192_418 = arith.constant 192 : index
    %626 = vector.load %arg8[%c1_416, %c0_417, %c192_418] : memref<2x8x256xf32, #tpu.memory_space<vmem>>, vector<1x8x32xf32>
    %627 = vector.shape_cast %626 : vector<1x8x32xf32> to vector<8x32xf32>
    %628 = vector.shape_cast %625 : vector<8x32xf32> to vector<1x8x32xf32>
    tpu.vector_store %arg8[%c1_416, %c0_417, %c192_418], %628 {strides = array<i32>} : memref<2x8x256xf32, #tpu.memory_space<vmem>>, vector<1x8x32xf32>,
    %629 = vector.extract_strided_slice %593 {offsets = [0, 7, 0], sizes = [8, 1, 32], strides = [1, 1, 1]} : vector<8x8x32xf32> to vector<8x1x32xf32>
    %630 = vector.shape_cast %629 : vector<8x1x32xf32> to vector<8x32xf32>
    %c1_419 = arith.constant 1 : index
    %c0_420 = arith.constant 0 : index
    %c224_421 = arith.constant 224 : index
    %631 = vector.load %arg8[%c1_419, %c0_420, %c224_421] : memref<2x8x256xf32, #tpu.memory_space<vmem>>, vector<1x8x32xf32>
    %632 = vector.shape_cast %631 : vector<1x8x32xf32> to vector<8x32xf32>
    %633 = vector.shape_cast %630 : vector<8x32xf32> to vector<1x8x32xf32>
    tpu.vector_store %arg8[%c1_419, %c0_420, %c224_421], %633 {strides = array<i32>} : memref<2x8x256xf32, #tpu.memory_space<vmem>>, vector<1x8x32xf32>,
    return
  }
  func.func @transform_0(%arg0: i32) -> (i32, i32, i32, i32) {
    %c0_i32 = arith.constant 0 : i32
    %c0_i32_0 = arith.constant 0 : i32
    %c0_i32_1 = arith.constant 0 : i32
    %c0_i32_2 = arith.constant 0 : i32
    return %arg0, %c0_i32, %c0_i32_0, %c0_i32_1 : i32, i32, i32, i32
  }
  func.func @transform_1(%arg0: i32) -> (i32, i32, i32) {
    %c0_i32 = arith.constant 0 : i32
    %c0_i32_0 = arith.constant 0 : i32
    %c0_i32_1 = arith.constant 0 : i32
    %c0_i32_2 = arith.constant 0 : i32
    return %c0_i32, %c0_i32_0, %c0_i32_1 : i32, i32, i32
  }
  func.func @transform_2(%arg0: i32) -> (i32, i32) {
    %c0_i32 = arith.constant 0 : i32
    %c0_i32_0 = arith.constant 0 : i32
    %c0_i32_1 = arith.constant 0 : i32
    return %c0_i32, %c0_i32_0 : i32, i32
  }
  func.func @transform_3(%arg0: i32) -> (i32, i32, i32) {
    %c0_i32 = arith.constant 0 : i32
    %c0_i32_0 = arith.constant 0 : i32
    %c0_i32_1 = arith.constant 0 : i32
    %c0_i32_2 = arith.constant 0 : i32
    return %c0_i32, %c0_i32_0, %c0_i32_1 : i32, i32, i32
  }
  func.func @transform_4(%arg0: i32) -> (i32, i32) {
    %c0_i32 = arith.constant 0 : i32
    %c0_i32_0 = arith.constant 0 : i32
    %c0_i32_1 = arith.constant 0 : i32
    return %c0_i32, %c0_i32_0 : i32, i32
  }
  func.func @transform_5(%arg0: i32) -> (i32, i32) {
    %c0_i32 = arith.constant 0 : i32
    %c0_i32_0 = arith.constant 0 : i32
    %c0_i32_1 = arith.constant 0 : i32
    return %c0_i32, %c0_i32_0 : i32, i32
  }
  func.func @transform_6(%arg0: i32) -> (i32, i32) {
    %c0_i32 = arith.constant 0 : i32
    %c0_i32_0 = arith.constant 0 : i32
    %c0_i32_1 = arith.constant 0 : i32
    return %c0_i32, %c0_i32_0 : i32, i32
  }
  func.func @transform_7(%arg0: i32) -> (i32, i32, i32) {
    %c0_i32 = arith.constant 0 : i32
    %c0_i32_0 = arith.constant 0 : i32
    %c0_i32_1 = arith.constant 0 : i32
    return %arg0, %c0_i32, %c0_i32_0 : i32, i32, i32
  }
}

</mosaic_0001>

<llo_original>
// kernel: block_forward.1
$region0: #{block_forward.1}
  #allocation0 [shape = 'u32[]', space=smem, size = 0x4, offset = 0x4, fixed_abs, tag = 'smem constant byte address 0x4 - core index']
  #allocation1 [shape = 'u32[144,128]{1,0:T(1,128)}', space=vmem, size = 0x12000, scoped, tag = 'internal scratch']
  #allocation2 [shape = 'f32[18,18,16]{2,1,0:T(8,128)}', space=vmem, size = 0x36000, scoped, tag = 'scratch operand']
  #allocation3 [shape = 'f32[18,18,32]{2,1,0:T(8,128)}', space=vmem, size = 0x36000, scoped, tag = 'scratch operand']
  #allocation4 [shape = 'f32[18,18,32]{2,1,0:T(8,128)}', space=vmem, size = 0x36000, scoped, tag = 'scratch operand']
  %s0 = inlined_call_operand.hbm [shape: f32[4,16,16,16], index: 0, kind: input, shape index: {}]
  %s1 = inlined_call_operand.vmem [shape: f32[3,3,16], index: 1, kind: input, shape index: {}]
  %s2 = inlined_call_operand.vmem [shape: bf16[16,32], index: 2, kind: input, shape index: {}]
  %s3 = inlined_call_operand.vmem [shape: f32[3,3,32], index: 3, kind: input, shape index: {}]
  %s4 = inlined_call_operand.vmem [shape: bf16[32,32], index: 4, kind: input, shape index: {}]
  %s5 = inlined_call_operand.vmem [shape: bf16[16,32], index: 5, kind: input, shape index: {}]
  %s6 = inlined_call_operand.vmem [shape: f32[3,32], index: 6, kind: input, shape index: {}]
  %s7 = inlined_call_operand.vmem [shape: f32[4,8,256], index: 7, kind: output, shape index: {}]
  %s8 = sld [smem:[#allocation0]]
  $region65: #{block_forward.1} parent=0
    _
  %s10 = ssub.s32 1, %s8
  %s11 = scalar_select 0, %s10, %s8
  $region1: #{block_forward.1} parent=0
    #allocation5 [shape = 'u8[524288]{0}', space=vmem, size = 0x80000, scoped, tag = 'input window, operand 0']
    #allocation6 [shape = 's32[2]{0}', space=sflag, size = 0x8, scoped, tag = 'scoped memory for block_forward.1']
    %12 = vsyncpa [#allocation6], 0
    %s13 = scalar_lea.sflag [#allocation6], 1
    %14 = vsyncpa %s13, 0
    loop: start=0, step=1, limit=4
    $region2: #{block_forward.1} parent=1 // loop_pre_header
      _
    $region3: #{block_forward.1} parent=1 // loop_header
      %s16 = sphi 0, %s20
      %p17 = scmp.ge.s32.totalorder %s16, 4
      %s26 = sphi 0, %s28
      %s29 = sphi 0, %s26
      %s30 = sphi 0, %s29
      %s46 = sphi 0, %s30
      %s50 = sphi 0, %s50
      %s52 = sphi 0, %s50
      %s53 = sphi 0, %s52
      %s67 = sphi 0, %s53
      %s71 = sphi 0, %s71
      %s73 = sphi 0, %s71
      %s74 = sphi 0, %s73
      %s88 = sphi 0, %s74
      %s92 = sphi 0, %s92
      %s94 = sphi 0, %s92
      %s95 = sphi 0, %s94
      %s109 = sphi 0, %s95
      %s113 = sphi 0, %s113
      %s115 = sphi 0, %s113
      %s116 = sphi 0, %s115
      %s130 = sphi 0, %s116
      %s134 = sphi 0, %s134
      %s136 = sphi 0, %s134
      %s137 = sphi 0, %s136
      %s151 = sphi 0, %s137
      %s155 = sphi 0, %s155
      %s157 = sphi 0, %s155
      %s158 = sphi 0, %s157
      %s172 = sphi 0, %s158
      %s178 = sphi 0, %s180
      %s181 = sphi 0, %s178
      %s182 = sphi 0, %s181
      %s198 = sphi 0, %s182
    $region4: #{block_forward.1} parent=1 // loop_header_branch
      %19 = sbr.rel (%p17) target = $region8
    $region5: #{block_forward.1} parent=1 // loop_body
      %s21 = ssub.s32 %s16, 1
      %s22 = ssub.s32 %s16, 2
      %s23 = sadd.s32 %s16, 1
      %s24 = ssub.s32 %s16, %s23
      %p25 = scmp.eq.s32.totalorder %s24, 0
      %s27 = sadd.s32 %s26, 1
      %s28 = scalar_select %p25, %s26, %s27
      %p31 = pneg %p25
      %p32 = scmp.eq.s32.totalorder %s16, 1
      %p33 = por %p31, %p32
      %p34 = scmp.ne.s32.totalorder %s26, %s29
      %p35 = scmp.eq.s32.totalorder %s16, 0
      %p36 = por %p34, %p35
      %p37 = scmp.ne.s32.totalorder %s26, %s29
      %p38 = scmp.eq.s32.totalorder %s21, 1
      %p39 = por %p37, %p38
      %p40 = scmp.ne.s32.totalorder %s29, %s30
      %p41 = scmp.eq.s32.totalorder %s21, 0
      %p42 = por %p40, %p41
      %p43 = scmp.ne.s32.totalorder %s29, %s30
      %p44 = scmp.eq.s32.totalorder %s22, 1
      %p45 = por %p43, %p44
      %p47 = scmp.ne.s32.totalorder %s30, %s46
      %p48 = scmp.eq.s32.totalorder %s22, 0
      %p49 = por %p47, %p48
      %s51 = sadd.s32 %s50, 1
      %p54 = scmp.eq.s32.totalorder %s16, 1
      %p55 = scmp.ne.s32.totalorder %s50, %s52
      %p56 = scmp.eq.s32.totalorder %s16, 0
      %p57 = por %p55, %p56
      %p58 = scmp.ne.s32.totalorder %s50, %s52
      %p59 = scmp.eq.s32.totalorder %s21, 1
      %p60 = por %p58, %p59
      %p61 = scmp.ne.s32.totalorder %s52, %s53
      %p62 = scmp.eq.s32.totalorder %s21, 0
      %p63 = por %p61, %p62
      %p64 = scmp.ne.s32.totalorder %s52, %s53
      %p65 = scmp.eq.s32.totalorder %s22, 1
      %p66 = por %p64, %p65
      %p68 = scmp.ne.s32.totalorder %s53, %s67
      %p69 = scmp.eq.s32.totalorder %s22, 0
      %p70 = por %p68, %p69
      %s72 = sadd.s32 %s71, 1
      %p75 = scmp.eq.s32.totalorder %s16, 1
      %p76 = scmp.ne.s32.totalorder %s71, %s73
      %p77 = scmp.eq.s32.totalorder %s16, 0
      %p78 = por %p76, %p77
      %p79 = scmp.ne.s32.totalorder %s71, %s73
      %p80 = scmp.eq.s32.totalorder %s21, 1
      %p81 = por %p79, %p80
      %p82 = scmp.ne.s32.totalorder %s73, %s74
      %p83 = scmp.eq.s32.totalorder %s21, 0
      %p84 = por %p82, %p83
      %p85 = scmp.ne.s32.totalorder %s73, %s74
      %p86 = scmp.eq.s32.totalorder %s22, 1
      %p87 = por %p85, %p86
      %p89 = scmp.ne.s32.totalorder %s74, %s88
      %p90 = scmp.eq.s32.totalorder %s22, 0
      %p91 = por %p89, %p90
      %s93 = sadd.s32 %s92, 1
      %p96 = scmp.eq.s32.totalorder %s16, 1
      %p97 = scmp.ne.s32.totalorder %s92, %s94
      %p98 = scmp.eq.s32.totalorder %s16, 0
      %p99 = por %p97, %p98
      %p100 = scmp.ne.s32.totalorder %s92, %s94
      %p101 = scmp.eq.s32.totalorder %s21, 1
      %p102 = por %p100, %p101
      %p103 = scmp.ne.s32.totalorder %s94, %s95
      %p104 = scmp.eq.s32.totalorder %s21, 0
      %p105 = por %p103, %p104
      %p106 = scmp.ne.s32.totalorder %s94, %s95
      %p107 = scmp.eq.s32.totalorder %s22, 1
      %p108 = por %p106, %p107
      %p110 = scmp.ne.s32.totalorder %s95, %s109
      %p111 = scmp.eq.s32.totalorder %s22, 0
      %p112 = por %p110, %p111
      %s114 = sadd.s32 %s113, 1
      %p117 = scmp.eq.s32.totalorder %s16, 1
      %p118 = scmp.ne.s32.totalorder %s113, %s115
      %p119 = scmp.eq.s32.totalorder %s16, 0
      %p120 = por %p118, %p119
      %p121 = scmp.ne.s32.totalorder %s113, %s115
      %p122 = scmp.eq.s32.totalorder %s21, 1
      %p123 = por %p121, %p122
      %p124 = scmp.ne.s32.totalorder %s115, %s116
      %p125 = scmp.eq.s32.totalorder %s21, 0
      %p126 = por %p124, %p125
      %p127 = scmp.ne.s32.totalorder %s115, %s116
      %p128 = scmp.eq.s32.totalorder %s22, 1
      %p129 = por %p127, %p128
      %p131 = scmp.ne.s32.totalorder %s116, %s130
      %p132 = scmp.eq.s32.totalorder %s22, 0
      %p133 = por %p131, %p132
      %s135 = sadd.s32 %s134, 1
      %p138 = scmp.eq.s32.totalorder %s16, 1
      %p139 = scmp.ne.s32.totalorder %s134, %s136
      %p140 = scmp.eq.s32.totalorder %s16, 0
      %p141 = por %p139, %p140
      %p142 = scmp.ne.s32.totalorder %s134, %s136
      %p143 = scmp.eq.s32.totalorder %s21, 1
      %p144 = por %p142, %p143
      %p145 = scmp.ne.s32.totalorder %s136, %s137
      %p146 = scmp.eq.s32.totalorder %s21, 0
      %p147 = por %p145, %p146
      %p148 = scmp.ne.s32.totalorder %s136, %s137
      %p149 = scmp.eq.s32.totalorder %s22, 1
      %p150 = por %p148, %p149
      %p152 = scmp.ne.s32.totalorder %s137, %s151
      %p153 = scmp.eq.s32.totalorder %s22, 0
      %p154 = por %p152, %p153
      %s156 = sadd.s32 %s155, 1
      %p159 = scmp.eq.s32.totalorder %s16, 1
      %p160 = scmp.ne.s32.totalorder %s155, %s157
      %p161 = scmp.eq.s32.totalorder %s16, 0
      %p162 = por %p160, %p161
      %p163 = scmp.ne.s32.totalorder %s155, %s157
      %p164 = scmp.eq.s32.totalorder %s21, 1
      %p165 = por %p163, %p164
      %p166 = scmp.ne.s32.totalorder %s157, %s158
      %p167 = scmp.eq.s32.totalorder %s21, 0
      %p168 = por %p166, %p167
      %p169 = scmp.ne.s32.totalorder %s157, %s158
      %p170 = scmp.eq.s32.totalorder %s22, 1
      %p171 = por %p169, %p170
      %p173 = scmp.ne.s32.totalorder %s158, %s172
      %p174 = scmp.eq.s32.totalorder %s22, 0
      %p175 = por %p173, %p174
      %s176 = ssub.s32 %s16, %s23
      %p177 = scmp.eq.s32.totalorder %s176, 0
      %s179 = sadd.s32 %s178, 1
      %s180 = scalar_select %p177, %s178, %s179
      %p183 = pneg %p177
      %p184 = scmp.eq.s32.totalorder %s16, 1
      %p185 = por %p183, %p184
      %p186 = scmp.ne.s32.totalorder %s178, %s181
      %p187 = scmp.eq.s32.totalorder %s16, 0
      %p188 = por %p186, %p187
      %p189 = scmp.ne.s32.totalorder %s178, %s181
      %p190 = scmp.eq.s32.totalorder %s21, 1
      %p191 = por %p189, %p190
      %p192 = scmp.ne.s32.totalorder %s181, %s182
      %p193 = scmp.eq.s32.totalorder %s21, 0
      %p194 = por %p192, %p193
      %p195 = scmp.ne.s32.totalorder %s181, %s182
      %p196 = scmp.eq.s32.totalorder %s22, 1
      %p197 = por %p195, %p196
      %p199 = scmp.ne.s32.totalorder %s182, %s198
      %p200 = scmp.eq.s32.totalorder %s22, 0
      %p201 = por %p199, %p200
      %p202 = scmp.le.s32.totalorder 1, %s16
      %p203 = scmp.lt.s32.totalorder %s16, 3
      %p204 = pnand %p202, %p203
      %p205 = pneg %p204
      // Predicated region
      $region9: #{block_forward.1} parent=5 // pred_check
        _
      $region10: #{block_forward.1} parent=5 // pred_check_branch
        %207 = sbr.rel (%p204) target = $region12
      $region11: #{block_forward.1} parent=5 // pred_region
        %s208 = ssub.s32 %s16, 1
        // Predicated region
        $region13: #{block_forward.1} parent=11 // pred_check
          %p209 = pneg %p63
        $region14: #{block_forward.1} parent=11 // pred_check_branch
          %211 = sbr.rel (%p209) target = $region16
        $region15: #{block_forward.1} parent=11 // pred_region
          _
        $region16: #{block_forward.1} parent=11 // pred_fallthru
          _
        // Predicated region
        $region17: #{block_forward.1} parent=11 // pred_check
          %p212 = pneg %p84
        $region18: #{block_forward.1} parent=11 // pred_check_branch
          %214 = sbr.rel (%p212) target = $region20
        $region19: #{block_forward.1} parent=11 // pred_region
          _
        $region20: #{block_forward.1} parent=11 // pred_fallthru
          _
        // Predicated region
        $region21: #{block_forward.1} parent=11 // pred_check
          %p215 = pneg %p105
        $region22: #{block_forward.1} parent=11 // pred_check_branch
          %217 = sbr.rel (%p215) target = $region24
        $region23: #{block_forward.1} parent=11 // pred_region
          _
        $region24: #{block_forward.1} parent=11 // pred_fallthru
          _
        // Predicated region
        $region25: #{block_forward.1} parent=11 // pred_check
          %p218 = pneg %p126
        $region26: #{block_forward.1} parent=11 // pred_check_branch
          %220 = sbr.rel (%p218) target = $region28
        $region27: #{block_forward.1} parent=11 // pred_region
          _
        $region28: #{block_forward.1} parent=11 // pred_fallthru
          _
        // Predicated region
        $region29: #{block_forward.1} parent=11 // pred_check
          %p221 = pneg %p147
        $region30: #{block_forward.1} parent=11 // pred_check_branch
          %223 = sbr.rel (%p221) target = $region32
        $region31: #{block_forward.1} parent=11 // pred_region
          _
        $region32: #{block_forward.1} parent=11 // pred_fallthru
          _
        // Predicated region
        $region33: #{block_forward.1} parent=11 // pred_check
          %p224 = pneg %p168
        $region34: #{block_forward.1} parent=11 // pred_check_branch
          %226 = sbr.rel (%p224) target = $region36
        $region35: #{block_forward.1} parent=11 // pred_region
          _
        $region36: #{block_forward.1} parent=11 // pred_fallthru
          _
      $region12: #{block_forward.1} parent=5 // pred_fallthru
        _
      %p227 = scmp.lt.s32.totalorder %s16, 2
      // Predicated region
      $region37: #{block_forward.1} parent=5 // pred_check
        %p228 = pneg %p227
      $region38: #{block_forward.1} parent=5 // pred_check_branch
        %230 = sbr.rel (%p228) target = $region40
      $region39: #{block_forward.1} parent=5 // pred_region
        // Predicated region
        $region41: #{block_forward.1} parent=39 // pred_check
          %p231 = pneg %p36
        $region42: #{block_forward.1} parent=39 // pred_check_branch
          %233 = sbr.rel (%p231) target = $region44
        $region43: #{block_forward.1} parent=39 // pred_region
          %s234 = sand.u32 %s26, 1
          %s235 = scalar_lea.sflag [#allocation6], %s234
          %s236 = sand.u32 %s26, 1
          %s237 = smul.addr %s236, 512
          %s238 = scalar_lea.vmem [#allocation5], %s237
          %s239 = smul.u32 2, %s16
          %s241 = ssub.s32 8192, 8192
          %242 = vsyncadd %s235, %s241
          %s243 = smul.addr %s239, 32
          %s244 = smul.addr %s243, 128
          %s245 = scalar_lea.hbm %s0, %s244
          %s246 = sshll.u32 %s238, 4
          %s247 = int_to_ptr.vmem [resolvable:$true] %s246
          %252 = dma.hbm_to_vmem [thread:$0]  %s245, 8192, %s247, %s235, 128, 128, 8
        $region44: #{block_forward.1} parent=39 // pred_fallthru
          _
      $region40: #{block_forward.1} parent=5 // pred_fallthru
        _
      %p253 = scmp.le.s32.totalorder 1, %s16
      %p254 = scmp.lt.s32.totalorder %s16, 3
      %p255 = pnand %p253, %p254
      %p256 = pneg %p255
      // Predicated region
      $region45: #{block_forward.1} parent=5 // pred_check
        _
      $region46: #{block_forward.1} parent=5 // pred_check_branch
        %258 = sbr.rel (%p255) target = $region48
      $region47: #{block_forward.1} parent=5 // pred_region
        %s259 = ssub.s32 %s16, 1
        %s260 = sand.u32 %s29, 1
        %s261 = scalar_lea.sflag [#allocation6], %s260
        %s262 = sand.u32 %s29, 1
        %s263 = smul.addr %s262, 512
        %s264 = scalar_lea.vmem [#allocation5], %s263
        // Predicated region
        $region49: #{block_forward.1} parent=47 // pred_check
          %p265 = pneg %p42
        $region50: #{block_forward.1} parent=47 // pred_check_branch
          %267 = sbr.rel (%p265) target = $region52
        $region51: #{block_forward.1} parent=47 // pred_region
          %268 = dma.done %s261, 8192
        $region52: #{block_forward.1} parent=47 // pred_fallthru
          _
        %s269 = sand.u32 %s29, 1
        %s270 = scalar_lea.sflag [#allocation6], %s269
        %s271 = sand.u32 %s29, 1
        %s272 = smul.addr %s271, 512
        %s273 = scalar_lea.vmem [#allocation5], %s272
        %p274 = pneg %p42
        %p275 = pneg %p39
        %p276 = pneg %p63
        %p277 = pneg %p60
        %p278 = pneg %p84
        %p279 = pneg %p81
        %p280 = pneg %p105
        %p281 = pneg %p102
        %p282 = pneg %p126
        %p283 = pneg %p123
        %p284 = pneg %p147
        %p285 = pneg %p144
        %p286 = pneg %p168
        %p287 = pneg %p165
        %p288 = pneg %p194
        %p289 = pneg %p191
        %s290 = smul.u32 2, %s21
        %p291 = scmp.lt.s32.totalorder %s290, 3
        %s292 = scalar_select %p291, %s290, 3
        %s293 = smul.addr %s292, 2
        %s294 = smul.addr %s293, 8
        %s295 = scalar_lea.vmem %s7, %s294
        %s296 = smul.u32 2, %s21
        %s297 = smul.u32 2, %s21
        %p298 = scmp.lt.s32.totalorder %s297, 3
        %s299 = scalar_select %p298, %s297, 3
        %s300 = smul.addr %s299, 2
        %s301 = smul.addr %s300, 8
        %s302 = scalar_lea.vmem %s7, %s301
        %s303 = smul.u32 2, %s21
        %vm305 = vcmask 130048
        %306 = vst.msk [vmem:[#allocation2] sm:$0xff] %vm305, 0.0
        %307 = vst.msk [vmem:[#allocation2 + $0x8] sm:$0xff] %vm305, 0.0
        %vm308 = vcmask 123904
        %309 = vst.msk [vmem:[#allocation2 + $0x10] sm:$0x3] %vm308, 0.0
        %s310 = scalar_lea.vmem [#allocation2], 408
        %311 = vst.msk [vmem:[%s310] sm:$0xff] %vm305, 0.0
        %312 = vst.msk [vmem:[%s310 + $0x8] sm:$0xff] %vm305, 0.0
        %313 = vst.msk [vmem:[%s310 + $0x10] sm:$0x3] %vm308, 0.0
        %s314 = scalar_lea.vmem [#allocation2], 24
        %vm315 = vcmask 122880
        %316 = vst.msk [vmem:[%s314] sm:$0x1] %vm315, 0.0
        %317 = vst.msk [vmem:[%s314 + $0x18] sm:$0x1] %vm315, 0.0
        %318 = vst.msk [vmem:[%s314 + $0x30] sm:$0x1] %vm315, 0.0
        %319 = vst.msk [vmem:[%s314 + $0x48] sm:$0x1] %vm315, 0.0
        %320 = vst.msk [vmem:[%s314 + $0x60] sm:$0x1] %vm315, 0.0
        %321 = vst.msk [vmem:[%s314 + $0x78] sm:$0x1] %vm315, 0.0
        %322 = vst.msk [vmem:[%s314 + $0x90] sm:$0x1] %vm315, 0.0
        %323 = vst.msk [vmem:[%s314 + $0xa8] sm:$0x1] %vm315, 0.0
        %324 = vst.msk [vmem:[%s314 + $0xc0] sm:$0x1] %vm315, 0.0
        %325 = vst.msk [vmem:[%s314 + $0xd8] sm:$0x1] %vm315, 0.0
        %326 = vst.msk [vmem:[%s314 + $0xf0] sm:$0x1] %vm315, 0.0
        %327 = vst.msk [vmem:[%s314 + $0x108] sm:$0x1] %vm315, 0.0
        %328 = vst.msk [vmem:[%s314 + $0x120] sm:$0x1] %vm315, 0.0
        %329 = vst.msk [vmem:[%s314 + $0x138] sm:$0x1] %vm315, 0.0
        %330 = vst.msk [vmem:[%s314 + $0x150] sm:$0x1] %vm315, 0.0
        %331 = vst.msk [vmem:[%s314 + $0x168] sm:$0x1] %vm315, 0.0
        %332 = vst.msk [vmem:[%s314 + $0x11] sm:$0x1] %vm315, 0.0
        %333 = vst.msk [vmem:[%s314 + $0x29] sm:$0x1] %vm315, 0.0
        %334 = vst.msk [vmem:[%s314 + $0x41] sm:$0x1] %vm315, 0.0
        %335 = vst.msk [vmem:[%s314 + $0x59] sm:$0x1] %vm315, 0.0
        %336 = vst.msk [vmem:[%s314 + $0x71] sm:$0x1] %vm315, 0.0
        %337 = vst.msk [vmem:[%s314 + $0x89] sm:$0x1] %vm315, 0.0
        %338 = vst.msk [vmem:[%s314 + $0xa1] sm:$0x1] %vm315, 0.0
        %339 = vst.msk [vmem:[%s314 + $0xb9] sm:$0x1] %vm315, 0.0
        %340 = vst.msk [vmem:[%s314 + $0xd1] sm:$0x1] %vm315, 0.0
        %341 = vst.msk [vmem:[%s314 + $0xe9] sm:$0x1] %vm315, 0.0
        %342 = vst.msk [vmem:[%s314 + $0x101] sm:$0x1] %vm315, 0.0
        %343 = vst.msk [vmem:[%s314 + $0x119] sm:$0x1] %vm315, 0.0
        %344 = vst.msk [vmem:[%s314 + $0x131] sm:$0x1] %vm315, 0.0
        %345 = vst.msk [vmem:[%s314 + $0x149] sm:$0x1] %vm315, 0.0
        %346 = vst.msk [vmem:[%s314 + $0x161] sm:$0x1] %vm315, 0.0
        %347 = vst.msk [vmem:[%s314 + $0x179] sm:$0x1] %vm315, 0.0
        %vm348 = vcmask 261120
        %349 = vst.msk [vmem:[#allocation3] sm:$0xff] %vm348, 0.0
        %350 = vst.msk [vmem:[#allocation3 + $0x8] sm:$0xff] %vm348, 0.0
        %vm351 = vcmask 254976
        %352 = vst.msk [vmem:[#allocation3 + $0x10] sm:$0x3] %vm351, 0.0
        %s353 = scalar_lea.vmem [#allocation3], 408
        %354 = vst.msk [vmem:[%s353] sm:$0xff] %vm348, 0.0
        %355 = vst.msk [vmem:[%s353 + $0x8] sm:$0xff] %vm348, 0.0
        %356 = vst.msk [vmem:[%s353 + $0x10] sm:$0x3] %vm351, 0.0
        %s357 = scalar_lea.vmem [#allocation3], 24
        %vm358 = vcmask 253952
        %359 = vst.msk [vmem:[%s357] sm:$0x1] %vm358, 0.0
        %360 = vst.msk [vmem:[%s357 + $0x18] sm:$0x1] %vm358, 0.0
        %361 = vst.msk [vmem:[%s357 + $0x30] sm:$0x1] %vm358, 0.0
        %362 = vst.msk [vmem:[%s357 + $0x48] sm:$0x1] %vm358, 0.0
        %363 = vst.msk [vmem:[%s357 + $0x60] sm:$0x1] %vm358, 0.0
        %364 = vst.msk [vmem:[%s357 + $0x78] sm:$0x1] %vm358, 0.0
        %365 = vst.msk [vmem:[%s357 + $0x90] sm:$0x1] %vm358, 0.0
        %366 = vst.msk [vmem:[%s357 + $0xa8] sm:$0x1] %vm358, 0.0
        %367 = vst.msk [vmem:[%s357 + $0xc0] sm:$0x1] %vm358, 0.0
        %368 = vst.msk [vmem:[%s357 + $0xd8] sm:$0x1] %vm358, 0.0
        %369 = vst.msk [vmem:[%s357 + $0xf0] sm:$0x1] %vm358, 0.0
        %370 = vst.msk [vmem:[%s357 + $0x108] sm:$0x1] %vm358, 0.0
        %371 = vst.msk [vmem:[%s357 + $0x120] sm:$0x1] %vm358, 0.0
        %372 = vst.msk [vmem:[%s357 + $0x138] sm:$0x1] %vm358, 0.0
        %373 = vst.msk [vmem:[%s357 + $0x150] sm:$0x1] %vm358, 0.0
        %374 = vst.msk [vmem:[%s357 + $0x168] sm:$0x1] %vm358, 0.0
        %375 = vst.msk [vmem:[%s357 + $0x11] sm:$0x1] %vm358, 0.0
        %376 = vst.msk [vmem:[%s357 + $0x29] sm:$0x1] %vm358, 0.0
        %377 = vst.msk [vmem:[%s357 + $0x41] sm:$0x1] %vm358, 0.0
        %378 = vst.msk [vmem:[%s357 + $0x59] sm:$0x1] %vm358, 0.0
        %379 = vst.msk [vmem:[%s357 + $0x71] sm:$0x1] %vm358, 0.0
        %380 = vst.msk [vmem:[%s357 + $0x89] sm:$0x1] %vm358, 0.0
        %381 = vst.msk [vmem:[%s357 + $0xa1] sm:$0x1] %vm358, 0.0
        %382 = vst.msk [vmem:[%s357 + $0xb9] sm:$0x1] %vm358, 0.0
        %383 = vst.msk [vmem:[%s357 + $0xd1] sm:$0x1] %vm358, 0.0
        %384 = vst.msk [vmem:[%s357 + $0xe9] sm:$0x1] %vm358, 0.0
        %385 = vst.msk [vmem:[%s357 + $0x101] sm:$0x1] %vm358, 0.0
        %386 = vst.msk [vmem:[%s357 + $0x119] sm:$0x1] %vm358, 0.0
        %387 = vst.msk [vmem:[%s357 + $0x131] sm:$0x1] %vm358, 0.0
        %388 = vst.msk [vmem:[%s357 + $0x149] sm:$0x1] %vm358, 0.0
        %389 = vst.msk [vmem:[%s357 + $0x161] sm:$0x1] %vm358, 0.0
        %390 = vst.msk [vmem:[%s357 + $0x179] sm:$0x1] %vm358, 0.0
        %391 = vst.msk [vmem:[#allocation4] sm:$0xff] %vm348, -inf
        %392 = vst.msk [vmem:[#allocation4 + $0x8] sm:$0xff] %vm348, -inf
        %393 = vst.msk [vmem:[#allocation4 + $0x10] sm:$0x3] %vm351, -inf
        %s394 = scalar_lea.vmem [#allocation4], 24
        %395 = vst.msk [vmem:[%s394] sm:$0x1] %vm358, -inf
        %396 = vst.msk [vmem:[%s394 + $0x18] sm:$0x1] %vm358, -inf
        %397 = vst.msk [vmem:[%s394 + $0x30] sm:$0x1] %vm358, -inf
        %398 = vst.msk [vmem:[%s394 + $0x48] sm:$0x1] %vm358, -inf
        %399 = vst.msk [vmem:[%s394 + $0x60] sm:$0x1] %vm358, -inf
        %400 = vst.msk [vmem:[%s394 + $0x78] sm:$0x1] %vm358, -inf
        %401 = vst.msk [vmem:[%s394 + $0x90] sm:$0x1] %vm358, -inf
        %402 = vst.msk [vmem:[%s394 + $0xa8] sm:$0x1] %vm358, -inf
        %403 = vst.msk [vmem:[%s394 + $0xc0] sm:$0x1] %vm358, -inf
        %404 = vst.msk [vmem:[%s394 + $0xd8] sm:$0x1] %vm358, -inf
        %405 = vst.msk [vmem:[%s394 + $0xf0] sm:$0x1] %vm358, -inf
        %406 = vst.msk [vmem:[%s394 + $0x108] sm:$0x1] %vm358, -inf
        %407 = vst.msk [vmem:[%s394 + $0x120] sm:$0x1] %vm358, -inf
        %408 = vst.msk [vmem:[%s394 + $0x138] sm:$0x1] %vm358, -inf
        %409 = vst.msk [vmem:[%s394 + $0x150] sm:$0x1] %vm358, -inf
        %410 = vst.msk [vmem:[%s394 + $0x168] sm:$0x1] %vm358, -inf
        %v411 = vld [vmem:[%s1] sm:$0x7]
        %v412 = vld [vmem:[%s1 + $0x4] sm:$0x7]
        %v413 = vld [vmem:[%s1 + $0x8] sm:$0x7]
        %v414 = vld [vmem:[%s3] sm:$0x7]
        %v415 = vld [vmem:[%s3 + $0x4] sm:$0x7]
        %v416 = vld [vmem:[%s3 + $0x8] sm:$0x7]
        %v417 = vld [vmem:[%s2] sm:$0xf]
        %v418 = vld [vmem:[%s2 + $0x4] sm:$0xf]
        %v419 = vld [vmem:[%s4] sm:$0xf]
        %v420 = vld [vmem:[%s4 + $0x4] sm:$0xf]
        %v421 = vld [vmem:[%s4 + $0x8] sm:$0xf]
        %v422 = vld [vmem:[%s4 + $0xc] sm:$0xf]
        %v423 = vld [vmem:[%s5] sm:$0xf]
        %v424 = vld [vmem:[%s5 + $0x4] sm:$0xf]
        %v425 = vld [vmem:[%s6] sm:$0x7]
        %v426 = vld [vmem:[%s264] sm:$0xff]
        %v427 = vld [vmem:[%s264 + $0x8] sm:$0xff]
        %v428 = vld [vmem:[%s264 + $0x10] sm:$0xff]
        %v429 = vld [vmem:[%s264 + $0x18] sm:$0xff]
        %v430 = vld [vmem:[%s264 + $0x20] sm:$0xff]
        %v431 = vld [vmem:[%s264 + $0x28] sm:$0xff]
        %v432 = vld [vmem:[%s264 + $0x30] sm:$0xff]
        %v433 = vld [vmem:[%s264 + $0x38] sm:$0xff]
        %v434 = vld [vmem:[%s264 + $0x40] sm:$0xff]
        %v435 = vld [vmem:[%s264 + $0x48] sm:$0xff]
        %v436 = vld [vmem:[%s264 + $0x50] sm:$0xff]
        %v437 = vld [vmem:[%s264 + $0x58] sm:$0xff]
        %v438 = vld [vmem:[%s264 + $0x60] sm:$0xff]
        %v439 = vld [vmem:[%s264 + $0x68] sm:$0xff]
        %v440 = vld [vmem:[%s264 + $0x70] sm:$0xff]
        %v441 = vld [vmem:[%s264 + $0x78] sm:$0xff]
        %v442 = vld [vmem:[%s264 + $0x80] sm:$0xff]
        %v443 = vld [vmem:[%s264 + $0x88] sm:$0xff]
        %v444 = vld [vmem:[%s264 + $0x90] sm:$0xff]
        %v445 = vld [vmem:[%s264 + $0x98] sm:$0xff]
        %v446 = vld [vmem:[%s264 + $0xa0] sm:$0xff]
        %v447 = vld [vmem:[%s264 + $0xa8] sm:$0xff]
        %v448 = vld [vmem:[%s264 + $0xb0] sm:$0xff]
        %v449 = vld [vmem:[%s264 + $0xb8] sm:$0xff]
        %v450 = vld [vmem:[%s264 + $0xc0] sm:$0xff]
        %v451 = vld [vmem:[%s264 + $0xc8] sm:$0xff]
        %v452 = vld [vmem:[%s264 + $0xd0] sm:$0xff]
        %v453 = vld [vmem:[%s264 + $0xd8] sm:$0xff]
        %v454 = vld [vmem:[%s264 + $0xe0] sm:$0xff]
        %v455 = vld [vmem:[%s264 + $0xe8] sm:$0xff]
        %v456 = vld [vmem:[%s264 + $0xf0] sm:$0xff]
        %v457 = vld [vmem:[%s264 + $0xf8] sm:$0xff]
        %v458 = vmax.f32 %v426, 0.0
        %v459 = vmax.f32 %v427, 0.0
        %v460 = vmax.f32 %v428, 0.0
        %v461 = vmax.f32 %v429, 0.0
        %v462 = vmax.f32 %v430, 0.0
        %v463 = vmax.f32 %v431, 0.0
        %v464 = vmax.f32 %v432, 0.0
        %v465 = vmax.f32 %v433, 0.0
        %v466 = vmax.f32 %v434, 0.0
        %v467 = vmax.f32 %v435, 0.0
        %v468 = vmax.f32 %v436, 0.0
        %v469 = vmax.f32 %v437, 0.0
        %v470 = vmax.f32 %v438, 0.0
        %v471 = vmax.f32 %v439, 0.0
        %v472 = vmax.f32 %v440, 0.0
        %v473 = vmax.f32 %v441, 0.0
        %v474 = vmax.f32 %v442, 0.0
        %v475 = vmax.f32 %v443, 0.0
        %v476 = vmax.f32 %v444, 0.0
        %v477 = vmax.f32 %v445, 0.0
        %v478 = vmax.f32 %v446, 0.0
        %v479 = vmax.f32 %v447, 0.0
        %v480 = vmax.f32 %v448, 0.0
        %v481 = vmax.f32 %v449, 0.0
        %v482 = vmax.f32 %v450, 0.0
        %v483 = vmax.f32 %v451, 0.0
        %v484 = vmax.f32 %v452, 0.0
        %v485 = vmax.f32 %v453, 0.0
        %v486 = vmax.f32 %v454, 0.0
        %v487 = vmax.f32 %v455, 0.0
        %v488 = vmax.f32 %v456, 0.0
        %v489 = vmax.f32 %v457, 0.0
        %490 = vst.msk [vmem:[%s314 + $0x1] sm:$0xff] %vm305, %v458
        %491 = vst.msk [vmem:[%s314 + $0x9] sm:$0xff] %vm305, %v459
        %492 = vst.msk [vmem:[%s314 + $0x19] sm:$0xff] %vm305, %v460
        %493 = vst.msk [vmem:[%s314 + $0x21] sm:$0xff] %vm305, %v461
        %494 = vst.msk [vmem:[%s314 + $0x31] sm:$0xff] %vm305, %v462
        %495 = vst.msk [vmem:[%s314 + $0x39] sm:$0xff] %vm305, %v463
        %496 = vst.msk [vmem:[%s314 + $0x49] sm:$0xff] %vm305, %v464
        %497 = vst.msk [vmem:[%s314 + $0x51] sm:$0xff] %vm305, %v465
        %498 = vst.msk [vmem:[%s314 + $0x61] sm:$0xff] %vm305, %v466
        %499 = vst.msk [vmem:[%s314 + $0x69] sm:$0xff] %vm305, %v467
        %500 = vst.msk [vmem:[%s314 + $0x79] sm:$0xff] %vm305, %v468
        %501 = vst.msk [vmem:[%s314 + $0x81] sm:$0xff] %vm305, %v469
        %502 = vst.msk [vmem:[%s314 + $0x91] sm:$0xff] %vm305, %v470
        %503 = vst.msk [vmem:[%s314 + $0x99] sm:$0xff] %vm305, %v471
        %504 = vst.msk [vmem:[%s314 + $0xa9] sm:$0xff] %vm305, %v472
        %505 = vst.msk [vmem:[%s314 + $0xb1] sm:$0xff] %vm305, %v473
        %506 = vst.msk [vmem:[%s314 + $0xc1] sm:$0xff] %vm305, %v474
        %507 = vst.msk [vmem:[%s314 + $0xc9] sm:$0xff] %vm305, %v475
        %508 = vst.msk [vmem:[%s314 + $0xd9] sm:$0xff] %vm305, %v476
        %509 = vst.msk [vmem:[%s314 + $0xe1] sm:$0xff] %vm305, %v477
        %510 = vst.msk [vmem:[%s314 + $0xf1] sm:$0xff] %vm305, %v478
        %511 = vst.msk [vmem:[%s314 + $0xf9] sm:$0xff] %vm305, %v479
        %512 = vst.msk [vmem:[%s314 + $0x109] sm:$0xff] %vm305, %v480
        %513 = vst.msk [vmem:[%s314 + $0x111] sm:$0xff] %vm305, %v481
        %514 = vst.msk [vmem:[%s314 + $0x121] sm:$0xff] %vm305, %v482
        %515 = vst.msk [vmem:[%s314 + $0x129] sm:$0xff] %vm305, %v483
        %516 = vst.msk [vmem:[%s314 + $0x139] sm:$0xff] %vm305, %v484
        %517 = vst.msk [vmem:[%s314 + $0x141] sm:$0xff] %vm305, %v485
        %518 = vst.msk [vmem:[%s314 + $0x151] sm:$0xff] %vm305, %v486
        %519 = vst.msk [vmem:[%s314 + $0x159] sm:$0xff] %vm305, %v487
        %520 = vst.msk [vmem:[%s314 + $0x169] sm:$0xff] %vm305, %v488
        %521 = vst.msk [vmem:[%s314 + $0x171] sm:$0xff] %vm305, %v489
        %v522 = vld [vmem:[#allocation2] sm:$0xff]
        %v523 = vld [vmem:[#allocation2 + $0x8] sm:$0xff]
        %v524 = vld [vmem:[#allocation2 + $0x18] sm:$0xff]
        %v525 = vld [vmem:[#allocation2 + $0x20] sm:$0xff]
        %v526 = vld [vmem:[#allocation2 + $0x30] sm:$0xff]
        %v527 = vld [vmem:[#allocation2 + $0x38] sm:$0xff]
        %v528 = vld [vmem:[#allocation2 + $0x48] sm:$0xff]
        %v529 = vld [vmem:[#allocation2 + $0x50] sm:$0xff]
        %v530 = vld [vmem:[#allocation2 + $0x60] sm:$0xff]
        %v531 = vld [vmem:[#allocation2 + $0x68] sm:$0xff]
        %v532 = vld [vmem:[#allocation2 + $0x78] sm:$0xff]
        %v533 = vld [vmem:[#allocation2 + $0x80] sm:$0xff]
        %v534 = vld [vmem:[#allocation2 + $0x90] sm:$0xff]
        %v535 = vld [vmem:[#allocation2 + $0x98] sm:$0xff]
        %v536 = vld [vmem:[#allocation2 + $0xa8] sm:$0xff]
        %v537 = vld [vmem:[#allocation2 + $0xb0] sm:$0xff]
        %v538 = vlaneseq
        %v539 = vshrl.u32 %v538, 7
        %v540 = vsub.s32 0, %v539
        %v541 = vrot.slane %v411, %v540
        %v542 = vmul.f32 %v522, %v541
        %v543 = vmul.f32 %v523, %v541
        %v544 = vmul.f32 %v524, %v541
        %v545 = vmul.f32 %v525, %v541
        %v546 = vmul.f32 %v526, %v541
        %v547 = vmul.f32 %v527, %v541
        %v548 = vmul.f32 %v528, %v541
        %v549 = vmul.f32 %v529, %v541
        %v550 = vmul.f32 %v530, %v541
        %v551 = vmul.f32 %v531, %v541
        %v552 = vmul.f32 %v532, %v541
        %v553 = vmul.f32 %v533, %v541
        %v554 = vmul.f32 %v534, %v541
        %v555 = vmul.f32 %v535, %v541
        %v556 = vmul.f32 %v536, %v541
        %v557 = vmul.f32 %v537, %v541
        %v558 = vadd.f32 %v542, 0.0
        %v559 = vadd.f32 %v543, 0.0
        %v560 = vadd.f32 %v544, 0.0
        %v561 = vadd.f32 %v545, 0.0
        %v562 = vadd.f32 %v546, 0.0
        %v563 = vadd.f32 %v547, 0.0
        %v564 = vadd.f32 %v548, 0.0
        %v565 = vadd.f32 %v549, 0.0
        %v566 = vadd.f32 %v550, 0.0
        %v567 = vadd.f32 %v551, 0.0
        %v568 = vadd.f32 %v552, 0.0
        %v569 = vadd.f32 %v553, 0.0
        %v570 = vadd.f32 %v554, 0.0
        %v571 = vadd.f32 %v555, 0.0
        %v572 = vadd.f32 %v556, 0.0
        %v573 = vadd.f32 %v557, 0.0
        %v574 = vld [vmem:[#allocation2 + $0x1] sm:$0xff]
        %v575 = vld [vmem:[#allocation2 + $0x9] sm:$0xff]
        %v576 = vld [vmem:[#allocation2 + $0x19] sm:$0xff]
        %v577 = vld [vmem:[#allocation2 + $0x21] sm:$0xff]
        %v578 = vld [vmem:[#allocation2 + $0x31] sm:$0xff]
        %v579 = vld [vmem:[#allocation2 + $0x39] sm:$0xff]
        %v580 = vld [vmem:[#allocation2 + $0x49] sm:$0xff]
        %v581 = vld [vmem:[#allocation2 + $0x51] sm:$0xff]
        %v582 = vld [vmem:[#allocation2 + $0x61] sm:$0xff]
        %v583 = vld [vmem:[#allocation2 + $0x69] sm:$0xff]
        %v584 = vld [vmem:[#allocation2 + $0x79] sm:$0xff]
        %v585 = vld [vmem:[#allocation2 + $0x81] sm:$0xff]
        %v586 = vld [vmem:[#allocation2 + $0x91] sm:$0xff]
        %v587 = vld [vmem:[#allocation2 + $0x99] sm:$0xff]
        %v588 = vld [vmem:[#allocation2 + $0xa9] sm:$0xff]
        %v589 = vld [vmem:[#allocation2 + $0xb1] sm:$0xff]
        %v590 = vlaneseq
        %v591 = vshrl.u32 %v590, 7
        %v592 = vsub.s32 1, %v591
        %v593 = vrot.slane %v411, %v592
        %v594 = vmul.f32 %v574, %v593
        %v595 = vmul.f32 %v575, %v593
        %v596 = vmul.f32 %v576, %v593
        %v597 = vmul.f32 %v577, %v593
        %v598 = vmul.f32 %v578, %v593
        %v599 = vmul.f32 %v579, %v593
        %v600 = vmul.f32 %v580, %v593
        %v601 = vmul.f32 %v581, %v593
        %v602 = vmul.f32 %v582, %v593
        %v603 = vmul.f32 %v583, %v593
        %v604 = vmul.f32 %v584, %v593
        %v605 = vmul.f32 %v585, %v593
        %v606 = vmul.f32 %v586, %v593
        %v607 = vmul.f32 %v587, %v593
        %v608 = vmul.f32 %v588, %v593
        %v609 = vmul.f32 %v589, %v593
        %v610 = vadd.f32 %v558, %v594
        %v611 = vadd.f32 %v559, %v595
        %v612 = vadd.f32 %v560, %v596
        %v613 = vadd.f32 %v561, %v597
        %v614 = vadd.f32 %v562, %v598
        %v615 = vadd.f32 %v563, %v599
        %v616 = vadd.f32 %v564, %v600
        %v617 = vadd.f32 %v565, %v601
        %v618 = vadd.f32 %v566, %v602
        %v619 = vadd.f32 %v567, %v603
        %v620 = vadd.f32 %v568, %v604
        %v621 = vadd.f32 %v569, %v605
        %v622 = vadd.f32 %v570, %v606
        %v623 = vadd.f32 %v571, %v607
        %v624 = vadd.f32 %v572, %v608
        %v625 = vadd.f32 %v573, %v609
        %v626 = vld [vmem:[#allocation2 + $0x2] sm:$0xff]
        %v627 = vld [vmem:[#allocation2 + $0xa] sm:$0xff]
        %v628 = vld [vmem:[#allocation2 + $0x1a] sm:$0xff]
        %v629 = vld [vmem:[#allocation2 + $0x22] sm:$0xff]
        %v630 = vld [vmem:[#allocation2 + $0x32] sm:$0xff]
        %v631 = vld [vmem:[#allocation2 + $0x3a] sm:$0xff]
        %v632 = vld [vmem:[#allocation2 + $0x4a] sm:$0xff]
        %v633 = vld [vmem:[#allocation2 + $0x52] sm:$0xff]
        %v634 = vld [vmem:[#allocation2 + $0x62] sm:$0xff]
        %v635 = vld [vmem:[#allocation2 + $0x6a] sm:$0xff]
        %v636 = vld [vmem:[#allocation2 + $0x7a] sm:$0xff]
        %v637 = vld [vmem:[#allocation2 + $0x82] sm:$0xff]
        %v638 = vld [vmem:[#allocation2 + $0x92] sm:$0xff]
        %v639 = vld [vmem:[#allocation2 + $0x9a] sm:$0xff]
        %v640 = vld [vmem:[#allocation2 + $0xaa] sm:$0xff]
        %v641 = vld [vmem:[#allocation2 + $0xb2] sm:$0xff]
        %v642 = vlaneseq
        %v643 = vshrl.u32 %v642, 7
        %v644 = vsub.s32 2, %v643
        %v645 = vrot.slane %v411, %v644
        %v646 = vmul.f32 %v626, %v645
        %v647 = vmul.f32 %v627, %v645
        %v648 = vmul.f32 %v628, %v645
        %v649 = vmul.f32 %v629, %v645
        %v650 = vmul.f32 %v630, %v645
        %v651 = vmul.f32 %v631, %v645
        %v652 = vmul.f32 %v632, %v645
        %v653 = vmul.f32 %v633, %v645
        %v654 = vmul.f32 %v634, %v645
        %v655 = vmul.f32 %v635, %v645
        %v656 = vmul.f32 %v636, %v645
        %v657 = vmul.f32 %v637, %v645
        %v658 = vmul.f32 %v638, %v645
        %v659 = vmul.f32 %v639, %v645
        %v660 = vmul.f32 %v640, %v645
        %v661 = vmul.f32 %v641, %v645
        %v662 = vadd.f32 %v610, %v646
        %v663 = vadd.f32 %v611, %v647
        %v664 = vadd.f32 %v612, %v648
        %v665 = vadd.f32 %v613, %v649
        %v666 = vadd.f32 %v614, %v650
        %v667 = vadd.f32 %v615, %v651
        %v668 = vadd.f32 %v616, %v652
        %v669 = vadd.f32 %v617, %v653
        %v670 = vadd.f32 %v618, %v654
        %v671 = vadd.f32 %v619, %v655
        %v672 = vadd.f32 %v620, %v656
        %v673 = vadd.f32 %v621, %v657
        %v674 = vadd.f32 %v622, %v658
        %v675 = vadd.f32 %v623, %v659
        %v676 = vadd.f32 %v624, %v660
        %v677 = vadd.f32 %v625, %v661
        %v678 = vld [vmem:[%s314] sm:$0xff]
        %v679 = vld [vmem:[%s314 + $0x8] sm:$0xff]
        %v680 = vld [vmem:[%s314 + $0x18] sm:$0xff]
        %v681 = vld [vmem:[%s314 + $0x20] sm:$0xff]
        %v682 = vld [vmem:[%s314 + $0x30] sm:$0xff]
        %v683 = vld [vmem:[%s314 + $0x38] sm:$0xff]
        %v684 = vld [vmem:[%s314 + $0x48] sm:$0xff]
        %v685 = vld [vmem:[%s314 + $0x50] sm:$0xff]
        %v686 = vld [vmem:[%s314 + $0x60] sm:$0xff]
        %v687 = vld [vmem:[%s314 + $0x68] sm:$0xff]
        %v688 = vld [vmem:[%s314 + $0x78] sm:$0xff]
        %v689 = vld [vmem:[%s314 + $0x80] sm:$0xff]
        %v690 = vld [vmem:[%s314 + $0x90] sm:$0xff]
        %v691 = vld [vmem:[%s314 + $0x98] sm:$0xff]
        %v692 = vld [vmem:[%s314 + $0xa8] sm:$0xff]
        %v693 = vld [vmem:[%s314 + $0xb0] sm:$0xff]
        %v694 = vlaneseq
        %v695 = vshrl.u32 %v694, 7
        %v696 = vsub.s32 0, %v695
        %v697 = vrot.slane %v412, %v696
        %v698 = vmul.f32 %v678, %v697
        %v699 = vmul.f32 %v679, %v697
        %v700 = vmul.f32 %v680, %v697
        %v701 = vmul.f32 %v681, %v697
        %v702 = vmul.f32 %v682, %v697
        %v703 = vmul.f32 %v683, %v697
        %v704 = vmul.f32 %v684, %v697
        %v705 = vmul.f32 %v685, %v697
        %v706 = vmul.f32 %v686, %v697
        %v707 = vmul.f32 %v687, %v697
        %v708 = vmul.f32 %v688, %v697
        %v709 = vmul.f32 %v689, %v697
        %v710 = vmul.f32 %v690, %v697
        %v711 = vmul.f32 %v691, %v697
        %v712 = vmul.f32 %v692, %v697
        %v713 = vmul.f32 %v693, %v697
        %v714 = vadd.f32 %v662, %v698
        %v715 = vadd.f32 %v663, %v699
        %v716 = vadd.f32 %v664, %v700
        %v717 = vadd.f32 %v665, %v701
        %v718 = vadd.f32 %v666, %v702
        %v719 = vadd.f32 %v667, %v703
        %v720 = vadd.f32 %v668, %v704
        %v721 = vadd.f32 %v669, %v705
        %v722 = vadd.f32 %v670, %v706
        %v723 = vadd.f32 %v671, %v707
        %v724 = vadd.f32 %v672, %v708
        %v725 = vadd.f32 %v673, %v709
        %v726 = vadd.f32 %v674, %v710
        %v727 = vadd.f32 %v675, %v711
        %v728 = vadd.f32 %v676, %v712
        %v729 = vadd.f32 %v677, %v713
        %v730 = vld [vmem:[%s314 + $0x1] sm:$0xff]
        %v731 = vld [vmem:[%s314 + $0x9] sm:$0xff]
        %v732 = vld [vmem:[%s314 + $0x19] sm:$0xff]
        %v733 = vld [vmem:[%s314 + $0x21] sm:$0xff]
        %v734 = vld [vmem:[%s314 + $0x31] sm:$0xff]
        %v735 = vld [vmem:[%s314 + $0x39] sm:$0xff]
        %v736 = vld [vmem:[%s314 + $0x49] sm:$0xff]
        %v737 = vld [vmem:[%s314 + $0x51] sm:$0xff]
        %v738 = vld [vmem:[%s314 + $0x61] sm:$0xff]
        %v739 = vld [vmem:[%s314 + $0x69] sm:$0xff]
        %v740 = vld [vmem:[%s314 + $0x79] sm:$0xff]
        %v741 = vld [vmem:[%s314 + $0x81] sm:$0xff]
        %v742 = vld [vmem:[%s314 + $0x91] sm:$0xff]
        %v743 = vld [vmem:[%s314 + $0x99] sm:$0xff]
        %v744 = vld [vmem:[%s314 + $0xa9] sm:$0xff]
        %v745 = vld [vmem:[%s314 + $0xb1] sm:$0xff]
        %v746 = vlaneseq
        %v747 = vshrl.u32 %v746, 7
        %v748 = vsub.s32 1, %v747
        %v749 = vrot.slane %v412, %v748
        %v750 = vmul.f32 %v730, %v749
        %v751 = vmul.f32 %v731, %v749
        %v752 = vmul.f32 %v732, %v749
        %v753 = vmul.f32 %v733, %v749
        %v754 = vmul.f32 %v734, %v749
        %v755 = vmul.f32 %v735, %v749
        %v756 = vmul.f32 %v736, %v749
        %v757 = vmul.f32 %v737, %v749
        %v758 = vmul.f32 %v738, %v749
        %v759 = vmul.f32 %v739, %v749
        %v760 = vmul.f32 %v740, %v749
        %v761 = vmul.f32 %v741, %v749
        %v762 = vmul.f32 %v742, %v749
        %v763 = vmul.f32 %v743, %v749
        %v764 = vmul.f32 %v744, %v749
        %v765 = vmul.f32 %v745, %v749
        %v766 = vadd.f32 %v714, %v750
        %v767 = vadd.f32 %v715, %v751
        %v768 = vadd.f32 %v716, %v752
        %v769 = vadd.f32 %v717, %v753
        %v770 = vadd.f32 %v718, %v754
        %v771 = vadd.f32 %v719, %v755
        %v772 = vadd.f32 %v720, %v756
        %v773 = vadd.f32 %v721, %v757
        %v774 = vadd.f32 %v722, %v758
        %v775 = vadd.f32 %v723, %v759
        %v776 = vadd.f32 %v724, %v760
        %v777 = vadd.f32 %v725, %v761
        %v778 = vadd.f32 %v726, %v762
        %v779 = vadd.f32 %v727, %v763
        %v780 = vadd.f32 %v728, %v764
        %v781 = vadd.f32 %v729, %v765
        %v782 = vld [vmem:[%s314 + $0x2] sm:$0xff]
        %v783 = vld [vmem:[%s314 + $0xa] sm:$0xff]
        %v784 = vld [vmem:[%s314 + $0x1a] sm:$0xff]
        %v785 = vld [vmem:[%s314 + $0x22] sm:$0xff]
        %v786 = vld [vmem:[%s314 + $0x32] sm:$0xff]
        %v787 = vld [vmem:[%s314 + $0x3a] sm:$0xff]
        %v788 = vld [vmem:[%s314 + $0x4a] sm:$0xff]
        %v789 = vld [vmem:[%s314 + $0x52] sm:$0xff]
        %v790 = vld [vmem:[%s314 + $0x62] sm:$0xff]
        %v791 = vld [vmem:[%s314 + $0x6a] sm:$0xff]
        %v792 = vld [vmem:[%s314 + $0x7a] sm:$0xff]
        %v793 = vld [vmem:[%s314 + $0x82] sm:$0xff]
        %v794 = vld [vmem:[%s314 + $0x92] sm:$0xff]
        %v795 = vld [vmem:[%s314 + $0x9a] sm:$0xff]
        %v796 = vld [vmem:[%s314 + $0xaa] sm:$0xff]
        %v797 = vld [vmem:[%s314 + $0xb2] sm:$0xff]
        %v798 = vlaneseq
        %v799 = vshrl.u32 %v798, 7
        %v800 = vsub.s32 2, %v799
        %v801 = vrot.slane %v412, %v800
        %v802 = vmul.f32 %v782, %v801
        %v803 = vmul.f32 %v783, %v801
        %v804 = vmul.f32 %v784, %v801
        %v805 = vmul.f32 %v785, %v801
        %v806 = vmul.f32 %v786, %v801
        %v807 = vmul.f32 %v787, %v801
        %v808 = vmul.f32 %v788, %v801
        %v809 = vmul.f32 %v789, %v801
        %v810 = vmul.f32 %v790, %v801
        %v811 = vmul.f32 %v791, %v801
        %v812 = vmul.f32 %v792, %v801
        %v813 = vmul.f32 %v793, %v801
        %v814 = vmul.f32 %v794, %v801
        %v815 = vmul.f32 %v795, %v801
        %v816 = vmul.f32 %v796, %v801
        %v817 = vmul.f32 %v797, %v801
        %v818 = vadd.f32 %v766, %v802
        %v819 = vadd.f32 %v767, %v803
        %v820 = vadd.f32 %v768, %v804
        %v821 = vadd.f32 %v769, %v805
        %v822 = vadd.f32 %v770, %v806
        %v823 = vadd.f32 %v771, %v807
        %v824 = vadd.f32 %v772, %v808
        %v825 = vadd.f32 %v773, %v809
        %v826 = vadd.f32 %v774, %v810
        %v827 = vadd.f32 %v775, %v811
        %v828 = vadd.f32 %v776, %v812
        %v829 = vadd.f32 %v777, %v813
        %v830 = vadd.f32 %v778, %v814
        %v831 = vadd.f32 %v779, %v815
        %v832 = vadd.f32 %v780, %v816
        %v833 = vadd.f32 %v781, %v817
        %s834 = scalar_lea.vmem [#allocation2], 48
        %v835 = vld [vmem:[%s834] sm:$0xff]
        %v836 = vld [vmem:[%s834 + $0x8] sm:$0xff]
        %v837 = vld [vmem:[%s834 + $0x18] sm:$0xff]
        %v838 = vld [vmem:[%s834 + $0x20] sm:$0xff]
        %v839 = vld [vmem:[%s834 + $0x30] sm:$0xff]
        %v840 = vld [vmem:[%s834 + $0x38] sm:$0xff]
        %v841 = vld [vmem:[%s834 + $0x48] sm:$0xff]
        %v842 = vld [vmem:[%s834 + $0x50] sm:$0xff]
        %v843 = vld [vmem:[%s834 + $0x60] sm:$0xff]
        %v844 = vld [vmem:[%s834 + $0x68] sm:$0xff]
        %v845 = vld [vmem:[%s834 + $0x78] sm:$0xff]
        %v846 = vld [vmem:[%s834 + $0x80] sm:$0xff]
        %v847 = vld [vmem:[%s834 + $0x90] sm:$0xff]
        %v848 = vld [vmem:[%s834 + $0x98] sm:$0xff]
        %v849 = vld [vmem:[%s834 + $0xa8] sm:$0xff]
        %v850 = vld [vmem:[%s834 + $0xb0] sm:$0xff]
        %v851 = vlaneseq
        %v852 = vshrl.u32 %v851, 7
        %v853 = vsub.s32 0, %v852
        %v854 = vrot.slane %v413, %v853
        %v855 = vmul.f32 %v835, %v854
        %v856 = vmul.f32 %v836, %v854
        %v857 = vmul.f32 %v837, %v854
        %v858 = vmul.f32 %v838, %v854
        %v859 = vmul.f32 %v839, %v854
        %v860 = vmul.f32 %v840, %v854
        %v861 = vmul.f32 %v841, %v854
        %v862 = vmul.f32 %v842, %v854
        %v863 = vmul.f32 %v843, %v854
        %v864 = vmul.f32 %v844, %v854
        %v865 = vmul.f32 %v845, %v854
        %v866 = vmul.f32 %v846, %v854
        %v867 = vmul.f32 %v847, %v854
        %v868 = vmul.f32 %v848, %v854
        %v869 = vmul.f32 %v849, %v854
        %v870 = vmul.f32 %v850, %v854
        %v871 = vadd.f32 %v818, %v855
        %v872 = vadd.f32 %v819, %v856
        %v873 = vadd.f32 %v820, %v857
        %v874 = vadd.f32 %v821, %v858
        %v875 = vadd.f32 %v822, %v859
        %v876 = vadd.f32 %v823, %v860
        %v877 = vadd.f32 %v824, %v861
        %v878 = vadd.f32 %v825, %v862
        %v879 = vadd.f32 %v826, %v863
        %v880 = vadd.f32 %v827, %v864
        %v881 = vadd.f32 %v828, %v865
        %v882 = vadd.f32 %v829, %v866
        %v883 = vadd.f32 %v830, %v867
        %v884 = vadd.f32 %v831, %v868
        %v885 = vadd.f32 %v832, %v869
        %v886 = vadd.f32 %v833, %v870
        %v887 = vld [vmem:[%s834 + $0x1] sm:$0xff]
        %v888 = vld [vmem:[%s834 + $0x9] sm:$0xff]
        %v889 = vld [vmem:[%s834 + $0x19] sm:$0xff]
        %v890 = vld [vmem:[%s834 + $0x21] sm:$0xff]
        %v891 = vld [vmem:[%s834 + $0x31] sm:$0xff]
        %v892 = vld [vmem:[%s834 + $0x39] sm:$0xff]
        %v893 = vld [vmem:[%s834 + $0x49] sm:$0xff]
        %v894 = vld [vmem:[%s834 + $0x51] sm:$0xff]
        %v895 = vld [vmem:[%s834 + $0x61] sm:$0xff]
        %v896 = vld [vmem:[%s834 + $0x69] sm:$0xff]
        %v897 = vld [vmem:[%s834 + $0x79] sm:$0xff]
        %v898 = vld [vmem:[%s834 + $0x81] sm:$0xff]
        %v899 = vld [vmem:[%s834 + $0x91] sm:$0xff]
        %v900 = vld [vmem:[%s834 + $0x99] sm:$0xff]
        %v901 = vld [vmem:[%s834 + $0xa9] sm:$0xff]
        %v902 = vld [vmem:[%s834 + $0xb1] sm:$0xff]
        %v903 = vlaneseq
        %v904 = vshrl.u32 %v903, 7
        %v905 = vsub.s32 1, %v904
        %v906 = vrot.slane %v413, %v905
        %v907 = vmul.f32 %v887, %v906
        %v908 = vmul.f32 %v888, %v906
        %v909 = vmul.f32 %v889, %v906
        %v910 = vmul.f32 %v890, %v906
        %v911 = vmul.f32 %v891, %v906
        %v912 = vmul.f32 %v892, %v906
        %v913 = vmul.f32 %v893, %v906
        %v914 = vmul.f32 %v894, %v906
        %v915 = vmul.f32 %v895, %v906
        %v916 = vmul.f32 %v896, %v906
        %v917 = vmul.f32 %v897, %v906
        %v918 = vmul.f32 %v898, %v906
        %v919 = vmul.f32 %v899, %v906
        %v920 = vmul.f32 %v900, %v906
        %v921 = vmul.f32 %v901, %v906
        %v922 = vmul.f32 %v902, %v906
        %v923 = vadd.f32 %v871, %v907
        %v924 = vadd.f32 %v872, %v908
        %v925 = vadd.f32 %v873, %v909
        %v926 = vadd.f32 %v874, %v910
        %v927 = vadd.f32 %v875, %v911
        %v928 = vadd.f32 %v876, %v912
        %v929 = vadd.f32 %v877, %v913
        %v930 = vadd.f32 %v878, %v914
        %v931 = vadd.f32 %v879, %v915
        %v932 = vadd.f32 %v880, %v916
        %v933 = vadd.f32 %v881, %v917
        %v934 = vadd.f32 %v882, %v918
        %v935 = vadd.f32 %v883, %v919
        %v936 = vadd.f32 %v884, %v920
        %v937 = vadd.f32 %v885, %v921
        %v938 = vadd.f32 %v886, %v922
        %v939 = vld [vmem:[%s834 + $0x2] sm:$0xff]
        %v940 = vld [vmem:[%s834 + $0xa] sm:$0xff]
        %v941 = vld [vmem:[%s834 + $0x1a] sm:$0xff]
        %v942 = vld [vmem:[%s834 + $0x22] sm:$0xff]
        %v943 = vld [vmem:[%s834 + $0x32] sm:$0xff]
        %v944 = vld [vmem:[%s834 + $0x3a] sm:$0xff]
        %v945 = vld [vmem:[%s834 + $0x4a] sm:$0xff]
        %v946 = vld [vmem:[%s834 + $0x52] sm:$0xff]
        %v947 = vld [vmem:[%s834 + $0x62] sm:$0xff]
        %v948 = vld [vmem:[%s834 + $0x6a] sm:$0xff]
        %v949 = vld [vmem:[%s834 + $0x7a] sm:$0xff]
        %v950 = vld [vmem:[%s834 + $0x82] sm:$0xff]
        %v951 = vld [vmem:[%s834 + $0x92] sm:$0xff]
        %v952 = vld [vmem:[%s834 + $0x9a] sm:$0xff]
        %v953 = vld [vmem:[%s834 + $0xaa] sm:$0xff]
        %v954 = vld [vmem:[%s834 + $0xb2] sm:$0xff]
        %v955 = vlaneseq
        %v956 = vshrl.u32 %v955, 7
        %v957 = vsub.s32 2, %v956
        %v958 = vrot.slane %v413, %v957
        %v959 = vmul.f32 %v939, %v958
        %v960 = vmul.f32 %v940, %v958
        %v961 = vmul.f32 %v941, %v958
        %v962 = vmul.f32 %v942, %v958
        %v963 = vmul.f32 %v943, %v958
        %v964 = vmul.f32 %v944, %v958
        %v965 = vmul.f32 %v945, %v958
        %v966 = vmul.f32 %v946, %v958
        %v967 = vmul.f32 %v947, %v958
        %v968 = vmul.f32 %v948, %v958
        %v969 = vmul.f32 %v949, %v958
        %v970 = vmul.f32 %v950, %v958
        %v971 = vmul.f32 %v951, %v958
        %v972 = vmul.f32 %v952, %v958
        %v973 = vmul.f32 %v953, %v958
        %v974 = vmul.f32 %v954, %v958
        %v975 = vadd.f32 %v923, %v959
        %v976 = vadd.f32 %v924, %v960
        %v977 = vadd.f32 %v925, %v961
        %v978 = vadd.f32 %v926, %v962
        %v979 = vadd.f32 %v927, %v963
        %v980 = vadd.f32 %v928, %v964
        %v981 = vadd.f32 %v929, %v965
        %v982 = vadd.f32 %v930, %v966
        %v983 = vadd.f32 %v931, %v967
        %v984 = vadd.f32 %v932, %v968
        %v985 = vadd.f32 %v933, %v969
        %v986 = vadd.f32 %v934, %v970
        %v987 = vadd.f32 %v935, %v971
        %v988 = vadd.f32 %v936, %v972
        %v989 = vadd.f32 %v937, %v973
        %v990 = vadd.f32 %v938, %v974
        %v991 = vpack.c.bf16 %v976, %v975
        %v992 = vpack.c.bf16 %v978, %v977
        %v993 = vpack.c.bf16 %v980, %v979
        %v994 = vpack.c.bf16 %v982, %v981
        %v995 = vpack.c.bf16 %v984, %v983
        %v996 = vpack.c.bf16 %v986, %v985
        %v997 = vpack.c.bf16 %v988, %v987
        %v998 = vpack.c.bf16 %v990, %v989
        %v999 = vlaneseq
        %v1000 = vshrl.u32 %v999, 7
        %v1001 = vsub.s32 0, %v1000
        %v1002 = vrot.slane %v425, %v1001
        %v1005 = vunpack.c.l.b16 %v417
        %v1006 = vunpack.c.l.b16 %v418
        %v1007 = vpack.c.b16 %v1006, %v1005
        %v1010 = vsel %vm305, %v991, 0
        %v1013 = vsel %vm305, %v992, 0
        %v1016 = vsel %vm305, %v993, 0
        %v1019 = vsel %vm305, %v994, 0
        %v1022 = vsel %vm305, %v995, 0
        %v1025 = vsel %vm305, %v996, 0
        %v1028 = vsel %vm305, %v997, 0
        %v1031 = vsel %vm305, %v998, 0
        %1033 = vmatprep.subr.bf16.mxu0 0
        %1034 = vmatpush1.bf16.msra.mxu0 0
        %1035 = vmatprep.subr.bf16.mxu0 0
        %1036 = vmatpush1.bf16.msra.mxu0 0
        %1037 = vmatprep.subr.bf16.mxu0 0
        %1038 = vmatpush1.bf16.msra.mxu0 0
        %1039 = vmatprep.subr.bf16.mxu0 0
        %1040 = vmatpush1.bf16.msra.mxu0 0
        %1041 = vmatprep.subr.bf16.mxu0 0
        %1042 = vmatpush1.bf16.msra.mxu0 0
        %1043 = vmatprep.subr.bf16.mxu0 0
        %1044 = vmatpush1.bf16.msra.mxu0 0
        %1045 = vmatprep.subr.bf16.mxu0 0
        %1046 = vmatpush1.bf16.msra.mxu0 0
        %1047 = vmatprep.subr.bf16.mxu0 0
        %1048 = vmatpush1.bf16.msra.mxu0 %v1007
        %1049 = vmatprep.subr.bf16.mxu0 0
        %1050 = vmatpush2.bf16.msra.mxu0 0
        %1051 = vmatprep.subr.bf16.mxu0 0
        %1052 = vmatpush2.bf16.msra.mxu0 0
        %1053 = vmatprep.subr.bf16.mxu0 0
        %1054 = vmatpush2.bf16.msra.mxu0 0
        %1055 = vmatprep.subr.bf16.mxu0 0
        %1056 = vmatpush2.bf16.msra.mxu0 0
        %1057 = vmatprep.subr.bf16.mxu0 0
        %1058 = vmatpush2.bf16.msra.mxu0 0
        %1059 = vmatprep.subr.bf16.mxu0 0
        %1060 = vmatpush2.bf16.msra.mxu0 0
        %1061 = vmatprep.subr.bf16.mxu0 0
        %1062 = vmatpush2.bf16.msra.mxu0 0
        %1063 = vmatprep.subr.bf16.mxu0 0
        %1064 = vmatpush2.bf16.msra.mxu0 0
        %1065 = vmatprep.mubr.bf16.mxu0 0
        %1066 = vmatmul.mubr.bf16.gmra.mxu0 %v1010
        %v1067 = vpop.f32.mrf.mxu0
        %v1068 = vadd.f32 %v1002, %v1067
        %v1069 = vpop.f32.mrf.mxu0
        %v1070 = vpop.f32.mrf.mxu0
        %v1071 = vadd.f32 %v1002, %v1070
        %v1072 = vpop.f32.mrf.mxu0
        %1073 = vmatprep.mubr.bf16.mxu0 0
        %1074 = vmatmul.mubr.bf16.gmra.mxu0 %v1013
        %v1075 = vpop.f32.mrf.mxu0
        %v1076 = vadd.f32 %v1002, %v1075
        %v1077 = vpop.f32.mrf.mxu0
        %v1078 = vpop.f32.mrf.mxu0
        %v1079 = vadd.f32 %v1002, %v1078
        %v1080 = vpop.f32.mrf.mxu0
        %1081 = vmatprep.mubr.bf16.mxu0 0
        %1082 = vmatmul.mubr.bf16.gmra.mxu0 %v1016
        %v1083 = vpop.f32.mrf.mxu0
        %v1084 = vadd.f32 %v1002, %v1083
        %v1085 = vpop.f32.mrf.mxu0
        %v1086 = vpop.f32.mrf.mxu0
        %v1087 = vadd.f32 %v1002, %v1086
        %v1088 = vpop.f32.mrf.mxu0
        %1089 = vmatprep.mubr.bf16.mxu0 0
        %1090 = vmatmul.mubr.bf16.gmra.mxu0 %v1019
        %v1091 = vpop.f32.mrf.mxu0
        %v1092 = vadd.f32 %v1002, %v1091
        %v1093 = vpop.f32.mrf.mxu0
        %v1094 = vpop.f32.mrf.mxu0
        %v1095 = vadd.f32 %v1002, %v1094
        %v1096 = vpop.f32.mrf.mxu0
        %1097 = vmatprep.mubr.bf16.mxu0 0
        %1098 = vmatmul.mubr.bf16.gmra.mxu0 %v1022
        %v1099 = vpop.f32.mrf.mxu0
        %v1100 = vadd.f32 %v1002, %v1099
        %v1101 = vpop.f32.mrf.mxu0
        %v1102 = vpop.f32.mrf.mxu0
        %v1103 = vadd.f32 %v1002, %v1102
        %v1104 = vpop.f32.mrf.mxu0
        %1105 = vmatprep.mubr.bf16.mxu0 0
        %1106 = vmatmul.mubr.bf16.gmra.mxu0 %v1025
        %v1107 = vpop.f32.mrf.mxu0
        %v1108 = vadd.f32 %v1002, %v1107
        %v1109 = vpop.f32.mrf.mxu0
        %v1110 = vpop.f32.mrf.mxu0
        %v1111 = vadd.f32 %v1002, %v1110
        %v1112 = vpop.f32.mrf.mxu0
        %1113 = vmatprep.mubr.bf16.mxu0 0
        %1114 = vmatmul.mubr.bf16.gmra.mxu0 %v1028
        %v1115 = vpop.f32.mrf.mxu0
        %v1116 = vadd.f32 %v1002, %v1115
        %v1117 = vpop.f32.mrf.mxu0
        %v1118 = vpop.f32.mrf.mxu0
        %v1119 = vadd.f32 %v1002, %v1118
        %v1120 = vpop.f32.mrf.mxu0
        %1121 = vmatprep.mubr.bf16.mxu0 0
        %1122 = vmatmul.mubr.bf16.gmra.mxu0 %v1031
        %v1123 = vpop.f32.mrf.mxu0
        %v1124 = vadd.f32 %v1002, %v1123
        %v1125 = vpop.f32.mrf.mxu0
        %v1126 = vpop.f32.mrf.mxu0
        %v1127 = vadd.f32 %v1002, %v1126
        %v1128 = vpop.f32.mrf.mxu0
        %1129 = vdwg.mxu0
        %v1130 = vmax.f32 %v1068, 0.0
        %v1131 = vmax.f32 %v1071, 0.0
        %v1132 = vmax.f32 %v1076, 0.0
        %v1133 = vmax.f32 %v1079, 0.0
        %v1134 = vmax.f32 %v1084, 0.0
        %v1135 = vmax.f32 %v1087, 0.0
        %v1136 = vmax.f32 %v1092, 0.0
        %v1137 = vmax.f32 %v1095, 0.0
        %v1138 = vmax.f32 %v1100, 0.0
        %v1139 = vmax.f32 %v1103, 0.0
        %v1140 = vmax.f32 %v1108, 0.0
        %v1141 = vmax.f32 %v1111, 0.0
        %v1142 = vmax.f32 %v1116, 0.0
        %v1143 = vmax.f32 %v1119, 0.0
        %v1144 = vmax.f32 %v1124, 0.0
        %v1145 = vmax.f32 %v1127, 0.0
        %1146 = vst.msk [vmem:[%s357 + $0x1] sm:$0xff] %vm348, %v1130
        %1147 = vst.msk [vmem:[%s357 + $0x9] sm:$0xff] %vm348, %v1131
        %1148 = vst.msk [vmem:[%s357 + $0x19] sm:$0xff] %vm348, %v1132
        %1149 = vst.msk [vmem:[%s357 + $0x21] sm:$0xff] %vm348, %v1133
        %1150 = vst.msk [vmem:[%s357 + $0x31] sm:$0xff] %vm348, %v1134
        %1151 = vst.msk [vmem:[%s357 + $0x39] sm:$0xff] %vm348, %v1135
        %1152 = vst.msk [vmem:[%s357 + $0x49] sm:$0xff] %vm348, %v1136
        %1153 = vst.msk [vmem:[%s357 + $0x51] sm:$0xff] %vm348, %v1137
        %1154 = vst.msk [vmem:[%s357 + $0x61] sm:$0xff] %vm348, %v1138
        %1155 = vst.msk [vmem:[%s357 + $0x69] sm:$0xff] %vm348, %v1139
        %1156 = vst.msk [vmem:[%s357 + $0x79] sm:$0xff] %vm348, %v1140
        %1157 = vst.msk [vmem:[%s357 + $0x81] sm:$0xff] %vm348, %v1141
        %1158 = vst.msk [vmem:[%s357 + $0x91] sm:$0xff] %vm348, %v1142
        %1159 = vst.msk [vmem:[%s357 + $0x99] sm:$0xff] %vm348, %v1143
        %1160 = vst.msk [vmem:[%s357 + $0xa9] sm:$0xff] %vm348, %v1144
        %1161 = vst.msk [vmem:[%s357 + $0xb1] sm:$0xff] %vm348, %v1145
        %s1162 = scalar_lea.vmem [#allocation2], 192
        %v1163 = vld [vmem:[%s1162] sm:$0xff]
        %v1164 = vld [vmem:[%s1162 + $0x8] sm:$0xff]
        %v1165 = vld [vmem:[%s1162 + $0x18] sm:$0xff]
        %v1166 = vld [vmem:[%s1162 + $0x20] sm:$0xff]
        %v1167 = vld [vmem:[%s1162 + $0x30] sm:$0xff]
        %v1168 = vld [vmem:[%s1162 + $0x38] sm:$0xff]
        %v1169 = vld [vmem:[%s1162 + $0x48] sm:$0xff]
        %v1170 = vld [vmem:[%s1162 + $0x50] sm:$0xff]
        %v1171 = vld [vmem:[%s1162 + $0x60] sm:$0xff]
        %v1172 = vld [vmem:[%s1162 + $0x68] sm:$0xff]
        %v1173 = vld [vmem:[%s1162 + $0x78] sm:$0xff]
        %v1174 = vld [vmem:[%s1162 + $0x80] sm:$0xff]
        %v1175 = vld [vmem:[%s1162 + $0x90] sm:$0xff]
        %v1176 = vld [vmem:[%s1162 + $0x98] sm:$0xff]
        %v1177 = vld [vmem:[%s1162 + $0xa8] sm:$0xff]
        %v1178 = vld [vmem:[%s1162 + $0xb0] sm:$0xff]
        %v1179 = vmul.f32 %v1163, %v541
        %v1180 = vmul.f32 %v1164, %v541
        %v1181 = vmul.f32 %v1165, %v541
        %v1182 = vmul.f32 %v1166, %v541
        %v1183 = vmul.f32 %v1167, %v541
        %v1184 = vmul.f32 %v1168, %v541
        %v1185 = vmul.f32 %v1169, %v541
        %v1186 = vmul.f32 %v1170, %v541
        %v1187 = vmul.f32 %v1171, %v541
        %v1188 = vmul.f32 %v1172, %v541
        %v1189 = vmul.f32 %v1173, %v541
        %v1190 = vmul.f32 %v1174, %v541
        %v1191 = vmul.f32 %v1175, %v541
        %v1192 = vmul.f32 %v1176, %v541
        %v1193 = vmul.f32 %v1177, %v541
        %v1194 = vmul.f32 %v1178, %v541
        %v1195 = vadd.f32 %v1179, 0.0
        %v1196 = vadd.f32 %v1180, 0.0
        %v1197 = vadd.f32 %v1181, 0.0
        %v1198 = vadd.f32 %v1182, 0.0
        %v1199 = vadd.f32 %v1183, 0.0
        %v1200 = vadd.f32 %v1184, 0.0
        %v1201 = vadd.f32 %v1185, 0.0
        %v1202 = vadd.f32 %v1186, 0.0
        %v1203 = vadd.f32 %v1187, 0.0
        %v1204 = vadd.f32 %v1188, 0.0
        %v1205 = vadd.f32 %v1189, 0.0
        %v1206 = vadd.f32 %v1190, 0.0
        %v1207 = vadd.f32 %v1191, 0.0
        %v1208 = vadd.f32 %v1192, 0.0
        %v1209 = vadd.f32 %v1193, 0.0
        %v1210 = vadd.f32 %v1194, 0.0
        %v1211 = vld [vmem:[%s1162 + $0x1] sm:$0xff]
        %v1212 = vld [vmem:[%s1162 + $0x9] sm:$0xff]
        %v1213 = vld [vmem:[%s1162 + $0x19] sm:$0xff]
        %v1214 = vld [vmem:[%s1162 + $0x21] sm:$0xff]
        %v1215 = vld [vmem:[%s1162 + $0x31] sm:$0xff]
        %v1216 = vld [vmem:[%s1162 + $0x39] sm:$0xff]
        %v1217 = vld [vmem:[%s1162 + $0x49] sm:$0xff]
        %v1218 = vld [vmem:[%s1162 + $0x51] sm:$0xff]
        %v1219 = vld [vmem:[%s1162 + $0x61] sm:$0xff]
        %v1220 = vld [vmem:[%s1162 + $0x69] sm:$0xff]
        %v1221 = vld [vmem:[%s1162 + $0x79] sm:$0xff]
        %v1222 = vld [vmem:[%s1162 + $0x81] sm:$0xff]
        %v1223 = vld [vmem:[%s1162 + $0x91] sm:$0xff]
        %v1224 = vld [vmem:[%s1162 + $0x99] sm:$0xff]
        %v1225 = vld [vmem:[%s1162 + $0xa9] sm:$0xff]
        %v1226 = vld [vmem:[%s1162 + $0xb1] sm:$0xff]
        %v1227 = vmul.f32 %v1211, %v593
        %v1228 = vmul.f32 %v1212, %v593
        %v1229 = vmul.f32 %v1213, %v593
        %v1230 = vmul.f32 %v1214, %v593
        %v1231 = vmul.f32 %v1215, %v593
        %v1232 = vmul.f32 %v1216, %v593
        %v1233 = vmul.f32 %v1217, %v593
        %v1234 = vmul.f32 %v1218, %v593
        %v1235 = vmul.f32 %v1219, %v593
        %v1236 = vmul.f32 %v1220, %v593
        %v1237 = vmul.f32 %v1221, %v593
        %v1238 = vmul.f32 %v1222, %v593
        %v1239 = vmul.f32 %v1223, %v593
        %v1240 = vmul.f32 %v1224, %v593
        %v1241 = vmul.f32 %v1225, %v593
        %v1242 = vmul.f32 %v1226, %v593
        %v1243 = vadd.f32 %v1195, %v1227
        %v1244 = vadd.f32 %v1196, %v1228
        %v1245 = vadd.f32 %v1197, %v1229
        %v1246 = vadd.f32 %v1198, %v1230
        %v1247 = vadd.f32 %v1199, %v1231
        %v1248 = vadd.f32 %v1200, %v1232
        %v1249 = vadd.f32 %v1201, %v1233
        %v1250 = vadd.f32 %v1202, %v1234
        %v1251 = vadd.f32 %v1203, %v1235
        %v1252 = vadd.f32 %v1204, %v1236
        %v1253 = vadd.f32 %v1205, %v1237
        %v1254 = vadd.f32 %v1206, %v1238
        %v1255 = vadd.f32 %v1207, %v1239
        %v1256 = vadd.f32 %v1208, %v1240
        %v1257 = vadd.f32 %v1209, %v1241
        %v1258 = vadd.f32 %v1210, %v1242
        %v1259 = vld [vmem:[%s1162 + $0x2] sm:$0xff]
        %v1260 = vld [vmem:[%s1162 + $0xa] sm:$0xff]
        %v1261 = vld [vmem:[%s1162 + $0x1a] sm:$0xff]
        %v1262 = vld [vmem:[%s1162 + $0x22] sm:$0xff]
        %v1263 = vld [vmem:[%s1162 + $0x32] sm:$0xff]
        %v1264 = vld [vmem:[%s1162 + $0x3a] sm:$0xff]
        %v1265 = vld [vmem:[%s1162 + $0x4a] sm:$0xff]
        %v1266 = vld [vmem:[%s1162 + $0x52] sm:$0xff]
        %v1267 = vld [vmem:[%s1162 + $0x62] sm:$0xff]
        %v1268 = vld [vmem:[%s1162 + $0x6a] sm:$0xff]
        %v1269 = vld [vmem:[%s1162 + $0x7a] sm:$0xff]
        %v1270 = vld [vmem:[%s1162 + $0x82] sm:$0xff]
        %v1271 = vld [vmem:[%s1162 + $0x92] sm:$0xff]
        %v1272 = vld [vmem:[%s1162 + $0x9a] sm:$0xff]
        %v1273 = vld [vmem:[%s1162 + $0xaa] sm:$0xff]
        %v1274 = vld [vmem:[%s1162 + $0xb2] sm:$0xff]
        %v1275 = vmul.f32 %v1259, %v645
        %v1276 = vmul.f32 %v1260, %v645
        %v1277 = vmul.f32 %v1261, %v645
        %v1278 = vmul.f32 %v1262, %v645
        %v1279 = vmul.f32 %v1263, %v645
        %v1280 = vmul.f32 %v1264, %v645
        %v1281 = vmul.f32 %v1265, %v645
        %v1282 = vmul.f32 %v1266, %v645
        %v1283 = vmul.f32 %v1267, %v645
        %v1284 = vmul.f32 %v1268, %v645
        %v1285 = vmul.f32 %v1269, %v645
        %v1286 = vmul.f32 %v1270, %v645
        %v1287 = vmul.f32 %v1271, %v645
        %v1288 = vmul.f32 %v1272, %v645
        %v1289 = vmul.f32 %v1273, %v645
        %v1290 = vmul.f32 %v1274, %v645
        %v1291 = vadd.f32 %v1243, %v1275
        %v1292 = vadd.f32 %v1244, %v1276
        %v1293 = vadd.f32 %v1245, %v1277
        %v1294 = vadd.f32 %v1246, %v1278
        %v1295 = vadd.f32 %v1247, %v1279
        %v1296 = vadd.f32 %v1248, %v1280
        %v1297 = vadd.f32 %v1249, %v1281
        %v1298 = vadd.f32 %v1250, %v1282
        %v1299 = vadd.f32 %v1251, %v1283
        %v1300 = vadd.f32 %v1252, %v1284
        %v1301 = vadd.f32 %v1253, %v1285
        %v1302 = vadd.f32 %v1254, %v1286
        %v1303 = vadd.f32 %v1255, %v1287
        %v1304 = vadd.f32 %v1256, %v1288
        %v1305 = vadd.f32 %v1257, %v1289
        %v1306 = vadd.f32 %v1258, %v1290
        %s1307 = scalar_lea.vmem [#allocation2], 216
        %v1308 = vld [vmem:[%s1307] sm:$0xff]
        %v1309 = vld [vmem:[%s1307 + $0x8] sm:$0xff]
        %v1310 = vld [vmem:[%s1307 + $0x18] sm:$0xff]
        %v1311 = vld [vmem:[%s1307 + $0x20] sm:$0xff]
        %v1312 = vld [vmem:[%s1307 + $0x30] sm:$0xff]
        %v1313 = vld [vmem:[%s1307 + $0x38] sm:$0xff]
        %v1314 = vld [vmem:[%s1307 + $0x48] sm:$0xff]
        %v1315 = vld [vmem:[%s1307 + $0x50] sm:$0xff]
        %v1316 = vld [vmem:[%s1307 + $0x60] sm:$0xff]
        %v1317 = vld [vmem:[%s1307 + $0x68] sm:$0xff]
        %v1318 = vld [vmem:[%s1307 + $0x78] sm:$0xff]
        %v1319 = vld [vmem:[%s1307 + $0x80] sm:$0xff]
        %v1320 = vld [vmem:[%s1307 + $0x90] sm:$0xff]
        %v1321 = vld [vmem:[%s1307 + $0x98] sm:$0xff]
        %v1322 = vld [vmem:[%s1307 + $0xa8] sm:$0xff]
        %v1323 = vld [vmem:[%s1307 + $0xb0] sm:$0xff]
        %v1324 = vmul.f32 %v1308, %v697
        %v1325 = vmul.f32 %v1309, %v697
        %v1326 = vmul.f32 %v1310, %v697
        %v1327 = vmul.f32 %v1311, %v697
        %v1328 = vmul.f32 %v1312, %v697
        %v1329 = vmul.f32 %v1313, %v697
        %v1330 = vmul.f32 %v1314, %v697
        %v1331 = vmul.f32 %v1315, %v697
        %v1332 = vmul.f32 %v1316, %v697
        %v1333 = vmul.f32 %v1317, %v697
        %v1334 = vmul.f32 %v1318, %v697
        %v1335 = vmul.f32 %v1319, %v697
        %v1336 = vmul.f32 %v1320, %v697
        %v1337 = vmul.f32 %v1321, %v697
        %v1338 = vmul.f32 %v1322, %v697
        %v1339 = vmul.f32 %v1323, %v697
        %v1340 = vadd.f32 %v1291, %v1324
        %v1341 = vadd.f32 %v1292, %v1325
        %v1342 = vadd.f32 %v1293, %v1326
        %v1343 = vadd.f32 %v1294, %v1327
        %v1344 = vadd.f32 %v1295, %v1328
        %v1345 = vadd.f32 %v1296, %v1329
        %v1346 = vadd.f32 %v1297, %v1330
        %v1347 = vadd.f32 %v1298, %v1331
        %v1348 = vadd.f32 %v1299, %v1332
        %v1349 = vadd.f32 %v1300, %v1333
        %v1350 = vadd.f32 %v1301, %v1334
        %v1351 = vadd.f32 %v1302, %v1335
        %v1352 = vadd.f32 %v1303, %v1336
        %v1353 = vadd.f32 %v1304, %v1337
        %v1354 = vadd.f32 %v1305, %v1338
        %v1355 = vadd.f32 %v1306, %v1339
        %v1356 = vld [vmem:[%s1307 + $0x1] sm:$0xff]
        %v1357 = vld [vmem:[%s1307 + $0x9] sm:$0xff]
        %v1358 = vld [vmem:[%s1307 + $0x19] sm:$0xff]
        %v1359 = vld [vmem:[%s1307 + $0x21] sm:$0xff]
        %v1360 = vld [vmem:[%s1307 + $0x31] sm:$0xff]
        %v1361 = vld [vmem:[%s1307 + $0x39] sm:$0xff]
        %v1362 = vld [vmem:[%s1307 + $0x49] sm:$0xff]
        %v1363 = vld [vmem:[%s1307 + $0x51] sm:$0xff]
        %v1364 = vld [vmem:[%s1307 + $0x61] sm:$0xff]
        %v1365 = vld [vmem:[%s1307 + $0x69] sm:$0xff]
        %v1366 = vld [vmem:[%s1307 + $0x79] sm:$0xff]
        %v1367 = vld [vmem:[%s1307 + $0x81] sm:$0xff]
        %v1368 = vld [vmem:[%s1307 + $0x91] sm:$0xff]
        %v1369 = vld [vmem:[%s1307 + $0x99] sm:$0xff]
        %v1370 = vld [vmem:[%s1307 + $0xa9] sm:$0xff]
        %v1371 = vld [vmem:[%s1307 + $0xb1] sm:$0xff]
        %v1372 = vmul.f32 %v1356, %v749
        %v1373 = vmul.f32 %v1357, %v749
        %v1374 = vmul.f32 %v1358, %v749
        %v1375 = vmul.f32 %v1359, %v749
        %v1376 = vmul.f32 %v1360, %v749
        %v1377 = vmul.f32 %v1361, %v749
        %v1378 = vmul.f32 %v1362, %v749
        %v1379 = vmul.f32 %v1363, %v749
        %v1380 = vmul.f32 %v1364, %v749
        %v1381 = vmul.f32 %v1365, %v749
        %v1382 = vmul.f32 %v1366, %v749
        %v1383 = vmul.f32 %v1367, %v749
        %v1384 = vmul.f32 %v1368, %v749
        %v1385 = vmul.f32 %v1369, %v749
        %v1386 = vmul.f32 %v1370, %v749
        %v1387 = vmul.f32 %v1371, %v749
        %v1388 = vadd.f32 %v1340, %v1372
        %v1389 = vadd.f32 %v1341, %v1373
        %v1390 = vadd.f32 %v1342, %v1374
        %v1391 = vadd.f32 %v1343, %v1375
        %v1392 = vadd.f32 %v1344, %v1376
        %v1393 = vadd.f32 %v1345, %v1377
        %v1394 = vadd.f32 %v1346, %v1378
        %v1395 = vadd.f32 %v1347, %v1379
        %v1396 = vadd.f32 %v1348, %v1380
        %v1397 = vadd.f32 %v1349, %v1381
        %v1398 = vadd.f32 %v1350, %v1382
        %v1399 = vadd.f32 %v1351, %v1383
        %v1400 = vadd.f32 %v1352, %v1384
        %v1401 = vadd.f32 %v1353, %v1385
        %v1402 = vadd.f32 %v1354, %v1386
        %v1403 = vadd.f32 %v1355, %v1387
        %v1404 = vld [vmem:[%s1307 + $0x2] sm:$0xff]
        %v1405 = vld [vmem:[%s1307 + $0xa] sm:$0xff]
        %v1406 = vld [vmem:[%s1307 + $0x1a] sm:$0xff]
        %v1407 = vld [vmem:[%s1307 + $0x22] sm:$0xff]
        %v1408 = vld [vmem:[%s1307 + $0x32] sm:$0xff]
        %v1409 = vld [vmem:[%s1307 + $0x3a] sm:$0xff]
        %v1410 = vld [vmem:[%s1307 + $0x4a] sm:$0xff]
        %v1411 = vld [vmem:[%s1307 + $0x52] sm:$0xff]
        %v1412 = vld [vmem:[%s1307 + $0x62] sm:$0xff]
        %v1413 = vld [vmem:[%s1307 + $0x6a] sm:$0xff]
        %v1414 = vld [vmem:[%s1307 + $0x7a] sm:$0xff]
        %v1415 = vld [vmem:[%s1307 + $0x82] sm:$0xff]
        %v1416 = vld [vmem:[%s1307 + $0x92] sm:$0xff]
        %v1417 = vld [vmem:[%s1307 + $0x9a] sm:$0xff]
        %v1418 = vld [vmem:[%s1307 + $0xaa] sm:$0xff]
        %v1419 = vld [vmem:[%s1307 + $0xb2] sm:$0xff]
        %v1420 = vmul.f32 %v1404, %v801
        %v1421 = vmul.f32 %v1405, %v801
        %v1422 = vmul.f32 %v1406, %v801
        %v1423 = vmul.f32 %v1407, %v801
        %v1424 = vmul.f32 %v1408, %v801
        %v1425 = vmul.f32 %v1409, %v801
        %v1426 = vmul.f32 %v1410, %v801
        %v1427 = vmul.f32 %v1411, %v801
        %v1428 = vmul.f32 %v1412, %v801
        %v1429 = vmul.f32 %v1413, %v801
        %v1430 = vmul.f32 %v1414, %v801
        %v1431 = vmul.f32 %v1415, %v801
        %v1432 = vmul.f32 %v1416, %v801
        %v1433 = vmul.f32 %v1417, %v801
        %v1434 = vmul.f32 %v1418, %v801
        %v1435 = vmul.f32 %v1419, %v801
        %v1436 = vadd.f32 %v1388, %v1420
        %v1437 = vadd.f32 %v1389, %v1421
        %v1438 = vadd.f32 %v1390, %v1422
        %v1439 = vadd.f32 %v1391, %v1423
        %v1440 = vadd.f32 %v1392, %v1424
        %v1441 = vadd.f32 %v1393, %v1425
        %v1442 = vadd.f32 %v1394, %v1426
        %v1443 = vadd.f32 %v1395, %v1427
        %v1444 = vadd.f32 %v1396, %v1428
        %v1445 = vadd.f32 %v1397, %v1429
        %v1446 = vadd.f32 %v1398, %v1430
        %v1447 = vadd.f32 %v1399, %v1431
        %v1448 = vadd.f32 %v1400, %v1432
        %v1449 = vadd.f32 %v1401, %v1433
        %v1450 = vadd.f32 %v1402, %v1434
        %v1451 = vadd.f32 %v1403, %v1435
        %s1452 = scalar_lea.vmem [#allocation2], 240
        %v1453 = vld [vmem:[%s1452] sm:$0xff]
        %v1454 = vld [vmem:[%s1452 + $0x8] sm:$0xff]
        %v1455 = vld [vmem:[%s1452 + $0x18] sm:$0xff]
        %v1456 = vld [vmem:[%s1452 + $0x20] sm:$0xff]
        %v1457 = vld [vmem:[%s1452 + $0x30] sm:$0xff]
        %v1458 = vld [vmem:[%s1452 + $0x38] sm:$0xff]
        %v1459 = vld [vmem:[%s1452 + $0x48] sm:$0xff]
        %v1460 = vld [vmem:[%s1452 + $0x50] sm:$0xff]
        %v1461 = vld [vmem:[%s1452 + $0x60] sm:$0xff]
        %v1462 = vld [vmem:[%s1452 + $0x68] sm:$0xff]
        %v1463 = vld [vmem:[%s1452 + $0x78] sm:$0xff]
        %v1464 = vld [vmem:[%s1452 + $0x80] sm:$0xff]
        %v1465 = vld [vmem:[%s1452 + $0x90] sm:$0xff]
        %v1466 = vld [vmem:[%s1452 + $0x98] sm:$0xff]
        %v1467 = vld [vmem:[%s1452 + $0xa8] sm:$0xff]
        %v1468 = vld [vmem:[%s1452 + $0xb0] sm:$0xff]
        %v1469 = vmul.f32 %v1453, %v854
        %v1470 = vmul.f32 %v1454, %v854
        %v1471 = vmul.f32 %v1455, %v854
        %v1472 = vmul.f32 %v1456, %v854
        %v1473 = vmul.f32 %v1457, %v854
        %v1474 = vmul.f32 %v1458, %v854
        %v1475 = vmul.f32 %v1459, %v854
        %v1476 = vmul.f32 %v1460, %v854
        %v1477 = vmul.f32 %v1461, %v854
        %v1478 = vmul.f32 %v1462, %v854
        %v1479 = vmul.f32 %v1463, %v854
        %v1480 = vmul.f32 %v1464, %v854
        %v1481 = vmul.f32 %v1465, %v854
        %v1482 = vmul.f32 %v1466, %v854
        %v1483 = vmul.f32 %v1467, %v854
        %v1484 = vmul.f32 %v1468, %v854
        %v1485 = vadd.f32 %v1436, %v1469
        %v1486 = vadd.f32 %v1437, %v1470
        %v1487 = vadd.f32 %v1438, %v1471
        %v1488 = vadd.f32 %v1439, %v1472
        %v1489 = vadd.f32 %v1440, %v1473
        %v1490 = vadd.f32 %v1441, %v1474
        %v1491 = vadd.f32 %v1442, %v1475
        %v1492 = vadd.f32 %v1443, %v1476
        %v1493 = vadd.f32 %v1444, %v1477
        %v1494 = vadd.f32 %v1445, %v1478
        %v1495 = vadd.f32 %v1446, %v1479
        %v1496 = vadd.f32 %v1447, %v1480
        %v1497 = vadd.f32 %v1448, %v1481
        %v1498 = vadd.f32 %v1449, %v1482
        %v1499 = vadd.f32 %v1450, %v1483
        %v1500 = vadd.f32 %v1451, %v1484
        %v1501 = vld [vmem:[%s1452 + $0x1] sm:$0xff]
        %v1502 = vld [vmem:[%s1452 + $0x9] sm:$0xff]
        %v1503 = vld [vmem:[%s1452 + $0x19] sm:$0xff]
        %v1504 = vld [vmem:[%s1452 + $0x21] sm:$0xff]
        %v1505 = vld [vmem:[%s1452 + $0x31] sm:$0xff]
        %v1506 = vld [vmem:[%s1452 + $0x39] sm:$0xff]
        %v1507 = vld [vmem:[%s1452 + $0x49] sm:$0xff]
        %v1508 = vld [vmem:[%s1452 + $0x51] sm:$0xff]
        %v1509 = vld [vmem:[%s1452 + $0x61] sm:$0xff]
        %v1510 = vld [vmem:[%s1452 + $0x69] sm:$0xff]
        %v1511 = vld [vmem:[%s1452 + $0x79] sm:$0xff]
        %v1512 = vld [vmem:[%s1452 + $0x81] sm:$0xff]
        %v1513 = vld [vmem:[%s1452 + $0x91] sm:$0xff]
        %v1514 = vld [vmem:[%s1452 + $0x99] sm:$0xff]
        %v1515 = vld [vmem:[%s1452 + $0xa9] sm:$0xff]
        %v1516 = vld [vmem:[%s1452 + $0xb1] sm:$0xff]
        %v1517 = vmul.f32 %v1501, %v906
        %v1518 = vmul.f32 %v1502, %v906
        %v1519 = vmul.f32 %v1503, %v906
        %v1520 = vmul.f32 %v1504, %v906
        %v1521 = vmul.f32 %v1505, %v906
        %v1522 = vmul.f32 %v1506, %v906
        %v1523 = vmul.f32 %v1507, %v906
        %v1524 = vmul.f32 %v1508, %v906
        %v1525 = vmul.f32 %v1509, %v906
        %v1526 = vmul.f32 %v1510, %v906
        %v1527 = vmul.f32 %v1511, %v906
        %v1528 = vmul.f32 %v1512, %v906
        %v1529 = vmul.f32 %v1513, %v906
        %v1530 = vmul.f32 %v1514, %v906
        %v1531 = vmul.f32 %v1515, %v906
        %v1532 = vmul.f32 %v1516, %v906
        %v1533 = vadd.f32 %v1485, %v1517
        %v1534 = vadd.f32 %v1486, %v1518
        %v1535 = vadd.f32 %v1487, %v1519
        %v1536 = vadd.f32 %v1488, %v1520
        %v1537 = vadd.f32 %v1489, %v1521
        %v1538 = vadd.f32 %v1490, %v1522
        %v1539 = vadd.f32 %v1491, %v1523
        %v1540 = vadd.f32 %v1492, %v1524
        %v1541 = vadd.f32 %v1493, %v1525
        %v1542 = vadd.f32 %v1494, %v1526
        %v1543 = vadd.f32 %v1495, %v1527
        %v1544 = vadd.f32 %v1496, %v1528
        %v1545 = vadd.f32 %v1497, %v1529
        %v1546 = vadd.f32 %v1498, %v1530
        %v1547 = vadd.f32 %v1499, %v1531
        %v1548 = vadd.f32 %v1500, %v1532
        %v1549 = vld [vmem:[%s1452 + $0x2] sm:$0xff]
        %v1550 = vld [vmem:[%s1452 + $0xa] sm:$0xff]
        %v1551 = vld [vmem:[%s1452 + $0x1a] sm:$0xff]
        %v1552 = vld [vmem:[%s1452 + $0x22] sm:$0xff]
        %v1553 = vld [vmem:[%s1452 + $0x32] sm:$0xff]
        %v1554 = vld [vmem:[%s1452 + $0x3a] sm:$0xff]
        %v1555 = vld [vmem:[%s1452 + $0x4a] sm:$0xff]
        %v1556 = vld [vmem:[%s1452 + $0x52] sm:$0xff]
        %v1557 = vld [vmem:[%s1452 + $0x62] sm:$0xff]
        %v1558 = vld [vmem:[%s1452 + $0x6a] sm:$0xff]
        %v1559 = vld [vmem:[%s1452 + $0x7a] sm:$0xff]
        %v1560 = vld [vmem:[%s1452 + $0x82] sm:$0xff]
        %v1561 = vld [vmem:[%s1452 + $0x92] sm:$0xff]
        %v1562 = vld [vmem:[%s1452 + $0x9a] sm:$0xff]
        %v1563 = vld [vmem:[%s1452 + $0xaa] sm:$0xff]
        %v1564 = vld [vmem:[%s1452 + $0xb2] sm:$0xff]
        %v1565 = vmul.f32 %v1549, %v958
        %v1566 = vmul.f32 %v1550, %v958
        %v1567 = vmul.f32 %v1551, %v958
        %v1568 = vmul.f32 %v1552, %v958
        %v1569 = vmul.f32 %v1553, %v958
        %v1570 = vmul.f32 %v1554, %v958
        %v1571 = vmul.f32 %v1555, %v958
        %v1572 = vmul.f32 %v1556, %v958
        %v1573 = vmul.f32 %v1557, %v958
        %v1574 = vmul.f32 %v1558, %v958
        %v1575 = vmul.f32 %v1559, %v958
        %v1576 = vmul.f32 %v1560, %v958
        %v1577 = vmul.f32 %v1561, %v958
        %v1578 = vmul.f32 %v1562, %v958
        %v1579 = vmul.f32 %v1563, %v958
        %v1580 = vmul.f32 %v1564, %v958
        %v1581 = vadd.f32 %v1533, %v1565
        %v1582 = vadd.f32 %v1534, %v1566
        %v1583 = vadd.f32 %v1535, %v1567
        %v1584 = vadd.f32 %v1536, %v1568
        %v1585 = vadd.f32 %v1537, %v1569
        %v1586 = vadd.f32 %v1538, %v1570
        %v1587 = vadd.f32 %v1539, %v1571
        %v1588 = vadd.f32 %v1540, %v1572
        %v1589 = vadd.f32 %v1541, %v1573
        %v1590 = vadd.f32 %v1542, %v1574
        %v1591 = vadd.f32 %v1543, %v1575
        %v1592 = vadd.f32 %v1544, %v1576
        %v1593 = vadd.f32 %v1545, %v1577
        %v1594 = vadd.f32 %v1546, %v1578
        %v1595 = vadd.f32 %v1547, %v1579
        %v1596 = vadd.f32 %v1548, %v1580
        %v1597 = vpack.c.bf16 %v1582, %v1581
        %v1598 = vpack.c.bf16 %v1584, %v1583
        %v1599 = vpack.c.bf16 %v1586, %v1585
        %v1600 = vpack.c.bf16 %v1588, %v1587
        %v1601 = vpack.c.bf16 %v1590, %v1589
        %v1602 = vpack.c.bf16 %v1592, %v1591
        %v1603 = vpack.c.bf16 %v1594, %v1593
        %v1604 = vpack.c.bf16 %v1596, %v1595
        %v1606 = vsel %vm305, %v1597, 0
        %v1609 = vsel %vm305, %v1598, 0
        %v1612 = vsel %vm305, %v1599, 0
        %v1615 = vsel %vm305, %v1600, 0
        %v1618 = vsel %vm305, %v1601, 0
        %v1621 = vsel %vm305, %v1602, 0
        %v1624 = vsel %vm305, %v1603, 0
        %v1627 = vsel %vm305, %v1604, 0
        %1629 = vmatprep.subr.bf16.mxu0 0
        %1630 = vmatpush1.bf16.msra.mxu0 0
        %1631 = vmatprep.subr.bf16.mxu0 0
        %1632 = vmatpush1.bf16.msra.mxu0 0
        %1633 = vmatprep.subr.bf16.mxu0 0
        %1634 = vmatpush1.bf16.msra.mxu0 0
        %1635 = vmatprep.subr.bf16.mxu0 0
        %1636 = vmatpush1.bf16.msra.mxu0 0
        %1637 = vmatprep.subr.bf16.mxu0 0
        %1638 = vmatpush1.bf16.msra.mxu0 0
        %1639 = vmatprep.subr.bf16.mxu0 0
        %1640 = vmatpush1.bf16.msra.mxu0 0
        %1641 = vmatprep.subr.bf16.mxu0 0
        %1642 = vmatpush1.bf16.msra.mxu0 0
        %1643 = vmatprep.subr.bf16.mxu0 0
        %1644 = vmatpush1.bf16.msra.mxu0 %v1007
        %1645 = vmatprep.subr.bf16.mxu0 0
        %1646 = vmatpush2.bf16.msra.mxu0 0
        %1647 = vmatprep.subr.bf16.mxu0 0
        %1648 = vmatpush2.bf16.msra.mxu0 0
        %1649 = vmatprep.subr.bf16.mxu0 0
        %1650 = vmatpush2.bf16.msra.mxu0 0
        %1651 = vmatprep.subr.bf16.mxu0 0
        %1652 = vmatpush2.bf16.msra.mxu0 0
        %1653 = vmatprep.subr.bf16.mxu0 0
        %1654 = vmatpush2.bf16.msra.mxu0 0
        %1655 = vmatprep.subr.bf16.mxu0 0
        %1656 = vmatpush2.bf16.msra.mxu0 0
        %1657 = vmatprep.subr.bf16.mxu0 0
        %1658 = vmatpush2.bf16.msra.mxu0 0
        %1659 = vmatprep.subr.bf16.mxu0 0
        %1660 = vmatpush2.bf16.msra.mxu0 0
        %1661 = vmatprep.mubr.bf16.mxu0 0
        %1662 = vmatmul.mubr.bf16.gmra.mxu0 %v1606
        %v1663 = vpop.f32.mrf.mxu0
        %v1664 = vadd.f32 %v1002, %v1663
        %v1665 = vpop.f32.mrf.mxu0
        %v1666 = vpop.f32.mrf.mxu0
        %v1667 = vadd.f32 %v1002, %v1666
        %v1668 = vpop.f32.mrf.mxu0
        %1669 = vmatprep.mubr.bf16.mxu0 0
        %1670 = vmatmul.mubr.bf16.gmra.mxu0 %v1609
        %v1671 = vpop.f32.mrf.mxu0
        %v1672 = vadd.f32 %v1002, %v1671
        %v1673 = vpop.f32.mrf.mxu0
        %v1674 = vpop.f32.mrf.mxu0
        %v1675 = vadd.f32 %v1002, %v1674
        %v1676 = vpop.f32.mrf.mxu0
        %1677 = vmatprep.mubr.bf16.mxu0 0
        %1678 = vmatmul.mubr.bf16.gmra.mxu0 %v1612
        %v1679 = vpop.f32.mrf.mxu0
        %v1680 = vadd.f32 %v1002, %v1679
        %v1681 = vpop.f32.mrf.mxu0
        %v1682 = vpop.f32.mrf.mxu0
        %v1683 = vadd.f32 %v1002, %v1682
        %v1684 = vpop.f32.mrf.mxu0
        %1685 = vmatprep.mubr.bf16.mxu0 0
        %1686 = vmatmul.mubr.bf16.gmra.mxu0 %v1615
        %v1687 = vpop.f32.mrf.mxu0
        %v1688 = vadd.f32 %v1002, %v1687
        %v1689 = vpop.f32.mrf.mxu0
        %v1690 = vpop.f32.mrf.mxu0
        %v1691 = vadd.f32 %v1002, %v1690
        %v1692 = vpop.f32.mrf.mxu0
        %1693 = vmatprep.mubr.bf16.mxu0 0
        %1694 = vmatmul.mubr.bf16.gmra.mxu0 %v1618
        %v1695 = vpop.f32.mrf.mxu0
        %v1696 = vadd.f32 %v1002, %v1695
        %v1697 = vpop.f32.mrf.mxu0
        %v1698 = vpop.f32.mrf.mxu0
        %v1699 = vadd.f32 %v1002, %v1698
        %v1700 = vpop.f32.mrf.mxu0
        %1701 = vmatprep.mubr.bf16.mxu0 0
        %1702 = vmatmul.mubr.bf16.gmra.mxu0 %v1621
        %v1703 = vpop.f32.mrf.mxu0
        %v1704 = vadd.f32 %v1002, %v1703
        %v1705 = vpop.f32.mrf.mxu0
        %v1706 = vpop.f32.mrf.mxu0
        %v1707 = vadd.f32 %v1002, %v1706
        %v1708 = vpop.f32.mrf.mxu0
        %1709 = vmatprep.mubr.bf16.mxu0 0
        %1710 = vmatmul.mubr.bf16.gmra.mxu0 %v1624
        %v1711 = vpop.f32.mrf.mxu0
        %v1712 = vadd.f32 %v1002, %v1711
        %v1713 = vpop.f32.mrf.mxu0
        %v1714 = vpop.f32.mrf.mxu0
        %v1715 = vadd.f32 %v1002, %v1714
        %v1716 = vpop.f32.mrf.mxu0
        %1717 = vmatprep.mubr.bf16.mxu0 0
        %1718 = vmatmul.mubr.bf16.gmra.mxu0 %v1627
        %v1719 = vpop.f32.mrf.mxu0
        %v1720 = vadd.f32 %v1002, %v1719
        %v1721 = vpop.f32.mrf.mxu0
        %v1722 = vpop.f32.mrf.mxu0
        %v1723 = vadd.f32 %v1002, %v1722
        %v1724 = vpop.f32.mrf.mxu0
        %1725 = vdwg.mxu0
        %v1726 = vmax.f32 %v1664, 0.0
        %v1727 = vmax.f32 %v1667, 0.0
        %v1728 = vmax.f32 %v1672, 0.0
        %v1729 = vmax.f32 %v1675, 0.0
        %v1730 = vmax.f32 %v1680, 0.0
        %v1731 = vmax.f32 %v1683, 0.0
        %v1732 = vmax.f32 %v1688, 0.0
        %v1733 = vmax.f32 %v1691, 0.0
        %v1734 = vmax.f32 %v1696, 0.0
        %v1735 = vmax.f32 %v1699, 0.0
        %v1736 = vmax.f32 %v1704, 0.0
        %v1737 = vmax.f32 %v1707, 0.0
        %v1738 = vmax.f32 %v1712, 0.0
        %v1739 = vmax.f32 %v1715, 0.0
        %v1740 = vmax.f32 %v1720, 0.0
        %v1741 = vmax.f32 %v1723, 0.0
        %s1742 = scalar_lea.vmem [#allocation3], 216
        %1743 = vst.msk [vmem:[%s1742 + $0x1] sm:$0xff] %vm348, %v1726
        %1744 = vst.msk [vmem:[%s1742 + $0x9] sm:$0xff] %vm348, %v1727
        %1745 = vst.msk [vmem:[%s1742 + $0x19] sm:$0xff] %vm348, %v1728
        %1746 = vst.msk [vmem:[%s1742 + $0x21] sm:$0xff] %vm348, %v1729
        %1747 = vst.msk [vmem:[%s1742 + $0x31] sm:$0xff] %vm348, %v1730
        %1748 = vst.msk [vmem:[%s1742 + $0x39] sm:$0xff] %vm348, %v1731
        %1749 = vst.msk [vmem:[%s1742 + $0x49] sm:$0xff] %vm348, %v1732
        %1750 = vst.msk [vmem:[%s1742 + $0x51] sm:$0xff] %vm348, %v1733
        %1751 = vst.msk [vmem:[%s1742 + $0x61] sm:$0xff] %vm348, %v1734
        %1752 = vst.msk [vmem:[%s1742 + $0x69] sm:$0xff] %vm348, %v1735
        %1753 = vst.msk [vmem:[%s1742 + $0x79] sm:$0xff] %vm348, %v1736
        %1754 = vst.msk [vmem:[%s1742 + $0x81] sm:$0xff] %vm348, %v1737
        %1755 = vst.msk [vmem:[%s1742 + $0x91] sm:$0xff] %vm348, %v1738
        %1756 = vst.msk [vmem:[%s1742 + $0x99] sm:$0xff] %vm348, %v1739
        %1757 = vst.msk [vmem:[%s1742 + $0xa9] sm:$0xff] %vm348, %v1740
        %1758 = vst.msk [vmem:[%s1742 + $0xb1] sm:$0xff] %vm348, %v1741
        %v1759 = vld [vmem:[#allocation3] sm:$0xff]
        %v1760 = vld [vmem:[#allocation3 + $0x8] sm:$0xff]
        %v1761 = vld [vmem:[#allocation3 + $0x18] sm:$0xff]
        %v1762 = vld [vmem:[#allocation3 + $0x20] sm:$0xff]
        %v1763 = vld [vmem:[#allocation3 + $0x30] sm:$0xff]
        %v1764 = vld [vmem:[#allocation3 + $0x38] sm:$0xff]
        %v1765 = vld [vmem:[#allocation3 + $0x48] sm:$0xff]
        %v1766 = vld [vmem:[#allocation3 + $0x50] sm:$0xff]
        %v1767 = vld [vmem:[#allocation3 + $0x60] sm:$0xff]
        %v1768 = vld [vmem:[#allocation3 + $0x68] sm:$0xff]
        %v1769 = vld [vmem:[#allocation3 + $0x78] sm:$0xff]
        %v1770 = vld [vmem:[#allocation3 + $0x80] sm:$0xff]
        %v1771 = vld [vmem:[#allocation3 + $0x90] sm:$0xff]
        %v1772 = vld [vmem:[#allocation3 + $0x98] sm:$0xff]
        %v1773 = vld [vmem:[#allocation3 + $0xa8] sm:$0xff]
        %v1774 = vld [vmem:[#allocation3 + $0xb0] sm:$0xff]
        %v1775 = vlaneseq
        %v1776 = vshrl.u32 %v1775, 7
        %v1777 = vsub.s32 0, %v1776
        %v1778 = vrot.slane %v414, %v1777
        %v1779 = vmul.f32 %v1759, %v1778
        %v1780 = vmul.f32 %v1760, %v1778
        %v1781 = vmul.f32 %v1761, %v1778
        %v1782 = vmul.f32 %v1762, %v1778
        %v1783 = vmul.f32 %v1763, %v1778
        %v1784 = vmul.f32 %v1764, %v1778
        %v1785 = vmul.f32 %v1765, %v1778
        %v1786 = vmul.f32 %v1766, %v1778
        %v1787 = vmul.f32 %v1767, %v1778
        %v1788 = vmul.f32 %v1768, %v1778
        %v1789 = vmul.f32 %v1769, %v1778
        %v1790 = vmul.f32 %v1770, %v1778
        %v1791 = vmul.f32 %v1771, %v1778
        %v1792 = vmul.f32 %v1772, %v1778
        %v1793 = vmul.f32 %v1773, %v1778
        %v1794 = vmul.f32 %v1774, %v1778
        %v1795 = vadd.f32 %v1779, 0.0
        %v1796 = vadd.f32 %v1780, 0.0
        %v1797 = vadd.f32 %v1781, 0.0
        %v1798 = vadd.f32 %v1782, 0.0
        %v1799 = vadd.f32 %v1783, 0.0
        %v1800 = vadd.f32 %v1784, 0.0
        %v1801 = vadd.f32 %v1785, 0.0
        %v1802 = vadd.f32 %v1786, 0.0
        %v1803 = vadd.f32 %v1787, 0.0
        %v1804 = vadd.f32 %v1788, 0.0
        %v1805 = vadd.f32 %v1789, 0.0
        %v1806 = vadd.f32 %v1790, 0.0
        %v1807 = vadd.f32 %v1791, 0.0
        %v1808 = vadd.f32 %v1792, 0.0
        %v1809 = vadd.f32 %v1793, 0.0
        %v1810 = vadd.f32 %v1794, 0.0
        %v1811 = vld [vmem:[#allocation3 + $0x1] sm:$0xff]
        %v1812 = vld [vmem:[#allocation3 + $0x9] sm:$0xff]
        %v1813 = vld [vmem:[#allocation3 + $0x19] sm:$0xff]
        %v1814 = vld [vmem:[#allocation3 + $0x21] sm:$0xff]
        %v1815 = vld [vmem:[#allocation3 + $0x31] sm:$0xff]
        %v1816 = vld [vmem:[#allocation3 + $0x39] sm:$0xff]
        %v1817 = vld [vmem:[#allocation3 + $0x49] sm:$0xff]
        %v1818 = vld [vmem:[#allocation3 + $0x51] sm:$0xff]
        %v1819 = vld [vmem:[#allocation3 + $0x61] sm:$0xff]
        %v1820 = vld [vmem:[#allocation3 + $0x69] sm:$0xff]
        %v1821 = vld [vmem:[#allocation3 + $0x79] sm:$0xff]
        %v1822 = vld [vmem:[#allocation3 + $0x81] sm:$0xff]
        %v1823 = vld [vmem:[#allocation3 + $0x91] sm:$0xff]
        %v1824 = vld [vmem:[#allocation3 + $0x99] sm:$0xff]
        %v1825 = vld [vmem:[#allocation3 + $0xa9] sm:$0xff]
        %v1826 = vld [vmem:[#allocation3 + $0xb1] sm:$0xff]
        %v1827 = vlaneseq
        %v1828 = vshrl.u32 %v1827, 7
        %v1829 = vsub.s32 1, %v1828
        %v1830 = vrot.slane %v414, %v1829
        %v1831 = vmul.f32 %v1811, %v1830
        %v1832 = vmul.f32 %v1812, %v1830
        %v1833 = vmul.f32 %v1813, %v1830
        %v1834 = vmul.f32 %v1814, %v1830
        %v1835 = vmul.f32 %v1815, %v1830
        %v1836 = vmul.f32 %v1816, %v1830
        %v1837 = vmul.f32 %v1817, %v1830
        %v1838 = vmul.f32 %v1818, %v1830
        %v1839 = vmul.f32 %v1819, %v1830
        %v1840 = vmul.f32 %v1820, %v1830
        %v1841 = vmul.f32 %v1821, %v1830
        %v1842 = vmul.f32 %v1822, %v1830
        %v1843 = vmul.f32 %v1823, %v1830
        %v1844 = vmul.f32 %v1824, %v1830
        %v1845 = vmul.f32 %v1825, %v1830
        %v1846 = vmul.f32 %v1826, %v1830
        %v1847 = vadd.f32 %v1795, %v1831
        %v1848 = vadd.f32 %v1796, %v1832
        %v1849 = vadd.f32 %v1797, %v1833
        %v1850 = vadd.f32 %v1798, %v1834
        %v1851 = vadd.f32 %v1799, %v1835
        %v1852 = vadd.f32 %v1800, %v1836
        %v1853 = vadd.f32 %v1801, %v1837
        %v1854 = vadd.f32 %v1802, %v1838
        %v1855 = vadd.f32 %v1803, %v1839
        %v1856 = vadd.f32 %v1804, %v1840
        %v1857 = vadd.f32 %v1805, %v1841
        %v1858 = vadd.f32 %v1806, %v1842
        %v1859 = vadd.f32 %v1807, %v1843
        %v1860 = vadd.f32 %v1808, %v1844
        %v1861 = vadd.f32 %v1809, %v1845
        %v1862 = vadd.f32 %v1810, %v1846
        %v1863 = vld [vmem:[#allocation3 + $0x2] sm:$0xff]
        %v1864 = vld [vmem:[#allocation3 + $0xa] sm:$0xff]
        %v1865 = vld [vmem:[#allocation3 + $0x1a] sm:$0xff]
        %v1866 = vld [vmem:[#allocation3 + $0x22] sm:$0xff]
        %v1867 = vld [vmem:[#allocation3 + $0x32] sm:$0xff]
        %v1868 = vld [vmem:[#allocation3 + $0x3a] sm:$0xff]
        %v1869 = vld [vmem:[#allocation3 + $0x4a] sm:$0xff]
        %v1870 = vld [vmem:[#allocation3 + $0x52] sm:$0xff]
        %v1871 = vld [vmem:[#allocation3 + $0x62] sm:$0xff]
        %v1872 = vld [vmem:[#allocation3 + $0x6a] sm:$0xff]
        %v1873 = vld [vmem:[#allocation3 + $0x7a] sm:$0xff]
        %v1874 = vld [vmem:[#allocation3 + $0x82] sm:$0xff]
        %v1875 = vld [vmem:[#allocation3 + $0x92] sm:$0xff]
        %v1876 = vld [vmem:[#allocation3 + $0x9a] sm:$0xff]
        %v1877 = vld [vmem:[#allocation3 + $0xaa] sm:$0xff]
        %v1878 = vld [vmem:[#allocation3 + $0xb2] sm:$0xff]
        %v1879 = vlaneseq
        %v1880 = vshrl.u32 %v1879, 7
        %v1881 = vsub.s32 2, %v1880
        %v1882 = vrot.slane %v414, %v1881
        %v1883 = vmul.f32 %v1863, %v1882
        %v1884 = vmul.f32 %v1864, %v1882
        %v1885 = vmul.f32 %v1865, %v1882
        %v1886 = vmul.f32 %v1866, %v1882
        %v1887 = vmul.f32 %v1867, %v1882
        %v1888 = vmul.f32 %v1868, %v1882
        %v1889 = vmul.f32 %v1869, %v1882
        %v1890 = vmul.f32 %v1870, %v1882
        %v1891 = vmul.f32 %v1871, %v1882
        %v1892 = vmul.f32 %v1872, %v1882
        %v1893 = vmul.f32 %v1873, %v1882
        %v1894 = vmul.f32 %v1874, %v1882
        %v1895 = vmul.f32 %v1875, %v1882
        %v1896 = vmul.f32 %v1876, %v1882
        %v1897 = vmul.f32 %v1877, %v1882
        %v1898 = vmul.f32 %v1878, %v1882
        %v1899 = vadd.f32 %v1847, %v1883
        %v1900 = vadd.f32 %v1848, %v1884
        %v1901 = vadd.f32 %v1849, %v1885
        %v1902 = vadd.f32 %v1850, %v1886
        %v1903 = vadd.f32 %v1851, %v1887
        %v1904 = vadd.f32 %v1852, %v1888
        %v1905 = vadd.f32 %v1853, %v1889
        %v1906 = vadd.f32 %v1854, %v1890
        %v1907 = vadd.f32 %v1855, %v1891
        %v1908 = vadd.f32 %v1856, %v1892
        %v1909 = vadd.f32 %v1857, %v1893
        %v1910 = vadd.f32 %v1858, %v1894
        %v1911 = vadd.f32 %v1859, %v1895
        %v1912 = vadd.f32 %v1860, %v1896
        %v1913 = vadd.f32 %v1861, %v1897
        %v1914 = vadd.f32 %v1862, %v1898
        %v1915 = vld [vmem:[%s357] sm:$0xff]
        %v1916 = vld [vmem:[%s357 + $0x8] sm:$0xff]
        %v1917 = vld [vmem:[%s357 + $0x18] sm:$0xff]
        %v1918 = vld [vmem:[%s357 + $0x20] sm:$0xff]
        %v1919 = vld [vmem:[%s357 + $0x30] sm:$0xff]
        %v1920 = vld [vmem:[%s357 + $0x38] sm:$0xff]
        %v1921 = vld [vmem:[%s357 + $0x48] sm:$0xff]
        %v1922 = vld [vmem:[%s357 + $0x50] sm:$0xff]
        %v1923 = vld [vmem:[%s357 + $0x60] sm:$0xff]
        %v1924 = vld [vmem:[%s357 + $0x68] sm:$0xff]
        %v1925 = vld [vmem:[%s357 + $0x78] sm:$0xff]
        %v1926 = vld [vmem:[%s357 + $0x80] sm:$0xff]
        %v1927 = vld [vmem:[%s357 + $0x90] sm:$0xff]
        %v1928 = vld [vmem:[%s357 + $0x98] sm:$0xff]
        %v1929 = vld [vmem:[%s357 + $0xa8] sm:$0xff]
        %v1930 = vld [vmem:[%s357 + $0xb0] sm:$0xff]
        %v1931 = vlaneseq
        %v1932 = vshrl.u32 %v1931, 7
        %v1933 = vsub.s32 0, %v1932
        %v1934 = vrot.slane %v415, %v1933
        %v1935 = vmul.f32 %v1915, %v1934
        %v1936 = vmul.f32 %v1916, %v1934
        %v1937 = vmul.f32 %v1917, %v1934
        %v1938 = vmul.f32 %v1918, %v1934
        %v1939 = vmul.f32 %v1919, %v1934
        %v1940 = vmul.f32 %v1920, %v1934
        %v1941 = vmul.f32 %v1921, %v1934
        %v1942 = vmul.f32 %v1922, %v1934
        %v1943 = vmul.f32 %v1923, %v1934
        %v1944 = vmul.f32 %v1924, %v1934
        %v1945 = vmul.f32 %v1925, %v1934
        %v1946 = vmul.f32 %v1926, %v1934
        %v1947 = vmul.f32 %v1927, %v1934
        %v1948 = vmul.f32 %v1928, %v1934
        %v1949 = vmul.f32 %v1929, %v1934
        %v1950 = vmul.f32 %v1930, %v1934
        %v1951 = vadd.f32 %v1899, %v1935
        %v1952 = vadd.f32 %v1900, %v1936
        %v1953 = vadd.f32 %v1901, %v1937
        %v1954 = vadd.f32 %v1902, %v1938
        %v1955 = vadd.f32 %v1903, %v1939
        %v1956 = vadd.f32 %v1904, %v1940
        %v1957 = vadd.f32 %v1905, %v1941
        %v1958 = vadd.f32 %v1906, %v1942
        %v1959 = vadd.f32 %v1907, %v1943
        %v1960 = vadd.f32 %v1908, %v1944
        %v1961 = vadd.f32 %v1909, %v1945
        %v1962 = vadd.f32 %v1910, %v1946
        %v1963 = vadd.f32 %v1911, %v1947
        %v1964 = vadd.f32 %v1912, %v1948
        %v1965 = vadd.f32 %v1913, %v1949
        %v1966 = vadd.f32 %v1914, %v1950
        %v1967 = vld [vmem:[%s357 + $0x1] sm:$0xff]
        %v1968 = vld [vmem:[%s357 + $0x9] sm:$0xff]
        %v1969 = vld [vmem:[%s357 + $0x19] sm:$0xff]
        %v1970 = vld [vmem:[%s357 + $0x21] sm:$0xff]
        %v1971 = vld [vmem:[%s357 + $0x31] sm:$0xff]
        %v1972 = vld [vmem:[%s357 + $0x39] sm:$0xff]
        %v1973 = vld [vmem:[%s357 + $0x49] sm:$0xff]
        %v1974 = vld [vmem:[%s357 + $0x51] sm:$0xff]
        %v1975 = vld [vmem:[%s357 + $0x61] sm:$0xff]
        %v1976 = vld [vmem:[%s357 + $0x69] sm:$0xff]
        %v1977 = vld [vmem:[%s357 + $0x79] sm:$0xff]
        %v1978 = vld [vmem:[%s357 + $0x81] sm:$0xff]
        %v1979 = vld [vmem:[%s357 + $0x91] sm:$0xff]
        %v1980 = vld [vmem:[%s357 + $0x99] sm:$0xff]
        %v1981 = vld [vmem:[%s357 + $0xa9] sm:$0xff]
        %v1982 = vld [vmem:[%s357 + $0xb1] sm:$0xff]
        %v1983 = vlaneseq
        %v1984 = vshrl.u32 %v1983, 7
        %v1985 = vsub.s32 1, %v1984
        %v1986 = vrot.slane %v415, %v1985
        %v1987 = vmul.f32 %v1967, %v1986
        %v1988 = vmul.f32 %v1968, %v1986
        %v1989 = vmul.f32 %v1969, %v1986
        %v1990 = vmul.f32 %v1970, %v1986
        %v1991 = vmul.f32 %v1971, %v1986
        %v1992 = vmul.f32 %v1972, %v1986
        %v1993 = vmul.f32 %v1973, %v1986
        %v1994 = vmul.f32 %v1974, %v1986
        %v1995 = vmul.f32 %v1975, %v1986
        %v1996 = vmul.f32 %v1976, %v1986
        %v1997 = vmul.f32 %v1977, %v1986
        %v1998 = vmul.f32 %v1978, %v1986
        %v1999 = vmul.f32 %v1979, %v1986
        %v2000 = vmul.f32 %v1980, %v1986
        %v2001 = vmul.f32 %v1981, %v1986
        %v2002 = vmul.f32 %v1982, %v1986
        %v2003 = vadd.f32 %v1951, %v1987
        %v2004 = vadd.f32 %v1952, %v1988
        %v2005 = vadd.f32 %v1953, %v1989
        %v2006 = vadd.f32 %v1954, %v1990
        %v2007 = vadd.f32 %v1955, %v1991
        %v2008 = vadd.f32 %v1956, %v1992
        %v2009 = vadd.f32 %v1957, %v1993
        %v2010 = vadd.f32 %v1958, %v1994
        %v2011 = vadd.f32 %v1959, %v1995
        %v2012 = vadd.f32 %v1960, %v1996
        %v2013 = vadd.f32 %v1961, %v1997
        %v2014 = vadd.f32 %v1962, %v1998
        %v2015 = vadd.f32 %v1963, %v1999
        %v2016 = vadd.f32 %v1964, %v2000
        %v2017 = vadd.f32 %v1965, %v2001
        %v2018 = vadd.f32 %v1966, %v2002
        %v2019 = vld [vmem:[%s357 + $0x2] sm:$0xff]
        %v2020 = vld [vmem:[%s357 + $0xa] sm:$0xff]
        %v2021 = vld [vmem:[%s357 + $0x1a] sm:$0xff]
        %v2022 = vld [vmem:[%s357 + $0x22] sm:$0xff]
        %v2023 = vld [vmem:[%s357 + $0x32] sm:$0xff]
        %v2024 = vld [vmem:[%s357 + $0x3a] sm:$0xff]
        %v2025 = vld [vmem:[%s357 + $0x4a] sm:$0xff]
        %v2026 = vld [vmem:[%s357 + $0x52] sm:$0xff]
        %v2027 = vld [vmem:[%s357 + $0x62] sm:$0xff]
        %v2028 = vld [vmem:[%s357 + $0x6a] sm:$0xff]
        %v2029 = vld [vmem:[%s357 + $0x7a] sm:$0xff]
        %v2030 = vld [vmem:[%s357 + $0x82] sm:$0xff]
        %v2031 = vld [vmem:[%s357 + $0x92] sm:$0xff]
        %v2032 = vld [vmem:[%s357 + $0x9a] sm:$0xff]
        %v2033 = vld [vmem:[%s357 + $0xaa] sm:$0xff]
        %v2034 = vld [vmem:[%s357 + $0xb2] sm:$0xff]
        %v2035 = vlaneseq
        %v2036 = vshrl.u32 %v2035, 7
        %v2037 = vsub.s32 2, %v2036
        %v2038 = vrot.slane %v415, %v2037
        %v2039 = vmul.f32 %v2019, %v2038
        %v2040 = vmul.f32 %v2020, %v2038
        %v2041 = vmul.f32 %v2021, %v2038
        %v2042 = vmul.f32 %v2022, %v2038
        %v2043 = vmul.f32 %v2023, %v2038
        %v2044 = vmul.f32 %v2024, %v2038
        %v2045 = vmul.f32 %v2025, %v2038
        %v2046 = vmul.f32 %v2026, %v2038
        %v2047 = vmul.f32 %v2027, %v2038
        %v2048 = vmul.f32 %v2028, %v2038
        %v2049 = vmul.f32 %v2029, %v2038
        %v2050 = vmul.f32 %v2030, %v2038
        %v2051 = vmul.f32 %v2031, %v2038
        %v2052 = vmul.f32 %v2032, %v2038
        %v2053 = vmul.f32 %v2033, %v2038
        %v2054 = vmul.f32 %v2034, %v2038
        %v2055 = vadd.f32 %v2003, %v2039
        %v2056 = vadd.f32 %v2004, %v2040
        %v2057 = vadd.f32 %v2005, %v2041
        %v2058 = vadd.f32 %v2006, %v2042
        %v2059 = vadd.f32 %v2007, %v2043
        %v2060 = vadd.f32 %v2008, %v2044
        %v2061 = vadd.f32 %v2009, %v2045
        %v2062 = vadd.f32 %v2010, %v2046
        %v2063 = vadd.f32 %v2011, %v2047
        %v2064 = vadd.f32 %v2012, %v2048
        %v2065 = vadd.f32 %v2013, %v2049
        %v2066 = vadd.f32 %v2014, %v2050
        %v2067 = vadd.f32 %v2015, %v2051
        %v2068 = vadd.f32 %v2016, %v2052
        %v2069 = vadd.f32 %v2017, %v2053
        %v2070 = vadd.f32 %v2018, %v2054
        %s2071 = scalar_lea.vmem [#allocation3], 48
        %v2072 = vld [vmem:[%s2071] sm:$0xff]
        %v2073 = vld [vmem:[%s2071 + $0x8] sm:$0xff]
        %v2074 = vld [vmem:[%s2071 + $0x18] sm:$0xff]
        %v2075 = vld [vmem:[%s2071 + $0x20] sm:$0xff]
        %v2076 = vld [vmem:[%s2071 + $0x30] sm:$0xff]
        %v2077 = vld [vmem:[%s2071 + $0x38] sm:$0xff]
        %v2078 = vld [vmem:[%s2071 + $0x48] sm:$0xff]
        %v2079 = vld [vmem:[%s2071 + $0x50] sm:$0xff]
        %v2080 = vld [vmem:[%s2071 + $0x60] sm:$0xff]
        %v2081 = vld [vmem:[%s2071 + $0x68] sm:$0xff]
        %v2082 = vld [vmem:[%s2071 + $0x78] sm:$0xff]
        %v2083 = vld [vmem:[%s2071 + $0x80] sm:$0xff]
        %v2084 = vld [vmem:[%s2071 + $0x90] sm:$0xff]
        %v2085 = vld [vmem:[%s2071 + $0x98] sm:$0xff]
        %v2086 = vld [vmem:[%s2071 + $0xa8] sm:$0xff]
        %v2087 = vld [vmem:[%s2071 + $0xb0] sm:$0xff]
        %v2088 = vlaneseq
        %v2089 = vshrl.u32 %v2088, 7
        %v2090 = vsub.s32 0, %v2089
        %v2091 = vrot.slane %v416, %v2090
        %v2092 = vmul.f32 %v2072, %v2091
        %v2093 = vmul.f32 %v2073, %v2091
        %v2094 = vmul.f32 %v2074, %v2091
        %v2095 = vmul.f32 %v2075, %v2091
        %v2096 = vmul.f32 %v2076, %v2091
        %v2097 = vmul.f32 %v2077, %v2091
        %v2098 = vmul.f32 %v2078, %v2091
        %v2099 = vmul.f32 %v2079, %v2091
        %v2100 = vmul.f32 %v2080, %v2091
        %v2101 = vmul.f32 %v2081, %v2091
        %v2102 = vmul.f32 %v2082, %v2091
        %v2103 = vmul.f32 %v2083, %v2091
        %v2104 = vmul.f32 %v2084, %v2091
        %v2105 = vmul.f32 %v2085, %v2091
        %v2106 = vmul.f32 %v2086, %v2091
        %v2107 = vmul.f32 %v2087, %v2091
        %v2108 = vadd.f32 %v2055, %v2092
        %v2109 = vadd.f32 %v2056, %v2093
        %v2110 = vadd.f32 %v2057, %v2094
        %v2111 = vadd.f32 %v2058, %v2095
        %v2112 = vadd.f32 %v2059, %v2096
        %v2113 = vadd.f32 %v2060, %v2097
        %v2114 = vadd.f32 %v2061, %v2098
        %v2115 = vadd.f32 %v2062, %v2099
        %v2116 = vadd.f32 %v2063, %v2100
        %v2117 = vadd.f32 %v2064, %v2101
        %v2118 = vadd.f32 %v2065, %v2102
        %v2119 = vadd.f32 %v2066, %v2103
        %v2120 = vadd.f32 %v2067, %v2104
        %v2121 = vadd.f32 %v2068, %v2105
        %v2122 = vadd.f32 %v2069, %v2106
        %v2123 = vadd.f32 %v2070, %v2107
        %v2124 = vld [vmem:[%s2071 + $0x1] sm:$0xff]
        %v2125 = vld [vmem:[%s2071 + $0x9] sm:$0xff]
        %v2126 = vld [vmem:[%s2071 + $0x19] sm:$0xff]
        %v2127 = vld [vmem:[%s2071 + $0x21] sm:$0xff]
        %v2128 = vld [vmem:[%s2071 + $0x31] sm:$0xff]
        %v2129 = vld [vmem:[%s2071 + $0x39] sm:$0xff]
        %v2130 = vld [vmem:[%s2071 + $0x49] sm:$0xff]
        %v2131 = vld [vmem:[%s2071 + $0x51] sm:$0xff]
        %v2132 = vld [vmem:[%s2071 + $0x61] sm:$0xff]
        %v2133 = vld [vmem:[%s2071 + $0x69] sm:$0xff]
        %v2134 = vld [vmem:[%s2071 + $0x79] sm:$0xff]
        %v2135 = vld [vmem:[%s2071 + $0x81] sm:$0xff]
        %v2136 = vld [vmem:[%s2071 + $0x91] sm:$0xff]
        %v2137 = vld [vmem:[%s2071 + $0x99] sm:$0xff]
        %v2138 = vld [vmem:[%s2071 + $0xa9] sm:$0xff]
        %v2139 = vld [vmem:[%s2071 + $0xb1] sm:$0xff]
        %v2140 = vlaneseq
        %v2141 = vshrl.u32 %v2140, 7
        %v2142 = vsub.s32 1, %v2141
        %v2143 = vrot.slane %v416, %v2142
        %v2144 = vmul.f32 %v2124, %v2143
        %v2145 = vmul.f32 %v2125, %v2143
        %v2146 = vmul.f32 %v2126, %v2143
        %v2147 = vmul.f32 %v2127, %v2143
        %v2148 = vmul.f32 %v2128, %v2143
        %v2149 = vmul.f32 %v2129, %v2143
        %v2150 = vmul.f32 %v2130, %v2143
        %v2151 = vmul.f32 %v2131, %v2143
        %v2152 = vmul.f32 %v2132, %v2143
        %v2153 = vmul.f32 %v2133, %v2143
        %v2154 = vmul.f32 %v2134, %v2143
        %v2155 = vmul.f32 %v2135, %v2143
        %v2156 = vmul.f32 %v2136, %v2143
        %v2157 = vmul.f32 %v2137, %v2143
        %v2158 = vmul.f32 %v2138, %v2143
        %v2159 = vmul.f32 %v2139, %v2143
        %v2160 = vadd.f32 %v2108, %v2144
        %v2161 = vadd.f32 %v2109, %v2145
        %v2162 = vadd.f32 %v2110, %v2146
        %v2163 = vadd.f32 %v2111, %v2147
        %v2164 = vadd.f32 %v2112, %v2148
        %v2165 = vadd.f32 %v2113, %v2149
        %v2166 = vadd.f32 %v2114, %v2150
        %v2167 = vadd.f32 %v2115, %v2151
        %v2168 = vadd.f32 %v2116, %v2152
        %v2169 = vadd.f32 %v2117, %v2153
        %v2170 = vadd.f32 %v2118, %v2154
        %v2171 = vadd.f32 %v2119, %v2155
        %v2172 = vadd.f32 %v2120, %v2156
        %v2173 = vadd.f32 %v2121, %v2157
        %v2174 = vadd.f32 %v2122, %v2158
        %v2175 = vadd.f32 %v2123, %v2159
        %v2176 = vld [vmem:[%s2071 + $0x2] sm:$0xff]
        %v2177 = vld [vmem:[%s2071 + $0xa] sm:$0xff]
        %v2178 = vld [vmem:[%s2071 + $0x1a] sm:$0xff]
        %v2179 = vld [vmem:[%s2071 + $0x22] sm:$0xff]
        %v2180 = vld [vmem:[%s2071 + $0x32] sm:$0xff]
        %v2181 = vld [vmem:[%s2071 + $0x3a] sm:$0xff]
        %v2182 = vld [vmem:[%s2071 + $0x4a] sm:$0xff]
        %v2183 = vld [vmem:[%s2071 + $0x52] sm:$0xff]
        %v2184 = vld [vmem:[%s2071 + $0x62] sm:$0xff]
        %v2185 = vld [vmem:[%s2071 + $0x6a] sm:$0xff]
        %v2186 = vld [vmem:[%s2071 + $0x7a] sm:$0xff]
        %v2187 = vld [vmem:[%s2071 + $0x82] sm:$0xff]
        %v2188 = vld [vmem:[%s2071 + $0x92] sm:$0xff]
        %v2189 = vld [vmem:[%s2071 + $0x9a] sm:$0xff]
        %v2190 = vld [vmem:[%s2071 + $0xaa] sm:$0xff]
        %v2191 = vld [vmem:[%s2071 + $0xb2] sm:$0xff]
        %v2192 = vlaneseq
        %v2193 = vshrl.u32 %v2192, 7
        %v2194 = vsub.s32 2, %v2193
        %v2195 = vrot.slane %v416, %v2194
        %v2196 = vmul.f32 %v2176, %v2195
        %v2197 = vmul.f32 %v2177, %v2195
        %v2198 = vmul.f32 %v2178, %v2195
        %v2199 = vmul.f32 %v2179, %v2195
        %v2200 = vmul.f32 %v2180, %v2195
        %v2201 = vmul.f32 %v2181, %v2195
        %v2202 = vmul.f32 %v2182, %v2195
        %v2203 = vmul.f32 %v2183, %v2195
        %v2204 = vmul.f32 %v2184, %v2195
        %v2205 = vmul.f32 %v2185, %v2195
        %v2206 = vmul.f32 %v2186, %v2195
        %v2207 = vmul.f32 %v2187, %v2195
        %v2208 = vmul.f32 %v2188, %v2195
        %v2209 = vmul.f32 %v2189, %v2195
        %v2210 = vmul.f32 %v2190, %v2195
        %v2211 = vmul.f32 %v2191, %v2195
        %v2212 = vadd.f32 %v2160, %v2196
        %v2213 = vadd.f32 %v2161, %v2197
        %v2214 = vadd.f32 %v2162, %v2198
        %v2215 = vadd.f32 %v2163, %v2199
        %v2216 = vadd.f32 %v2164, %v2200
        %v2217 = vadd.f32 %v2165, %v2201
        %v2218 = vadd.f32 %v2166, %v2202
        %v2219 = vadd.f32 %v2167, %v2203
        %v2220 = vadd.f32 %v2168, %v2204
        %v2221 = vadd.f32 %v2169, %v2205
        %v2222 = vadd.f32 %v2170, %v2206
        %v2223 = vadd.f32 %v2171, %v2207
        %v2224 = vadd.f32 %v2172, %v2208
        %v2225 = vadd.f32 %v2173, %v2209
        %v2226 = vadd.f32 %v2174, %v2210
        %v2227 = vadd.f32 %v2175, %v2211
        %v2228 = vpack.c.bf16 %v2213, %v2212
        %v2229 = vpack.c.bf16 %v2215, %v2214
        %v2230 = vpack.c.bf16 %v2217, %v2216
        %v2231 = vpack.c.bf16 %v2219, %v2218
        %v2232 = vpack.c.bf16 %v2221, %v2220
        %v2233 = vpack.c.bf16 %v2223, %v2222
        %v2234 = vpack.c.bf16 %v2225, %v2224
        %v2235 = vpack.c.bf16 %v2227, %v2226
        %v2236 = vlaneseq
        %v2237 = vshrl.u32 %v2236, 7
        %v2238 = vsub.s32 1, %v2237
        %v2239 = vrot.slane %v425, %v2238
        %v2244 = vunpack.c.l.b16 %v419
        %v2245 = vunpack.c.l.b16 %v420
        %v2246 = vunpack.c.l.b16 %v421
        %v2247 = vunpack.c.l.b16 %v422
        %v2248 = vpack.c.b16 %v2245, %v2244
        %v2249 = vpack.c.b16 %v2247, %v2246
        %v2253 = vsel %vm348, %v2228, 0
        %v2256 = vsel %vm348, %v2229, 0
        %v2259 = vsel %vm348, %v2230, 0
        %v2262 = vsel %vm348, %v2231, 0
        %v2265 = vsel %vm348, %v2232, 0
        %v2268 = vsel %vm348, %v2233, 0
        %v2271 = vsel %vm348, %v2234, 0
        %v2274 = vsel %vm348, %v2235, 0
        %2276 = vmatprep.subr.bf16.mxu0 0
        %2277 = vmatpush1.bf16.msra.mxu0 0
        %2278 = vmatprep.subr.bf16.mxu0 0
        %2279 = vmatpush1.bf16.msra.mxu0 0
        %2280 = vmatprep.subr.bf16.mxu0 0
        %2281 = vmatpush1.bf16.msra.mxu0 0
        %2282 = vmatprep.subr.bf16.mxu0 0
        %2283 = vmatpush1.bf16.msra.mxu0 0
        %2284 = vmatprep.subr.bf16.mxu0 0
        %2285 = vmatpush1.bf16.msra.mxu0 0
        %2286 = vmatprep.subr.bf16.mxu0 0
        %2287 = vmatpush1.bf16.msra.mxu0 0
        %2288 = vmatprep.subr.bf16.mxu0 0
        %2289 = vmatpush1.bf16.msra.mxu0 %v2249
        %2290 = vmatprep.subr.bf16.mxu0 0
        %2291 = vmatpush1.bf16.msra.mxu0 %v2248
        %2292 = vmatprep.subr.bf16.mxu0 0
        %2293 = vmatpush2.bf16.msra.mxu0 0
        %2294 = vmatprep.subr.bf16.mxu0 0
        %2295 = vmatpush2.bf16.msra.mxu0 0
        %2296 = vmatprep.subr.bf16.mxu0 0
        %2297 = vmatpush2.bf16.msra.mxu0 0
        %2298 = vmatprep.subr.bf16.mxu0 0
        %2299 = vmatpush2.bf16.msra.mxu0 0
        %2300 = vmatprep.subr.bf16.mxu0 0
        %2301 = vmatpush2.bf16.msra.mxu0 0
        %2302 = vmatprep.subr.bf16.mxu0 0
        %2303 = vmatpush2.bf16.msra.mxu0 0
        %2304 = vmatprep.subr.bf16.mxu0 0
        %2305 = vmatpush2.bf16.msra.mxu0 0
        %2306 = vmatprep.subr.bf16.mxu0 0
        %2307 = vmatpush2.bf16.msra.mxu0 0
        %2308 = vmatprep.mubr.bf16.mxu0 0
        %2309 = vmatmul.mubr.bf16.gmra.mxu0 %v2253
        %v2310 = vpop.f32.mrf.mxu0
        %v2311 = vadd.f32 %v2239, %v2310
        %v2312 = vpop.f32.mrf.mxu0
        %v2313 = vpop.f32.mrf.mxu0
        %v2314 = vadd.f32 %v2239, %v2313
        %v2315 = vpop.f32.mrf.mxu0
        %2316 = vmatprep.mubr.bf16.mxu0 0
        %2317 = vmatmul.mubr.bf16.gmra.mxu0 %v2256
        %v2318 = vpop.f32.mrf.mxu0
        %v2319 = vadd.f32 %v2239, %v2318
        %v2320 = vpop.f32.mrf.mxu0
        %v2321 = vpop.f32.mrf.mxu0
        %v2322 = vadd.f32 %v2239, %v2321
        %v2323 = vpop.f32.mrf.mxu0
        %2324 = vmatprep.mubr.bf16.mxu0 0
        %2325 = vmatmul.mubr.bf16.gmra.mxu0 %v2259
        %v2326 = vpop.f32.mrf.mxu0
        %v2327 = vadd.f32 %v2239, %v2326
        %v2328 = vpop.f32.mrf.mxu0
        %v2329 = vpop.f32.mrf.mxu0
        %v2330 = vadd.f32 %v2239, %v2329
        %v2331 = vpop.f32.mrf.mxu0
        %2332 = vmatprep.mubr.bf16.mxu0 0
        %2333 = vmatmul.mubr.bf16.gmra.mxu0 %v2262
        %v2334 = vpop.f32.mrf.mxu0
        %v2335 = vadd.f32 %v2239, %v2334
        %v2336 = vpop.f32.mrf.mxu0
        %v2337 = vpop.f32.mrf.mxu0
        %v2338 = vadd.f32 %v2239, %v2337
        %v2339 = vpop.f32.mrf.mxu0
        %2340 = vmatprep.mubr.bf16.mxu0 0
        %2341 = vmatmul.mubr.bf16.gmra.mxu0 %v2265
        %v2342 = vpop.f32.mrf.mxu0
        %v2343 = vadd.f32 %v2239, %v2342
        %v2344 = vpop.f32.mrf.mxu0
        %v2345 = vpop.f32.mrf.mxu0
        %v2346 = vadd.f32 %v2239, %v2345
        %v2347 = vpop.f32.mrf.mxu0
        %2348 = vmatprep.mubr.bf16.mxu0 0
        %2349 = vmatmul.mubr.bf16.gmra.mxu0 %v2268
        %v2350 = vpop.f32.mrf.mxu0
        %v2351 = vadd.f32 %v2239, %v2350
        %v2352 = vpop.f32.mrf.mxu0
        %v2353 = vpop.f32.mrf.mxu0
        %v2354 = vadd.f32 %v2239, %v2353
        %v2355 = vpop.f32.mrf.mxu0
        %2356 = vmatprep.mubr.bf16.mxu0 0
        %2357 = vmatmul.mubr.bf16.gmra.mxu0 %v2271
        %v2358 = vpop.f32.mrf.mxu0
        %v2359 = vadd.f32 %v2239, %v2358
        %v2360 = vpop.f32.mrf.mxu0
        %v2361 = vpop.f32.mrf.mxu0
        %v2362 = vadd.f32 %v2239, %v2361
        %v2363 = vpop.f32.mrf.mxu0
        %2364 = vmatprep.mubr.bf16.mxu0 0
        %2365 = vmatmul.mubr.bf16.gmra.mxu0 %v2274
        %v2366 = vpop.f32.mrf.mxu0
        %v2367 = vadd.f32 %v2239, %v2366
        %v2368 = vpop.f32.mrf.mxu0
        %v2369 = vpop.f32.mrf.mxu0
        %v2370 = vadd.f32 %v2239, %v2369
        %v2371 = vpop.f32.mrf.mxu0
        %2372 = vdwg.mxu0
        %2373 = vst.msk [vmem:[%s394 + $0x1] sm:$0xff] %vm348, %v2311
        %2374 = vst.msk [vmem:[%s394 + $0x9] sm:$0xff] %vm348, %v2314
        %2375 = vst.msk [vmem:[%s394 + $0x19] sm:$0xff] %vm348, %v2319
        %2376 = vst.msk [vmem:[%s394 + $0x21] sm:$0xff] %vm348, %v2322
        %2377 = vst.msk [vmem:[%s394 + $0x31] sm:$0xff] %vm348, %v2327
        %2378 = vst.msk [vmem:[%s394 + $0x39] sm:$0xff] %vm348, %v2330
        %2379 = vst.msk [vmem:[%s394 + $0x49] sm:$0xff] %vm348, %v2335
        %2380 = vst.msk [vmem:[%s394 + $0x51] sm:$0xff] %vm348, %v2338
        %2381 = vst.msk [vmem:[%s394 + $0x61] sm:$0xff] %vm348, %v2343
        %2382 = vst.msk [vmem:[%s394 + $0x69] sm:$0xff] %vm348, %v2346
        %2383 = vst.msk [vmem:[%s394 + $0x79] sm:$0xff] %vm348, %v2351
        %2384 = vst.msk [vmem:[%s394 + $0x81] sm:$0xff] %vm348, %v2354
        %2385 = vst.msk [vmem:[%s394 + $0x91] sm:$0xff] %vm348, %v2359
        %2386 = vst.msk [vmem:[%s394 + $0x99] sm:$0xff] %vm348, %v2362
        %2387 = vst.msk [vmem:[%s394 + $0xa9] sm:$0xff] %vm348, %v2367
        %2388 = vst.msk [vmem:[%s394 + $0xb1] sm:$0xff] %vm348, %v2370
        %s2389 = scalar_lea.vmem [#allocation3], 192
        %v2390 = vld [vmem:[%s2389] sm:$0xff]
        %v2391 = vld [vmem:[%s2389 + $0x8] sm:$0xff]
        %v2392 = vld [vmem:[%s2389 + $0x18] sm:$0xff]
        %v2393 = vld [vmem:[%s2389 + $0x20] sm:$0xff]
        %v2394 = vld [vmem:[%s2389 + $0x30] sm:$0xff]
        %v2395 = vld [vmem:[%s2389 + $0x38] sm:$0xff]
        %v2396 = vld [vmem:[%s2389 + $0x48] sm:$0xff]
        %v2397 = vld [vmem:[%s2389 + $0x50] sm:$0xff]
        %v2398 = vld [vmem:[%s2389 + $0x60] sm:$0xff]
        %v2399 = vld [vmem:[%s2389 + $0x68] sm:$0xff]
        %v2400 = vld [vmem:[%s2389 + $0x78] sm:$0xff]
        %v2401 = vld [vmem:[%s2389 + $0x80] sm:$0xff]
        %v2402 = vld [vmem:[%s2389 + $0x90] sm:$0xff]
        %v2403 = vld [vmem:[%s2389 + $0x98] sm:$0xff]
        %v2404 = vld [vmem:[%s2389 + $0xa8] sm:$0xff]
        %v2405 = vld [vmem:[%s2389 + $0xb0] sm:$0xff]
        %v2406 = vmul.f32 %v2390, %v1778
        %v2407 = vmul.f32 %v2391, %v1778
        %v2408 = vmul.f32 %v2392, %v1778
        %v2409 = vmul.f32 %v2393, %v1778
        %v2410 = vmul.f32 %v2394, %v1778
        %v2411 = vmul.f32 %v2395, %v1778
        %v2412 = vmul.f32 %v2396, %v1778
        %v2413 = vmul.f32 %v2397, %v1778
        %v2414 = vmul.f32 %v2398, %v1778
        %v2415 = vmul.f32 %v2399, %v1778
        %v2416 = vmul.f32 %v2400, %v1778
        %v2417 = vmul.f32 %v2401, %v1778
        %v2418 = vmul.f32 %v2402, %v1778
        %v2419 = vmul.f32 %v2403, %v1778
        %v2420 = vmul.f32 %v2404, %v1778
        %v2421 = vmul.f32 %v2405, %v1778
        %v2422 = vadd.f32 %v2406, 0.0
        %v2423 = vadd.f32 %v2407, 0.0
        %v2424 = vadd.f32 %v2408, 0.0
        %v2425 = vadd.f32 %v2409, 0.0
        %v2426 = vadd.f32 %v2410, 0.0
        %v2427 = vadd.f32 %v2411, 0.0
        %v2428 = vadd.f32 %v2412, 0.0
        %v2429 = vadd.f32 %v2413, 0.0
        %v2430 = vadd.f32 %v2414, 0.0
        %v2431 = vadd.f32 %v2415, 0.0
        %v2432 = vadd.f32 %v2416, 0.0
        %v2433 = vadd.f32 %v2417, 0.0
        %v2434 = vadd.f32 %v2418, 0.0
        %v2435 = vadd.f32 %v2419, 0.0
        %v2436 = vadd.f32 %v2420, 0.0
        %v2437 = vadd.f32 %v2421, 0.0
        %v2438 = vld [vmem:[%s2389 + $0x1] sm:$0xff]
        %v2439 = vld [vmem:[%s2389 + $0x9] sm:$0xff]
        %v2440 = vld [vmem:[%s2389 + $0x19] sm:$0xff]
        %v2441 = vld [vmem:[%s2389 + $0x21] sm:$0xff]
        %v2442 = vld [vmem:[%s2389 + $0x31] sm:$0xff]
        %v2443 = vld [vmem:[%s2389 + $0x39] sm:$0xff]
        %v2444 = vld [vmem:[%s2389 + $0x49] sm:$0xff]
        %v2445 = vld [vmem:[%s2389 + $0x51] sm:$0xff]
        %v2446 = vld [vmem:[%s2389 + $0x61] sm:$0xff]
        %v2447 = vld [vmem:[%s2389 + $0x69] sm:$0xff]
        %v2448 = vld [vmem:[%s2389 + $0x79] sm:$0xff]
        %v2449 = vld [vmem:[%s2389 + $0x81] sm:$0xff]
        %v2450 = vld [vmem:[%s2389 + $0x91] sm:$0xff]
        %v2451 = vld [vmem:[%s2389 + $0x99] sm:$0xff]
        %v2452 = vld [vmem:[%s2389 + $0xa9] sm:$0xff]
        %v2453 = vld [vmem:[%s2389 + $0xb1] sm:$0xff]
        %v2454 = vmul.f32 %v2438, %v1830
        %v2455 = vmul.f32 %v2439, %v1830
        %v2456 = vmul.f32 %v2440, %v1830
        %v2457 = vmul.f32 %v2441, %v1830
        %v2458 = vmul.f32 %v2442, %v1830
        %v2459 = vmul.f32 %v2443, %v1830
        %v2460 = vmul.f32 %v2444, %v1830
        %v2461 = vmul.f32 %v2445, %v1830
        %v2462 = vmul.f32 %v2446, %v1830
        %v2463 = vmul.f32 %v2447, %v1830
        %v2464 = vmul.f32 %v2448, %v1830
        %v2465 = vmul.f32 %v2449, %v1830
        %v2466 = vmul.f32 %v2450, %v1830
        %v2467 = vmul.f32 %v2451, %v1830
        %v2468 = vmul.f32 %v2452, %v1830
        %v2469 = vmul.f32 %v2453, %v1830
        %v2470 = vadd.f32 %v2422, %v2454
        %v2471 = vadd.f32 %v2423, %v2455
        %v2472 = vadd.f32 %v2424, %v2456
        %v2473 = vadd.f32 %v2425, %v2457
        %v2474 = vadd.f32 %v2426, %v2458
        %v2475 = vadd.f32 %v2427, %v2459
        %v2476 = vadd.f32 %v2428, %v2460
        %v2477 = vadd.f32 %v2429, %v2461
        %v2478 = vadd.f32 %v2430, %v2462
        %v2479 = vadd.f32 %v2431, %v2463
        %v2480 = vadd.f32 %v2432, %v2464
        %v2481 = vadd.f32 %v2433, %v2465
        %v2482 = vadd.f32 %v2434, %v2466
        %v2483 = vadd.f32 %v2435, %v2467
        %v2484 = vadd.f32 %v2436, %v2468
        %v2485 = vadd.f32 %v2437, %v2469
        %v2486 = vld [vmem:[%s2389 + $0x2] sm:$0xff]
        %v2487 = vld [vmem:[%s2389 + $0xa] sm:$0xff]
        %v2488 = vld [vmem:[%s2389 + $0x1a] sm:$0xff]
        %v2489 = vld [vmem:[%s2389 + $0x22] sm:$0xff]
        %v2490 = vld [vmem:[%s2389 + $0x32] sm:$0xff]
        %v2491 = vld [vmem:[%s2389 + $0x3a] sm:$0xff]
        %v2492 = vld [vmem:[%s2389 + $0x4a] sm:$0xff]
        %v2493 = vld [vmem:[%s2389 + $0x52] sm:$0xff]
        %v2494 = vld [vmem:[%s2389 + $0x62] sm:$0xff]
        %v2495 = vld [vmem:[%s2389 + $0x6a] sm:$0xff]
        %v2496 = vld [vmem:[%s2389 + $0x7a] sm:$0xff]
        %v2497 = vld [vmem:[%s2389 + $0x82] sm:$0xff]
        %v2498 = vld [vmem:[%s2389 + $0x92] sm:$0xff]
        %v2499 = vld [vmem:[%s2389 + $0x9a] sm:$0xff]
        %v2500 = vld [vmem:[%s2389 + $0xaa] sm:$0xff]
        %v2501 = vld [vmem:[%s2389 + $0xb2] sm:$0xff]
        %v2502 = vmul.f32 %v2486, %v1882
        %v2503 = vmul.f32 %v2487, %v1882
        %v2504 = vmul.f32 %v2488, %v1882
        %v2505 = vmul.f32 %v2489, %v1882
        %v2506 = vmul.f32 %v2490, %v1882
        %v2507 = vmul.f32 %v2491, %v1882
        %v2508 = vmul.f32 %v2492, %v1882
        %v2509 = vmul.f32 %v2493, %v1882
        %v2510 = vmul.f32 %v2494, %v1882
        %v2511 = vmul.f32 %v2495, %v1882
        %v2512 = vmul.f32 %v2496, %v1882
        %v2513 = vmul.f32 %v2497, %v1882
        %v2514 = vmul.f32 %v2498, %v1882
        %v2515 = vmul.f32 %v2499, %v1882
        %v2516 = vmul.f32 %v2500, %v1882
        %v2517 = vmul.f32 %v2501, %v1882
        %v2518 = vadd.f32 %v2470, %v2502
        %v2519 = vadd.f32 %v2471, %v2503
        %v2520 = vadd.f32 %v2472, %v2504
        %v2521 = vadd.f32 %v2473, %v2505
        %v2522 = vadd.f32 %v2474, %v2506
        %v2523 = vadd.f32 %v2475, %v2507
        %v2524 = vadd.f32 %v2476, %v2508
        %v2525 = vadd.f32 %v2477, %v2509
        %v2526 = vadd.f32 %v2478, %v2510
        %v2527 = vadd.f32 %v2479, %v2511
        %v2528 = vadd.f32 %v2480, %v2512
        %v2529 = vadd.f32 %v2481, %v2513
        %v2530 = vadd.f32 %v2482, %v2514
        %v2531 = vadd.f32 %v2483, %v2515
        %v2532 = vadd.f32 %v2484, %v2516
        %v2533 = vadd.f32 %v2485, %v2517
        %v2534 = vld [vmem:[%s1742] sm:$0xff]
        %v2535 = vld [vmem:[%s1742 + $0x8] sm:$0xff]
        %v2536 = vld [vmem:[%s1742 + $0x18] sm:$0xff]
        %v2537 = vld [vmem:[%s1742 + $0x20] sm:$0xff]
        %v2538 = vld [vmem:[%s1742 + $0x30] sm:$0xff]
        %v2539 = vld [vmem:[%s1742 + $0x38] sm:$0xff]
        %v2540 = vld [vmem:[%s1742 + $0x48] sm:$0xff]
        %v2541 = vld [vmem:[%s1742 + $0x50] sm:$0xff]
        %v2542 = vld [vmem:[%s1742 + $0x60] sm:$0xff]
        %v2543 = vld [vmem:[%s1742 + $0x68] sm:$0xff]
        %v2544 = vld [vmem:[%s1742 + $0x78] sm:$0xff]
        %v2545 = vld [vmem:[%s1742 + $0x80] sm:$0xff]
        %v2546 = vld [vmem:[%s1742 + $0x90] sm:$0xff]
        %v2547 = vld [vmem:[%s1742 + $0x98] sm:$0xff]
        %v2548 = vld [vmem:[%s1742 + $0xa8] sm:$0xff]
        %v2549 = vld [vmem:[%s1742 + $0xb0] sm:$0xff]
        %v2550 = vmul.f32 %v2534, %v1934
        %v2551 = vmul.f32 %v2535, %v1934
        %v2552 = vmul.f32 %v2536, %v1934
        %v2553 = vmul.f32 %v2537, %v1934
        %v2554 = vmul.f32 %v2538, %v1934
        %v2555 = vmul.f32 %v2539, %v1934
        %v2556 = vmul.f32 %v2540, %v1934
        %v2557 = vmul.f32 %v2541, %v1934
        %v2558 = vmul.f32 %v2542, %v1934
        %v2559 = vmul.f32 %v2543, %v1934
        %v2560 = vmul.f32 %v2544, %v1934
        %v2561 = vmul.f32 %v2545, %v1934
        %v2562 = vmul.f32 %v2546, %v1934
        %v2563 = vmul.f32 %v2547, %v1934
        %v2564 = vmul.f32 %v2548, %v1934
        %v2565 = vmul.f32 %v2549, %v1934
        %v2566 = vadd.f32 %v2518, %v2550
        %v2567 = vadd.f32 %v2519, %v2551
        %v2568 = vadd.f32 %v2520, %v2552
        %v2569 = vadd.f32 %v2521, %v2553
        %v2570 = vadd.f32 %v2522, %v2554
        %v2571 = vadd.f32 %v2523, %v2555
        %v2572 = vadd.f32 %v2524, %v2556
        %v2573 = vadd.f32 %v2525, %v2557
        %v2574 = vadd.f32 %v2526, %v2558
        %v2575 = vadd.f32 %v2527, %v2559
        %v2576 = vadd.f32 %v2528, %v2560
        %v2577 = vadd.f32 %v2529, %v2561
        %v2578 = vadd.f32 %v2530, %v2562
        %v2579 = vadd.f32 %v2531, %v2563
        %v2580 = vadd.f32 %v2532, %v2564
        %v2581 = vadd.f32 %v2533, %v2565
        %v2582 = vld [vmem:[%s1742 + $0x1] sm:$0xff]
        %v2583 = vld [vmem:[%s1742 + $0x9] sm:$0xff]
        %v2584 = vld [vmem:[%s1742 + $0x19] sm:$0xff]
        %v2585 = vld [vmem:[%s1742 + $0x21] sm:$0xff]
        %v2586 = vld [vmem:[%s1742 + $0x31] sm:$0xff]
        %v2587 = vld [vmem:[%s1742 + $0x39] sm:$0xff]
        %v2588 = vld [vmem:[%s1742 + $0x49] sm:$0xff]
        %v2589 = vld [vmem:[%s1742 + $0x51] sm:$0xff]
        %v2590 = vld [vmem:[%s1742 + $0x61] sm:$0xff]
        %v2591 = vld [vmem:[%s1742 + $0x69] sm:$0xff]
        %v2592 = vld [vmem:[%s1742 + $0x79] sm:$0xff]
        %v2593 = vld [vmem:[%s1742 + $0x81] sm:$0xff]
        %v2594 = vld [vmem:[%s1742 + $0x91] sm:$0xff]
        %v2595 = vld [vmem:[%s1742 + $0x99] sm:$0xff]
        %v2596 = vld [vmem:[%s1742 + $0xa9] sm:$0xff]
        %v2597 = vld [vmem:[%s1742 + $0xb1] sm:$0xff]
        %v2598 = vmul.f32 %v2582, %v1986
        %v2599 = vmul.f32 %v2583, %v1986
        %v2600 = vmul.f32 %v2584, %v1986
        %v2601 = vmul.f32 %v2585, %v1986
        %v2602 = vmul.f32 %v2586, %v1986
        %v2603 = vmul.f32 %v2587, %v1986
        %v2604 = vmul.f32 %v2588, %v1986
        %v2605 = vmul.f32 %v2589, %v1986
        %v2606 = vmul.f32 %v2590, %v1986
        %v2607 = vmul.f32 %v2591, %v1986
        %v2608 = vmul.f32 %v2592, %v1986
        %v2609 = vmul.f32 %v2593, %v1986
        %v2610 = vmul.f32 %v2594, %v1986
        %v2611 = vmul.f32 %v2595, %v1986
        %v2612 = vmul.f32 %v2596, %v1986
        %v2613 = vmul.f32 %v2597, %v1986
        %v2614 = vadd.f32 %v2566, %v2598
        %v2615 = vadd.f32 %v2567, %v2599
        %v2616 = vadd.f32 %v2568, %v2600
        %v2617 = vadd.f32 %v2569, %v2601
        %v2618 = vadd.f32 %v2570, %v2602
        %v2619 = vadd.f32 %v2571, %v2603
        %v2620 = vadd.f32 %v2572, %v2604
        %v2621 = vadd.f32 %v2573, %v2605
        %v2622 = vadd.f32 %v2574, %v2606
        %v2623 = vadd.f32 %v2575, %v2607
        %v2624 = vadd.f32 %v2576, %v2608
        %v2625 = vadd.f32 %v2577, %v2609
        %v2626 = vadd.f32 %v2578, %v2610
        %v2627 = vadd.f32 %v2579, %v2611
        %v2628 = vadd.f32 %v2580, %v2612
        %v2629 = vadd.f32 %v2581, %v2613
        %v2630 = vld [vmem:[%s1742 + $0x2] sm:$0xff]
        %v2631 = vld [vmem:[%s1742 + $0xa] sm:$0xff]
        %v2632 = vld [vmem:[%s1742 + $0x1a] sm:$0xff]
        %v2633 = vld [vmem:[%s1742 + $0x22] sm:$0xff]
        %v2634 = vld [vmem:[%s1742 + $0x32] sm:$0xff]
        %v2635 = vld [vmem:[%s1742 + $0x3a] sm:$0xff]
        %v2636 = vld [vmem:[%s1742 + $0x4a] sm:$0xff]
        %v2637 = vld [vmem:[%s1742 + $0x52] sm:$0xff]
        %v2638 = vld [vmem:[%s1742 + $0x62] sm:$0xff]
        %v2639 = vld [vmem:[%s1742 + $0x6a] sm:$0xff]
        %v2640 = vld [vmem:[%s1742 + $0x7a] sm:$0xff]
        %v2641 = vld [vmem:[%s1742 + $0x82] sm:$0xff]
        %v2642 = vld [vmem:[%s1742 + $0x92] sm:$0xff]
        %v2643 = vld [vmem:[%s1742 + $0x9a] sm:$0xff]
        %v2644 = vld [vmem:[%s1742 + $0xaa] sm:$0xff]
        %v2645 = vld [vmem:[%s1742 + $0xb2] sm:$0xff]
        %v2646 = vmul.f32 %v2630, %v2038
        %v2647 = vmul.f32 %v2631, %v2038
        %v2648 = vmul.f32 %v2632, %v2038
        %v2649 = vmul.f32 %v2633, %v2038
        %v2650 = vmul.f32 %v2634, %v2038
        %v2651 = vmul.f32 %v2635, %v2038
        %v2652 = vmul.f32 %v2636, %v2038
        %v2653 = vmul.f32 %v2637, %v2038
        %v2654 = vmul.f32 %v2638, %v2038
        %v2655 = vmul.f32 %v2639, %v2038
        %v2656 = vmul.f32 %v2640, %v2038
        %v2657 = vmul.f32 %v2641, %v2038
        %v2658 = vmul.f32 %v2642, %v2038
        %v2659 = vmul.f32 %v2643, %v2038
        %v2660 = vmul.f32 %v2644, %v2038
        %v2661 = vmul.f32 %v2645, %v2038
        %v2662 = vadd.f32 %v2614, %v2646
        %v2663 = vadd.f32 %v2615, %v2647
        %v2664 = vadd.f32 %v2616, %v2648
        %v2665 = vadd.f32 %v2617, %v2649
        %v2666 = vadd.f32 %v2618, %v2650
        %v2667 = vadd.f32 %v2619, %v2651
        %v2668 = vadd.f32 %v2620, %v2652
        %v2669 = vadd.f32 %v2621, %v2653
        %v2670 = vadd.f32 %v2622, %v2654
        %v2671 = vadd.f32 %v2623, %v2655
        %v2672 = vadd.f32 %v2624, %v2656
        %v2673 = vadd.f32 %v2625, %v2657
        %v2674 = vadd.f32 %v2626, %v2658
        %v2675 = vadd.f32 %v2627, %v2659
        %v2676 = vadd.f32 %v2628, %v2660
        %v2677 = vadd.f32 %v2629, %v2661
        %s2678 = scalar_lea.vmem [#allocation3], 240
        %v2679 = vld [vmem:[%s2678] sm:$0xff]
        %v2680 = vld [vmem:[%s2678 + $0x8] sm:$0xff]
        %v2681 = vld [vmem:[%s2678 + $0x18] sm:$0xff]
        %v2682 = vld [vmem:[%s2678 + $0x20] sm:$0xff]
        %v2683 = vld [vmem:[%s2678 + $0x30] sm:$0xff]
        %v2684 = vld [vmem:[%s2678 + $0x38] sm:$0xff]
        %v2685 = vld [vmem:[%s2678 + $0x48] sm:$0xff]
        %v2686 = vld [vmem:[%s2678 + $0x50] sm:$0xff]
        %v2687 = vld [vmem:[%s2678 + $0x60] sm:$0xff]
        %v2688 = vld [vmem:[%s2678 + $0x68] sm:$0xff]
        %v2689 = vld [vmem:[%s2678 + $0x78] sm:$0xff]
        %v2690 = vld [vmem:[%s2678 + $0x80] sm:$0xff]
        %v2691 = vld [vmem:[%s2678 + $0x90] sm:$0xff]
        %v2692 = vld [vmem:[%s2678 + $0x98] sm:$0xff]
        %v2693 = vld [vmem:[%s2678 + $0xa8] sm:$0xff]
        %v2694 = vld [vmem:[%s2678 + $0xb0] sm:$0xff]
        %v2695 = vmul.f32 %v2679, %v2091
        %v2696 = vmul.f32 %v2680, %v2091
        %v2697 = vmul.f32 %v2681, %v2091
        %v2698 = vmul.f32 %v2682, %v2091
        %v2699 = vmul.f32 %v2683, %v2091
        %v2700 = vmul.f32 %v2684, %v2091
        %v2701 = vmul.f32 %v2685, %v2091
        %v2702 = vmul.f32 %v2686, %v2091
        %v2703 = vmul.f32 %v2687, %v2091
        %v2704 = vmul.f32 %v2688, %v2091
        %v2705 = vmul.f32 %v2689, %v2091
        %v2706 = vmul.f32 %v2690, %v2091
        %v2707 = vmul.f32 %v2691, %v2091
        %v2708 = vmul.f32 %v2692, %v2091
        %v2709 = vmul.f32 %v2693, %v2091
        %v2710 = vmul.f32 %v2694, %v2091
        %v2711 = vadd.f32 %v2662, %v2695
        %v2712 = vadd.f32 %v2663, %v2696
        %v2713 = vadd.f32 %v2664, %v2697
        %v2714 = vadd.f32 %v2665, %v2698
        %v2715 = vadd.f32 %v2666, %v2699
        %v2716 = vadd.f32 %v2667, %v2700
        %v2717 = vadd.f32 %v2668, %v2701
        %v2718 = vadd.f32 %v2669, %v2702
        %v2719 = vadd.f32 %v2670, %v2703
        %v2720 = vadd.f32 %v2671, %v2704
        %v2721 = vadd.f32 %v2672, %v2705
        %v2722 = vadd.f32 %v2673, %v2706
        %v2723 = vadd.f32 %v2674, %v2707
        %v2724 = vadd.f32 %v2675, %v2708
        %v2725 = vadd.f32 %v2676, %v2709
        %v2726 = vadd.f32 %v2677, %v2710
        %v2727 = vld [vmem:[%s2678 + $0x1] sm:$0xff]
        %v2728 = vld [vmem:[%s2678 + $0x9] sm:$0xff]
        %v2729 = vld [vmem:[%s2678 + $0x19] sm:$0xff]
        %v2730 = vld [vmem:[%s2678 + $0x21] sm:$0xff]
        %v2731 = vld [vmem:[%s2678 + $0x31] sm:$0xff]
        %v2732 = vld [vmem:[%s2678 + $0x39] sm:$0xff]
        %v2733 = vld [vmem:[%s2678 + $0x49] sm:$0xff]
        %v2734 = vld [vmem:[%s2678 + $0x51] sm:$0xff]
        %v2735 = vld [vmem:[%s2678 + $0x61] sm:$0xff]
        %v2736 = vld [vmem:[%s2678 + $0x69] sm:$0xff]
        %v2737 = vld [vmem:[%s2678 + $0x79] sm:$0xff]
        %v2738 = vld [vmem:[%s2678 + $0x81] sm:$0xff]
        %v2739 = vld [vmem:[%s2678 + $0x91] sm:$0xff]
        %v2740 = vld [vmem:[%s2678 + $0x99] sm:$0xff]
        %v2741 = vld [vmem:[%s2678 + $0xa9] sm:$0xff]
        %v2742 = vld [vmem:[%s2678 + $0xb1] sm:$0xff]
        %v2743 = vmul.f32 %v2727, %v2143
        %v2744 = vmul.f32 %v2728, %v2143
        %v2745 = vmul.f32 %v2729, %v2143
        %v2746 = vmul.f32 %v2730, %v2143
        %v2747 = vmul.f32 %v2731, %v2143
        %v2748 = vmul.f32 %v2732, %v2143
        %v2749 = vmul.f32 %v2733, %v2143
        %v2750 = vmul.f32 %v2734, %v2143
        %v2751 = vmul.f32 %v2735, %v2143
        %v2752 = vmul.f32 %v2736, %v2143
        %v2753 = vmul.f32 %v2737, %v2143
        %v2754 = vmul.f32 %v2738, %v2143
        %v2755 = vmul.f32 %v2739, %v2143
        %v2756 = vmul.f32 %v2740, %v2143
        %v2757 = vmul.f32 %v2741, %v2143
        %v2758 = vmul.f32 %v2742, %v2143
        %v2759 = vadd.f32 %v2711, %v2743
        %v2760 = vadd.f32 %v2712, %v2744
        %v2761 = vadd.f32 %v2713, %v2745
        %v2762 = vadd.f32 %v2714, %v2746
        %v2763 = vadd.f32 %v2715, %v2747
        %v2764 = vadd.f32 %v2716, %v2748
        %v2765 = vadd.f32 %v2717, %v2749
        %v2766 = vadd.f32 %v2718, %v2750
        %v2767 = vadd.f32 %v2719, %v2751
        %v2768 = vadd.f32 %v2720, %v2752
        %v2769 = vadd.f32 %v2721, %v2753
        %v2770 = vadd.f32 %v2722, %v2754
        %v2771 = vadd.f32 %v2723, %v2755
        %v2772 = vadd.f32 %v2724, %v2756
        %v2773 = vadd.f32 %v2725, %v2757
        %v2774 = vadd.f32 %v2726, %v2758
        %v2775 = vld [vmem:[%s2678 + $0x2] sm:$0xff]
        %v2776 = vld [vmem:[%s2678 + $0xa] sm:$0xff]
        %v2777 = vld [vmem:[%s2678 + $0x1a] sm:$0xff]
        %v2778 = vld [vmem:[%s2678 + $0x22] sm:$0xff]
        %v2779 = vld [vmem:[%s2678 + $0x32] sm:$0xff]
        %v2780 = vld [vmem:[%s2678 + $0x3a] sm:$0xff]
        %v2781 = vld [vmem:[%s2678 + $0x4a] sm:$0xff]
        %v2782 = vld [vmem:[%s2678 + $0x52] sm:$0xff]
        %v2783 = vld [vmem:[%s2678 + $0x62] sm:$0xff]
        %v2784 = vld [vmem:[%s2678 + $0x6a] sm:$0xff]
        %v2785 = vld [vmem:[%s2678 + $0x7a] sm:$0xff]
        %v2786 = vld [vmem:[%s2678 + $0x82] sm:$0xff]
        %v2787 = vld [vmem:[%s2678 + $0x92] sm:$0xff]
        %v2788 = vld [vmem:[%s2678 + $0x9a] sm:$0xff]
        %v2789 = vld [vmem:[%s2678 + $0xaa] sm:$0xff]
        %v2790 = vld [vmem:[%s2678 + $0xb2] sm:$0xff]
        %v2791 = vmul.f32 %v2775, %v2195
        %v2792 = vmul.f32 %v2776, %v2195
        %v2793 = vmul.f32 %v2777, %v2195
        %v2794 = vmul.f32 %v2778, %v2195
        %v2795 = vmul.f32 %v2779, %v2195
        %v2796 = vmul.f32 %v2780, %v2195
        %v2797 = vmul.f32 %v2781, %v2195
        %v2798 = vmul.f32 %v2782, %v2195
        %v2799 = vmul.f32 %v2783, %v2195
        %v2800 = vmul.f32 %v2784, %v2195
        %v2801 = vmul.f32 %v2785, %v2195
        %v2802 = vmul.f32 %v2786, %v2195
        %v2803 = vmul.f32 %v2787, %v2195
        %v2804 = vmul.f32 %v2788, %v2195
        %v2805 = vmul.f32 %v2789, %v2195
        %v2806 = vmul.f32 %v2790, %v2195
        %v2807 = vadd.f32 %v2759, %v2791
        %v2808 = vadd.f32 %v2760, %v2792
        %v2809 = vadd.f32 %v2761, %v2793
        %v2810 = vadd.f32 %v2762, %v2794
        %v2811 = vadd.f32 %v2763, %v2795
        %v2812 = vadd.f32 %v2764, %v2796
        %v2813 = vadd.f32 %v2765, %v2797
        %v2814 = vadd.f32 %v2766, %v2798
        %v2815 = vadd.f32 %v2767, %v2799
        %v2816 = vadd.f32 %v2768, %v2800
        %v2817 = vadd.f32 %v2769, %v2801
        %v2818 = vadd.f32 %v2770, %v2802
        %v2819 = vadd.f32 %v2771, %v2803
        %v2820 = vadd.f32 %v2772, %v2804
        %v2821 = vadd.f32 %v2773, %v2805
        %v2822 = vadd.f32 %v2774, %v2806
        %v2823 = vpack.c.bf16 %v2808, %v2807
        %v2824 = vpack.c.bf16 %v2810, %v2809
        %v2825 = vpack.c.bf16 %v2812, %v2811
        %v2826 = vpack.c.bf16 %v2814, %v2813
        %v2827 = vpack.c.bf16 %v2816, %v2815
        %v2828 = vpack.c.bf16 %v2818, %v2817
        %v2829 = vpack.c.bf16 %v2820, %v2819
        %v2830 = vpack.c.bf16 %v2822, %v2821
        %v2832 = vsel %vm348, %v2823, 0
        %v2835 = vsel %vm348, %v2824, 0
        %v2838 = vsel %vm348, %v2825, 0
        %v2841 = vsel %vm348, %v2826, 0
        %v2844 = vsel %vm348, %v2827, 0
        %v2847 = vsel %vm348, %v2828, 0
        %v2850 = vsel %vm348, %v2829, 0
        %v2853 = vsel %vm348, %v2830, 0
        %2855 = vmatprep.subr.bf16.mxu0 0
        %2856 = vmatpush1.bf16.msra.mxu0 0
        %2857 = vmatprep.subr.bf16.mxu0 0
        %2858 = vmatpush1.bf16.msra.mxu0 0
        %2859 = vmatprep.subr.bf16.mxu0 0
        %2860 = vmatpush1.bf16.msra.mxu0 0
        %2861 = vmatprep.subr.bf16.mxu0 0
        %2862 = vmatpush1.bf16.msra.mxu0 0
        %2863 = vmatprep.subr.bf16.mxu0 0
        %2864 = vmatpush1.bf16.msra.mxu0 0
        %2865 = vmatprep.subr.bf16.mxu0 0
        %2866 = vmatpush1.bf16.msra.mxu0 0
        %2867 = vmatprep.subr.bf16.mxu0 0
        %2868 = vmatpush1.bf16.msra.mxu0 %v2249
        %2869 = vmatprep.subr.bf16.mxu0 0
        %2870 = vmatpush1.bf16.msra.mxu0 %v2248
        %2871 = vmatprep.subr.bf16.mxu0 0
        %2872 = vmatpush2.bf16.msra.mxu0 0
        %2873 = vmatprep.subr.bf16.mxu0 0
        %2874 = vmatpush2.bf16.msra.mxu0 0
        %2875 = vmatprep.subr.bf16.mxu0 0
        %2876 = vmatpush2.bf16.msra.mxu0 0
        %2877 = vmatprep.subr.bf16.mxu0 0
        %2878 = vmatpush2.bf16.msra.mxu0 0
        %2879 = vmatprep.subr.bf16.mxu0 0
        %2880 = vmatpush2.bf16.msra.mxu0 0
        %2881 = vmatprep.subr.bf16.mxu0 0
        %2882 = vmatpush2.bf16.msra.mxu0 0
        %2883 = vmatprep.subr.bf16.mxu0 0
        %2884 = vmatpush2.bf16.msra.mxu0 0
        %2885 = vmatprep.subr.bf16.mxu0 0
        %2886 = vmatpush2.bf16.msra.mxu0 0
        %2887 = vmatprep.mubr.bf16.mxu0 0
        %2888 = vmatmul.mubr.bf16.gmra.mxu0 %v2832
        %v2889 = vpop.f32.mrf.mxu0
        %v2890 = vadd.f32 %v2239, %v2889
        %v2891 = vpop.f32.mrf.mxu0
        %v2892 = vpop.f32.mrf.mxu0
        %v2893 = vadd.f32 %v2239, %v2892
        %v2894 = vpop.f32.mrf.mxu0
        %2895 = vmatprep.mubr.bf16.mxu0 0
        %2896 = vmatmul.mubr.bf16.gmra.mxu0 %v2835
        %v2897 = vpop.f32.mrf.mxu0
        %v2898 = vadd.f32 %v2239, %v2897
        %v2899 = vpop.f32.mrf.mxu0
        %v2900 = vpop.f32.mrf.mxu0
        %v2901 = vadd.f32 %v2239, %v2900
        %v2902 = vpop.f32.mrf.mxu0
        %2903 = vmatprep.mubr.bf16.mxu0 0
        %2904 = vmatmul.mubr.bf16.gmra.mxu0 %v2838
        %v2905 = vpop.f32.mrf.mxu0
        %v2906 = vadd.f32 %v2239, %v2905
        %v2907 = vpop.f32.mrf.mxu0
        %v2908 = vpop.f32.mrf.mxu0
        %v2909 = vadd.f32 %v2239, %v2908
        %v2910 = vpop.f32.mrf.mxu0
        %2911 = vmatprep.mubr.bf16.mxu0 0
        %2912 = vmatmul.mubr.bf16.gmra.mxu0 %v2841
        %v2913 = vpop.f32.mrf.mxu0
        %v2914 = vadd.f32 %v2239, %v2913
        %v2915 = vpop.f32.mrf.mxu0
        %v2916 = vpop.f32.mrf.mxu0
        %v2917 = vadd.f32 %v2239, %v2916
        %v2918 = vpop.f32.mrf.mxu0
        %2919 = vmatprep.mubr.bf16.mxu0 0
        %2920 = vmatmul.mubr.bf16.gmra.mxu0 %v2844
        %v2921 = vpop.f32.mrf.mxu0
        %v2922 = vadd.f32 %v2239, %v2921
        %v2923 = vpop.f32.mrf.mxu0
        %v2924 = vpop.f32.mrf.mxu0
        %v2925 = vadd.f32 %v2239, %v2924
        %v2926 = vpop.f32.mrf.mxu0
        %2927 = vmatprep.mubr.bf16.mxu0 0
        %2928 = vmatmul.mubr.bf16.gmra.mxu0 %v2847
        %v2929 = vpop.f32.mrf.mxu0
        %v2930 = vadd.f32 %v2239, %v2929
        %v2931 = vpop.f32.mrf.mxu0
        %v2932 = vpop.f32.mrf.mxu0
        %v2933 = vadd.f32 %v2239, %v2932
        %v2934 = vpop.f32.mrf.mxu0
        %2935 = vmatprep.mubr.bf16.mxu0 0
        %2936 = vmatmul.mubr.bf16.gmra.mxu0 %v2850
        %v2937 = vpop.f32.mrf.mxu0
        %v2938 = vadd.f32 %v2239, %v2937
        %v2939 = vpop.f32.mrf.mxu0
        %v2940 = vpop.f32.mrf.mxu0
        %v2941 = vadd.f32 %v2239, %v2940
        %v2942 = vpop.f32.mrf.mxu0
        %2943 = vmatprep.mubr.bf16.mxu0 0
        %2944 = vmatmul.mubr.bf16.gmra.mxu0 %v2853
        %v2945 = vpop.f32.mrf.mxu0
        %v2946 = vadd.f32 %v2239, %v2945
        %v2947 = vpop.f32.mrf.mxu0
        %v2948 = vpop.f32.mrf.mxu0
        %v2949 = vadd.f32 %v2239, %v2948
        %v2950 = vpop.f32.mrf.mxu0
        %2951 = vdwg.mxu0
        %s2952 = scalar_lea.vmem [#allocation4], 216
        %2953 = vst.msk [vmem:[%s2952 + $0x1] sm:$0xff] %vm348, %v2890
        %2954 = vst.msk [vmem:[%s2952 + $0x9] sm:$0xff] %vm348, %v2893
        %2955 = vst.msk [vmem:[%s2952 + $0x19] sm:$0xff] %vm348, %v2898
        %2956 = vst.msk [vmem:[%s2952 + $0x21] sm:$0xff] %vm348, %v2901
        %2957 = vst.msk [vmem:[%s2952 + $0x31] sm:$0xff] %vm348, %v2906
        %2958 = vst.msk [vmem:[%s2952 + $0x39] sm:$0xff] %vm348, %v2909
        %2959 = vst.msk [vmem:[%s2952 + $0x49] sm:$0xff] %vm348, %v2914
        %2960 = vst.msk [vmem:[%s2952 + $0x51] sm:$0xff] %vm348, %v2917
        %2961 = vst.msk [vmem:[%s2952 + $0x61] sm:$0xff] %vm348, %v2922
        %2962 = vst.msk [vmem:[%s2952 + $0x69] sm:$0xff] %vm348, %v2925
        %2963 = vst.msk [vmem:[%s2952 + $0x79] sm:$0xff] %vm348, %v2930
        %2964 = vst.msk [vmem:[%s2952 + $0x81] sm:$0xff] %vm348, %v2933
        %2965 = vst.msk [vmem:[%s2952 + $0x91] sm:$0xff] %vm348, %v2938
        %2966 = vst.msk [vmem:[%s2952 + $0x99] sm:$0xff] %vm348, %v2941
        %2967 = vst.msk [vmem:[%s2952 + $0xa9] sm:$0xff] %vm348, %v2946
        %2968 = vst.msk [vmem:[%s2952 + $0xb1] sm:$0xff] %vm348, %v2949
        %v2969 = vld [vmem:[#allocation4] ss:$2 sm:$0xff]
        %s2970 = scalar_lea.vmem [#allocation4], 48
        %v2971 = vld [vmem:[%s2970] ss:$2 sm:$0xff]
        %s2972 = scalar_lea.vmem [#allocation4], 96
        %v2973 = vld [vmem:[%s2972] ss:$2 sm:$0xff]
        %s2974 = scalar_lea.vmem [#allocation4], 144
        %v2975 = vld [vmem:[%s2974] ss:$2 sm:$0xff]
        %s2976 = scalar_lea.vmem [#allocation4], 192
        %v2977 = vld [vmem:[%s2976] ss:$2 sm:$0xff]
        %s2978 = scalar_lea.vmem [#allocation4], 240
        %v2979 = vld [vmem:[%s2978] ss:$2 sm:$0xff]
        %s2980 = scalar_lea.vmem [#allocation4], 288
        %v2981 = vld [vmem:[%s2980] ss:$2 sm:$0xff]
        %s2982 = scalar_lea.vmem [#allocation4], 336
        %v2983 = vld [vmem:[%s2982] ss:$2 sm:$0xff]
        %s2984 = scalar_lea.vmem [#allocation4], 1
        %v2985 = vld [vmem:[%s2984] ss:$2 sm:$0xff]
        %s2986 = scalar_lea.vmem [#allocation4], 49
        %v2987 = vld [vmem:[%s2986] ss:$2 sm:$0xff]
        %s2988 = scalar_lea.vmem [#allocation4], 97
        %v2989 = vld [vmem:[%s2988] ss:$2 sm:$0xff]
        %s2990 = scalar_lea.vmem [#allocation4], 145
        %v2991 = vld [vmem:[%s2990] ss:$2 sm:$0xff]
        %s2992 = scalar_lea.vmem [#allocation4], 193
        %v2993 = vld [vmem:[%s2992] ss:$2 sm:$0xff]
        %s2994 = scalar_lea.vmem [#allocation4], 241
        %v2995 = vld [vmem:[%s2994] ss:$2 sm:$0xff]
        %s2996 = scalar_lea.vmem [#allocation4], 289
        %v2997 = vld [vmem:[%s2996] ss:$2 sm:$0xff]
        %s2998 = scalar_lea.vmem [#allocation4], 337
        %v2999 = vld [vmem:[%s2998] ss:$2 sm:$0xff]
        %v3000 = vmax.f32 %v2969, %v2985
        %v3001 = vmax.f32 %v2971, %v2987
        %v3002 = vmax.f32 %v2973, %v2989
        %v3003 = vmax.f32 %v2975, %v2991
        %v3004 = vmax.f32 %v2977, %v2993
        %v3005 = vmax.f32 %v2979, %v2995
        %v3006 = vmax.f32 %v2981, %v2997
        %v3007 = vmax.f32 %v2983, %v2999
        %s3008 = scalar_lea.vmem [#allocation4], 2
        %v3009 = vld [vmem:[%s3008] ss:$2 sm:$0xff]
        %s3010 = scalar_lea.vmem [#allocation4], 50
        %v3011 = vld [vmem:[%s3010] ss:$2 sm:$0xff]
        %s3012 = scalar_lea.vmem [#allocation4], 98
        %v3013 = vld [vmem:[%s3012] ss:$2 sm:$0xff]
        %s3014 = scalar_lea.vmem [#allocation4], 146
        %v3015 = vld [vmem:[%s3014] ss:$2 sm:$0xff]
        %s3016 = scalar_lea.vmem [#allocation4], 194
        %v3017 = vld [vmem:[%s3016] ss:$2 sm:$0xff]
        %s3018 = scalar_lea.vmem [#allocation4], 242
        %v3019 = vld [vmem:[%s3018] ss:$2 sm:$0xff]
        %s3020 = scalar_lea.vmem [#allocation4], 290
        %v3021 = vld [vmem:[%s3020] ss:$2 sm:$0xff]
        %s3022 = scalar_lea.vmem [#allocation4], 338
        %v3023 = vld [vmem:[%s3022] ss:$2 sm:$0xff]
        %v3024 = vmax.f32 %v3000, %v3009
        %v3025 = vmax.f32 %v3001, %v3011
        %v3026 = vmax.f32 %v3002, %v3013
        %v3027 = vmax.f32 %v3003, %v3015
        %v3028 = vmax.f32 %v3004, %v3017
        %v3029 = vmax.f32 %v3005, %v3019
        %v3030 = vmax.f32 %v3006, %v3021
        %v3031 = vmax.f32 %v3007, %v3023
        %v3032 = vld [vmem:[%s394] ss:$2 sm:$0xff]
        %s3033 = scalar_lea.vmem %s394, 48 [#allocation4]
        %v3034 = vld [vmem:[%s3033] ss:$2 sm:$0xff]
        %s3035 = scalar_lea.vmem %s394, 96 [#allocation4]
        %v3036 = vld [vmem:[%s3035] ss:$2 sm:$0xff]
        %s3037 = scalar_lea.vmem %s394, 144 [#allocation4]
        %v3038 = vld [vmem:[%s3037] ss:$2 sm:$0xff]
        %s3039 = scalar_lea.vmem %s394, 192 [#allocation4]
        %v3040 = vld [vmem:[%s3039] ss:$2 sm:$0xff]
        %s3041 = scalar_lea.vmem %s394, 240 [#allocation4]
        %v3042 = vld [vmem:[%s3041] ss:$2 sm:$0xff]
        %s3043 = scalar_lea.vmem %s394, 288 [#allocation4]
        %v3044 = vld [vmem:[%s3043] ss:$2 sm:$0xff]
        %s3045 = scalar_lea.vmem %s394, 336 [#allocation4]
        %v3046 = vld [vmem:[%s3045] ss:$2 sm:$0xff]
        %v3047 = vmax.f32 %v3024, %v3032
        %v3048 = vmax.f32 %v3025, %v3034
        %v3049 = vmax.f32 %v3026, %v3036
        %v3050 = vmax.f32 %v3027, %v3038
        %v3051 = vmax.f32 %v3028, %v3040
        %v3052 = vmax.f32 %v3029, %v3042
        %v3053 = vmax.f32 %v3030, %v3044
        %v3054 = vmax.f32 %v3031, %v3046
        %s3055 = scalar_lea.vmem %s394, 1 [#allocation4]
        %v3056 = vld [vmem:[%s3055] ss:$2 sm:$0xff]
        %s3057 = scalar_lea.vmem %s394, 49 [#allocation4]
        %v3058 = vld [vmem:[%s3057] ss:$2 sm:$0xff]
        %s3059 = scalar_lea.vmem %s394, 97 [#allocation4]
        %v3060 = vld [vmem:[%s3059] ss:$2 sm:$0xff]
        %s3061 = scalar_lea.vmem %s394, 145 [#allocation4]
        %v3062 = vld [vmem:[%s3061] ss:$2 sm:$0xff]
        %s3063 = scalar_lea.vmem %s394, 193 [#allocation4]
        %v3064 = vld [vmem:[%s3063] ss:$2 sm:$0xff]
        %s3065 = scalar_lea.vmem %s394, 241 [#allocation4]
        %v3066 = vld [vmem:[%s3065] ss:$2 sm:$0xff]
        %s3067 = scalar_lea.vmem %s394, 289 [#allocation4]
        %v3068 = vld [vmem:[%s3067] ss:$2 sm:$0xff]
        %s3069 = scalar_lea.vmem %s394, 337 [#allocation4]
        %v3070 = vld [vmem:[%s3069] ss:$2 sm:$0xff]
        %v3071 = vmax.f32 %v3047, %v3056
        %v3072 = vmax.f32 %v3048, %v3058
        %v3073 = vmax.f32 %v3049, %v3060
        %v3074 = vmax.f32 %v3050, %v3062
        %v3075 = vmax.f32 %v3051, %v3064
        %v3076 = vmax.f32 %v3052, %v3066
        %v3077 = vmax.f32 %v3053, %v3068
        %v3078 = vmax.f32 %v3054, %v3070
        %s3079 = scalar_lea.vmem %s394, 2 [#allocation4]
        %v3080 = vld [vmem:[%s3079] ss:$2 sm:$0xff]
        %s3081 = scalar_lea.vmem %s394, 50 [#allocation4]
        %v3082 = vld [vmem:[%s3081] ss:$2 sm:$0xff]
        %s3083 = scalar_lea.vmem %s394, 98 [#allocation4]
        %v3084 = vld [vmem:[%s3083] ss:$2 sm:$0xff]
        %s3085 = scalar_lea.vmem %s394, 146 [#allocation4]
        %v3086 = vld [vmem:[%s3085] ss:$2 sm:$0xff]
        %s3087 = scalar_lea.vmem %s394, 194 [#allocation4]
        %v3088 = vld [vmem:[%s3087] ss:$2 sm:$0xff]
        %s3089 = scalar_lea.vmem %s394, 242 [#allocation4]
        %v3090 = vld [vmem:[%s3089] ss:$2 sm:$0xff]
        %s3091 = scalar_lea.vmem %s394, 290 [#allocation4]
        %v3092 = vld [vmem:[%s3091] ss:$2 sm:$0xff]
        %s3093 = scalar_lea.vmem %s394, 338 [#allocation4]
        %v3094 = vld [vmem:[%s3093] ss:$2 sm:$0xff]
        %v3095 = vmax.f32 %v3071, %v3080
        %v3096 = vmax.f32 %v3072, %v3082
        %v3097 = vmax.f32 %v3073, %v3084
        %v3098 = vmax.f32 %v3074, %v3086
        %v3099 = vmax.f32 %v3075, %v3088
        %v3100 = vmax.f32 %v3076, %v3090
        %v3101 = vmax.f32 %v3077, %v3092
        %v3102 = vmax.f32 %v3078, %v3094
        %s3103 = scalar_lea.vmem [#allocation4], 48
        %v3104 = vld [vmem:[%s3103] ss:$2 sm:$0xff]
        %s3105 = scalar_lea.vmem %s3103, 48 [#allocation4]
        %v3106 = vld [vmem:[%s3105] ss:$2 sm:$0xff]
        %s3107 = scalar_lea.vmem %s3103, 96 [#allocation4]
        %v3108 = vld [vmem:[%s3107] ss:$2 sm:$0xff]
        %s3109 = scalar_lea.vmem %s3103, 144 [#allocation4]
        %v3110 = vld [vmem:[%s3109] ss:$2 sm:$0xff]
        %s3111 = scalar_lea.vmem %s3103, 192 [#allocation4]
        %v3112 = vld [vmem:[%s3111] ss:$2 sm:$0xff]
        %s3113 = scalar_lea.vmem %s3103, 240 [#allocation4]
        %v3114 = vld [vmem:[%s3113] ss:$2 sm:$0xff]
        %s3115 = scalar_lea.vmem %s3103, 288 [#allocation4]
        %v3116 = vld [vmem:[%s3115] ss:$2 sm:$0xff]
        %s3117 = scalar_lea.vmem %s3103, 336 [#allocation4]
        %v3118 = vld [vmem:[%s3117] ss:$2 sm:$0xff]
        %v3119 = vmax.f32 %v3095, %v3104
        %v3120 = vmax.f32 %v3096, %v3106
        %v3121 = vmax.f32 %v3097, %v3108
        %v3122 = vmax.f32 %v3098, %v3110
        %v3123 = vmax.f32 %v3099, %v3112
        %v3124 = vmax.f32 %v3100, %v3114
        %v3125 = vmax.f32 %v3101, %v3116
        %v3126 = vmax.f32 %v3102, %v3118
        %s3127 = scalar_lea.vmem %s3103, 1 [#allocation4]
        %v3128 = vld [vmem:[%s3127] ss:$2 sm:$0xff]
        %s3129 = scalar_lea.vmem %s3103, 49 [#allocation4]
        %v3130 = vld [vmem:[%s3129] ss:$2 sm:$0xff]
        %s3131 = scalar_lea.vmem %s3103, 97 [#allocation4]
        %v3132 = vld [vmem:[%s3131] ss:$2 sm:$0xff]
        %s3133 = scalar_lea.vmem %s3103, 145 [#allocation4]
        %v3134 = vld [vmem:[%s3133] ss:$2 sm:$0xff]
        %s3135 = scalar_lea.vmem %s3103, 193 [#allocation4]
        %v3136 = vld [vmem:[%s3135] ss:$2 sm:$0xff]
        %s3137 = scalar_lea.vmem %s3103, 241 [#allocation4]
        %v3138 = vld [vmem:[%s3137] ss:$2 sm:$0xff]
        %s3139 = scalar_lea.vmem %s3103, 289 [#allocation4]
        %v3140 = vld [vmem:[%s3139] ss:$2 sm:$0xff]
        %s3141 = scalar_lea.vmem %s3103, 337 [#allocation4]
        %v3142 = vld [vmem:[%s3141] ss:$2 sm:$0xff]
        %v3143 = vmax.f32 %v3119, %v3128
        %v3144 = vmax.f32 %v3120, %v3130
        %v3145 = vmax.f32 %v3121, %v3132
        %v3146 = vmax.f32 %v3122, %v3134
        %v3147 = vmax.f32 %v3123, %v3136
        %v3148 = vmax.f32 %v3124, %v3138
        %v3149 = vmax.f32 %v3125, %v3140
        %v3150 = vmax.f32 %v3126, %v3142
        %s3151 = scalar_lea.vmem %s3103, 2 [#allocation4]
        %v3152 = vld [vmem:[%s3151] ss:$2 sm:$0xff]
        %s3153 = scalar_lea.vmem %s3103, 50 [#allocation4]
        %v3154 = vld [vmem:[%s3153] ss:$2 sm:$0xff]
        %s3155 = scalar_lea.vmem %s3103, 98 [#allocation4]
        %v3156 = vld [vmem:[%s3155] ss:$2 sm:$0xff]
        %s3157 = scalar_lea.vmem %s3103, 146 [#allocation4]
        %v3158 = vld [vmem:[%s3157] ss:$2 sm:$0xff]
        %s3159 = scalar_lea.vmem %s3103, 194 [#allocation4]
        %v3160 = vld [vmem:[%s3159] ss:$2 sm:$0xff]
        %s3161 = scalar_lea.vmem %s3103, 242 [#allocation4]
        %v3162 = vld [vmem:[%s3161] ss:$2 sm:$0xff]
        %s3163 = scalar_lea.vmem %s3103, 290 [#allocation4]
        %v3164 = vld [vmem:[%s3163] ss:$2 sm:$0xff]
        %s3165 = scalar_lea.vmem %s3103, 338 [#allocation4]
        %v3166 = vld [vmem:[%s3165] ss:$2 sm:$0xff]
        %v3167 = vmax.f32 %v3143, %v3152
        %v3168 = vmax.f32 %v3144, %v3154
        %v3169 = vmax.f32 %v3145, %v3156
        %v3170 = vmax.f32 %v3146, %v3158
        %v3171 = vmax.f32 %v3147, %v3160
        %v3172 = vmax.f32 %v3148, %v3162
        %v3173 = vmax.f32 %v3149, %v3164
        %v3174 = vmax.f32 %v3150, %v3166
        %s3175 = scalar_lea.vmem %s264, 256 [#allocation5]
        %v3176 = vld [vmem:[%s3175] sm:$0xff]
        %v3177 = vld [vmem:[%s3175 + $0x8] sm:$0xff]
        %v3178 = vld [vmem:[%s3175 + $0x10] sm:$0xff]
        %v3179 = vld [vmem:[%s3175 + $0x18] sm:$0xff]
        %v3180 = vld [vmem:[%s3175 + $0x20] sm:$0xff]
        %v3181 = vld [vmem:[%s3175 + $0x28] sm:$0xff]
        %v3182 = vld [vmem:[%s3175 + $0x30] sm:$0xff]
        %v3183 = vld [vmem:[%s3175 + $0x38] sm:$0xff]
        %v3184 = vld [vmem:[%s3175 + $0x40] sm:$0xff]
        %v3185 = vld [vmem:[%s3175 + $0x48] sm:$0xff]
        %v3186 = vld [vmem:[%s3175 + $0x50] sm:$0xff]
        %v3187 = vld [vmem:[%s3175 + $0x58] sm:$0xff]
        %v3188 = vld [vmem:[%s3175 + $0x60] sm:$0xff]
        %v3189 = vld [vmem:[%s3175 + $0x68] sm:$0xff]
        %v3190 = vld [vmem:[%s3175 + $0x70] sm:$0xff]
        %v3191 = vld [vmem:[%s3175 + $0x78] sm:$0xff]
        %v3192 = vld [vmem:[%s3175 + $0x80] sm:$0xff]
        %v3193 = vld [vmem:[%s3175 + $0x88] sm:$0xff]
        %v3194 = vld [vmem:[%s3175 + $0x90] sm:$0xff]
        %v3195 = vld [vmem:[%s3175 + $0x98] sm:$0xff]
        %v3196 = vld [vmem:[%s3175 + $0xa0] sm:$0xff]
        %v3197 = vld [vmem:[%s3175 + $0xa8] sm:$0xff]
        %v3198 = vld [vmem:[%s3175 + $0xb0] sm:$0xff]
        %v3199 = vld [vmem:[%s3175 + $0xb8] sm:$0xff]
        %v3200 = vld [vmem:[%s3175 + $0xc0] sm:$0xff]
        %v3201 = vld [vmem:[%s3175 + $0xc8] sm:$0xff]
        %v3202 = vld [vmem:[%s3175 + $0xd0] sm:$0xff]
        %v3203 = vld [vmem:[%s3175 + $0xd8] sm:$0xff]
        %v3204 = vld [vmem:[%s3175 + $0xe0] sm:$0xff]
        %v3205 = vld [vmem:[%s3175 + $0xe8] sm:$0xff]
        %v3206 = vld [vmem:[%s3175 + $0xf0] sm:$0xff]
        %v3207 = vld [vmem:[%s3175 + $0xf8] sm:$0xff]
        %v3208 = vmax.f32 %v3176, 0.0
        %v3209 = vmax.f32 %v3177, 0.0
        %v3210 = vmax.f32 %v3178, 0.0
        %v3211 = vmax.f32 %v3179, 0.0
        %v3212 = vmax.f32 %v3180, 0.0
        %v3213 = vmax.f32 %v3181, 0.0
        %v3214 = vmax.f32 %v3182, 0.0
        %v3215 = vmax.f32 %v3183, 0.0
        %v3216 = vmax.f32 %v3184, 0.0
        %v3217 = vmax.f32 %v3185, 0.0
        %v3218 = vmax.f32 %v3186, 0.0
        %v3219 = vmax.f32 %v3187, 0.0
        %v3220 = vmax.f32 %v3188, 0.0
        %v3221 = vmax.f32 %v3189, 0.0
        %v3222 = vmax.f32 %v3190, 0.0
        %v3223 = vmax.f32 %v3191, 0.0
        %v3224 = vmax.f32 %v3192, 0.0
        %v3225 = vmax.f32 %v3193, 0.0
        %v3226 = vmax.f32 %v3194, 0.0
        %v3227 = vmax.f32 %v3195, 0.0
        %v3228 = vmax.f32 %v3196, 0.0
        %v3229 = vmax.f32 %v3197, 0.0
        %v3230 = vmax.f32 %v3198, 0.0
        %v3231 = vmax.f32 %v3199, 0.0
        %v3232 = vmax.f32 %v3200, 0.0
        %v3233 = vmax.f32 %v3201, 0.0
        %v3234 = vmax.f32 %v3202, 0.0
        %v3235 = vmax.f32 %v3203, 0.0
        %v3236 = vmax.f32 %v3204, 0.0
        %v3237 = vmax.f32 %v3205, 0.0
        %v3238 = vmax.f32 %v3206, 0.0
        %v3239 = vmax.f32 %v3207, 0.0
        %3240 = vst.msk [vmem:[%s314 + $0x1] sm:$0xff] %vm305, %v3208
        %3241 = vst.msk [vmem:[%s314 + $0x9] sm:$0xff] %vm305, %v3209
        %3242 = vst.msk [vmem:[%s314 + $0x19] sm:$0xff] %vm305, %v3210
        %3243 = vst.msk [vmem:[%s314 + $0x21] sm:$0xff] %vm305, %v3211
        %3244 = vst.msk [vmem:[%s314 + $0x31] sm:$0xff] %vm305, %v3212
        %3245 = vst.msk [vmem:[%s314 + $0x39] sm:$0xff] %vm305, %v3213
        %3246 = vst.msk [vmem:[%s314 + $0x49] sm:$0xff] %vm305, %v3214
        %3247 = vst.msk [vmem:[%s314 + $0x51] sm:$0xff] %vm305, %v3215
        %3248 = vst.msk [vmem:[%s314 + $0x61] sm:$0xff] %vm305, %v3216
        %3249 = vst.msk [vmem:[%s314 + $0x69] sm:$0xff] %vm305, %v3217
        %3250 = vst.msk [vmem:[%s314 + $0x79] sm:$0xff] %vm305, %v3218
        %3251 = vst.msk [vmem:[%s314 + $0x81] sm:$0xff] %vm305, %v3219
        %3252 = vst.msk [vmem:[%s314 + $0x91] sm:$0xff] %vm305, %v3220
        %3253 = vst.msk [vmem:[%s314 + $0x99] sm:$0xff] %vm305, %v3221
        %3254 = vst.msk [vmem:[%s314 + $0xa9] sm:$0xff] %vm305, %v3222
        %3255 = vst.msk [vmem:[%s314 + $0xb1] sm:$0xff] %vm305, %v3223
        %3256 = vst.msk [vmem:[%s314 + $0xc1] sm:$0xff] %vm305, %v3224
        %3257 = vst.msk [vmem:[%s314 + $0xc9] sm:$0xff] %vm305, %v3225
        %3258 = vst.msk [vmem:[%s314 + $0xd9] sm:$0xff] %vm305, %v3226
        %3259 = vst.msk [vmem:[%s314 + $0xe1] sm:$0xff] %vm305, %v3227
        %3260 = vst.msk [vmem:[%s314 + $0xf1] sm:$0xff] %vm305, %v3228
        %3261 = vst.msk [vmem:[%s314 + $0xf9] sm:$0xff] %vm305, %v3229
        %3262 = vst.msk [vmem:[%s314 + $0x109] sm:$0xff] %vm305, %v3230
        %3263 = vst.msk [vmem:[%s314 + $0x111] sm:$0xff] %vm305, %v3231
        %3264 = vst.msk [vmem:[%s314 + $0x121] sm:$0xff] %vm305, %v3232
        %3265 = vst.msk [vmem:[%s314 + $0x129] sm:$0xff] %vm305, %v3233
        %3266 = vst.msk [vmem:[%s314 + $0x139] sm:$0xff] %vm305, %v3234
        %3267 = vst.msk [vmem:[%s314 + $0x141] sm:$0xff] %vm305, %v3235
        %3268 = vst.msk [vmem:[%s314 + $0x151] sm:$0xff] %vm305, %v3236
        %3269 = vst.msk [vmem:[%s314 + $0x159] sm:$0xff] %vm305, %v3237
        %3270 = vst.msk [vmem:[%s314 + $0x169] sm:$0xff] %vm305, %v3238
        %3271 = vst.msk [vmem:[%s314 + $0x171] sm:$0xff] %vm305, %v3239
        %v3272 = vld [vmem:[#allocation2] sm:$0xff]
        %v3273 = vld [vmem:[#allocation2 + $0x8] sm:$0xff]
        %v3274 = vld [vmem:[#allocation2 + $0x18] sm:$0xff]
        %v3275 = vld [vmem:[#allocation2 + $0x20] sm:$0xff]
        %v3276 = vld [vmem:[#allocation2 + $0x30] sm:$0xff]
        %v3277 = vld [vmem:[#allocation2 + $0x38] sm:$0xff]
        %v3278 = vld [vmem:[#allocation2 + $0x48] sm:$0xff]
        %v3279 = vld [vmem:[#allocation2 + $0x50] sm:$0xff]
        %v3280 = vld [vmem:[#allocation2 + $0x60] sm:$0xff]
        %v3281 = vld [vmem:[#allocation2 + $0x68] sm:$0xff]
        %v3282 = vld [vmem:[#allocation2 + $0x78] sm:$0xff]
        %v3283 = vld [vmem:[#allocation2 + $0x80] sm:$0xff]
        %v3284 = vld [vmem:[#allocation2 + $0x90] sm:$0xff]
        %v3285 = vld [vmem:[#allocation2 + $0x98] sm:$0xff]
        %v3286 = vld [vmem:[#allocation2 + $0xa8] sm:$0xff]
        %v3287 = vld [vmem:[#allocation2 + $0xb0] sm:$0xff]
        %v3288 = vmul.f32 %v3272, %v541
        %v3289 = vmul.f32 %v3273, %v541
        %v3290 = vmul.f32 %v3274, %v541
        %v3291 = vmul.f32 %v3275, %v541
        %v3292 = vmul.f32 %v3276, %v541
        %v3293 = vmul.f32 %v3277, %v541
        %v3294 = vmul.f32 %v3278, %v541
        %v3295 = vmul.f32 %v3279, %v541
        %v3296 = vmul.f32 %v3280, %v541
        %v3297 = vmul.f32 %v3281, %v541
        %v3298 = vmul.f32 %v3282, %v541
        %v3299 = vmul.f32 %v3283, %v541
        %v3300 = vmul.f32 %v3284, %v541
        %v3301 = vmul.f32 %v3285, %v541
        %v3302 = vmul.f32 %v3286, %v541
        %v3303 = vmul.f32 %v3287, %v541
        %v3304 = vadd.f32 %v3288, 0.0
        %v3305 = vadd.f32 %v3289, 0.0
        %v3306 = vadd.f32 %v3290, 0.0
        %v3307 = vadd.f32 %v3291, 0.0
        %v3308 = vadd.f32 %v3292, 0.0
        %v3309 = vadd.f32 %v3293, 0.0
        %v3310 = vadd.f32 %v3294, 0.0
        %v3311 = vadd.f32 %v3295, 0.0
        %v3312 = vadd.f32 %v3296, 0.0
        %v3313 = vadd.f32 %v3297, 0.0
        %v3314 = vadd.f32 %v3298, 0.0
        %v3315 = vadd.f32 %v3299, 0.0
        %v3316 = vadd.f32 %v3300, 0.0
        %v3317 = vadd.f32 %v3301, 0.0
        %v3318 = vadd.f32 %v3302, 0.0
        %v3319 = vadd.f32 %v3303, 0.0
        %v3320 = vld [vmem:[#allocation2 + $0x1] sm:$0xff]
        %v3321 = vld [vmem:[#allocation2 + $0x9] sm:$0xff]
        %v3322 = vld [vmem:[#allocation2 + $0x19] sm:$0xff]
        %v3323 = vld [vmem:[#allocation2 + $0x21] sm:$0xff]
        %v3324 = vld [vmem:[#allocation2 + $0x31] sm:$0xff]
        %v3325 = vld [vmem:[#allocation2 + $0x39] sm:$0xff]
        %v3326 = vld [vmem:[#allocation2 + $0x49] sm:$0xff]
        %v3327 = vld [vmem:[#allocation2 + $0x51] sm:$0xff]
        %v3328 = vld [vmem:[#allocation2 + $0x61] sm:$0xff]
        %v3329 = vld [vmem:[#allocation2 + $0x69] sm:$0xff]
        %v3330 = vld [vmem:[#allocation2 + $0x79] sm:$0xff]
        %v3331 = vld [vmem:[#allocation2 + $0x81] sm:$0xff]
        %v3332 = vld [vmem:[#allocation2 + $0x91] sm:$0xff]
        %v3333 = vld [vmem:[#allocation2 + $0x99] sm:$0xff]
        %v3334 = vld [vmem:[#allocation2 + $0xa9] sm:$0xff]
        %v3335 = vld [vmem:[#allocation2 + $0xb1] sm:$0xff]
        %v3336 = vmul.f32 %v3320, %v593
        %v3337 = vmul.f32 %v3321, %v593
        %v3338 = vmul.f32 %v3322, %v593
        %v3339 = vmul.f32 %v3323, %v593
        %v3340 = vmul.f32 %v3324, %v593
        %v3341 = vmul.f32 %v3325, %v593
        %v3342 = vmul.f32 %v3326, %v593
        %v3343 = vmul.f32 %v3327, %v593
        %v3344 = vmul.f32 %v3328, %v593
        %v3345 = vmul.f32 %v3329, %v593
        %v3346 = vmul.f32 %v3330, %v593
        %v3347 = vmul.f32 %v3331, %v593
        %v3348 = vmul.f32 %v3332, %v593
        %v3349 = vmul.f32 %v3333, %v593
        %v3350 = vmul.f32 %v3334, %v593
        %v3351 = vmul.f32 %v3335, %v593
        %v3352 = vadd.f32 %v3304, %v3336
        %v3353 = vadd.f32 %v3305, %v3337
        %v3354 = vadd.f32 %v3306, %v3338
        %v3355 = vadd.f32 %v3307, %v3339
        %v3356 = vadd.f32 %v3308, %v3340
        %v3357 = vadd.f32 %v3309, %v3341
        %v3358 = vadd.f32 %v3310, %v3342
        %v3359 = vadd.f32 %v3311, %v3343
        %v3360 = vadd.f32 %v3312, %v3344
        %v3361 = vadd.f32 %v3313, %v3345
        %v3362 = vadd.f32 %v3314, %v3346
        %v3363 = vadd.f32 %v3315, %v3347
        %v3364 = vadd.f32 %v3316, %v3348
        %v3365 = vadd.f32 %v3317, %v3349
        %v3366 = vadd.f32 %v3318, %v3350
        %v3367 = vadd.f32 %v3319, %v3351
        %v3368 = vld [vmem:[#allocation2 + $0x2] sm:$0xff]
        %v3369 = vld [vmem:[#allocation2 + $0xa] sm:$0xff]
        %v3370 = vld [vmem:[#allocation2 + $0x1a] sm:$0xff]
        %v3371 = vld [vmem:[#allocation2 + $0x22] sm:$0xff]
        %v3372 = vld [vmem:[#allocation2 + $0x32] sm:$0xff]
        %v3373 = vld [vmem:[#allocation2 + $0x3a] sm:$0xff]
        %v3374 = vld [vmem:[#allocation2 + $0x4a] sm:$0xff]
        %v3375 = vld [vmem:[#allocation2 + $0x52] sm:$0xff]
        %v3376 = vld [vmem:[#allocation2 + $0x62] sm:$0xff]
        %v3377 = vld [vmem:[#allocation2 + $0x6a] sm:$0xff]
        %v3378 = vld [vmem:[#allocation2 + $0x7a] sm:$0xff]
        %v3379 = vld [vmem:[#allocation2 + $0x82] sm:$0xff]
        %v3380 = vld [vmem:[#allocation2 + $0x92] sm:$0xff]
        %v3381 = vld [vmem:[#allocation2 + $0x9a] sm:$0xff]
        %v3382 = vld [vmem:[#allocation2 + $0xaa] sm:$0xff]
        %v3383 = vld [vmem:[#allocation2 + $0xb2] sm:$0xff]
        %v3384 = vmul.f32 %v3368, %v645
        %v3385 = vmul.f32 %v3369, %v645
        %v3386 = vmul.f32 %v3370, %v645
        %v3387 = vmul.f32 %v3371, %v645
        %v3388 = vmul.f32 %v3372, %v645
        %v3389 = vmul.f32 %v3373, %v645
        %v3390 = vmul.f32 %v3374, %v645
        %v3391 = vmul.f32 %v3375, %v645
        %v3392 = vmul.f32 %v3376, %v645
        %v3393 = vmul.f32 %v3377, %v645
        %v3394 = vmul.f32 %v3378, %v645
        %v3395 = vmul.f32 %v3379, %v645
        %v3396 = vmul.f32 %v3380, %v645
        %v3397 = vmul.f32 %v3381, %v645
        %v3398 = vmul.f32 %v3382, %v645
        %v3399 = vmul.f32 %v3383, %v645
        %v3400 = vadd.f32 %v3352, %v3384
        %v3401 = vadd.f32 %v3353, %v3385
        %v3402 = vadd.f32 %v3354, %v3386
        %v3403 = vadd.f32 %v3355, %v3387
        %v3404 = vadd.f32 %v3356, %v3388
        %v3405 = vadd.f32 %v3357, %v3389
        %v3406 = vadd.f32 %v3358, %v3390
        %v3407 = vadd.f32 %v3359, %v3391
        %v3408 = vadd.f32 %v3360, %v3392
        %v3409 = vadd.f32 %v3361, %v3393
        %v3410 = vadd.f32 %v3362, %v3394
        %v3411 = vadd.f32 %v3363, %v3395
        %v3412 = vadd.f32 %v3364, %v3396
        %v3413 = vadd.f32 %v3365, %v3397
        %v3414 = vadd.f32 %v3366, %v3398
        %v3415 = vadd.f32 %v3367, %v3399
        %v3416 = vld [vmem:[%s314] sm:$0xff]
        %v3417 = vld [vmem:[%s314 + $0x8] sm:$0xff]
        %v3418 = vld [vmem:[%s314 + $0x18] sm:$0xff]
        %v3419 = vld [vmem:[%s314 + $0x20] sm:$0xff]
        %v3420 = vld [vmem:[%s314 + $0x30] sm:$0xff]
        %v3421 = vld [vmem:[%s314 + $0x38] sm:$0xff]
        %v3422 = vld [vmem:[%s314 + $0x48] sm:$0xff]
        %v3423 = vld [vmem:[%s314 + $0x50] sm:$0xff]
        %v3424 = vld [vmem:[%s314 + $0x60] sm:$0xff]
        %v3425 = vld [vmem:[%s314 + $0x68] sm:$0xff]
        %v3426 = vld [vmem:[%s314 + $0x78] sm:$0xff]
        %v3427 = vld [vmem:[%s314 + $0x80] sm:$0xff]
        %v3428 = vld [vmem:[%s314 + $0x90] sm:$0xff]
        %v3429 = vld [vmem:[%s314 + $0x98] sm:$0xff]
        %v3430 = vld [vmem:[%s314 + $0xa8] sm:$0xff]
        %v3431 = vld [vmem:[%s314 + $0xb0] sm:$0xff]
        %v3432 = vmul.f32 %v3416, %v697
        %v3433 = vmul.f32 %v3417, %v697
        %v3434 = vmul.f32 %v3418, %v697
        %v3435 = vmul.f32 %v3419, %v697
        %v3436 = vmul.f32 %v3420, %v697
        %v3437 = vmul.f32 %v3421, %v697
        %v3438 = vmul.f32 %v3422, %v697
        %v3439 = vmul.f32 %v3423, %v697
        %v3440 = vmul.f32 %v3424, %v697
        %v3441 = vmul.f32 %v3425, %v697
        %v3442 = vmul.f32 %v3426, %v697
        %v3443 = vmul.f32 %v3427, %v697
        %v3444 = vmul.f32 %v3428, %v697
        %v3445 = vmul.f32 %v3429, %v697
        %v3446 = vmul.f32 %v3430, %v697
        %v3447 = vmul.f32 %v3431, %v697
        %v3448 = vadd.f32 %v3400, %v3432
        %v3449 = vadd.f32 %v3401, %v3433
        %v3450 = vadd.f32 %v3402, %v3434
        %v3451 = vadd.f32 %v3403, %v3435
        %v3452 = vadd.f32 %v3404, %v3436
        %v3453 = vadd.f32 %v3405, %v3437
        %v3454 = vadd.f32 %v3406, %v3438
        %v3455 = vadd.f32 %v3407, %v3439
        %v3456 = vadd.f32 %v3408, %v3440
        %v3457 = vadd.f32 %v3409, %v3441
        %v3458 = vadd.f32 %v3410, %v3442
        %v3459 = vadd.f32 %v3411, %v3443
        %v3460 = vadd.f32 %v3412, %v3444
        %v3461 = vadd.f32 %v3413, %v3445
        %v3462 = vadd.f32 %v3414, %v3446
        %v3463 = vadd.f32 %v3415, %v3447
        %v3464 = vld [vmem:[%s314 + $0x1] sm:$0xff]
        %v3465 = vld [vmem:[%s314 + $0x9] sm:$0xff]
        %v3466 = vld [vmem:[%s314 + $0x19] sm:$0xff]
        %v3467 = vld [vmem:[%s314 + $0x21] sm:$0xff]
        %v3468 = vld [vmem:[%s314 + $0x31] sm:$0xff]
        %v3469 = vld [vmem:[%s314 + $0x39] sm:$0xff]
        %v3470 = vld [vmem:[%s314 + $0x49] sm:$0xff]
        %v3471 = vld [vmem:[%s314 + $0x51] sm:$0xff]
        %v3472 = vld [vmem:[%s314 + $0x61] sm:$0xff]
        %v3473 = vld [vmem:[%s314 + $0x69] sm:$0xff]
        %v3474 = vld [vmem:[%s314 + $0x79] sm:$0xff]
        %v3475 = vld [vmem:[%s314 + $0x81] sm:$0xff]
        %v3476 = vld [vmem:[%s314 + $0x91] sm:$0xff]
        %v3477 = vld [vmem:[%s314 + $0x99] sm:$0xff]
        %v3478 = vld [vmem:[%s314 + $0xa9] sm:$0xff]
        %v3479 = vld [vmem:[%s314 + $0xb1] sm:$0xff]
        %v3480 = vmul.f32 %v3464, %v749
        %v3481 = vmul.f32 %v3465, %v749
        %v3482 = vmul.f32 %v3466, %v749
        %v3483 = vmul.f32 %v3467, %v749
        %v3484 = vmul.f32 %v3468, %v749
        %v3485 = vmul.f32 %v3469, %v749
        %v3486 = vmul.f32 %v3470, %v749
        %v3487 = vmul.f32 %v3471, %v749
        %v3488 = vmul.f32 %v3472, %v749
        %v3489 = vmul.f32 %v3473, %v749
        %v3490 = vmul.f32 %v3474, %v749
        %v3491 = vmul.f32 %v3475, %v749
        %v3492 = vmul.f32 %v3476, %v749
        %v3493 = vmul.f32 %v3477, %v749
        %v3494 = vmul.f32 %v3478, %v749
        %v3495 = vmul.f32 %v3479, %v749
        %v3496 = vadd.f32 %v3448, %v3480
        %v3497 = vadd.f32 %v3449, %v3481
        %v3498 = vadd.f32 %v3450, %v3482
        %v3499 = vadd.f32 %v3451, %v3483
        %v3500 = vadd.f32 %v3452, %v3484
        %v3501 = vadd.f32 %v3453, %v3485
        %v3502 = vadd.f32 %v3454, %v3486
        %v3503 = vadd.f32 %v3455, %v3487
        %v3504 = vadd.f32 %v3456, %v3488
        %v3505 = vadd.f32 %v3457, %v3489
        %v3506 = vadd.f32 %v3458, %v3490
        %v3507 = vadd.f32 %v3459, %v3491
        %v3508 = vadd.f32 %v3460, %v3492
        %v3509 = vadd.f32 %v3461, %v3493
        %v3510 = vadd.f32 %v3462, %v3494
        %v3511 = vadd.f32 %v3463, %v3495
        %v3512 = vld [vmem:[%s314 + $0x2] sm:$0xff]
        %v3513 = vld [vmem:[%s314 + $0xa] sm:$0xff]
        %v3514 = vld [vmem:[%s314 + $0x1a] sm:$0xff]
        %v3515 = vld [vmem:[%s314 + $0x22] sm:$0xff]
        %v3516 = vld [vmem:[%s314 + $0x32] sm:$0xff]
        %v3517 = vld [vmem:[%s314 + $0x3a] sm:$0xff]
        %v3518 = vld [vmem:[%s314 + $0x4a] sm:$0xff]
        %v3519 = vld [vmem:[%s314 + $0x52] sm:$0xff]
        %v3520 = vld [vmem:[%s314 + $0x62] sm:$0xff]
        %v3521 = vld [vmem:[%s314 + $0x6a] sm:$0xff]
        %v3522 = vld [vmem:[%s314 + $0x7a] sm:$0xff]
        %v3523 = vld [vmem:[%s314 + $0x82] sm:$0xff]
        %v3524 = vld [vmem:[%s314 + $0x92] sm:$0xff]
        %v3525 = vld [vmem:[%s314 + $0x9a] sm:$0xff]
        %v3526 = vld [vmem:[%s314 + $0xaa] sm:$0xff]
        %v3527 = vld [vmem:[%s314 + $0xb2] sm:$0xff]
        %v3528 = vmul.f32 %v3512, %v801
        %v3529 = vmul.f32 %v3513, %v801
        %v3530 = vmul.f32 %v3514, %v801
        %v3531 = vmul.f32 %v3515, %v801
        %v3532 = vmul.f32 %v3516, %v801
        %v3533 = vmul.f32 %v3517, %v801
        %v3534 = vmul.f32 %v3518, %v801
        %v3535 = vmul.f32 %v3519, %v801
        %v3536 = vmul.f32 %v3520, %v801
        %v3537 = vmul.f32 %v3521, %v801
        %v3538 = vmul.f32 %v3522, %v801
        %v3539 = vmul.f32 %v3523, %v801
        %v3540 = vmul.f32 %v3524, %v801
        %v3541 = vmul.f32 %v3525, %v801
        %v3542 = vmul.f32 %v3526, %v801
        %v3543 = vmul.f32 %v3527, %v801
        %v3544 = vadd.f32 %v3496, %v3528
        %v3545 = vadd.f32 %v3497, %v3529
        %v3546 = vadd.f32 %v3498, %v3530
        %v3547 = vadd.f32 %v3499, %v3531
        %v3548 = vadd.f32 %v3500, %v3532
        %v3549 = vadd.f32 %v3501, %v3533
        %v3550 = vadd.f32 %v3502, %v3534
        %v3551 = vadd.f32 %v3503, %v3535
        %v3552 = vadd.f32 %v3504, %v3536
        %v3553 = vadd.f32 %v3505, %v3537
        %v3554 = vadd.f32 %v3506, %v3538
        %v3555 = vadd.f32 %v3507, %v3539
        %v3556 = vadd.f32 %v3508, %v3540
        %v3557 = vadd.f32 %v3509, %v3541
        %v3558 = vadd.f32 %v3510, %v3542
        %v3559 = vadd.f32 %v3511, %v3543
        %v3560 = vld [vmem:[%s834] sm:$0xff]
        %v3561 = vld [vmem:[%s834 + $0x8] sm:$0xff]
        %v3562 = vld [vmem:[%s834 + $0x18] sm:$0xff]
        %v3563 = vld [vmem:[%s834 + $0x20] sm:$0xff]
        %v3564 = vld [vmem:[%s834 + $0x30] sm:$0xff]
        %v3565 = vld [vmem:[%s834 + $0x38] sm:$0xff]
        %v3566 = vld [vmem:[%s834 + $0x48] sm:$0xff]
        %v3567 = vld [vmem:[%s834 + $0x50] sm:$0xff]
        %v3568 = vld [vmem:[%s834 + $0x60] sm:$0xff]
        %v3569 = vld [vmem:[%s834 + $0x68] sm:$0xff]
        %v3570 = vld [vmem:[%s834 + $0x78] sm:$0xff]
        %v3571 = vld [vmem:[%s834 + $0x80] sm:$0xff]
        %v3572 = vld [vmem:[%s834 + $0x90] sm:$0xff]
        %v3573 = vld [vmem:[%s834 + $0x98] sm:$0xff]
        %v3574 = vld [vmem:[%s834 + $0xa8] sm:$0xff]
        %v3575 = vld [vmem:[%s834 + $0xb0] sm:$0xff]
        %v3576 = vmul.f32 %v3560, %v854
        %v3577 = vmul.f32 %v3561, %v854
        %v3578 = vmul.f32 %v3562, %v854
        %v3579 = vmul.f32 %v3563, %v854
        %v3580 = vmul.f32 %v3564, %v854
        %v3581 = vmul.f32 %v3565, %v854
        %v3582 = vmul.f32 %v3566, %v854
        %v3583 = vmul.f32 %v3567, %v854
        %v3584 = vmul.f32 %v3568, %v854
        %v3585 = vmul.f32 %v3569, %v854
        %v3586 = vmul.f32 %v3570, %v854
        %v3587 = vmul.f32 %v3571, %v854
        %v3588 = vmul.f32 %v3572, %v854
        %v3589 = vmul.f32 %v3573, %v854
        %v3590 = vmul.f32 %v3574, %v854
        %v3591 = vmul.f32 %v3575, %v854
        %v3592 = vadd.f32 %v3544, %v3576
        %v3593 = vadd.f32 %v3545, %v3577
        %v3594 = vadd.f32 %v3546, %v3578
        %v3595 = vadd.f32 %v3547, %v3579
        %v3596 = vadd.f32 %v3548, %v3580
        %v3597 = vadd.f32 %v3549, %v3581
        %v3598 = vadd.f32 %v3550, %v3582
        %v3599 = vadd.f32 %v3551, %v3583
        %v3600 = vadd.f32 %v3552, %v3584
        %v3601 = vadd.f32 %v3553, %v3585
        %v3602 = vadd.f32 %v3554, %v3586
        %v3603 = vadd.f32 %v3555, %v3587
        %v3604 = vadd.f32 %v3556, %v3588
        %v3605 = vadd.f32 %v3557, %v3589
        %v3606 = vadd.f32 %v3558, %v3590
        %v3607 = vadd.f32 %v3559, %v3591
        %v3608 = vld [vmem:[%s834 + $0x1] sm:$0xff]
        %v3609 = vld [vmem:[%s834 + $0x9] sm:$0xff]
        %v3610 = vld [vmem:[%s834 + $0x19] sm:$0xff]
        %v3611 = vld [vmem:[%s834 + $0x21] sm:$0xff]
        %v3612 = vld [vmem:[%s834 + $0x31] sm:$0xff]
        %v3613 = vld [vmem:[%s834 + $0x39] sm:$0xff]
        %v3614 = vld [vmem:[%s834 + $0x49] sm:$0xff]
        %v3615 = vld [vmem:[%s834 + $0x51] sm:$0xff]
        %v3616 = vld [vmem:[%s834 + $0x61] sm:$0xff]
        %v3617 = vld [vmem:[%s834 + $0x69] sm:$0xff]
        %v3618 = vld [vmem:[%s834 + $0x79] sm:$0xff]
        %v3619 = vld [vmem:[%s834 + $0x81] sm:$0xff]
        %v3620 = vld [vmem:[%s834 + $0x91] sm:$0xff]
        %v3621 = vld [vmem:[%s834 + $0x99] sm:$0xff]
        %v3622 = vld [vmem:[%s834 + $0xa9] sm:$0xff]
        %v3623 = vld [vmem:[%s834 + $0xb1] sm:$0xff]
        %v3624 = vmul.f32 %v3608, %v906
        %v3625 = vmul.f32 %v3609, %v906
        %v3626 = vmul.f32 %v3610, %v906
        %v3627 = vmul.f32 %v3611, %v906
        %v3628 = vmul.f32 %v3612, %v906
        %v3629 = vmul.f32 %v3613, %v906
        %v3630 = vmul.f32 %v3614, %v906
        %v3631 = vmul.f32 %v3615, %v906
        %v3632 = vmul.f32 %v3616, %v906
        %v3633 = vmul.f32 %v3617, %v906
        %v3634 = vmul.f32 %v3618, %v906
        %v3635 = vmul.f32 %v3619, %v906
        %v3636 = vmul.f32 %v3620, %v906
        %v3637 = vmul.f32 %v3621, %v906
        %v3638 = vmul.f32 %v3622, %v906
        %v3639 = vmul.f32 %v3623, %v906
        %v3640 = vadd.f32 %v3592, %v3624
        %v3641 = vadd.f32 %v3593, %v3625
        %v3642 = vadd.f32 %v3594, %v3626
        %v3643 = vadd.f32 %v3595, %v3627
        %v3644 = vadd.f32 %v3596, %v3628
        %v3645 = vadd.f32 %v3597, %v3629
        %v3646 = vadd.f32 %v3598, %v3630
        %v3647 = vadd.f32 %v3599, %v3631
        %v3648 = vadd.f32 %v3600, %v3632
        %v3649 = vadd.f32 %v3601, %v3633
        %v3650 = vadd.f32 %v3602, %v3634
        %v3651 = vadd.f32 %v3603, %v3635
        %v3652 = vadd.f32 %v3604, %v3636
        %v3653 = vadd.f32 %v3605, %v3637
        %v3654 = vadd.f32 %v3606, %v3638
        %v3655 = vadd.f32 %v3607, %v3639
        %v3656 = vld [vmem:[%s834 + $0x2] sm:$0xff]
        %v3657 = vld [vmem:[%s834 + $0xa] sm:$0xff]
        %v3658 = vld [vmem:[%s834 + $0x1a] sm:$0xff]
        %v3659 = vld [vmem:[%s834 + $0x22] sm:$0xff]
        %v3660 = vld [vmem:[%s834 + $0x32] sm:$0xff]
        %v3661 = vld [vmem:[%s834 + $0x3a] sm:$0xff]
        %v3662 = vld [vmem:[%s834 + $0x4a] sm:$0xff]
        %v3663 = vld [vmem:[%s834 + $0x52] sm:$0xff]
        %v3664 = vld [vmem:[%s834 + $0x62] sm:$0xff]
        %v3665 = vld [vmem:[%s834 + $0x6a] sm:$0xff]
        %v3666 = vld [vmem:[%s834 + $0x7a] sm:$0xff]
        %v3667 = vld [vmem:[%s834 + $0x82] sm:$0xff]
        %v3668 = vld [vmem:[%s834 + $0x92] sm:$0xff]
        %v3669 = vld [vmem:[%s834 + $0x9a] sm:$0xff]
        %v3670 = vld [vmem:[%s834 + $0xaa] sm:$0xff]
        %v3671 = vld [vmem:[%s834 + $0xb2] sm:$0xff]
        %v3672 = vmul.f32 %v3656, %v958
        %v3673 = vmul.f32 %v3657, %v958
        %v3674 = vmul.f32 %v3658, %v958
        %v3675 = vmul.f32 %v3659, %v958
        %v3676 = vmul.f32 %v3660, %v958
        %v3677 = vmul.f32 %v3661, %v958
        %v3678 = vmul.f32 %v3662, %v958
        %v3679 = vmul.f32 %v3663, %v958
        %v3680 = vmul.f32 %v3664, %v958
        %v3681 = vmul.f32 %v3665, %v958
        %v3682 = vmul.f32 %v3666, %v958
        %v3683 = vmul.f32 %v3667, %v958
        %v3684 = vmul.f32 %v3668, %v958
        %v3685 = vmul.f32 %v3669, %v958
        %v3686 = vmul.f32 %v3670, %v958
        %v3687 = vmul.f32 %v3671, %v958
        %v3688 = vadd.f32 %v3640, %v3672
        %v3689 = vadd.f32 %v3641, %v3673
        %v3690 = vadd.f32 %v3642, %v3674
        %v3691 = vadd.f32 %v3643, %v3675
        %v3692 = vadd.f32 %v3644, %v3676
        %v3693 = vadd.f32 %v3645, %v3677
        %v3694 = vadd.f32 %v3646, %v3678
        %v3695 = vadd.f32 %v3647, %v3679
        %v3696 = vadd.f32 %v3648, %v3680
        %v3697 = vadd.f32 %v3649, %v3681
        %v3698 = vadd.f32 %v3650, %v3682
        %v3699 = vadd.f32 %v3651, %v3683
        %v3700 = vadd.f32 %v3652, %v3684
        %v3701 = vadd.f32 %v3653, %v3685
        %v3702 = vadd.f32 %v3654, %v3686
        %v3703 = vadd.f32 %v3655, %v3687
        %v3704 = vpack.c.bf16 %v3689, %v3688
        %v3705 = vpack.c.bf16 %v3691, %v3690
        %v3706 = vpack.c.bf16 %v3693, %v3692
        %v3707 = vpack.c.bf16 %v3695, %v3694
        %v3708 = vpack.c.bf16 %v3697, %v3696
        %v3709 = vpack.c.bf16 %v3699, %v3698
        %v3710 = vpack.c.bf16 %v3701, %v3700
        %v3711 = vpack.c.bf16 %v3703, %v3702
        %v3713 = vsel %vm305, %v3704, 0
        %v3716 = vsel %vm305, %v3705, 0
        %v3719 = vsel %vm305, %v3706, 0
        %v3722 = vsel %vm305, %v3707, 0
        %v3725 = vsel %vm305, %v3708, 0
        %v3728 = vsel %vm305, %v3709, 0
        %v3731 = vsel %vm305, %v3710, 0
        %v3734 = vsel %vm305, %v3711, 0
        %3736 = vmatprep.subr.bf16.mxu0 0
        %3737 = vmatpush1.bf16.msra.mxu0 0
        %3738 = vmatprep.subr.bf16.mxu0 0
        %3739 = vmatpush1.bf16.msra.mxu0 0
        %3740 = vmatprep.subr.bf16.mxu0 0
        %3741 = vmatpush1.bf16.msra.mxu0 0
        %3742 = vmatprep.subr.bf16.mxu0 0
        %3743 = vmatpush1.bf16.msra.mxu0 0
        %3744 = vmatprep.subr.bf16.mxu0 0
        %3745 = vmatpush1.bf16.msra.mxu0 0
        %3746 = vmatprep.subr.bf16.mxu0 0
        %3747 = vmatpush1.bf16.msra.mxu0 0
        %3748 = vmatprep.subr.bf16.mxu0 0
        %3749 = vmatpush1.bf16.msra.mxu0 0
        %3750 = vmatprep.subr.bf16.mxu0 0
        %3751 = vmatpush1.bf16.msra.mxu0 %v1007
        %3752 = vmatprep.subr.bf16.mxu0 0
        %3753 = vmatpush2.bf16.msra.mxu0 0
        %3754 = vmatprep.subr.bf16.mxu0 0
        %3755 = vmatpush2.bf16.msra.mxu0 0
        %3756 = vmatprep.subr.bf16.mxu0 0
        %3757 = vmatpush2.bf16.msra.mxu0 0
        %3758 = vmatprep.subr.bf16.mxu0 0
        %3759 = vmatpush2.bf16.msra.mxu0 0
        %3760 = vmatprep.subr.bf16.mxu0 0
        %3761 = vmatpush2.bf16.msra.mxu0 0
        %3762 = vmatprep.subr.bf16.mxu0 0
        %3763 = vmatpush2.bf16.msra.mxu0 0
        %3764 = vmatprep.subr.bf16.mxu0 0
        %3765 = vmatpush2.bf16.msra.mxu0 0
        %3766 = vmatprep.subr.bf16.mxu0 0
        %3767 = vmatpush2.bf16.msra.mxu0 0
        %3768 = vmatprep.mubr.bf16.mxu0 0
        %3769 = vmatmul.mubr.bf16.gmra.mxu0 %v3713
        %v3770 = vpop.f32.mrf.mxu0
        %v3771 = vadd.f32 %v1002, %v3770
        %v3772 = vpop.f32.mrf.mxu0
        %v3773 = vpop.f32.mrf.mxu0
        %v3774 = vadd.f32 %v1002, %v3773
        %v3775 = vpop.f32.mrf.mxu0
        %3776 = vmatprep.mubr.bf16.mxu0 0
        %3777 = vmatmul.mubr.bf16.gmra.mxu0 %v3716
        %v3778 = vpop.f32.mrf.mxu0
        %v3779 = vadd.f32 %v1002, %v3778
        %v3780 = vpop.f32.mrf.mxu0
        %v3781 = vpop.f32.mrf.mxu0
        %v3782 = vadd.f32 %v1002, %v3781
        %v3783 = vpop.f32.mrf.mxu0
        %3784 = vmatprep.mubr.bf16.mxu0 0
        %3785 = vmatmul.mubr.bf16.gmra.mxu0 %v3719
        %v3786 = vpop.f32.mrf.mxu0
        %v3787 = vadd.f32 %v1002, %v3786
        %v3788 = vpop.f32.mrf.mxu0
        %v3789 = vpop.f32.mrf.mxu0
        %v3790 = vadd.f32 %v1002, %v3789
        %v3791 = vpop.f32.mrf.mxu0
        %3792 = vmatprep.mubr.bf16.mxu0 0
        %3793 = vmatmul.mubr.bf16.gmra.mxu0 %v3722
        %v3794 = vpop.f32.mrf.mxu0
        %v3795 = vadd.f32 %v1002, %v3794
        %v3796 = vpop.f32.mrf.mxu0
        %v3797 = vpop.f32.mrf.mxu0
        %v3798 = vadd.f32 %v1002, %v3797
        %v3799 = vpop.f32.mrf.mxu0
        %3800 = vmatprep.mubr.bf16.mxu0 0
        %3801 = vmatmul.mubr.bf16.gmra.mxu0 %v3725
        %v3802 = vpop.f32.mrf.mxu0
        %v3803 = vadd.f32 %v1002, %v3802
        %v3804 = vpop.f32.mrf.mxu0
        %v3805 = vpop.f32.mrf.mxu0
        %v3806 = vadd.f32 %v1002, %v3805
        %v3807 = vpop.f32.mrf.mxu0
        %3808 = vmatprep.mubr.bf16.mxu0 0
        %3809 = vmatmul.mubr.bf16.gmra.mxu0 %v3728
        %v3810 = vpop.f32.mrf.mxu0
        %v3811 = vadd.f32 %v1002, %v3810
        %v3812 = vpop.f32.mrf.mxu0
        %v3813 = vpop.f32.mrf.mxu0
        %v3814 = vadd.f32 %v1002, %v3813
        %v3815 = vpop.f32.mrf.mxu0
        %3816 = vmatprep.mubr.bf16.mxu0 0
        %3817 = vmatmul.mubr.bf16.gmra.mxu0 %v3731
        %v3818 = vpop.f32.mrf.mxu0
        %v3819 = vadd.f32 %v1002, %v3818
        %v3820 = vpop.f32.mrf.mxu0
        %v3821 = vpop.f32.mrf.mxu0
        %v3822 = vadd.f32 %v1002, %v3821
        %v3823 = vpop.f32.mrf.mxu0
        %3824 = vmatprep.mubr.bf16.mxu0 0
        %3825 = vmatmul.mubr.bf16.gmra.mxu0 %v3734
        %v3826 = vpop.f32.mrf.mxu0
        %v3827 = vadd.f32 %v1002, %v3826
        %v3828 = vpop.f32.mrf.mxu0
        %v3829 = vpop.f32.mrf.mxu0
        %v3830 = vadd.f32 %v1002, %v3829
        %v3831 = vpop.f32.mrf.mxu0
        %3832 = vdwg.mxu0
        %v3833 = vmax.f32 %v3771, 0.0
        %v3834 = vmax.f32 %v3774, 0.0
        %v3835 = vmax.f32 %v3779, 0.0
        %v3836 = vmax.f32 %v3782, 0.0
        %v3837 = vmax.f32 %v3787, 0.0
        %v3838 = vmax.f32 %v3790, 0.0
        %v3839 = vmax.f32 %v3795, 0.0
        %v3840 = vmax.f32 %v3798, 0.0
        %v3841 = vmax.f32 %v3803, 0.0
        %v3842 = vmax.f32 %v3806, 0.0
        %v3843 = vmax.f32 %v3811, 0.0
        %v3844 = vmax.f32 %v3814, 0.0
        %v3845 = vmax.f32 %v3819, 0.0
        %v3846 = vmax.f32 %v3822, 0.0
        %v3847 = vmax.f32 %v3827, 0.0
        %v3848 = vmax.f32 %v3830, 0.0
        %3849 = vst.msk [vmem:[%s357 + $0x1] sm:$0xff] %vm348, %v3833
        %3850 = vst.msk [vmem:[%s357 + $0x9] sm:$0xff] %vm348, %v3834
        %3851 = vst.msk [vmem:[%s357 + $0x19] sm:$0xff] %vm348, %v3835
        %3852 = vst.msk [vmem:[%s357 + $0x21] sm:$0xff] %vm348, %v3836
        %3853 = vst.msk [vmem:[%s357 + $0x31] sm:$0xff] %vm348, %v3837
        %3854 = vst.msk [vmem:[%s357 + $0x39] sm:$0xff] %vm348, %v3838
        %3855 = vst.msk [vmem:[%s357 + $0x49] sm:$0xff] %vm348, %v3839
        %3856 = vst.msk [vmem:[%s357 + $0x51] sm:$0xff] %vm348, %v3840
        %3857 = vst.msk [vmem:[%s357 + $0x61] sm:$0xff] %vm348, %v3841
        %3858 = vst.msk [vmem:[%s357 + $0x69] sm:$0xff] %vm348, %v3842
        %3859 = vst.msk [vmem:[%s357 + $0x79] sm:$0xff] %vm348, %v3843
        %3860 = vst.msk [vmem:[%s357 + $0x81] sm:$0xff] %vm348, %v3844
        %3861 = vst.msk [vmem:[%s357 + $0x91] sm:$0xff] %vm348, %v3845
        %3862 = vst.msk [vmem:[%s357 + $0x99] sm:$0xff] %vm348, %v3846
        %3863 = vst.msk [vmem:[%s357 + $0xa9] sm:$0xff] %vm348, %v3847
        %3864 = vst.msk [vmem:[%s357 + $0xb1] sm:$0xff] %vm348, %v3848
        %v3865 = vld [vmem:[%s1162] sm:$0xff]
        %v3866 = vld [vmem:[%s1162 + $0x8] sm:$0xff]
        %v3867 = vld [vmem:[%s1162 + $0x18] sm:$0xff]
        %v3868 = vld [vmem:[%s1162 + $0x20] sm:$0xff]
        %v3869 = vld [vmem:[%s1162 + $0x30] sm:$0xff]
        %v3870 = vld [vmem:[%s1162 + $0x38] sm:$0xff]
        %v3871 = vld [vmem:[%s1162 + $0x48] sm:$0xff]
        %v3872 = vld [vmem:[%s1162 + $0x50] sm:$0xff]
        %v3873 = vld [vmem:[%s1162 + $0x60] sm:$0xff]
        %v3874 = vld [vmem:[%s1162 + $0x68] sm:$0xff]
        %v3875 = vld [vmem:[%s1162 + $0x78] sm:$0xff]
        %v3876 = vld [vmem:[%s1162 + $0x80] sm:$0xff]
        %v3877 = vld [vmem:[%s1162 + $0x90] sm:$0xff]
        %v3878 = vld [vmem:[%s1162 + $0x98] sm:$0xff]
        %v3879 = vld [vmem:[%s1162 + $0xa8] sm:$0xff]
        %v3880 = vld [vmem:[%s1162 + $0xb0] sm:$0xff]
        %v3881 = vmul.f32 %v3865, %v541
        %v3882 = vmul.f32 %v3866, %v541
        %v3883 = vmul.f32 %v3867, %v541
        %v3884 = vmul.f32 %v3868, %v541
        %v3885 = vmul.f32 %v3869, %v541
        %v3886 = vmul.f32 %v3870, %v541
        %v3887 = vmul.f32 %v3871, %v541
        %v3888 = vmul.f32 %v3872, %v541
        %v3889 = vmul.f32 %v3873, %v541
        %v3890 = vmul.f32 %v3874, %v541
        %v3891 = vmul.f32 %v3875, %v541
        %v3892 = vmul.f32 %v3876, %v541
        %v3893 = vmul.f32 %v3877, %v541
        %v3894 = vmul.f32 %v3878, %v541
        %v3895 = vmul.f32 %v3879, %v541
        %v3896 = vmul.f32 %v3880, %v541
        %v3897 = vadd.f32 %v3881, 0.0
        %v3898 = vadd.f32 %v3882, 0.0
        %v3899 = vadd.f32 %v3883, 0.0
        %v3900 = vadd.f32 %v3884, 0.0
        %v3901 = vadd.f32 %v3885, 0.0
        %v3902 = vadd.f32 %v3886, 0.0
        %v3903 = vadd.f32 %v3887, 0.0
        %v3904 = vadd.f32 %v3888, 0.0
        %v3905 = vadd.f32 %v3889, 0.0
        %v3906 = vadd.f32 %v3890, 0.0
        %v3907 = vadd.f32 %v3891, 0.0
        %v3908 = vadd.f32 %v3892, 0.0
        %v3909 = vadd.f32 %v3893, 0.0
        %v3910 = vadd.f32 %v3894, 0.0
        %v3911 = vadd.f32 %v3895, 0.0
        %v3912 = vadd.f32 %v3896, 0.0
        %v3913 = vld [vmem:[%s1162 + $0x1] sm:$0xff]
        %v3914 = vld [vmem:[%s1162 + $0x9] sm:$0xff]
        %v3915 = vld [vmem:[%s1162 + $0x19] sm:$0xff]
        %v3916 = vld [vmem:[%s1162 + $0x21] sm:$0xff]
        %v3917 = vld [vmem:[%s1162 + $0x31] sm:$0xff]
        %v3918 = vld [vmem:[%s1162 + $0x39] sm:$0xff]
        %v3919 = vld [vmem:[%s1162 + $0x49] sm:$0xff]
        %v3920 = vld [vmem:[%s1162 + $0x51] sm:$0xff]
        %v3921 = vld [vmem:[%s1162 + $0x61] sm:$0xff]
        %v3922 = vld [vmem:[%s1162 + $0x69] sm:$0xff]
        %v3923 = vld [vmem:[%s1162 + $0x79] sm:$0xff]
        %v3924 = vld [vmem:[%s1162 + $0x81] sm:$0xff]
        %v3925 = vld [vmem:[%s1162 + $0x91] sm:$0xff]
        %v3926 = vld [vmem:[%s1162 + $0x99] sm:$0xff]
        %v3927 = vld [vmem:[%s1162 + $0xa9] sm:$0xff]
        %v3928 = vld [vmem:[%s1162 + $0xb1] sm:$0xff]
        %v3929 = vmul.f32 %v3913, %v593
        %v3930 = vmul.f32 %v3914, %v593
        %v3931 = vmul.f32 %v3915, %v593
        %v3932 = vmul.f32 %v3916, %v593
        %v3933 = vmul.f32 %v3917, %v593
        %v3934 = vmul.f32 %v3918, %v593
        %v3935 = vmul.f32 %v3919, %v593
        %v3936 = vmul.f32 %v3920, %v593
        %v3937 = vmul.f32 %v3921, %v593
        %v3938 = vmul.f32 %v3922, %v593
        %v3939 = vmul.f32 %v3923, %v593
        %v3940 = vmul.f32 %v3924, %v593
        %v3941 = vmul.f32 %v3925, %v593
        %v3942 = vmul.f32 %v3926, %v593
        %v3943 = vmul.f32 %v3927, %v593
        %v3944 = vmul.f32 %v3928, %v593
        %v3945 = vadd.f32 %v3897, %v3929
        %v3946 = vadd.f32 %v3898, %v3930
        %v3947 = vadd.f32 %v3899, %v3931
        %v3948 = vadd.f32 %v3900, %v3932
        %v3949 = vadd.f32 %v3901, %v3933
        %v3950 = vadd.f32 %v3902, %v3934
        %v3951 = vadd.f32 %v3903, %v3935
        %v3952 = vadd.f32 %v3904, %v3936
        %v3953 = vadd.f32 %v3905, %v3937
        %v3954 = vadd.f32 %v3906, %v3938
        %v3955 = vadd.f32 %v3907, %v3939
        %v3956 = vadd.f32 %v3908, %v3940
        %v3957 = vadd.f32 %v3909, %v3941
        %v3958 = vadd.f32 %v3910, %v3942
        %v3959 = vadd.f32 %v3911, %v3943
        %v3960 = vadd.f32 %v3912, %v3944
        %v3961 = vld [vmem:[%s1162 + $0x2] sm:$0xff]
        %v3962 = vld [vmem:[%s1162 + $0xa] sm:$0xff]
        %v3963 = vld [vmem:[%s1162 + $0x1a] sm:$0xff]
        %v3964 = vld [vmem:[%s1162 + $0x22] sm:$0xff]
        %v3965 = vld [vmem:[%s1162 + $0x32] sm:$0xff]
        %v3966 = vld [vmem:[%s1162 + $0x3a] sm:$0xff]
        %v3967 = vld [vmem:[%s1162 + $0x4a] sm:$0xff]
        %v3968 = vld [vmem:[%s1162 + $0x52] sm:$0xff]
        %v3969 = vld [vmem:[%s1162 + $0x62] sm:$0xff]
        %v3970 = vld [vmem:[%s1162 + $0x6a] sm:$0xff]
        %v3971 = vld [vmem:[%s1162 + $0x7a] sm:$0xff]
        %v3972 = vld [vmem:[%s1162 + $0x82] sm:$0xff]
        %v3973 = vld [vmem:[%s1162 + $0x92] sm:$0xff]
        %v3974 = vld [vmem:[%s1162 + $0x9a] sm:$0xff]
        %v3975 = vld [vmem:[%s1162 + $0xaa] sm:$0xff]
        %v3976 = vld [vmem:[%s1162 + $0xb2] sm:$0xff]
        %v3977 = vmul.f32 %v3961, %v645
        %v3978 = vmul.f32 %v3962, %v645
        %v3979 = vmul.f32 %v3963, %v645
        %v3980 = vmul.f32 %v3964, %v645
        %v3981 = vmul.f32 %v3965, %v645
        %v3982 = vmul.f32 %v3966, %v645
        %v3983 = vmul.f32 %v3967, %v645
        %v3984 = vmul.f32 %v3968, %v645
        %v3985 = vmul.f32 %v3969, %v645
        %v3986 = vmul.f32 %v3970, %v645
        %v3987 = vmul.f32 %v3971, %v645
        %v3988 = vmul.f32 %v3972, %v645
        %v3989 = vmul.f32 %v3973, %v645
        %v3990 = vmul.f32 %v3974, %v645
        %v3991 = vmul.f32 %v3975, %v645
        %v3992 = vmul.f32 %v3976, %v645
        %v3993 = vadd.f32 %v3945, %v3977
        %v3994 = vadd.f32 %v3946, %v3978
        %v3995 = vadd.f32 %v3947, %v3979
        %v3996 = vadd.f32 %v3948, %v3980
        %v3997 = vadd.f32 %v3949, %v3981
        %v3998 = vadd.f32 %v3950, %v3982
        %v3999 = vadd.f32 %v3951, %v3983
        %v4000 = vadd.f32 %v3952, %v3984
        %v4001 = vadd.f32 %v3953, %v3985
        %v4002 = vadd.f32 %v3954, %v3986
        %v4003 = vadd.f32 %v3955, %v3987
        %v4004 = vadd.f32 %v3956, %v3988
        %v4005 = vadd.f32 %v3957, %v3989
        %v4006 = vadd.f32 %v3958, %v3990
        %v4007 = vadd.f32 %v3959, %v3991
        %v4008 = vadd.f32 %v3960, %v3992
        %v4009 = vld [vmem:[%s1307] sm:$0xff]
        %v4010 = vld [vmem:[%s1307 + $0x8] sm:$0xff]
        %v4011 = vld [vmem:[%s1307 + $0x18] sm:$0xff]
        %v4012 = vld [vmem:[%s1307 + $0x20] sm:$0xff]
        %v4013 = vld [vmem:[%s1307 + $0x30] sm:$0xff]
        %v4014 = vld [vmem:[%s1307 + $0x38] sm:$0xff]
        %v4015 = vld [vmem:[%s1307 + $0x48] sm:$0xff]
        %v4016 = vld [vmem:[%s1307 + $0x50] sm:$0xff]
        %v4017 = vld [vmem:[%s1307 + $0x60] sm:$0xff]
        %v4018 = vld [vmem:[%s1307 + $0x68] sm:$0xff]
        %v4019 = vld [vmem:[%s1307 + $0x78] sm:$0xff]
        %v4020 = vld [vmem:[%s1307 + $0x80] sm:$0xff]
        %v4021 = vld [vmem:[%s1307 + $0x90] sm:$0xff]
        %v4022 = vld [vmem:[%s1307 + $0x98] sm:$0xff]
        %v4023 = vld [vmem:[%s1307 + $0xa8] sm:$0xff]
        %v4024 = vld [vmem:[%s1307 + $0xb0] sm:$0xff]
        %v4025 = vmul.f32 %v4009, %v697
        %v4026 = vmul.f32 %v4010, %v697
        %v4027 = vmul.f32 %v4011, %v697
        %v4028 = vmul.f32 %v4012, %v697
        %v4029 = vmul.f32 %v4013, %v697
        %v4030 = vmul.f32 %v4014, %v697
        %v4031 = vmul.f32 %v4015, %v697
        %v4032 = vmul.f32 %v4016, %v697
        %v4033 = vmul.f32 %v4017, %v697
        %v4034 = vmul.f32 %v4018, %v697
        %v4035 = vmul.f32 %v4019, %v697
        %v4036 = vmul.f32 %v4020, %v697
        %v4037 = vmul.f32 %v4021, %v697
        %v4038 = vmul.f32 %v4022, %v697
        %v4039 = vmul.f32 %v4023, %v697
        %v4040 = vmul.f32 %v4024, %v697
        %v4041 = vadd.f32 %v3993, %v4025
        %v4042 = vadd.f32 %v3994, %v4026
        %v4043 = vadd.f32 %v3995, %v4027
        %v4044 = vadd.f32 %v3996, %v4028
        %v4045 = vadd.f32 %v3997, %v4029
        %v4046 = vadd.f32 %v3998, %v4030
        %v4047 = vadd.f32 %v3999, %v4031
        %v4048 = vadd.f32 %v4000, %v4032
        %v4049 = vadd.f32 %v4001, %v4033
        %v4050 = vadd.f32 %v4002, %v4034
        %v4051 = vadd.f32 %v4003, %v4035
        %v4052 = vadd.f32 %v4004, %v4036
        %v4053 = vadd.f32 %v4005, %v4037
        %v4054 = vadd.f32 %v4006, %v4038
        %v4055 = vadd.f32 %v4007, %v4039
        %v4056 = vadd.f32 %v4008, %v4040
        %v4057 = vld [vmem:[%s1307 + $0x1] sm:$0xff]
        %v4058 = vld [vmem:[%s1307 + $0x9] sm:$0xff]
        %v4059 = vld [vmem:[%s1307 + $0x19] sm:$0xff]
        %v4060 = vld [vmem:[%s1307 + $0x21] sm:$0xff]
        %v4061 = vld [vmem:[%s1307 + $0x31] sm:$0xff]
        %v4062 = vld [vmem:[%s1307 + $0x39] sm:$0xff]
        %v4063 = vld [vmem:[%s1307 + $0x49] sm:$0xff]
        %v4064 = vld [vmem:[%s1307 + $0x51] sm:$0xff]
        %v4065 = vld [vmem:[%s1307 + $0x61] sm:$0xff]
        %v4066 = vld [vmem:[%s1307 + $0x69] sm:$0xff]
        %v4067 = vld [vmem:[%s1307 + $0x79] sm:$0xff]
        %v4068 = vld [vmem:[%s1307 + $0x81] sm:$0xff]
        %v4069 = vld [vmem:[%s1307 + $0x91] sm:$0xff]
        %v4070 = vld [vmem:[%s1307 + $0x99] sm:$0xff]
        %v4071 = vld [vmem:[%s1307 + $0xa9] sm:$0xff]
        %v4072 = vld [vmem:[%s1307 + $0xb1] sm:$0xff]
        %v4073 = vmul.f32 %v4057, %v749
        %v4074 = vmul.f32 %v4058, %v749
        %v4075 = vmul.f32 %v4059, %v749
        %v4076 = vmul.f32 %v4060, %v749
        %v4077 = vmul.f32 %v4061, %v749
        %v4078 = vmul.f32 %v4062, %v749
        %v4079 = vmul.f32 %v4063, %v749
        %v4080 = vmul.f32 %v4064, %v749
        %v4081 = vmul.f32 %v4065, %v749
        %v4082 = vmul.f32 %v4066, %v749
        %v4083 = vmul.f32 %v4067, %v749
        %v4084 = vmul.f32 %v4068, %v749
        %v4085 = vmul.f32 %v4069, %v749
        %v4086 = vmul.f32 %v4070, %v749
        %v4087 = vmul.f32 %v4071, %v749
        %v4088 = vmul.f32 %v4072, %v749
        %v4089 = vadd.f32 %v4041, %v4073
        %v4090 = vadd.f32 %v4042, %v4074
        %v4091 = vadd.f32 %v4043, %v4075
        %v4092 = vadd.f32 %v4044, %v4076
        %v4093 = vadd.f32 %v4045, %v4077
        %v4094 = vadd.f32 %v4046, %v4078
        %v4095 = vadd.f32 %v4047, %v4079
        %v4096 = vadd.f32 %v4048, %v4080
        %v4097 = vadd.f32 %v4049, %v4081
        %v4098 = vadd.f32 %v4050, %v4082
        %v4099 = vadd.f32 %v4051, %v4083
        %v4100 = vadd.f32 %v4052, %v4084
        %v4101 = vadd.f32 %v4053, %v4085
        %v4102 = vadd.f32 %v4054, %v4086
        %v4103 = vadd.f32 %v4055, %v4087
        %v4104 = vadd.f32 %v4056, %v4088
        %v4105 = vld [vmem:[%s1307 + $0x2] sm:$0xff]
        %v4106 = vld [vmem:[%s1307 + $0xa] sm:$0xff]
        %v4107 = vld [vmem:[%s1307 + $0x1a] sm:$0xff]
        %v4108 = vld [vmem:[%s1307 + $0x22] sm:$0xff]
        %v4109 = vld [vmem:[%s1307 + $0x32] sm:$0xff]
        %v4110 = vld [vmem:[%s1307 + $0x3a] sm:$0xff]
        %v4111 = vld [vmem:[%s1307 + $0x4a] sm:$0xff]
        %v4112 = vld [vmem:[%s1307 + $0x52] sm:$0xff]
        %v4113 = vld [vmem:[%s1307 + $0x62] sm:$0xff]
        %v4114 = vld [vmem:[%s1307 + $0x6a] sm:$0xff]
        %v4115 = vld [vmem:[%s1307 + $0x7a] sm:$0xff]
        %v4116 = vld [vmem:[%s1307 + $0x82] sm:$0xff]
        %v4117 = vld [vmem:[%s1307 + $0x92] sm:$0xff]
        %v4118 = vld [vmem:[%s1307 + $0x9a] sm:$0xff]
        %v4119 = vld [vmem:[%s1307 + $0xaa] sm:$0xff]
        %v4120 = vld [vmem:[%s1307 + $0xb2] sm:$0xff]
        %v4121 = vmul.f32 %v4105, %v801
        %v4122 = vmul.f32 %v4106, %v801
        %v4123 = vmul.f32 %v4107, %v801
        %v4124 = vmul.f32 %v4108, %v801
        %v4125 = vmul.f32 %v4109, %v801
        %v4126 = vmul.f32 %v4110, %v801
        %v4127 = vmul.f32 %v4111, %v801
        %v4128 = vmul.f32 %v4112, %v801
        %v4129 = vmul.f32 %v4113, %v801
        %v4130 = vmul.f32 %v4114, %v801
        %v4131 = vmul.f32 %v4115, %v801
        %v4132 = vmul.f32 %v4116, %v801
        %v4133 = vmul.f32 %v4117, %v801
        %v4134 = vmul.f32 %v4118, %v801
        %v4135 = vmul.f32 %v4119, %v801
        %v4136 = vmul.f32 %v4120, %v801
        %v4137 = vadd.f32 %v4089, %v4121
        %v4138 = vadd.f32 %v4090, %v4122
        %v4139 = vadd.f32 %v4091, %v4123
        %v4140 = vadd.f32 %v4092, %v4124
        %v4141 = vadd.f32 %v4093, %v4125
        %v4142 = vadd.f32 %v4094, %v4126
        %v4143 = vadd.f32 %v4095, %v4127
        %v4144 = vadd.f32 %v4096, %v4128
        %v4145 = vadd.f32 %v4097, %v4129
        %v4146 = vadd.f32 %v4098, %v4130
        %v4147 = vadd.f32 %v4099, %v4131
        %v4148 = vadd.f32 %v4100, %v4132
        %v4149 = vadd.f32 %v4101, %v4133
        %v4150 = vadd.f32 %v4102, %v4134
        %v4151 = vadd.f32 %v4103, %v4135
        %v4152 = vadd.f32 %v4104, %v4136
        %v4153 = vld [vmem:[%s1452] sm:$0xff]
        %v4154 = vld [vmem:[%s1452 + $0x8] sm:$0xff]
        %v4155 = vld [vmem:[%s1452 + $0x18] sm:$0xff]
        %v4156 = vld [vmem:[%s1452 + $0x20] sm:$0xff]
        %v4157 = vld [vmem:[%s1452 + $0x30] sm:$0xff]
        %v4158 = vld [vmem:[%s1452 + $0x38] sm:$0xff]
        %v4159 = vld [vmem:[%s1452 + $0x48] sm:$0xff]
        %v4160 = vld [vmem:[%s1452 + $0x50] sm:$0xff]
        %v4161 = vld [vmem:[%s1452 + $0x60] sm:$0xff]
        %v4162 = vld [vmem:[%s1452 + $0x68] sm:$0xff]
        %v4163 = vld [vmem:[%s1452 + $0x78] sm:$0xff]
        %v4164 = vld [vmem:[%s1452 + $0x80] sm:$0xff]
        %v4165 = vld [vmem:[%s1452 + $0x90] sm:$0xff]
        %v4166 = vld [vmem:[%s1452 + $0x98] sm:$0xff]
        %v4167 = vld [vmem:[%s1452 + $0xa8] sm:$0xff]
        %v4168 = vld [vmem:[%s1452 + $0xb0] sm:$0xff]
        %v4169 = vmul.f32 %v4153, %v854
        %v4170 = vmul.f32 %v4154, %v854
        %v4171 = vmul.f32 %v4155, %v854
        %v4172 = vmul.f32 %v4156, %v854
        %v4173 = vmul.f32 %v4157, %v854
        %v4174 = vmul.f32 %v4158, %v854
        %v4175 = vmul.f32 %v4159, %v854
        %v4176 = vmul.f32 %v4160, %v854
        %v4177 = vmul.f32 %v4161, %v854
        %v4178 = vmul.f32 %v4162, %v854
        %v4179 = vmul.f32 %v4163, %v854
        %v4180 = vmul.f32 %v4164, %v854
        %v4181 = vmul.f32 %v4165, %v854
        %v4182 = vmul.f32 %v4166, %v854
        %v4183 = vmul.f32 %v4167, %v854
        %v4184 = vmul.f32 %v4168, %v854
        %v4185 = vadd.f32 %v4137, %v4169
        %v4186 = vadd.f32 %v4138, %v4170
        %v4187 = vadd.f32 %v4139, %v4171
        %v4188 = vadd.f32 %v4140, %v4172
        %v4189 = vadd.f32 %v4141, %v4173
        %v4190 = vadd.f32 %v4142, %v4174
        %v4191 = vadd.f32 %v4143, %v4175
        %v4192 = vadd.f32 %v4144, %v4176
        %v4193 = vadd.f32 %v4145, %v4177
        %v4194 = vadd.f32 %v4146, %v4178
        %v4195 = vadd.f32 %v4147, %v4179
        %v4196 = vadd.f32 %v4148, %v4180
        %v4197 = vadd.f32 %v4149, %v4181
        %v4198 = vadd.f32 %v4150, %v4182
        %v4199 = vadd.f32 %v4151, %v4183
        %v4200 = vadd.f32 %v4152, %v4184
        %v4201 = vld [vmem:[%s1452 + $0x1] sm:$0xff]
        %v4202 = vld [vmem:[%s1452 + $0x9] sm:$0xff]
        %v4203 = vld [vmem:[%s1452 + $0x19] sm:$0xff]
        %v4204 = vld [vmem:[%s1452 + $0x21] sm:$0xff]
        %v4205 = vld [vmem:[%s1452 + $0x31] sm:$0xff]
        %v4206 = vld [vmem:[%s1452 + $0x39] sm:$0xff]
        %v4207 = vld [vmem:[%s1452 + $0x49] sm:$0xff]
        %v4208 = vld [vmem:[%s1452 + $0x51] sm:$0xff]
        %v4209 = vld [vmem:[%s1452 + $0x61] sm:$0xff]
        %v4210 = vld [vmem:[%s1452 + $0x69] sm:$0xff]
        %v4211 = vld [vmem:[%s1452 + $0x79] sm:$0xff]
        %v4212 = vld [vmem:[%s1452 + $0x81] sm:$0xff]
        %v4213 = vld [vmem:[%s1452 + $0x91] sm:$0xff]
        %v4214 = vld [vmem:[%s1452 + $0x99] sm:$0xff]
        %v4215 = vld [vmem:[%s1452 + $0xa9] sm:$0xff]
        %v4216 = vld [vmem:[%s1452 + $0xb1] sm:$0xff]
        %v4217 = vmul.f32 %v4201, %v906
        %v4218 = vmul.f32 %v4202, %v906
        %v4219 = vmul.f32 %v4203, %v906
        %v4220 = vmul.f32 %v4204, %v906
        %v4221 = vmul.f32 %v4205, %v906
        %v4222 = vmul.f32 %v4206, %v906
        %v4223 = vmul.f32 %v4207, %v906
        %v4224 = vmul.f32 %v4208, %v906
        %v4225 = vmul.f32 %v4209, %v906
        %v4226 = vmul.f32 %v4210, %v906
        %v4227 = vmul.f32 %v4211, %v906
        %v4228 = vmul.f32 %v4212, %v906
        %v4229 = vmul.f32 %v4213, %v906
        %v4230 = vmul.f32 %v4214, %v906
        %v4231 = vmul.f32 %v4215, %v906
        %v4232 = vmul.f32 %v4216, %v906
        %v4233 = vadd.f32 %v4185, %v4217
        %v4234 = vadd.f32 %v4186, %v4218
        %v4235 = vadd.f32 %v4187, %v4219
        %v4236 = vadd.f32 %v4188, %v4220
        %v4237 = vadd.f32 %v4189, %v4221
        %v4238 = vadd.f32 %v4190, %v4222
        %v4239 = vadd.f32 %v4191, %v4223
        %v4240 = vadd.f32 %v4192, %v4224
        %v4241 = vadd.f32 %v4193, %v4225
        %v4242 = vadd.f32 %v4194, %v4226
        %v4243 = vadd.f32 %v4195, %v4227
        %v4244 = vadd.f32 %v4196, %v4228
        %v4245 = vadd.f32 %v4197, %v4229
        %v4246 = vadd.f32 %v4198, %v4230
        %v4247 = vadd.f32 %v4199, %v4231
        %v4248 = vadd.f32 %v4200, %v4232
        %v4249 = vld [vmem:[%s1452 + $0x2] sm:$0xff]
        %v4250 = vld [vmem:[%s1452 + $0xa] sm:$0xff]
        %v4251 = vld [vmem:[%s1452 + $0x1a] sm:$0xff]
        %v4252 = vld [vmem:[%s1452 + $0x22] sm:$0xff]
        %v4253 = vld [vmem:[%s1452 + $0x32] sm:$0xff]
        %v4254 = vld [vmem:[%s1452 + $0x3a] sm:$0xff]
        %v4255 = vld [vmem:[%s1452 + $0x4a] sm:$0xff]
        %v4256 = vld [vmem:[%s1452 + $0x52] sm:$0xff]
        %v4257 = vld [vmem:[%s1452 + $0x62] sm:$0xff]
        %v4258 = vld [vmem:[%s1452 + $0x6a] sm:$0xff]
        %v4259 = vld [vmem:[%s1452 + $0x7a] sm:$0xff]
        %v4260 = vld [vmem:[%s1452 + $0x82] sm:$0xff]
        %v4261 = vld [vmem:[%s1452 + $0x92] sm:$0xff]
        %v4262 = vld [vmem:[%s1452 + $0x9a] sm:$0xff]
        %v4263 = vld [vmem:[%s1452 + $0xaa] sm:$0xff]
        %v4264 = vld [vmem:[%s1452 + $0xb2] sm:$0xff]
        %v4265 = vmul.f32 %v4249, %v958
        %v4266 = vmul.f32 %v4250, %v958
        %v4267 = vmul.f32 %v4251, %v958
        %v4268 = vmul.f32 %v4252, %v958
        %v4269 = vmul.f32 %v4253, %v958
        %v4270 = vmul.f32 %v4254, %v958
        %v4271 = vmul.f32 %v4255, %v958
        %v4272 = vmul.f32 %v4256, %v958
        %v4273 = vmul.f32 %v4257, %v958
        %v4274 = vmul.f32 %v4258, %v958
        %v4275 = vmul.f32 %v4259, %v958
        %v4276 = vmul.f32 %v4260, %v958
        %v4277 = vmul.f32 %v4261, %v958
        %v4278 = vmul.f32 %v4262, %v958
        %v4279 = vmul.f32 %v4263, %v958
        %v4280 = vmul.f32 %v4264, %v958
        %v4281 = vadd.f32 %v4233, %v4265
        %v4282 = vadd.f32 %v4234, %v4266
        %v4283 = vadd.f32 %v4235, %v4267
        %v4284 = vadd.f32 %v4236, %v4268
        %v4285 = vadd.f32 %v4237, %v4269
        %v4286 = vadd.f32 %v4238, %v4270
        %v4287 = vadd.f32 %v4239, %v4271
        %v4288 = vadd.f32 %v4240, %v4272
        %v4289 = vadd.f32 %v4241, %v4273
        %v4290 = vadd.f32 %v4242, %v4274
        %v4291 = vadd.f32 %v4243, %v4275
        %v4292 = vadd.f32 %v4244, %v4276
        %v4293 = vadd.f32 %v4245, %v4277
        %v4294 = vadd.f32 %v4246, %v4278
        %v4295 = vadd.f32 %v4247, %v4279
        %v4296 = vadd.f32 %v4248, %v4280
        %v4297 = vpack.c.bf16 %v4282, %v4281
        %v4298 = vpack.c.bf16 %v4284, %v4283
        %v4299 = vpack.c.bf16 %v4286, %v4285
        %v4300 = vpack.c.bf16 %v4288, %v4287
        %v4301 = vpack.c.bf16 %v4290, %v4289
        %v4302 = vpack.c.bf16 %v4292, %v4291
        %v4303 = vpack.c.bf16 %v4294, %v4293
        %v4304 = vpack.c.bf16 %v4296, %v4295
        %v4306 = vsel %vm305, %v4297, 0
        %v4309 = vsel %vm305, %v4298, 0
        %v4312 = vsel %vm305, %v4299, 0
        %v4315 = vsel %vm305, %v4300, 0
        %v4318 = vsel %vm305, %v4301, 0
        %v4321 = vsel %vm305, %v4302, 0
        %v4324 = vsel %vm305, %v4303, 0
        %v4327 = vsel %vm305, %v4304, 0
        %4329 = vmatprep.subr.bf16.mxu0 0
        %4330 = vmatpush1.bf16.msra.mxu0 0
        %4331 = vmatprep.subr.bf16.mxu0 0
        %4332 = vmatpush1.bf16.msra.mxu0 0
        %4333 = vmatprep.subr.bf16.mxu0 0
        %4334 = vmatpush1.bf16.msra.mxu0 0
        %4335 = vmatprep.subr.bf16.mxu0 0
        %4336 = vmatpush1.bf16.msra.mxu0 0
        %4337 = vmatprep.subr.bf16.mxu0 0
        %4338 = vmatpush1.bf16.msra.mxu0 0
        %4339 = vmatprep.subr.bf16.mxu0 0
        %4340 = vmatpush1.bf16.msra.mxu0 0
        %4341 = vmatprep.subr.bf16.mxu0 0
        %4342 = vmatpush1.bf16.msra.mxu0 0
        %4343 = vmatprep.subr.bf16.mxu0 0
        %4344 = vmatpush1.bf16.msra.mxu0 %v1007
        %4345 = vmatprep.subr.bf16.mxu0 0
        %4346 = vmatpush2.bf16.msra.mxu0 0
        %4347 = vmatprep.subr.bf16.mxu0 0
        %4348 = vmatpush2.bf16.msra.mxu0 0
        %4349 = vmatprep.subr.bf16.mxu0 0
        %4350 = vmatpush2.bf16.msra.mxu0 0
        %4351 = vmatprep.subr.bf16.mxu0 0
        %4352 = vmatpush2.bf16.msra.mxu0 0
        %4353 = vmatprep.subr.bf16.mxu0 0
        %4354 = vmatpush2.bf16.msra.mxu0 0
        %4355 = vmatprep.subr.bf16.mxu0 0
        %4356 = vmatpush2.bf16.msra.mxu0 0
        %4357 = vmatprep.subr.bf16.mxu0 0
        %4358 = vmatpush2.bf16.msra.mxu0 0
        %4359 = vmatprep.subr.bf16.mxu0 0
        %4360 = vmatpush2.bf16.msra.mxu0 0
        %4361 = vmatprep.mubr.bf16.mxu0 0
        %4362 = vmatmul.mubr.bf16.gmra.mxu0 %v4306
        %v4363 = vpop.f32.mrf.mxu0
        %v4364 = vadd.f32 %v1002, %v4363
        %v4365 = vpop.f32.mrf.mxu0
        %v4366 = vpop.f32.mrf.mxu0
        %v4367 = vadd.f32 %v1002, %v4366
        %v4368 = vpop.f32.mrf.mxu0
        %4369 = vmatprep.mubr.bf16.mxu0 0
        %4370 = vmatmul.mubr.bf16.gmra.mxu0 %v4309
        %v4371 = vpop.f32.mrf.mxu0
        %v4372 = vadd.f32 %v1002, %v4371
        %v4373 = vpop.f32.mrf.mxu0
        %v4374 = vpop.f32.mrf.mxu0
        %v4375 = vadd.f32 %v1002, %v4374
        %v4376 = vpop.f32.mrf.mxu0
        %4377 = vmatprep.mubr.bf16.mxu0 0
        %4378 = vmatmul.mubr.bf16.gmra.mxu0 %v4312
        %v4379 = vpop.f32.mrf.mxu0
        %v4380 = vadd.f32 %v1002, %v4379
        %v4381 = vpop.f32.mrf.mxu0
        %v4382 = vpop.f32.mrf.mxu0
        %v4383 = vadd.f32 %v1002, %v4382
        %v4384 = vpop.f32.mrf.mxu0
        %4385 = vmatprep.mubr.bf16.mxu0 0
        %4386 = vmatmul.mubr.bf16.gmra.mxu0 %v4315
        %v4387 = vpop.f32.mrf.mxu0
        %v4388 = vadd.f32 %v1002, %v4387
        %v4389 = vpop.f32.mrf.mxu0
        %v4390 = vpop.f32.mrf.mxu0
        %v4391 = vadd.f32 %v1002, %v4390
        %v4392 = vpop.f32.mrf.mxu0
        %4393 = vmatprep.mubr.bf16.mxu0 0
        %4394 = vmatmul.mubr.bf16.gmra.mxu0 %v4318
        %v4395 = vpop.f32.mrf.mxu0
        %v4396 = vadd.f32 %v1002, %v4395
        %v4397 = vpop.f32.mrf.mxu0
        %v4398 = vpop.f32.mrf.mxu0
        %v4399 = vadd.f32 %v1002, %v4398
        %v4400 = vpop.f32.mrf.mxu0
        %4401 = vmatprep.mubr.bf16.mxu0 0
        %4402 = vmatmul.mubr.bf16.gmra.mxu0 %v4321
        %v4403 = vpop.f32.mrf.mxu0
        %v4404 = vadd.f32 %v1002, %v4403
        %v4405 = vpop.f32.mrf.mxu0
        %v4406 = vpop.f32.mrf.mxu0
        %v4407 = vadd.f32 %v1002, %v4406
        %v4408 = vpop.f32.mrf.mxu0
        %4409 = vmatprep.mubr.bf16.mxu0 0
        %4410 = vmatmul.mubr.bf16.gmra.mxu0 %v4324
        %v4411 = vpop.f32.mrf.mxu0
        %v4412 = vadd.f32 %v1002, %v4411
        %v4413 = vpop.f32.mrf.mxu0
        %v4414 = vpop.f32.mrf.mxu0
        %v4415 = vadd.f32 %v1002, %v4414
        %v4416 = vpop.f32.mrf.mxu0
        %4417 = vmatprep.mubr.bf16.mxu0 0
        %4418 = vmatmul.mubr.bf16.gmra.mxu0 %v4327
        %v4419 = vpop.f32.mrf.mxu0
        %v4420 = vadd.f32 %v1002, %v4419
        %v4421 = vpop.f32.mrf.mxu0
        %v4422 = vpop.f32.mrf.mxu0
        %v4423 = vadd.f32 %v1002, %v4422
        %v4424 = vpop.f32.mrf.mxu0
        %4425 = vdwg.mxu0
        %v4426 = vmax.f32 %v4364, 0.0
        %v4427 = vmax.f32 %v4367, 0.0
        %v4428 = vmax.f32 %v4372, 0.0
        %v4429 = vmax.f32 %v4375, 0.0
        %v4430 = vmax.f32 %v4380, 0.0
        %v4431 = vmax.f32 %v4383, 0.0
        %v4432 = vmax.f32 %v4388, 0.0
        %v4433 = vmax.f32 %v4391, 0.0
        %v4434 = vmax.f32 %v4396, 0.0
        %v4435 = vmax.f32 %v4399, 0.0
        %v4436 = vmax.f32 %v4404, 0.0
        %v4437 = vmax.f32 %v4407, 0.0
        %v4438 = vmax.f32 %v4412, 0.0
        %v4439 = vmax.f32 %v4415, 0.0
        %v4440 = vmax.f32 %v4420, 0.0
        %v4441 = vmax.f32 %v4423, 0.0
        %4442 = vst.msk [vmem:[%s1742 + $0x1] sm:$0xff] %vm348, %v4426
        %4443 = vst.msk [vmem:[%s1742 + $0x9] sm:$0xff] %vm348, %v4427
        %4444 = vst.msk [vmem:[%s1742 + $0x19] sm:$0xff] %vm348, %v4428
        %4445 = vst.msk [vmem:[%s1742 + $0x21] sm:$0xff] %vm348, %v4429
        %4446 = vst.msk [vmem:[%s1742 + $0x31] sm:$0xff] %vm348, %v4430
        %4447 = vst.msk [vmem:[%s1742 + $0x39] sm:$0xff] %vm348, %v4431
        %4448 = vst.msk [vmem:[%s1742 + $0x49] sm:$0xff] %vm348, %v4432
        %4449 = vst.msk [vmem:[%s1742 + $0x51] sm:$0xff] %vm348, %v4433
        %4450 = vst.msk [vmem:[%s1742 + $0x61] sm:$0xff] %vm348, %v4434
        %4451 = vst.msk [vmem:[%s1742 + $0x69] sm:$0xff] %vm348, %v4435
        %4452 = vst.msk [vmem:[%s1742 + $0x79] sm:$0xff] %vm348, %v4436
        %4453 = vst.msk [vmem:[%s1742 + $0x81] sm:$0xff] %vm348, %v4437
        %4454 = vst.msk [vmem:[%s1742 + $0x91] sm:$0xff] %vm348, %v4438
        %4455 = vst.msk [vmem:[%s1742 + $0x99] sm:$0xff] %vm348, %v4439
        %4456 = vst.msk [vmem:[%s1742 + $0xa9] sm:$0xff] %vm348, %v4440
        %4457 = vst.msk [vmem:[%s1742 + $0xb1] sm:$0xff] %vm348, %v4441
        %v4458 = vld [vmem:[#allocation3] sm:$0xff]
        %v4459 = vld [vmem:[#allocation3 + $0x8] sm:$0xff]
        %v4460 = vld [vmem:[#allocation3 + $0x18] sm:$0xff]
        %v4461 = vld [vmem:[#allocation3 + $0x20] sm:$0xff]
        %v4462 = vld [vmem:[#allocation3 + $0x30] sm:$0xff]
        %v4463 = vld [vmem:[#allocation3 + $0x38] sm:$0xff]
        %v4464 = vld [vmem:[#allocation3 + $0x48] sm:$0xff]
        %v4465 = vld [vmem:[#allocation3 + $0x50] sm:$0xff]
        %v4466 = vld [vmem:[#allocation3 + $0x60] sm:$0xff]
        %v4467 = vld [vmem:[#allocation3 + $0x68] sm:$0xff]
        %v4468 = vld [vmem:[#allocation3 + $0x78] sm:$0xff]
        %v4469 = vld [vmem:[#allocation3 + $0x80] sm:$0xff]
        %v4470 = vld [vmem:[#allocation3 + $0x90] sm:$0xff]
        %v4471 = vld [vmem:[#allocation3 + $0x98] sm:$0xff]
        %v4472 = vld [vmem:[#allocation3 + $0xa8] sm:$0xff]
        %v4473 = vld [vmem:[#allocation3 + $0xb0] sm:$0xff]
        %v4474 = vmul.f32 %v4458, %v1778
        %v4475 = vmul.f32 %v4459, %v1778
        %v4476 = vmul.f32 %v4460, %v1778
        %v4477 = vmul.f32 %v4461, %v1778
        %v4478 = vmul.f32 %v4462, %v1778
        %v4479 = vmul.f32 %v4463, %v1778
        %v4480 = vmul.f32 %v4464, %v1778
        %v4481 = vmul.f32 %v4465, %v1778
        %v4482 = vmul.f32 %v4466, %v1778
        %v4483 = vmul.f32 %v4467, %v1778
        %v4484 = vmul.f32 %v4468, %v1778
        %v4485 = vmul.f32 %v4469, %v1778
        %v4486 = vmul.f32 %v4470, %v1778
        %v4487 = vmul.f32 %v4471, %v1778
        %v4488 = vmul.f32 %v4472, %v1778
        %v4489 = vmul.f32 %v4473, %v1778
        %v4490 = vadd.f32 %v4474, 0.0
        %v4491 = vadd.f32 %v4475, 0.0
        %v4492 = vadd.f32 %v4476, 0.0
        %v4493 = vadd.f32 %v4477, 0.0
        %v4494 = vadd.f32 %v4478, 0.0
        %v4495 = vadd.f32 %v4479, 0.0
        %v4496 = vadd.f32 %v4480, 0.0
        %v4497 = vadd.f32 %v4481, 0.0
        %v4498 = vadd.f32 %v4482, 0.0
        %v4499 = vadd.f32 %v4483, 0.0
        %v4500 = vadd.f32 %v4484, 0.0
        %v4501 = vadd.f32 %v4485, 0.0
        %v4502 = vadd.f32 %v4486, 0.0
        %v4503 = vadd.f32 %v4487, 0.0
        %v4504 = vadd.f32 %v4488, 0.0
        %v4505 = vadd.f32 %v4489, 0.0
        %v4506 = vld [vmem:[#allocation3 + $0x1] sm:$0xff]
        %v4507 = vld [vmem:[#allocation3 + $0x9] sm:$0xff]
        %v4508 = vld [vmem:[#allocation3 + $0x19] sm:$0xff]
        %v4509 = vld [vmem:[#allocation3 + $0x21] sm:$0xff]
        %v4510 = vld [vmem:[#allocation3 + $0x31] sm:$0xff]
        %v4511 = vld [vmem:[#allocation3 + $0x39] sm:$0xff]
        %v4512 = vld [vmem:[#allocation3 + $0x49] sm:$0xff]
        %v4513 = vld [vmem:[#allocation3 + $0x51] sm:$0xff]
        %v4514 = vld [vmem:[#allocation3 + $0x61] sm:$0xff]
        %v4515 = vld [vmem:[#allocation3 + $0x69] sm:$0xff]
        %v4516 = vld [vmem:[#allocation3 + $0x79] sm:$0xff]
        %v4517 = vld [vmem:[#allocation3 + $0x81] sm:$0xff]
        %v4518 = vld [vmem:[#allocation3 + $0x91] sm:$0xff]
        %v4519 = vld [vmem:[#allocation3 + $0x99] sm:$0xff]
        %v4520 = vld [vmem:[#allocation3 + $0xa9] sm:$0xff]
        %v4521 = vld [vmem:[#allocation3 + $0xb1] sm:$0xff]
        %v4522 = vmul.f32 %v4506, %v1830
        %v4523 = vmul.f32 %v4507, %v1830
        %v4524 = vmul.f32 %v4508, %v1830
        %v4525 = vmul.f32 %v4509, %v1830
        %v4526 = vmul.f32 %v4510, %v1830
        %v4527 = vmul.f32 %v4511, %v1830
        %v4528 = vmul.f32 %v4512, %v1830
        %v4529 = vmul.f32 %v4513, %v1830
        %v4530 = vmul.f32 %v4514, %v1830
        %v4531 = vmul.f32 %v4515, %v1830
        %v4532 = vmul.f32 %v4516, %v1830
        %v4533 = vmul.f32 %v4517, %v1830
        %v4534 = vmul.f32 %v4518, %v1830
        %v4535 = vmul.f32 %v4519, %v1830
        %v4536 = vmul.f32 %v4520, %v1830
        %v4537 = vmul.f32 %v4521, %v1830
        %v4538 = vadd.f32 %v4490, %v4522
        %v4539 = vadd.f32 %v4491, %v4523
        %v4540 = vadd.f32 %v4492, %v4524
        %v4541 = vadd.f32 %v4493, %v4525
        %v4542 = vadd.f32 %v4494, %v4526
        %v4543 = vadd.f32 %v4495, %v4527
        %v4544 = vadd.f32 %v4496, %v4528
        %v4545 = vadd.f32 %v4497, %v4529
        %v4546 = vadd.f32 %v4498, %v4530
        %v4547 = vadd.f32 %v4499, %v4531
        %v4548 = vadd.f32 %v4500, %v4532
        %v4549 = vadd.f32 %v4501, %v4533
        %v4550 = vadd.f32 %v4502, %v4534
        %v4551 = vadd.f32 %v4503, %v4535
        %v4552 = vadd.f32 %v4504, %v4536
        %v4553 = vadd.f32 %v4505, %v4537
        %v4554 = vld [vmem:[#allocation3 + $0x2] sm:$0xff]
        %v4555 = vld [vmem:[#allocation3 + $0xa] sm:$0xff]
        %v4556 = vld [vmem:[#allocation3 + $0x1a] sm:$0xff]
        %v4557 = vld [vmem:[#allocation3 + $0x22] sm:$0xff]
        %v4558 = vld [vmem:[#allocation3 + $0x32] sm:$0xff]
        %v4559 = vld [vmem:[#allocation3 + $0x3a] sm:$0xff]
        %v4560 = vld [vmem:[#allocation3 + $0x4a] sm:$0xff]
        %v4561 = vld [vmem:[#allocation3 + $0x52] sm:$0xff]
        %v4562 = vld [vmem:[#allocation3 + $0x62] sm:$0xff]
        %v4563 = vld [vmem:[#allocation3 + $0x6a] sm:$0xff]
        %v4564 = vld [vmem:[#allocation3 + $0x7a] sm:$0xff]
        %v4565 = vld [vmem:[#allocation3 + $0x82] sm:$0xff]
        %v4566 = vld [vmem:[#allocation3 + $0x92] sm:$0xff]
        %v4567 = vld [vmem:[#allocation3 + $0x9a] sm:$0xff]
        %v4568 = vld [vmem:[#allocation3 + $0xaa] sm:$0xff]
        %v4569 = vld [vmem:[#allocation3 + $0xb2] sm:$0xff]
        %v4570 = vmul.f32 %v4554, %v1882
        %v4571 = vmul.f32 %v4555, %v1882
        %v4572 = vmul.f32 %v4556, %v1882
        %v4573 = vmul.f32 %v4557, %v1882
        %v4574 = vmul.f32 %v4558, %v1882
        %v4575 = vmul.f32 %v4559, %v1882
        %v4576 = vmul.f32 %v4560, %v1882
        %v4577 = vmul.f32 %v4561, %v1882
        %v4578 = vmul.f32 %v4562, %v1882
        %v4579 = vmul.f32 %v4563, %v1882
        %v4580 = vmul.f32 %v4564, %v1882
        %v4581 = vmul.f32 %v4565, %v1882
        %v4582 = vmul.f32 %v4566, %v1882
        %v4583 = vmul.f32 %v4567, %v1882
        %v4584 = vmul.f32 %v4568, %v1882
        %v4585 = vmul.f32 %v4569, %v1882
        %v4586 = vadd.f32 %v4538, %v4570
        %v4587 = vadd.f32 %v4539, %v4571
        %v4588 = vadd.f32 %v4540, %v4572
        %v4589 = vadd.f32 %v4541, %v4573
        %v4590 = vadd.f32 %v4542, %v4574
        %v4591 = vadd.f32 %v4543, %v4575
        %v4592 = vadd.f32 %v4544, %v4576
        %v4593 = vadd.f32 %v4545, %v4577
        %v4594 = vadd.f32 %v4546, %v4578
        %v4595 = vadd.f32 %v4547, %v4579
        %v4596 = vadd.f32 %v4548, %v4580
        %v4597 = vadd.f32 %v4549, %v4581
        %v4598 = vadd.f32 %v4550, %v4582
        %v4599 = vadd.f32 %v4551, %v4583
        %v4600 = vadd.f32 %v4552, %v4584
        %v4601 = vadd.f32 %v4553, %v4585
        %v4602 = vld [vmem:[%s357] sm:$0xff]
        %v4603 = vld [vmem:[%s357 + $0x8] sm:$0xff]
        %v4604 = vld [vmem:[%s357 + $0x18] sm:$0xff]
        %v4605 = vld [vmem:[%s357 + $0x20] sm:$0xff]
        %v4606 = vld [vmem:[%s357 + $0x30] sm:$0xff]
        %v4607 = vld [vmem:[%s357 + $0x38] sm:$0xff]
        %v4608 = vld [vmem:[%s357 + $0x48] sm:$0xff]
        %v4609 = vld [vmem:[%s357 + $0x50] sm:$0xff]
        %v4610 = vld [vmem:[%s357 + $0x60] sm:$0xff]
        %v4611 = vld [vmem:[%s357 + $0x68] sm:$0xff]
        %v4612 = vld [vmem:[%s357 + $0x78] sm:$0xff]
        %v4613 = vld [vmem:[%s357 + $0x80] sm:$0xff]
        %v4614 = vld [vmem:[%s357 + $0x90] sm:$0xff]
        %v4615 = vld [vmem:[%s357 + $0x98] sm:$0xff]
        %v4616 = vld [vmem:[%s357 + $0xa8] sm:$0xff]
        %v4617 = vld [vmem:[%s357 + $0xb0] sm:$0xff]
        %v4618 = vmul.f32 %v4602, %v1934
        %v4619 = vmul.f32 %v4603, %v1934
        %v4620 = vmul.f32 %v4604, %v1934
        %v4621 = vmul.f32 %v4605, %v1934
        %v4622 = vmul.f32 %v4606, %v1934
        %v4623 = vmul.f32 %v4607, %v1934
        %v4624 = vmul.f32 %v4608, %v1934
        %v4625 = vmul.f32 %v4609, %v1934
        %v4626 = vmul.f32 %v4610, %v1934
        %v4627 = vmul.f32 %v4611, %v1934
        %v4628 = vmul.f32 %v4612, %v1934
        %v4629 = vmul.f32 %v4613, %v1934
        %v4630 = vmul.f32 %v4614, %v1934
        %v4631 = vmul.f32 %v4615, %v1934
        %v4632 = vmul.f32 %v4616, %v1934
        %v4633 = vmul.f32 %v4617, %v1934
        %v4634 = vadd.f32 %v4586, %v4618
        %v4635 = vadd.f32 %v4587, %v4619
        %v4636 = vadd.f32 %v4588, %v4620
        %v4637 = vadd.f32 %v4589, %v4621
        %v4638 = vadd.f32 %v4590, %v4622
        %v4639 = vadd.f32 %v4591, %v4623
        %v4640 = vadd.f32 %v4592, %v4624
        %v4641 = vadd.f32 %v4593, %v4625
        %v4642 = vadd.f32 %v4594, %v4626
        %v4643 = vadd.f32 %v4595, %v4627
        %v4644 = vadd.f32 %v4596, %v4628
        %v4645 = vadd.f32 %v4597, %v4629
        %v4646 = vadd.f32 %v4598, %v4630
        %v4647 = vadd.f32 %v4599, %v4631
        %v4648 = vadd.f32 %v4600, %v4632
        %v4649 = vadd.f32 %v4601, %v4633
        %v4650 = vld [vmem:[%s357 + $0x1] sm:$0xff]
        %v4651 = vld [vmem:[%s357 + $0x9] sm:$0xff]
        %v4652 = vld [vmem:[%s357 + $0x19] sm:$0xff]
        %v4653 = vld [vmem:[%s357 + $0x21] sm:$0xff]
        %v4654 = vld [vmem:[%s357 + $0x31] sm:$0xff]
        %v4655 = vld [vmem:[%s357 + $0x39] sm:$0xff]
        %v4656 = vld [vmem:[%s357 + $0x49] sm:$0xff]
        %v4657 = vld [vmem:[%s357 + $0x51] sm:$0xff]
        %v4658 = vld [vmem:[%s357 + $0x61] sm:$0xff]
        %v4659 = vld [vmem:[%s357 + $0x69] sm:$0xff]
        %v4660 = vld [vmem:[%s357 + $0x79] sm:$0xff]
        %v4661 = vld [vmem:[%s357 + $0x81] sm:$0xff]
        %v4662 = vld [vmem:[%s357 + $0x91] sm:$0xff]
        %v4663 = vld [vmem:[%s357 + $0x99] sm:$0xff]
        %v4664 = vld [vmem:[%s357 + $0xa9] sm:$0xff]
        %v4665 = vld [vmem:[%s357 + $0xb1] sm:$0xff]
        %v4666 = vmul.f32 %v4650, %v1986
        %v4667 = vmul.f32 %v4651, %v1986
        %v4668 = vmul.f32 %v4652, %v1986
        %v4669 = vmul.f32 %v4653, %v1986
        %v4670 = vmul.f32 %v4654, %v1986
        %v4671 = vmul.f32 %v4655, %v1986
        %v4672 = vmul.f32 %v4656, %v1986
        %v4673 = vmul.f32 %v4657, %v1986
        %v4674 = vmul.f32 %v4658, %v1986
        %v4675 = vmul.f32 %v4659, %v1986
        %v4676 = vmul.f32 %v4660, %v1986
        %v4677 = vmul.f32 %v4661, %v1986
        %v4678 = vmul.f32 %v4662, %v1986
        %v4679 = vmul.f32 %v4663, %v1986
        %v4680 = vmul.f32 %v4664, %v1986
        %v4681 = vmul.f32 %v4665, %v1986
        %v4682 = vadd.f32 %v4634, %v4666
        %v4683 = vadd.f32 %v4635, %v4667
        %v4684 = vadd.f32 %v4636, %v4668
        %v4685 = vadd.f32 %v4637, %v4669
        %v4686 = vadd.f32 %v4638, %v4670
        %v4687 = vadd.f32 %v4639, %v4671
        %v4688 = vadd.f32 %v4640, %v4672
        %v4689 = vadd.f32 %v4641, %v4673
        %v4690 = vadd.f32 %v4642, %v4674
        %v4691 = vadd.f32 %v4643, %v4675
        %v4692 = vadd.f32 %v4644, %v4676
        %v4693 = vadd.f32 %v4645, %v4677
        %v4694 = vadd.f32 %v4646, %v4678
        %v4695 = vadd.f32 %v4647, %v4679
        %v4696 = vadd.f32 %v4648, %v4680
        %v4697 = vadd.f32 %v4649, %v4681
        %v4698 = vld [vmem:[%s357 + $0x2] sm:$0xff]
        %v4699 = vld [vmem:[%s357 + $0xa] sm:$0xff]
        %v4700 = vld [vmem:[%s357 + $0x1a] sm:$0xff]
        %v4701 = vld [vmem:[%s357 + $0x22] sm:$0xff]
        %v4702 = vld [vmem:[%s357 + $0x32] sm:$0xff]
        %v4703 = vld [vmem:[%s357 + $0x3a] sm:$0xff]
        %v4704 = vld [vmem:[%s357 + $0x4a] sm:$0xff]
        %v4705 = vld [vmem:[%s357 + $0x52] sm:$0xff]
        %v4706 = vld [vmem:[%s357 + $0x62] sm:$0xff]
        %v4707 = vld [vmem:[%s357 + $0x6a] sm:$0xff]
        %v4708 = vld [vmem:[%s357 + $0x7a] sm:$0xff]
        %v4709 = vld [vmem:[%s357 + $0x82] sm:$0xff]
        %v4710 = vld [vmem:[%s357 + $0x92] sm:$0xff]
        %v4711 = vld [vmem:[%s357 + $0x9a] sm:$0xff]
        %v4712 = vld [vmem:[%s357 + $0xaa] sm:$0xff]
        %v4713 = vld [vmem:[%s357 + $0xb2] sm:$0xff]
        %v4714 = vmul.f32 %v4698, %v2038
        %v4715 = vmul.f32 %v4699, %v2038
        %v4716 = vmul.f32 %v4700, %v2038
        %v4717 = vmul.f32 %v4701, %v2038
        %v4718 = vmul.f32 %v4702, %v2038
        %v4719 = vmul.f32 %v4703, %v2038
        %v4720 = vmul.f32 %v4704, %v2038
        %v4721 = vmul.f32 %v4705, %v2038
        %v4722 = vmul.f32 %v4706, %v2038
        %v4723 = vmul.f32 %v4707, %v2038
        %v4724 = vmul.f32 %v4708, %v2038
        %v4725 = vmul.f32 %v4709, %v2038
        %v4726 = vmul.f32 %v4710, %v2038
        %v4727 = vmul.f32 %v4711, %v2038
        %v4728 = vmul.f32 %v4712, %v2038
        %v4729 = vmul.f32 %v4713, %v2038
        %v4730 = vadd.f32 %v4682, %v4714
        %v4731 = vadd.f32 %v4683, %v4715
        %v4732 = vadd.f32 %v4684, %v4716
        %v4733 = vadd.f32 %v4685, %v4717
        %v4734 = vadd.f32 %v4686, %v4718
        %v4735 = vadd.f32 %v4687, %v4719
        %v4736 = vadd.f32 %v4688, %v4720
        %v4737 = vadd.f32 %v4689, %v4721
        %v4738 = vadd.f32 %v4690, %v4722
        %v4739 = vadd.f32 %v4691, %v4723
        %v4740 = vadd.f32 %v4692, %v4724
        %v4741 = vadd.f32 %v4693, %v4725
        %v4742 = vadd.f32 %v4694, %v4726
        %v4743 = vadd.f32 %v4695, %v4727
        %v4744 = vadd.f32 %v4696, %v4728
        %v4745 = vadd.f32 %v4697, %v4729
        %v4746 = vld [vmem:[%s2071] sm:$0xff]
        %v4747 = vld [vmem:[%s2071 + $0x8] sm:$0xff]
        %v4748 = vld [vmem:[%s2071 + $0x18] sm:$0xff]
        %v4749 = vld [vmem:[%s2071 + $0x20] sm:$0xff]
        %v4750 = vld [vmem:[%s2071 + $0x30] sm:$0xff]
        %v4751 = vld [vmem:[%s2071 + $0x38] sm:$0xff]
        %v4752 = vld [vmem:[%s2071 + $0x48] sm:$0xff]
        %v4753 = vld [vmem:[%s2071 + $0x50] sm:$0xff]
        %v4754 = vld [vmem:[%s2071 + $0x60] sm:$0xff]
        %v4755 = vld [vmem:[%s2071 + $0x68] sm:$0xff]
        %v4756 = vld [vmem:[%s2071 + $0x78] sm:$0xff]
        %v4757 = vld [vmem:[%s2071 + $0x80] sm:$0xff]
        %v4758 = vld [vmem:[%s2071 + $0x90] sm:$0xff]
        %v4759 = vld [vmem:[%s2071 + $0x98] sm:$0xff]
        %v4760 = vld [vmem:[%s2071 + $0xa8] sm:$0xff]
        %v4761 = vld [vmem:[%s2071 + $0xb0] sm:$0xff]
        %v4762 = vmul.f32 %v4746, %v2091
        %v4763 = vmul.f32 %v4747, %v2091
        %v4764 = vmul.f32 %v4748, %v2091
        %v4765 = vmul.f32 %v4749, %v2091
        %v4766 = vmul.f32 %v4750, %v2091
        %v4767 = vmul.f32 %v4751, %v2091
        %v4768 = vmul.f32 %v4752, %v2091
        %v4769 = vmul.f32 %v4753, %v2091
        %v4770 = vmul.f32 %v4754, %v2091
        %v4771 = vmul.f32 %v4755, %v2091
        %v4772 = vmul.f32 %v4756, %v2091
        %v4773 = vmul.f32 %v4757, %v2091
        %v4774 = vmul.f32 %v4758, %v2091
        %v4775 = vmul.f32 %v4759, %v2091
        %v4776 = vmul.f32 %v4760, %v2091
        %v4777 = vmul.f32 %v4761, %v2091
        %v4778 = vadd.f32 %v4730, %v4762
        %v4779 = vadd.f32 %v4731, %v4763
        %v4780 = vadd.f32 %v4732, %v4764
        %v4781 = vadd.f32 %v4733, %v4765
        %v4782 = vadd.f32 %v4734, %v4766
        %v4783 = vadd.f32 %v4735, %v4767
        %v4784 = vadd.f32 %v4736, %v4768
        %v4785 = vadd.f32 %v4737, %v4769
        %v4786 = vadd.f32 %v4738, %v4770
        %v4787 = vadd.f32 %v4739, %v4771
        %v4788 = vadd.f32 %v4740, %v4772
        %v4789 = vadd.f32 %v4741, %v4773
        %v4790 = vadd.f32 %v4742, %v4774
        %v4791 = vadd.f32 %v4743, %v4775
        %v4792 = vadd.f32 %v4744, %v4776
        %v4793 = vadd.f32 %v4745, %v4777
        %v4794 = vld [vmem:[%s2071 + $0x1] sm:$0xff]
        %v4795 = vld [vmem:[%s2071 + $0x9] sm:$0xff]
        %v4796 = vld [vmem:[%s2071 + $0x19] sm:$0xff]
        %v4797 = vld [vmem:[%s2071 + $0x21] sm:$0xff]
        %v4798 = vld [vmem:[%s2071 + $0x31] sm:$0xff]
        %v4799 = vld [vmem:[%s2071 + $0x39] sm:$0xff]
        %v4800 = vld [vmem:[%s2071 + $0x49] sm:$0xff]
        %v4801 = vld [vmem:[%s2071 + $0x51] sm:$0xff]
        %v4802 = vld [vmem:[%s2071 + $0x61] sm:$0xff]
        %v4803 = vld [vmem:[%s2071 + $0x69] sm:$0xff]
        %v4804 = vld [vmem:[%s2071 + $0x79] sm:$0xff]
        %v4805 = vld [vmem:[%s2071 + $0x81] sm:$0xff]
        %v4806 = vld [vmem:[%s2071 + $0x91] sm:$0xff]
        %v4807 = vld [vmem:[%s2071 + $0x99] sm:$0xff]
        %v4808 = vld [vmem:[%s2071 + $0xa9] sm:$0xff]
        %v4809 = vld [vmem:[%s2071 + $0xb1] sm:$0xff]
        %v4810 = vmul.f32 %v4794, %v2143
        %v4811 = vmul.f32 %v4795, %v2143
        %v4812 = vmul.f32 %v4796, %v2143
        %v4813 = vmul.f32 %v4797, %v2143
        %v4814 = vmul.f32 %v4798, %v2143
        %v4815 = vmul.f32 %v4799, %v2143
        %v4816 = vmul.f32 %v4800, %v2143
        %v4817 = vmul.f32 %v4801, %v2143
        %v4818 = vmul.f32 %v4802, %v2143
        %v4819 = vmul.f32 %v4803, %v2143
        %v4820 = vmul.f32 %v4804, %v2143
        %v4821 = vmul.f32 %v4805, %v2143
        %v4822 = vmul.f32 %v4806, %v2143
        %v4823 = vmul.f32 %v4807, %v2143
        %v4824 = vmul.f32 %v4808, %v2143
        %v4825 = vmul.f32 %v4809, %v2143
        %v4826 = vadd.f32 %v4778, %v4810
        %v4827 = vadd.f32 %v4779, %v4811
        %v4828 = vadd.f32 %v4780, %v4812
        %v4829 = vadd.f32 %v4781, %v4813
        %v4830 = vadd.f32 %v4782, %v4814
        %v4831 = vadd.f32 %v4783, %v4815
        %v4832 = vadd.f32 %v4784, %v4816
        %v4833 = vadd.f32 %v4785, %v4817
        %v4834 = vadd.f32 %v4786, %v4818
        %v4835 = vadd.f32 %v4787, %v4819
        %v4836 = vadd.f32 %v4788, %v4820
        %v4837 = vadd.f32 %v4789, %v4821
        %v4838 = vadd.f32 %v4790, %v4822
        %v4839 = vadd.f32 %v4791, %v4823
        %v4840 = vadd.f32 %v4792, %v4824
        %v4841 = vadd.f32 %v4793, %v4825
        %v4842 = vld [vmem:[%s2071 + $0x2] sm:$0xff]
        %v4843 = vld [vmem:[%s2071 + $0xa] sm:$0xff]
        %v4844 = vld [vmem:[%s2071 + $0x1a] sm:$0xff]
        %v4845 = vld [vmem:[%s2071 + $0x22] sm:$0xff]
        %v4846 = vld [vmem:[%s2071 + $0x32] sm:$0xff]
        %v4847 = vld [vmem:[%s2071 + $0x3a] sm:$0xff]
        %v4848 = vld [vmem:[%s2071 + $0x4a] sm:$0xff]
        %v4849 = vld [vmem:[%s2071 + $0x52] sm:$0xff]
        %v4850 = vld [vmem:[%s2071 + $0x62] sm:$0xff]
        %v4851 = vld [vmem:[%s2071 + $0x6a] sm:$0xff]
        %v4852 = vld [vmem:[%s2071 + $0x7a] sm:$0xff]
        %v4853 = vld [vmem:[%s2071 + $0x82] sm:$0xff]
        %v4854 = vld [vmem:[%s2071 + $0x92] sm:$0xff]
        %v4855 = vld [vmem:[%s2071 + $0x9a] sm:$0xff]
        %v4856 = vld [vmem:[%s2071 + $0xaa] sm:$0xff]
        %v4857 = vld [vmem:[%s2071 + $0xb2] sm:$0xff]
        %v4858 = vmul.f32 %v4842, %v2195
        %v4859 = vmul.f32 %v4843, %v2195
        %v4860 = vmul.f32 %v4844, %v2195
        %v4861 = vmul.f32 %v4845, %v2195
        %v4862 = vmul.f32 %v4846, %v2195
        %v4863 = vmul.f32 %v4847, %v2195
        %v4864 = vmul.f32 %v4848, %v2195
        %v4865 = vmul.f32 %v4849, %v2195
        %v4866 = vmul.f32 %v4850, %v2195
        %v4867 = vmul.f32 %v4851, %v2195
        %v4868 = vmul.f32 %v4852, %v2195
        %v4869 = vmul.f32 %v4853, %v2195
        %v4870 = vmul.f32 %v4854, %v2195
        %v4871 = vmul.f32 %v4855, %v2195
        %v4872 = vmul.f32 %v4856, %v2195
        %v4873 = vmul.f32 %v4857, %v2195
        %v4874 = vadd.f32 %v4826, %v4858
        %v4875 = vadd.f32 %v4827, %v4859
        %v4876 = vadd.f32 %v4828, %v4860
        %v4877 = vadd.f32 %v4829, %v4861
        %v4878 = vadd.f32 %v4830, %v4862
        %v4879 = vadd.f32 %v4831, %v4863
        %v4880 = vadd.f32 %v4832, %v4864
        %v4881 = vadd.f32 %v4833, %v4865
        %v4882 = vadd.f32 %v4834, %v4866
        %v4883 = vadd.f32 %v4835, %v4867
        %v4884 = vadd.f32 %v4836, %v4868
        %v4885 = vadd.f32 %v4837, %v4869
        %v4886 = vadd.f32 %v4838, %v4870
        %v4887 = vadd.f32 %v4839, %v4871
        %v4888 = vadd.f32 %v4840, %v4872
        %v4889 = vadd.f32 %v4841, %v4873
        %v4890 = vpack.c.bf16 %v4875, %v4874
        %v4891 = vpack.c.bf16 %v4877, %v4876
        %v4892 = vpack.c.bf16 %v4879, %v4878
        %v4893 = vpack.c.bf16 %v4881, %v4880
        %v4894 = vpack.c.bf16 %v4883, %v4882
        %v4895 = vpack.c.bf16 %v4885, %v4884
        %v4896 = vpack.c.bf16 %v4887, %v4886
        %v4897 = vpack.c.bf16 %v4889, %v4888
        %v4899 = vsel %vm348, %v4890, 0
        %v4902 = vsel %vm348, %v4891, 0
        %v4905 = vsel %vm348, %v4892, 0
        %v4908 = vsel %vm348, %v4893, 0
        %v4911 = vsel %vm348, %v4894, 0
        %v4914 = vsel %vm348, %v4895, 0
        %v4917 = vsel %vm348, %v4896, 0
        %v4920 = vsel %vm348, %v4897, 0
        %4922 = vmatprep.subr.bf16.mxu0 0
        %4923 = vmatpush1.bf16.msra.mxu0 0
        %4924 = vmatprep.subr.bf16.mxu0 0
        %4925 = vmatpush1.bf16.msra.mxu0 0
        %4926 = vmatprep.subr.bf16.mxu0 0
        %4927 = vmatpush1.bf16.msra.mxu0 0
        %4928 = vmatprep.subr.bf16.mxu0 0
        %4929 = vmatpush1.bf16.msra.mxu0 0
        %4930 = vmatprep.subr.bf16.mxu0 0
        %4931 = vmatpush1.bf16.msra.mxu0 0
        %4932 = vmatprep.subr.bf16.mxu0 0
        %4933 = vmatpush1.bf16.msra.mxu0 0
        %4934 = vmatprep.subr.bf16.mxu0 0
        %4935 = vmatpush1.bf16.msra.mxu0 %v2249
        %4936 = vmatprep.subr.bf16.mxu0 0
        %4937 = vmatpush1.bf16.msra.mxu0 %v2248
        %4938 = vmatprep.subr.bf16.mxu0 0
        %4939 = vmatpush2.bf16.msra.mxu0 0
        %4940 = vmatprep.subr.bf16.mxu0 0
        %4941 = vmatpush2.bf16.msra.mxu0 0
        %4942 = vmatprep.subr.bf16.mxu0 0
        %4943 = vmatpush2.bf16.msra.mxu0 0
        %4944 = vmatprep.subr.bf16.mxu0 0
        %4945 = vmatpush2.bf16.msra.mxu0 0
        %4946 = vmatprep.subr.bf16.mxu0 0
        %4947 = vmatpush2.bf16.msra.mxu0 0
        %4948 = vmatprep.subr.bf16.mxu0 0
        %4949 = vmatpush2.bf16.msra.mxu0 0
        %4950 = vmatprep.subr.bf16.mxu0 0
        %4951 = vmatpush2.bf16.msra.mxu0 0
        %4952 = vmatprep.subr.bf16.mxu0 0
        %4953 = vmatpush2.bf16.msra.mxu0 0
        %4954 = vmatprep.mubr.bf16.mxu0 0
        %4955 = vmatmul.mubr.bf16.gmra.mxu0 %v4899
        %v4956 = vpop.f32.mrf.mxu0
        %v4957 = vadd.f32 %v2239, %v4956
        %v4958 = vpop.f32.mrf.mxu0
        %v4959 = vpop.f32.mrf.mxu0
        %v4960 = vadd.f32 %v2239, %v4959
        %v4961 = vpop.f32.mrf.mxu0
        %4962 = vmatprep.mubr.bf16.mxu0 0
        %4963 = vmatmul.mubr.bf16.gmra.mxu0 %v4902
        %v4964 = vpop.f32.mrf.mxu0
        %v4965 = vadd.f32 %v2239, %v4964
        %v4966 = vpop.f32.mrf.mxu0
        %v4967 = vpop.f32.mrf.mxu0
        %v4968 = vadd.f32 %v2239, %v4967
        %v4969 = vpop.f32.mrf.mxu0
        %4970 = vmatprep.mubr.bf16.mxu0 0
        %4971 = vmatmul.mubr.bf16.gmra.mxu0 %v4905
        %v4972 = vpop.f32.mrf.mxu0
        %v4973 = vadd.f32 %v2239, %v4972
        %v4974 = vpop.f32.mrf.mxu0
        %v4975 = vpop.f32.mrf.mxu0
        %v4976 = vadd.f32 %v2239, %v4975
        %v4977 = vpop.f32.mrf.mxu0
        %4978 = vmatprep.mubr.bf16.mxu0 0
        %4979 = vmatmul.mubr.bf16.gmra.mxu0 %v4908
        %v4980 = vpop.f32.mrf.mxu0
        %v4981 = vadd.f32 %v2239, %v4980
        %v4982 = vpop.f32.mrf.mxu0
        %v4983 = vpop.f32.mrf.mxu0
        %v4984 = vadd.f32 %v2239, %v4983
        %v4985 = vpop.f32.mrf.mxu0
        %4986 = vmatprep.mubr.bf16.mxu0 0
        %4987 = vmatmul.mubr.bf16.gmra.mxu0 %v4911
        %v4988 = vpop.f32.mrf.mxu0
        %v4989 = vadd.f32 %v2239, %v4988
        %v4990 = vpop.f32.mrf.mxu0
        %v4991 = vpop.f32.mrf.mxu0
        %v4992 = vadd.f32 %v2239, %v4991
        %v4993 = vpop.f32.mrf.mxu0
        %4994 = vmatprep.mubr.bf16.mxu0 0
        %4995 = vmatmul.mubr.bf16.gmra.mxu0 %v4914
        %v4996 = vpop.f32.mrf.mxu0
        %v4997 = vadd.f32 %v2239, %v4996
        %v4998 = vpop.f32.mrf.mxu0
        %v4999 = vpop.f32.mrf.mxu0
        %v5000 = vadd.f32 %v2239, %v4999
        %v5001 = vpop.f32.mrf.mxu0
        %5002 = vmatprep.mubr.bf16.mxu0 0
        %5003 = vmatmul.mubr.bf16.gmra.mxu0 %v4917
        %v5004 = vpop.f32.mrf.mxu0
        %v5005 = vadd.f32 %v2239, %v5004
        %v5006 = vpop.f32.mrf.mxu0
        %v5007 = vpop.f32.mrf.mxu0
        %v5008 = vadd.f32 %v2239, %v5007
        %v5009 = vpop.f32.mrf.mxu0
        %5010 = vmatprep.mubr.bf16.mxu0 0
        %5011 = vmatmul.mubr.bf16.gmra.mxu0 %v4920
        %v5012 = vpop.f32.mrf.mxu0
        %v5013 = vadd.f32 %v2239, %v5012
        %v5014 = vpop.f32.mrf.mxu0
        %v5015 = vpop.f32.mrf.mxu0
        %v5016 = vadd.f32 %v2239, %v5015
        %v5017 = vpop.f32.mrf.mxu0
        %5018 = vdwg.mxu0
        %5019 = vst.msk [vmem:[%s394 + $0x1] sm:$0xff] %vm348, %v4957
        %5020 = vst.msk [vmem:[%s394 + $0x9] sm:$0xff] %vm348, %v4960
        %5021 = vst.msk [vmem:[%s394 + $0x19] sm:$0xff] %vm348, %v4965
        %5022 = vst.msk [vmem:[%s394 + $0x21] sm:$0xff] %vm348, %v4968
        %5023 = vst.msk [vmem:[%s394 + $0x31] sm:$0xff] %vm348, %v4973
        %5024 = vst.msk [vmem:[%s394 + $0x39] sm:$0xff] %vm348, %v4976
        %5025 = vst.msk [vmem:[%s394 + $0x49] sm:$0xff] %vm348, %v4981
        %5026 = vst.msk [vmem:[%s394 + $0x51] sm:$0xff] %vm348, %v4984
        %5027 = vst.msk [vmem:[%s394 + $0x61] sm:$0xff] %vm348, %v4989
        %5028 = vst.msk [vmem:[%s394 + $0x69] sm:$0xff] %vm348, %v4992
        %5029 = vst.msk [vmem:[%s394 + $0x79] sm:$0xff] %vm348, %v4997
        %5030 = vst.msk [vmem:[%s394 + $0x81] sm:$0xff] %vm348, %v5000
        %5031 = vst.msk [vmem:[%s394 + $0x91] sm:$0xff] %vm348, %v5005
        %5032 = vst.msk [vmem:[%s394 + $0x99] sm:$0xff] %vm348, %v5008
        %5033 = vst.msk [vmem:[%s394 + $0xa9] sm:$0xff] %vm348, %v5013
        %5034 = vst.msk [vmem:[%s394 + $0xb1] sm:$0xff] %vm348, %v5016
        %v5035 = vld [vmem:[%s2389] sm:$0xff]
        %v5036 = vld [vmem:[%s2389 + $0x8] sm:$0xff]
        %v5037 = vld [vmem:[%s2389 + $0x18] sm:$0xff]
        %v5038 = vld [vmem:[%s2389 + $0x20] sm:$0xff]
        %v5039 = vld [vmem:[%s2389 + $0x30] sm:$0xff]
        %v5040 = vld [vmem:[%s2389 + $0x38] sm:$0xff]
        %v5041 = vld [vmem:[%s2389 + $0x48] sm:$0xff]
        %v5042 = vld [vmem:[%s2389 + $0x50] sm:$0xff]
        %v5043 = vld [vmem:[%s2389 + $0x60] sm:$0xff]
        %v5044 = vld [vmem:[%s2389 + $0x68] sm:$0xff]
        %v5045 = vld [vmem:[%s2389 + $0x78] sm:$0xff]
        %v5046 = vld [vmem:[%s2389 + $0x80] sm:$0xff]
        %v5047 = vld [vmem:[%s2389 + $0x90] sm:$0xff]
        %v5048 = vld [vmem:[%s2389 + $0x98] sm:$0xff]
        %v5049 = vld [vmem:[%s2389 + $0xa8] sm:$0xff]
        %v5050 = vld [vmem:[%s2389 + $0xb0] sm:$0xff]
        %v5051 = vmul.f32 %v5035, %v1778
        %v5052 = vmul.f32 %v5036, %v1778
        %v5053 = vmul.f32 %v5037, %v1778
        %v5054 = vmul.f32 %v5038, %v1778
        %v5055 = vmul.f32 %v5039, %v1778
        %v5056 = vmul.f32 %v5040, %v1778
        %v5057 = vmul.f32 %v5041, %v1778
        %v5058 = vmul.f32 %v5042, %v1778
        %v5059 = vmul.f32 %v5043, %v1778
        %v5060 = vmul.f32 %v5044, %v1778
        %v5061 = vmul.f32 %v5045, %v1778
        %v5062 = vmul.f32 %v5046, %v1778
        %v5063 = vmul.f32 %v5047, %v1778
        %v5064 = vmul.f32 %v5048, %v1778
        %v5065 = vmul.f32 %v5049, %v1778
        %v5066 = vmul.f32 %v5050, %v1778
        %v5067 = vadd.f32 %v5051, 0.0
        %v5068 = vadd.f32 %v5052, 0.0
        %v5069 = vadd.f32 %v5053, 0.0
        %v5070 = vadd.f32 %v5054, 0.0
        %v5071 = vadd.f32 %v5055, 0.0
        %v5072 = vadd.f32 %v5056, 0.0
        %v5073 = vadd.f32 %v5057, 0.0
        %v5074 = vadd.f32 %v5058, 0.0
        %v5075 = vadd.f32 %v5059, 0.0
        %v5076 = vadd.f32 %v5060, 0.0
        %v5077 = vadd.f32 %v5061, 0.0
        %v5078 = vadd.f32 %v5062, 0.0
        %v5079 = vadd.f32 %v5063, 0.0
        %v5080 = vadd.f32 %v5064, 0.0
        %v5081 = vadd.f32 %v5065, 0.0
        %v5082 = vadd.f32 %v5066, 0.0
        %v5083 = vld [vmem:[%s2389 + $0x1] sm:$0xff]
        %v5084 = vld [vmem:[%s2389 + $0x9] sm:$0xff]
        %v5085 = vld [vmem:[%s2389 + $0x19] sm:$0xff]
        %v5086 = vld [vmem:[%s2389 + $0x21] sm:$0xff]
        %v5087 = vld [vmem:[%s2389 + $0x31] sm:$0xff]
        %v5088 = vld [vmem:[%s2389 + $0x39] sm:$0xff]
        %v5089 = vld [vmem:[%s2389 + $0x49] sm:$0xff]
        %v5090 = vld [vmem:[%s2389 + $0x51] sm:$0xff]
        %v5091 = vld [vmem:[%s2389 + $0x61] sm:$0xff]
        %v5092 = vld [vmem:[%s2389 + $0x69] sm:$0xff]
        %v5093 = vld [vmem:[%s2389 + $0x79] sm:$0xff]
        %v5094 = vld [vmem:[%s2389 + $0x81] sm:$0xff]
        %v5095 = vld [vmem:[%s2389 + $0x91] sm:$0xff]
        %v5096 = vld [vmem:[%s2389 + $0x99] sm:$0xff]
        %v5097 = vld [vmem:[%s2389 + $0xa9] sm:$0xff]
        %v5098 = vld [vmem:[%s2389 + $0xb1] sm:$0xff]
        %v5099 = vmul.f32 %v5083, %v1830
        %v5100 = vmul.f32 %v5084, %v1830
        %v5101 = vmul.f32 %v5085, %v1830
        %v5102 = vmul.f32 %v5086, %v1830
        %v5103 = vmul.f32 %v5087, %v1830
        %v5104 = vmul.f32 %v5088, %v1830
        %v5105 = vmul.f32 %v5089, %v1830
        %v5106 = vmul.f32 %v5090, %v1830
        %v5107 = vmul.f32 %v5091, %v1830
        %v5108 = vmul.f32 %v5092, %v1830
        %v5109 = vmul.f32 %v5093, %v1830
        %v5110 = vmul.f32 %v5094, %v1830
        %v5111 = vmul.f32 %v5095, %v1830
        %v5112 = vmul.f32 %v5096, %v1830
        %v5113 = vmul.f32 %v5097, %v1830
        %v5114 = vmul.f32 %v5098, %v1830
        %v5115 = vadd.f32 %v5067, %v5099
        %v5116 = vadd.f32 %v5068, %v5100
        %v5117 = vadd.f32 %v5069, %v5101
        %v5118 = vadd.f32 %v5070, %v5102
        %v5119 = vadd.f32 %v5071, %v5103
        %v5120 = vadd.f32 %v5072, %v5104
        %v5121 = vadd.f32 %v5073, %v5105
        %v5122 = vadd.f32 %v5074, %v5106
        %v5123 = vadd.f32 %v5075, %v5107
        %v5124 = vadd.f32 %v5076, %v5108
        %v5125 = vadd.f32 %v5077, %v5109
        %v5126 = vadd.f32 %v5078, %v5110
        %v5127 = vadd.f32 %v5079, %v5111
        %v5128 = vadd.f32 %v5080, %v5112
        %v5129 = vadd.f32 %v5081, %v5113
        %v5130 = vadd.f32 %v5082, %v5114
        %v5131 = vld [vmem:[%s2389 + $0x2] sm:$0xff]
        %v5132 = vld [vmem:[%s2389 + $0xa] sm:$0xff]
        %v5133 = vld [vmem:[%s2389 + $0x1a] sm:$0xff]
        %v5134 = vld [vmem:[%s2389 + $0x22] sm:$0xff]
        %v5135 = vld [vmem:[%s2389 + $0x32] sm:$0xff]
        %v5136 = vld [vmem:[%s2389 + $0x3a] sm:$0xff]
        %v5137 = vld [vmem:[%s2389 + $0x4a] sm:$0xff]
        %v5138 = vld [vmem:[%s2389 + $0x52] sm:$0xff]
        %v5139 = vld [vmem:[%s2389 + $0x62] sm:$0xff]
        %v5140 = vld [vmem:[%s2389 + $0x6a] sm:$0xff]
        %v5141 = vld [vmem:[%s2389 + $0x7a] sm:$0xff]
        %v5142 = vld [vmem:[%s2389 + $0x82] sm:$0xff]
        %v5143 = vld [vmem:[%s2389 + $0x92] sm:$0xff]
        %v5144 = vld [vmem:[%s2389 + $0x9a] sm:$0xff]
        %v5145 = vld [vmem:[%s2389 + $0xaa] sm:$0xff]
        %v5146 = vld [vmem:[%s2389 + $0xb2] sm:$0xff]
        %v5147 = vmul.f32 %v5131, %v1882
        %v5148 = vmul.f32 %v5132, %v1882
        %v5149 = vmul.f32 %v5133, %v1882
        %v5150 = vmul.f32 %v5134, %v1882
        %v5151 = vmul.f32 %v5135, %v1882
        %v5152 = vmul.f32 %v5136, %v1882
        %v5153 = vmul.f32 %v5137, %v1882
        %v5154 = vmul.f32 %v5138, %v1882
        %v5155 = vmul.f32 %v5139, %v1882
        %v5156 = vmul.f32 %v5140, %v1882
        %v5157 = vmul.f32 %v5141, %v1882
        %v5158 = vmul.f32 %v5142, %v1882
        %v5159 = vmul.f32 %v5143, %v1882
        %v5160 = vmul.f32 %v5144, %v1882
        %v5161 = vmul.f32 %v5145, %v1882
        %v5162 = vmul.f32 %v5146, %v1882
        %v5163 = vadd.f32 %v5115, %v5147
        %v5164 = vadd.f32 %v5116, %v5148
        %v5165 = vadd.f32 %v5117, %v5149
        %v5166 = vadd.f32 %v5118, %v5150
        %v5167 = vadd.f32 %v5119, %v5151
        %v5168 = vadd.f32 %v5120, %v5152
        %v5169 = vadd.f32 %v5121, %v5153
        %v5170 = vadd.f32 %v5122, %v5154
        %v5171 = vadd.f32 %v5123, %v5155
        %v5172 = vadd.f32 %v5124, %v5156
        %v5173 = vadd.f32 %v5125, %v5157
        %v5174 = vadd.f32 %v5126, %v5158
        %v5175 = vadd.f32 %v5127, %v5159
        %v5176 = vadd.f32 %v5128, %v5160
        %v5177 = vadd.f32 %v5129, %v5161
        %v5178 = vadd.f32 %v5130, %v5162
        %v5179 = vld [vmem:[%s1742] sm:$0xff]
        %v5180 = vld [vmem:[%s1742 + $0x8] sm:$0xff]
        %v5181 = vld [vmem:[%s1742 + $0x18] sm:$0xff]
        %v5182 = vld [vmem:[%s1742 + $0x20] sm:$0xff]
        %v5183 = vld [vmem:[%s1742 + $0x30] sm:$0xff]
        %v5184 = vld [vmem:[%s1742 + $0x38] sm:$0xff]
        %v5185 = vld [vmem:[%s1742 + $0x48] sm:$0xff]
        %v5186 = vld [vmem:[%s1742 + $0x50] sm:$0xff]
        %v5187 = vld [vmem:[%s1742 + $0x60] sm:$0xff]
        %v5188 = vld [vmem:[%s1742 + $0x68] sm:$0xff]
        %v5189 = vld [vmem:[%s1742 + $0x78] sm:$0xff]
        %v5190 = vld [vmem:[%s1742 + $0x80] sm:$0xff]
        %v5191 = vld [vmem:[%s1742 + $0x90] sm:$0xff]
        %v5192 = vld [vmem:[%s1742 + $0x98] sm:$0xff]
        %v5193 = vld [vmem:[%s1742 + $0xa8] sm:$0xff]
        %v5194 = vld [vmem:[%s1742 + $0xb0] sm:$0xff]
        %v5195 = vmul.f32 %v5179, %v1934
        %v5196 = vmul.f32 %v5180, %v1934
        %v5197 = vmul.f32 %v5181, %v1934
        %v5198 = vmul.f32 %v5182, %v1934
        %v5199 = vmul.f32 %v5183, %v1934
        %v5200 = vmul.f32 %v5184, %v1934
        %v5201 = vmul.f32 %v5185, %v1934
        %v5202 = vmul.f32 %v5186, %v1934
        %v5203 = vmul.f32 %v5187, %v1934
        %v5204 = vmul.f32 %v5188, %v1934
        %v5205 = vmul.f32 %v5189, %v1934
        %v5206 = vmul.f32 %v5190, %v1934
        %v5207 = vmul.f32 %v5191, %v1934
        %v5208 = vmul.f32 %v5192, %v1934
        %v5209 = vmul.f32 %v5193, %v1934
        %v5210 = vmul.f32 %v5194, %v1934
        %v5211 = vadd.f32 %v5163, %v5195
        %v5212 = vadd.f32 %v5164, %v5196
        %v5213 = vadd.f32 %v5165, %v5197
        %v5214 = vadd.f32 %v5166, %v5198
        %v5215 = vadd.f32 %v5167, %v5199
        %v5216 = vadd.f32 %v5168, %v5200
        %v5217 = vadd.f32 %v5169, %v5201
        %v5218 = vadd.f32 %v5170, %v5202
        %v5219 = vadd.f32 %v5171, %v5203
        %v5220 = vadd.f32 %v5172, %v5204
        %v5221 = vadd.f32 %v5173, %v5205
        %v5222 = vadd.f32 %v5174, %v5206
        %v5223 = vadd.f32 %v5175, %v5207
        %v5224 = vadd.f32 %v5176, %v5208
        %v5225 = vadd.f32 %v5177, %v5209
        %v5226 = vadd.f32 %v5178, %v5210
        %v5227 = vld [vmem:[%s1742 + $0x1] sm:$0xff]
        %v5228 = vld [vmem:[%s1742 + $0x9] sm:$0xff]
        %v5229 = vld [vmem:[%s1742 + $0x19] sm:$0xff]
        %v5230 = vld [vmem:[%s1742 + $0x21] sm:$0xff]
        %v5231 = vld [vmem:[%s1742 + $0x31] sm:$0xff]
        %v5232 = vld [vmem:[%s1742 + $0x39] sm:$0xff]
        %v5233 = vld [vmem:[%s1742 + $0x49] sm:$0xff]
        %v5234 = vld [vmem:[%s1742 + $0x51] sm:$0xff]
        %v5235 = vld [vmem:[%s1742 + $0x61] sm:$0xff]
        %v5236 = vld [vmem:[%s1742 + $0x69] sm:$0xff]
        %v5237 = vld [vmem:[%s1742 + $0x79] sm:$0xff]
        %v5238 = vld [vmem:[%s1742 + $0x81] sm:$0xff]
        %v5239 = vld [vmem:[%s1742 + $0x91] sm:$0xff]
        %v5240 = vld [vmem:[%s1742 + $0x99] sm:$0xff]
        %v5241 = vld [vmem:[%s1742 + $0xa9] sm:$0xff]
        %v5242 = vld [vmem:[%s1742 + $0xb1] sm:$0xff]
        %v5243 = vmul.f32 %v5227, %v1986
        %v5244 = vmul.f32 %v5228, %v1986
        %v5245 = vmul.f32 %v5229, %v1986
        %v5246 = vmul.f32 %v5230, %v1986
        %v5247 = vmul.f32 %v5231, %v1986
        %v5248 = vmul.f32 %v5232, %v1986
        %v5249 = vmul.f32 %v5233, %v1986
        %v5250 = vmul.f32 %v5234, %v1986
        %v5251 = vmul.f32 %v5235, %v1986
        %v5252 = vmul.f32 %v5236, %v1986
        %v5253 = vmul.f32 %v5237, %v1986
        %v5254 = vmul.f32 %v5238, %v1986
        %v5255 = vmul.f32 %v5239, %v1986
        %v5256 = vmul.f32 %v5240, %v1986
        %v5257 = vmul.f32 %v5241, %v1986
        %v5258 = vmul.f32 %v5242, %v1986
        %v5259 = vadd.f32 %v5211, %v5243
        %v5260 = vadd.f32 %v5212, %v5244
        %v5261 = vadd.f32 %v5213, %v5245
        %v5262 = vadd.f32 %v5214, %v5246
        %v5263 = vadd.f32 %v5215, %v5247
        %v5264 = vadd.f32 %v5216, %v5248
        %v5265 = vadd.f32 %v5217, %v5249
        %v5266 = vadd.f32 %v5218, %v5250
        %v5267 = vadd.f32 %v5219, %v5251
        %v5268 = vadd.f32 %v5220, %v5252
        %v5269 = vadd.f32 %v5221, %v5253
        %v5270 = vadd.f32 %v5222, %v5254
        %v5271 = vadd.f32 %v5223, %v5255
        %v5272 = vadd.f32 %v5224, %v5256
        %v5273 = vadd.f32 %v5225, %v5257
        %v5274 = vadd.f32 %v5226, %v5258
        %v5275 = vld [vmem:[%s1742 + $0x2] sm:$0xff]
        %v5276 = vld [vmem:[%s1742 + $0xa] sm:$0xff]
        %v5277 = vld [vmem:[%s1742 + $0x1a] sm:$0xff]
        %v5278 = vld [vmem:[%s1742 + $0x22] sm:$0xff]
        %v5279 = vld [vmem:[%s1742 + $0x32] sm:$0xff]
        %v5280 = vld [vmem:[%s1742 + $0x3a] sm:$0xff]
        %v5281 = vld [vmem:[%s1742 + $0x4a] sm:$0xff]
        %v5282 = vld [vmem:[%s1742 + $0x52] sm:$0xff]
        %v5283 = vld [vmem:[%s1742 + $0x62] sm:$0xff]
        %v5284 = vld [vmem:[%s1742 + $0x6a] sm:$0xff]
        %v5285 = vld [vmem:[%s1742 + $0x7a] sm:$0xff]
        %v5286 = vld [vmem:[%s1742 + $0x82] sm:$0xff]
        %v5287 = vld [vmem:[%s1742 + $0x92] sm:$0xff]
        %v5288 = vld [vmem:[%s1742 + $0x9a] sm:$0xff]
        %v5289 = vld [vmem:[%s1742 + $0xaa] sm:$0xff]
        %v5290 = vld [vmem:[%s1742 + $0xb2] sm:$0xff]
        %v5291 = vmul.f32 %v5275, %v2038
        %v5292 = vmul.f32 %v5276, %v2038
        %v5293 = vmul.f32 %v5277, %v2038
        %v5294 = vmul.f32 %v5278, %v2038
        %v5295 = vmul.f32 %v5279, %v2038
        %v5296 = vmul.f32 %v5280, %v2038
        %v5297 = vmul.f32 %v5281, %v2038
        %v5298 = vmul.f32 %v5282, %v2038
        %v5299 = vmul.f32 %v5283, %v2038
        %v5300 = vmul.f32 %v5284, %v2038
        %v5301 = vmul.f32 %v5285, %v2038
        %v5302 = vmul.f32 %v5286, %v2038
        %v5303 = vmul.f32 %v5287, %v2038
        %v5304 = vmul.f32 %v5288, %v2038
        %v5305 = vmul.f32 %v5289, %v2038
        %v5306 = vmul.f32 %v5290, %v2038
        %v5307 = vadd.f32 %v5259, %v5291
        %v5308 = vadd.f32 %v5260, %v5292
        %v5309 = vadd.f32 %v5261, %v5293
        %v5310 = vadd.f32 %v5262, %v5294
        %v5311 = vadd.f32 %v5263, %v5295
        %v5312 = vadd.f32 %v5264, %v5296
        %v5313 = vadd.f32 %v5265, %v5297
        %v5314 = vadd.f32 %v5266, %v5298
        %v5315 = vadd.f32 %v5267, %v5299
        %v5316 = vadd.f32 %v5268, %v5300
        %v5317 = vadd.f32 %v5269, %v5301
        %v5318 = vadd.f32 %v5270, %v5302
        %v5319 = vadd.f32 %v5271, %v5303
        %v5320 = vadd.f32 %v5272, %v5304
        %v5321 = vadd.f32 %v5273, %v5305
        %v5322 = vadd.f32 %v5274, %v5306
        %v5323 = vld [vmem:[%s2678] sm:$0xff]
        %v5324 = vld [vmem:[%s2678 + $0x8] sm:$0xff]
        %v5325 = vld [vmem:[%s2678 + $0x18] sm:$0xff]
        %v5326 = vld [vmem:[%s2678 + $0x20] sm:$0xff]
        %v5327 = vld [vmem:[%s2678 + $0x30] sm:$0xff]
        %v5328 = vld [vmem:[%s2678 + $0x38] sm:$0xff]
        %v5329 = vld [vmem:[%s2678 + $0x48] sm:$0xff]
        %v5330 = vld [vmem:[%s2678 + $0x50] sm:$0xff]
        %v5331 = vld [vmem:[%s2678 + $0x60] sm:$0xff]
        %v5332 = vld [vmem:[%s2678 + $0x68] sm:$0xff]
        %v5333 = vld [vmem:[%s2678 + $0x78] sm:$0xff]
        %v5334 = vld [vmem:[%s2678 + $0x80] sm:$0xff]
        %v5335 = vld [vmem:[%s2678 + $0x90] sm:$0xff]
        %v5336 = vld [vmem:[%s2678 + $0x98] sm:$0xff]
        %v5337 = vld [vmem:[%s2678 + $0xa8] sm:$0xff]
        %v5338 = vld [vmem:[%s2678 + $0xb0] sm:$0xff]
        %v5339 = vmul.f32 %v5323, %v2091
        %v5340 = vmul.f32 %v5324, %v2091
        %v5341 = vmul.f32 %v5325, %v2091
        %v5342 = vmul.f32 %v5326, %v2091
        %v5343 = vmul.f32 %v5327, %v2091
        %v5344 = vmul.f32 %v5328, %v2091
        %v5345 = vmul.f32 %v5329, %v2091
        %v5346 = vmul.f32 %v5330, %v2091
        %v5347 = vmul.f32 %v5331, %v2091
        %v5348 = vmul.f32 %v5332, %v2091
        %v5349 = vmul.f32 %v5333, %v2091
        %v5350 = vmul.f32 %v5334, %v2091
        %v5351 = vmul.f32 %v5335, %v2091
        %v5352 = vmul.f32 %v5336, %v2091
        %v5353 = vmul.f32 %v5337, %v2091
        %v5354 = vmul.f32 %v5338, %v2091
        %v5355 = vadd.f32 %v5307, %v5339
        %v5356 = vadd.f32 %v5308, %v5340
        %v5357 = vadd.f32 %v5309, %v5341
        %v5358 = vadd.f32 %v5310, %v5342
        %v5359 = vadd.f32 %v5311, %v5343
        %v5360 = vadd.f32 %v5312, %v5344
        %v5361 = vadd.f32 %v5313, %v5345
        %v5362 = vadd.f32 %v5314, %v5346
        %v5363 = vadd.f32 %v5315, %v5347
        %v5364 = vadd.f32 %v5316, %v5348
        %v5365 = vadd.f32 %v5317, %v5349
        %v5366 = vadd.f32 %v5318, %v5350
        %v5367 = vadd.f32 %v5319, %v5351
        %v5368 = vadd.f32 %v5320, %v5352
        %v5369 = vadd.f32 %v5321, %v5353
        %v5370 = vadd.f32 %v5322, %v5354
        %v5371 = vld [vmem:[%s2678 + $0x1] sm:$0xff]
        %v5372 = vld [vmem:[%s2678 + $0x9] sm:$0xff]
        %v5373 = vld [vmem:[%s2678 + $0x19] sm:$0xff]
        %v5374 = vld [vmem:[%s2678 + $0x21] sm:$0xff]
        %v5375 = vld [vmem:[%s2678 + $0x31] sm:$0xff]
        %v5376 = vld [vmem:[%s2678 + $0x39] sm:$0xff]
        %v5377 = vld [vmem:[%s2678 + $0x49] sm:$0xff]
        %v5378 = vld [vmem:[%s2678 + $0x51] sm:$0xff]
        %v5379 = vld [vmem:[%s2678 + $0x61] sm:$0xff]
        %v5380 = vld [vmem:[%s2678 + $0x69] sm:$0xff]
        %v5381 = vld [vmem:[%s2678 + $0x79] sm:$0xff]
        %v5382 = vld [vmem:[%s2678 + $0x81] sm:$0xff]
        %v5383 = vld [vmem:[%s2678 + $0x91] sm:$0xff]
        %v5384 = vld [vmem:[%s2678 + $0x99] sm:$0xff]
        %v5385 = vld [vmem:[%s2678 + $0xa9] sm:$0xff]
        %v5386 = vld [vmem:[%s2678 + $0xb1] sm:$0xff]
        %v5387 = vmul.f32 %v5371, %v2143
        %v5388 = vmul.f32 %v5372, %v2143
        %v5389 = vmul.f32 %v5373, %v2143
        %v5390 = vmul.f32 %v5374, %v2143
        %v5391 = vmul.f32 %v5375, %v2143
        %v5392 = vmul.f32 %v5376, %v2143
        %v5393 = vmul.f32 %v5377, %v2143
        %v5394 = vmul.f32 %v5378, %v2143
        %v5395 = vmul.f32 %v5379, %v2143
        %v5396 = vmul.f32 %v5380, %v2143
        %v5397 = vmul.f32 %v5381, %v2143
        %v5398 = vmul.f32 %v5382, %v2143
        %v5399 = vmul.f32 %v5383, %v2143
        %v5400 = vmul.f32 %v5384, %v2143
        %v5401 = vmul.f32 %v5385, %v2143
        %v5402 = vmul.f32 %v5386, %v2143
        %v5403 = vadd.f32 %v5355, %v5387
        %v5404 = vadd.f32 %v5356, %v5388
        %v5405 = vadd.f32 %v5357, %v5389
        %v5406 = vadd.f32 %v5358, %v5390
        %v5407 = vadd.f32 %v5359, %v5391
        %v5408 = vadd.f32 %v5360, %v5392
        %v5409 = vadd.f32 %v5361, %v5393
        %v5410 = vadd.f32 %v5362, %v5394
        %v5411 = vadd.f32 %v5363, %v5395
        %v5412 = vadd.f32 %v5364, %v5396
        %v5413 = vadd.f32 %v5365, %v5397
        %v5414 = vadd.f32 %v5366, %v5398
        %v5415 = vadd.f32 %v5367, %v5399
        %v5416 = vadd.f32 %v5368, %v5400
        %v5417 = vadd.f32 %v5369, %v5401
        %v5418 = vadd.f32 %v5370, %v5402
        %v5419 = vld [vmem:[%s2678 + $0x2] sm:$0xff]
        %v5420 = vld [vmem:[%s2678 + $0xa] sm:$0xff]
        %v5421 = vld [vmem:[%s2678 + $0x1a] sm:$0xff]
        %v5422 = vld [vmem:[%s2678 + $0x22] sm:$0xff]
        %v5423 = vld [vmem:[%s2678 + $0x32] sm:$0xff]
        %v5424 = vld [vmem:[%s2678 + $0x3a] sm:$0xff]
        %v5425 = vld [vmem:[%s2678 + $0x4a] sm:$0xff]
        %v5426 = vld [vmem:[%s2678 + $0x52] sm:$0xff]
        %v5427 = vld [vmem:[%s2678 + $0x62] sm:$0xff]
        %v5428 = vld [vmem:[%s2678 + $0x6a] sm:$0xff]
        %v5429 = vld [vmem:[%s2678 + $0x7a] sm:$0xff]
        %v5430 = vld [vmem:[%s2678 + $0x82] sm:$0xff]
        %v5431 = vld [vmem:[%s2678 + $0x92] sm:$0xff]
        %v5432 = vld [vmem:[%s2678 + $0x9a] sm:$0xff]
        %v5433 = vld [vmem:[%s2678 + $0xaa] sm:$0xff]
        %v5434 = vld [vmem:[%s2678 + $0xb2] sm:$0xff]
        %v5435 = vmul.f32 %v5419, %v2195
        %v5436 = vmul.f32 %v5420, %v2195
        %v5437 = vmul.f32 %v5421, %v2195
        %v5438 = vmul.f32 %v5422, %v2195
        %v5439 = vmul.f32 %v5423, %v2195
        %v5440 = vmul.f32 %v5424, %v2195
        %v5441 = vmul.f32 %v5425, %v2195
        %v5442 = vmul.f32 %v5426, %v2195
        %v5443 = vmul.f32 %v5427, %v2195
        %v5444 = vmul.f32 %v5428, %v2195
        %v5445 = vmul.f32 %v5429, %v2195
        %v5446 = vmul.f32 %v5430, %v2195
        %v5447 = vmul.f32 %v5431, %v2195
        %v5448 = vmul.f32 %v5432, %v2195
        %v5449 = vmul.f32 %v5433, %v2195
        %v5450 = vmul.f32 %v5434, %v2195
        %v5451 = vadd.f32 %v5403, %v5435
        %v5452 = vadd.f32 %v5404, %v5436
        %v5453 = vadd.f32 %v5405, %v5437
        %v5454 = vadd.f32 %v5406, %v5438
        %v5455 = vadd.f32 %v5407, %v5439
        %v5456 = vadd.f32 %v5408, %v5440
        %v5457 = vadd.f32 %v5409, %v5441
        %v5458 = vadd.f32 %v5410, %v5442
        %v5459 = vadd.f32 %v5411, %v5443
        %v5460 = vadd.f32 %v5412, %v5444
        %v5461 = vadd.f32 %v5413, %v5445
        %v5462 = vadd.f32 %v5414, %v5446
        %v5463 = vadd.f32 %v5415, %v5447
        %v5464 = vadd.f32 %v5416, %v5448
        %v5465 = vadd.f32 %v5417, %v5449
        %v5466 = vadd.f32 %v5418, %v5450
        %v5467 = vpack.c.bf16 %v5452, %v5451
        %v5468 = vpack.c.bf16 %v5454, %v5453
        %v5469 = vpack.c.bf16 %v5456, %v5455
        %v5470 = vpack.c.bf16 %v5458, %v5457
        %v5471 = vpack.c.bf16 %v5460, %v5459
        %v5472 = vpack.c.bf16 %v5462, %v5461
        %v5473 = vpack.c.bf16 %v5464, %v5463
        %v5474 = vpack.c.bf16 %v5466, %v5465
        %v5476 = vsel %vm348, %v5467, 0
        %v5479 = vsel %vm348, %v5468, 0
        %v5482 = vsel %vm348, %v5469, 0
        %v5485 = vsel %vm348, %v5470, 0
        %v5488 = vsel %vm348, %v5471, 0
        %v5491 = vsel %vm348, %v5472, 0
        %v5494 = vsel %vm348, %v5473, 0
        %v5497 = vsel %vm348, %v5474, 0
        %5499 = vmatprep.subr.bf16.mxu0 0
        %5500 = vmatpush1.bf16.msra.mxu0 0
        %5501 = vmatprep.subr.bf16.mxu0 0
        %5502 = vmatpush1.bf16.msra.mxu0 0
        %5503 = vmatprep.subr.bf16.mxu0 0
        %5504 = vmatpush1.bf16.msra.mxu0 0
        %5505 = vmatprep.subr.bf16.mxu0 0
        %5506 = vmatpush1.bf16.msra.mxu0 0
        %5507 = vmatprep.subr.bf16.mxu0 0
        %5508 = vmatpush1.bf16.msra.mxu0 0
        %5509 = vmatprep.subr.bf16.mxu0 0
        %5510 = vmatpush1.bf16.msra.mxu0 0
        %5511 = vmatprep.subr.bf16.mxu0 0
        %5512 = vmatpush1.bf16.msra.mxu0 %v2249
        %5513 = vmatprep.subr.bf16.mxu0 0
        %5514 = vmatpush1.bf16.msra.mxu0 %v2248
        %5515 = vmatprep.subr.bf16.mxu0 0
        %5516 = vmatpush2.bf16.msra.mxu0 0
        %5517 = vmatprep.subr.bf16.mxu0 0
        %5518 = vmatpush2.bf16.msra.mxu0 0
        %5519 = vmatprep.subr.bf16.mxu0 0
        %5520 = vmatpush2.bf16.msra.mxu0 0
        %5521 = vmatprep.subr.bf16.mxu0 0
        %5522 = vmatpush2.bf16.msra.mxu0 0
        %5523 = vmatprep.subr.bf16.mxu0 0
        %5524 = vmatpush2.bf16.msra.mxu0 0
        %5525 = vmatprep.subr.bf16.mxu0 0
        %5526 = vmatpush2.bf16.msra.mxu0 0
        %5527 = vmatprep.subr.bf16.mxu0 0
        %5528 = vmatpush2.bf16.msra.mxu0 0
        %5529 = vmatprep.subr.bf16.mxu0 0
        %5530 = vmatpush2.bf16.msra.mxu0 0
        %5531 = vmatprep.mubr.bf16.mxu0 0
        %5532 = vmatmul.mubr.bf16.gmra.mxu0 %v5476
        %v5533 = vpop.f32.mrf.mxu0
        %v5534 = vadd.f32 %v2239, %v5533
        %v5535 = vpop.f32.mrf.mxu0
        %v5536 = vpop.f32.mrf.mxu0
        %v5537 = vadd.f32 %v2239, %v5536
        %v5538 = vpop.f32.mrf.mxu0
        %5539 = vmatprep.mubr.bf16.mxu0 0
        %5540 = vmatmul.mubr.bf16.gmra.mxu0 %v5479
        %v5541 = vpop.f32.mrf.mxu0
        %v5542 = vadd.f32 %v2239, %v5541
        %v5543 = vpop.f32.mrf.mxu0
        %v5544 = vpop.f32.mrf.mxu0
        %v5545 = vadd.f32 %v2239, %v5544
        %v5546 = vpop.f32.mrf.mxu0
        %5547 = vmatprep.mubr.bf16.mxu0 0
        %5548 = vmatmul.mubr.bf16.gmra.mxu0 %v5482
        %v5549 = vpop.f32.mrf.mxu0
        %v5550 = vadd.f32 %v2239, %v5549
        %v5551 = vpop.f32.mrf.mxu0
        %v5552 = vpop.f32.mrf.mxu0
        %v5553 = vadd.f32 %v2239, %v5552
        %v5554 = vpop.f32.mrf.mxu0
        %5555 = vmatprep.mubr.bf16.mxu0 0
        %5556 = vmatmul.mubr.bf16.gmra.mxu0 %v5485
        %v5557 = vpop.f32.mrf.mxu0
        %v5558 = vadd.f32 %v2239, %v5557
        %v5559 = vpop.f32.mrf.mxu0
        %v5560 = vpop.f32.mrf.mxu0
        %v5561 = vadd.f32 %v2239, %v5560
        %v5562 = vpop.f32.mrf.mxu0
        %5563 = vmatprep.mubr.bf16.mxu0 0
        %5564 = vmatmul.mubr.bf16.gmra.mxu0 %v5488
        %v5565 = vpop.f32.mrf.mxu0
        %v5566 = vadd.f32 %v2239, %v5565
        %v5567 = vpop.f32.mrf.mxu0
        %v5568 = vpop.f32.mrf.mxu0
        %v5569 = vadd.f32 %v2239, %v5568
        %v5570 = vpop.f32.mrf.mxu0
        %5571 = vmatprep.mubr.bf16.mxu0 0
        %5572 = vmatmul.mubr.bf16.gmra.mxu0 %v5491
        %v5573 = vpop.f32.mrf.mxu0
        %v5574 = vadd.f32 %v2239, %v5573
        %v5575 = vpop.f32.mrf.mxu0
        %v5576 = vpop.f32.mrf.mxu0
        %v5577 = vadd.f32 %v2239, %v5576
        %v5578 = vpop.f32.mrf.mxu0
        %5579 = vmatprep.mubr.bf16.mxu0 0
        %5580 = vmatmul.mubr.bf16.gmra.mxu0 %v5494
        %v5581 = vpop.f32.mrf.mxu0
        %v5582 = vadd.f32 %v2239, %v5581
        %v5583 = vpop.f32.mrf.mxu0
        %v5584 = vpop.f32.mrf.mxu0
        %v5585 = vadd.f32 %v2239, %v5584
        %v5586 = vpop.f32.mrf.mxu0
        %5587 = vmatprep.mubr.bf16.mxu0 0
        %5588 = vmatmul.mubr.bf16.gmra.mxu0 %v5497
        %v5589 = vpop.f32.mrf.mxu0
        %v5590 = vadd.f32 %v2239, %v5589
        %v5591 = vpop.f32.mrf.mxu0
        %v5592 = vpop.f32.mrf.mxu0
        %v5593 = vadd.f32 %v2239, %v5592
        %v5594 = vpop.f32.mrf.mxu0
        %5595 = vdwg.mxu0
        %5596 = vst.msk [vmem:[%s2952 + $0x1] sm:$0xff] %vm348, %v5534
        %5597 = vst.msk [vmem:[%s2952 + $0x9] sm:$0xff] %vm348, %v5537
        %5598 = vst.msk [vmem:[%s2952 + $0x19] sm:$0xff] %vm348, %v5542
        %5599 = vst.msk [vmem:[%s2952 + $0x21] sm:$0xff] %vm348, %v5545
        %5600 = vst.msk [vmem:[%s2952 + $0x31] sm:$0xff] %vm348, %v5550
        %5601 = vst.msk [vmem:[%s2952 + $0x39] sm:$0xff] %vm348, %v5553
        %5602 = vst.msk [vmem:[%s2952 + $0x49] sm:$0xff] %vm348, %v5558
        %5603 = vst.msk [vmem:[%s2952 + $0x51] sm:$0xff] %vm348, %v5561
        %5604 = vst.msk [vmem:[%s2952 + $0x61] sm:$0xff] %vm348, %v5566
        %5605 = vst.msk [vmem:[%s2952 + $0x69] sm:$0xff] %vm348, %v5569
        %5606 = vst.msk [vmem:[%s2952 + $0x79] sm:$0xff] %vm348, %v5574
        %5607 = vst.msk [vmem:[%s2952 + $0x81] sm:$0xff] %vm348, %v5577
        %5608 = vst.msk [vmem:[%s2952 + $0x91] sm:$0xff] %vm348, %v5582
        %5609 = vst.msk [vmem:[%s2952 + $0x99] sm:$0xff] %vm348, %v5585
        %5610 = vst.msk [vmem:[%s2952 + $0xa9] sm:$0xff] %vm348, %v5590
        %5611 = vst.msk [vmem:[%s2952 + $0xb1] sm:$0xff] %vm348, %v5593
        %v5612 = vld [vmem:[#allocation4] ss:$2 sm:$0xff]
        %v5613 = vld [vmem:[%s2970] ss:$2 sm:$0xff]
        %v5614 = vld [vmem:[%s2972] ss:$2 sm:$0xff]
        %v5615 = vld [vmem:[%s2974] ss:$2 sm:$0xff]
        %v5616 = vld [vmem:[%s2976] ss:$2 sm:$0xff]
        %v5617 = vld [vmem:[%s2978] ss:$2 sm:$0xff]
        %v5618 = vld [vmem:[%s2980] ss:$2 sm:$0xff]
        %v5619 = vld [vmem:[%s2982] ss:$2 sm:$0xff]
        %v5620 = vld [vmem:[%s2984] ss:$2 sm:$0xff]
        %v5621 = vld [vmem:[%s2986] ss:$2 sm:$0xff]
        %v5622 = vld [vmem:[%s2988] ss:$2 sm:$0xff]
        %v5623 = vld [vmem:[%s2990] ss:$2 sm:$0xff]
        %v5624 = vld [vmem:[%s2992] ss:$2 sm:$0xff]
        %v5625 = vld [vmem:[%s2994] ss:$2 sm:$0xff]
        %v5626 = vld [vmem:[%s2996] ss:$2 sm:$0xff]
        %v5627 = vld [vmem:[%s2998] ss:$2 sm:$0xff]
        %v5628 = vmax.f32 %v5612, %v5620
        %v5629 = vmax.f32 %v5613, %v5621
        %v5630 = vmax.f32 %v5614, %v5622
        %v5631 = vmax.f32 %v5615, %v5623
        %v5632 = vmax.f32 %v5616, %v5624
        %v5633 = vmax.f32 %v5617, %v5625
        %v5634 = vmax.f32 %v5618, %v5626
        %v5635 = vmax.f32 %v5619, %v5627
        %v5636 = vld [vmem:[%s3008] ss:$2 sm:$0xff]
        %v5637 = vld [vmem:[%s3010] ss:$2 sm:$0xff]
        %v5638 = vld [vmem:[%s3012] ss:$2 sm:$0xff]
        %v5639 = vld [vmem:[%s3014] ss:$2 sm:$0xff]
        %v5640 = vld [vmem:[%s3016] ss:$2 sm:$0xff]
        %v5641 = vld [vmem:[%s3018] ss:$2 sm:$0xff]
        %v5642 = vld [vmem:[%s3020] ss:$2 sm:$0xff]
        %v5643 = vld [vmem:[%s3022] ss:$2 sm:$0xff]
        %v5644 = vmax.f32 %v5628, %v5636
        %v5645 = vmax.f32 %v5629, %v5637
        %v5646 = vmax.f32 %v5630, %v5638
        %v5647 = vmax.f32 %v5631, %v5639
        %v5648 = vmax.f32 %v5632, %v5640
        %v5649 = vmax.f32 %v5633, %v5641
        %v5650 = vmax.f32 %v5634, %v5642
        %v5651 = vmax.f32 %v5635, %v5643
        %v5652 = vld [vmem:[%s394] ss:$2 sm:$0xff]
        %v5653 = vld [vmem:[%s3033] ss:$2 sm:$0xff]
        %v5654 = vld [vmem:[%s3035] ss:$2 sm:$0xff]
        %v5655 = vld [vmem:[%s3037] ss:$2 sm:$0xff]
        %v5656 = vld [vmem:[%s3039] ss:$2 sm:$0xff]
        %v5657 = vld [vmem:[%s3041] ss:$2 sm:$0xff]
        %v5658 = vld [vmem:[%s3043] ss:$2 sm:$0xff]
        %v5659 = vld [vmem:[%s3045] ss:$2 sm:$0xff]
        %v5660 = vmax.f32 %v5644, %v5652
        %v5661 = vmax.f32 %v5645, %v5653
        %v5662 = vmax.f32 %v5646, %v5654
        %v5663 = vmax.f32 %v5647, %v5655
        %v5664 = vmax.f32 %v5648, %v5656
        %v5665 = vmax.f32 %v5649, %v5657
        %v5666 = vmax.f32 %v5650, %v5658
        %v5667 = vmax.f32 %v5651, %v5659
        %v5668 = vld [vmem:[%s3055] ss:$2 sm:$0xff]
        %v5669 = vld [vmem:[%s3057] ss:$2 sm:$0xff]
        %v5670 = vld [vmem:[%s3059] ss:$2 sm:$0xff]
        %v5671 = vld [vmem:[%s3061] ss:$2 sm:$0xff]
        %v5672 = vld [vmem:[%s3063] ss:$2 sm:$0xff]
        %v5673 = vld [vmem:[%s3065] ss:$2 sm:$0xff]
        %v5674 = vld [vmem:[%s3067] ss:$2 sm:$0xff]
        %v5675 = vld [vmem:[%s3069] ss:$2 sm:$0xff]
        %v5676 = vmax.f32 %v5660, %v5668
        %v5677 = vmax.f32 %v5661, %v5669
        %v5678 = vmax.f32 %v5662, %v5670
        %v5679 = vmax.f32 %v5663, %v5671
        %v5680 = vmax.f32 %v5664, %v5672
        %v5681 = vmax.f32 %v5665, %v5673
        %v5682 = vmax.f32 %v5666, %v5674
        %v5683 = vmax.f32 %v5667, %v5675
        %v5684 = vld [vmem:[%s3079] ss:$2 sm:$0xff]
        %v5685 = vld [vmem:[%s3081] ss:$2 sm:$0xff]
        %v5686 = vld [vmem:[%s3083] ss:$2 sm:$0xff]
        %v5687 = vld [vmem:[%s3085] ss:$2 sm:$0xff]
        %v5688 = vld [vmem:[%s3087] ss:$2 sm:$0xff]
        %v5689 = vld [vmem:[%s3089] ss:$2 sm:$0xff]
        %v5690 = vld [vmem:[%s3091] ss:$2 sm:$0xff]
        %v5691 = vld [vmem:[%s3093] ss:$2 sm:$0xff]
        %v5692 = vmax.f32 %v5676, %v5684
        %v5693 = vmax.f32 %v5677, %v5685
        %v5694 = vmax.f32 %v5678, %v5686
        %v5695 = vmax.f32 %v5679, %v5687
        %v5696 = vmax.f32 %v5680, %v5688
        %v5697 = vmax.f32 %v5681, %v5689
        %v5698 = vmax.f32 %v5682, %v5690
        %v5699 = vmax.f32 %v5683, %v5691
        %v5700 = vld [vmem:[%s3103] ss:$2 sm:$0xff]
        %v5701 = vld [vmem:[%s3105] ss:$2 sm:$0xff]
        %v5702 = vld [vmem:[%s3107] ss:$2 sm:$0xff]
        %v5703 = vld [vmem:[%s3109] ss:$2 sm:$0xff]
        %v5704 = vld [vmem:[%s3111] ss:$2 sm:$0xff]
        %v5705 = vld [vmem:[%s3113] ss:$2 sm:$0xff]
        %v5706 = vld [vmem:[%s3115] ss:$2 sm:$0xff]
        %v5707 = vld [vmem:[%s3117] ss:$2 sm:$0xff]
        %v5708 = vmax.f32 %v5692, %v5700
        %v5709 = vmax.f32 %v5693, %v5701
        %v5710 = vmax.f32 %v5694, %v5702
        %v5711 = vmax.f32 %v5695, %v5703
        %v5712 = vmax.f32 %v5696, %v5704
        %v5713 = vmax.f32 %v5697, %v5705
        %v5714 = vmax.f32 %v5698, %v5706
        %v5715 = vmax.f32 %v5699, %v5707
        %v5716 = vld [vmem:[%s3127] ss:$2 sm:$0xff]
        %v5717 = vld [vmem:[%s3129] ss:$2 sm:$0xff]
        %v5718 = vld [vmem:[%s3131] ss:$2 sm:$0xff]
        %v5719 = vld [vmem:[%s3133] ss:$2 sm:$0xff]
        %v5720 = vld [vmem:[%s3135] ss:$2 sm:$0xff]
        %v5721 = vld [vmem:[%s3137] ss:$2 sm:$0xff]
        %v5722 = vld [vmem:[%s3139] ss:$2 sm:$0xff]
        %v5723 = vld [vmem:[%s3141] ss:$2 sm:$0xff]
        %v5724 = vmax.f32 %v5708, %v5716
        %v5725 = vmax.f32 %v5709, %v5717
        %v5726 = vmax.f32 %v5710, %v5718
        %v5727 = vmax.f32 %v5711, %v5719
        %v5728 = vmax.f32 %v5712, %v5720
        %v5729 = vmax.f32 %v5713, %v5721
        %v5730 = vmax.f32 %v5714, %v5722
        %v5731 = vmax.f32 %v5715, %v5723
        %v5732 = vld [vmem:[%s3151] ss:$2 sm:$0xff]
        %v5733 = vld [vmem:[%s3153] ss:$2 sm:$0xff]
        %v5734 = vld [vmem:[%s3155] ss:$2 sm:$0xff]
        %v5735 = vld [vmem:[%s3157] ss:$2 sm:$0xff]
        %v5736 = vld [vmem:[%s3159] ss:$2 sm:$0xff]
        %v5737 = vld [vmem:[%s3161] ss:$2 sm:$0xff]
        %v5738 = vld [vmem:[%s3163] ss:$2 sm:$0xff]
        %v5739 = vld [vmem:[%s3165] ss:$2 sm:$0xff]
        %v5740 = vmax.f32 %v5724, %v5732
        %v5741 = vmax.f32 %v5725, %v5733
        %v5742 = vmax.f32 %v5726, %v5734
        %v5743 = vmax.f32 %v5727, %v5735
        %v5744 = vmax.f32 %v5728, %v5736
        %v5745 = vmax.f32 %v5729, %v5737
        %v5746 = vmax.f32 %v5730, %v5738
        %v5747 = vmax.f32 %v5731, %v5739
        %v5748 = vld [vmem:[%s264] ss:$2 sm:$0xff]
        %s5749 = scalar_lea.vmem %s264, 32 [#allocation5]
        %v5750 = vld [vmem:[%s5749] ss:$2 sm:$0xff]
        %s5751 = scalar_lea.vmem %s264, 64 [#allocation5]
        %v5752 = vld [vmem:[%s5751] ss:$2 sm:$0xff]
        %s5753 = scalar_lea.vmem %s264, 96 [#allocation5]
        %v5754 = vld [vmem:[%s5753] ss:$2 sm:$0xff]
        %s5755 = scalar_lea.vmem %s264, 128 [#allocation5]
        %v5756 = vld [vmem:[%s5755] ss:$2 sm:$0xff]
        %s5757 = scalar_lea.vmem %s264, 160 [#allocation5]
        %v5758 = vld [vmem:[%s5757] ss:$2 sm:$0xff]
        %s5759 = scalar_lea.vmem %s264, 192 [#allocation5]
        %v5760 = vld [vmem:[%s5759] ss:$2 sm:$0xff]
        %s5761 = scalar_lea.vmem %s264, 224 [#allocation5]
        %v5762 = vld [vmem:[%s5761] ss:$2 sm:$0xff]
        %s5763 = scalar_lea.vmem %s264, 256 [#allocation5]
        %v5764 = vld [vmem:[%s5763] ss:$2 sm:$0xff]
        %s5765 = scalar_lea.vmem %s264, 288 [#allocation5]
        %v5766 = vld [vmem:[%s5765] ss:$2 sm:$0xff]
        %s5767 = scalar_lea.vmem %s264, 320 [#allocation5]
        %v5768 = vld [vmem:[%s5767] ss:$2 sm:$0xff]
        %s5769 = scalar_lea.vmem %s264, 352 [#allocation5]
        %v5770 = vld [vmem:[%s5769] ss:$2 sm:$0xff]
        %s5771 = scalar_lea.vmem %s264, 384 [#allocation5]
        %v5772 = vld [vmem:[%s5771] ss:$2 sm:$0xff]
        %s5773 = scalar_lea.vmem %s264, 416 [#allocation5]
        %v5774 = vld [vmem:[%s5773] ss:$2 sm:$0xff]
        %s5775 = scalar_lea.vmem %s264, 448 [#allocation5]
        %v5776 = vld [vmem:[%s5775] ss:$2 sm:$0xff]
        %s5777 = scalar_lea.vmem %s264, 480 [#allocation5]
        %v5778 = vld [vmem:[%s5777] ss:$2 sm:$0xff]
        %v5779 = vpack.c.bf16 %v5750, %v5748
        %v5780 = vpack.c.bf16 %v5754, %v5752
        %v5781 = vpack.c.bf16 %v5758, %v5756
        %v5782 = vpack.c.bf16 %v5762, %v5760
        %v5783 = vpack.c.bf16 %v5766, %v5764
        %v5784 = vpack.c.bf16 %v5770, %v5768
        %v5785 = vpack.c.bf16 %v5774, %v5772
        %v5786 = vpack.c.bf16 %v5778, %v5776
        %v5787 = vlaneseq
        %v5788 = vshrl.u32 %v5787, 7
        %v5789 = vsub.s32 2, %v5788
        %v5790 = vrot.slane %v425, %v5789
        %v5793 = vunpack.c.l.b16 %v423
        %v5794 = vunpack.c.l.b16 %v424
        %v5795 = vpack.c.b16 %v5794, %v5793
        %v5798 = vsel %vm305, %v5779, 0
        %v5801 = vsel %vm305, %v5780, 0
        %v5804 = vsel %vm305, %v5781, 0
        %v5807 = vsel %vm305, %v5782, 0
        %v5810 = vsel %vm305, %v5783, 0
        %v5813 = vsel %vm305, %v5784, 0
        %v5816 = vsel %vm305, %v5785, 0
        %v5819 = vsel %vm305, %v5786, 0
        %5821 = vmatprep.subr.bf16.mxu0 0
        %5822 = vmatpush1.bf16.msra.mxu0 0
        %5823 = vmatprep.subr.bf16.mxu0 0
        %5824 = vmatpush1.bf16.msra.mxu0 0
        %5825 = vmatprep.subr.bf16.mxu0 0
        %5826 = vmatpush1.bf16.msra.mxu0 0
        %5827 = vmatprep.subr.bf16.mxu0 0
        %5828 = vmatpush1.bf16.msra.mxu0 0
        %5829 = vmatprep.subr.bf16.mxu0 0
        %5830 = vmatpush1.bf16.msra.mxu0 0
        %5831 = vmatprep.subr.bf16.mxu0 0
        %5832 = vmatpush1.bf16.msra.mxu0 0
        %5833 = vmatprep.subr.bf16.mxu0 0
        %5834 = vmatpush1.bf16.msra.mxu0 0
        %5835 = vmatprep.subr.bf16.mxu0 0
        %5836 = vmatpush1.bf16.msra.mxu0 %v5795
        %5837 = vmatprep.subr.bf16.mxu0 0
        %5838 = vmatpush2.bf16.msra.mxu0 0
        %5839 = vmatprep.subr.bf16.mxu0 0
        %5840 = vmatpush2.bf16.msra.mxu0 0
        %5841 = vmatprep.subr.bf16.mxu0 0
        %5842 = vmatpush2.bf16.msra.mxu0 0
        %5843 = vmatprep.subr.bf16.mxu0 0
        %5844 = vmatpush2.bf16.msra.mxu0 0
        %5845 = vmatprep.subr.bf16.mxu0 0
        %5846 = vmatpush2.bf16.msra.mxu0 0
        %5847 = vmatprep.subr.bf16.mxu0 0
        %5848 = vmatpush2.bf16.msra.mxu0 0
        %5849 = vmatprep.subr.bf16.mxu0 0
        %5850 = vmatpush2.bf16.msra.mxu0 0
        %5851 = vmatprep.subr.bf16.mxu0 0
        %5852 = vmatpush2.bf16.msra.mxu0 0
        %5853 = vmatprep.mubr.bf16.mxu0 0
        %5854 = vmatmul.mubr.bf16.gmra.mxu0 %v5798
        %v5855 = vpop.f32.mrf.mxu0
        %v5856 = vadd.f32 %v5790, %v5855
        %v5857 = vpop.f32.mrf.mxu0
        %v5858 = vpop.f32.mrf.mxu0
        %v5859 = vadd.f32 %v5790, %v5858
        %v5860 = vpop.f32.mrf.mxu0
        %5861 = vmatprep.mubr.bf16.mxu0 0
        %5862 = vmatmul.mubr.bf16.gmra.mxu0 %v5801
        %v5863 = vpop.f32.mrf.mxu0
        %v5864 = vadd.f32 %v5790, %v5863
        %v5865 = vpop.f32.mrf.mxu0
        %v5866 = vpop.f32.mrf.mxu0
        %v5867 = vadd.f32 %v5790, %v5866
        %v5868 = vpop.f32.mrf.mxu0
        %5869 = vmatprep.mubr.bf16.mxu0 0
        %5870 = vmatmul.mubr.bf16.gmra.mxu0 %v5804
        %v5871 = vpop.f32.mrf.mxu0
        %v5872 = vadd.f32 %v5790, %v5871
        %v5873 = vpop.f32.mrf.mxu0
        %v5874 = vpop.f32.mrf.mxu0
        %v5875 = vadd.f32 %v5790, %v5874
        %v5876 = vpop.f32.mrf.mxu0
        %5877 = vmatprep.mubr.bf16.mxu0 0
        %5878 = vmatmul.mubr.bf16.gmra.mxu0 %v5807
        %v5879 = vpop.f32.mrf.mxu0
        %v5880 = vadd.f32 %v5790, %v5879
        %v5881 = vpop.f32.mrf.mxu0
        %v5882 = vpop.f32.mrf.mxu0
        %v5883 = vadd.f32 %v5790, %v5882
        %v5884 = vpop.f32.mrf.mxu0
        %5885 = vmatprep.mubr.bf16.mxu0 0
        %5886 = vmatmul.mubr.bf16.gmra.mxu0 %v5810
        %v5887 = vpop.f32.mrf.mxu0
        %v5888 = vadd.f32 %v5790, %v5887
        %v5889 = vpop.f32.mrf.mxu0
        %v5890 = vpop.f32.mrf.mxu0
        %v5891 = vadd.f32 %v5790, %v5890
        %v5892 = vpop.f32.mrf.mxu0
        %5893 = vmatprep.mubr.bf16.mxu0 0
        %5894 = vmatmul.mubr.bf16.gmra.mxu0 %v5813
        %v5895 = vpop.f32.mrf.mxu0
        %v5896 = vadd.f32 %v5790, %v5895
        %v5897 = vpop.f32.mrf.mxu0
        %v5898 = vpop.f32.mrf.mxu0
        %v5899 = vadd.f32 %v5790, %v5898
        %v5900 = vpop.f32.mrf.mxu0
        %5901 = vmatprep.mubr.bf16.mxu0 0
        %5902 = vmatmul.mubr.bf16.gmra.mxu0 %v5816
        %v5903 = vpop.f32.mrf.mxu0
        %v5904 = vadd.f32 %v5790, %v5903
        %v5905 = vpop.f32.mrf.mxu0
        %v5906 = vpop.f32.mrf.mxu0
        %v5907 = vadd.f32 %v5790, %v5906
        %v5908 = vpop.f32.mrf.mxu0
        %5909 = vmatprep.mubr.bf16.mxu0 0
        %5910 = vmatmul.mubr.bf16.gmra.mxu0 %v5819
        %v5911 = vpop.f32.mrf.mxu0
        %v5912 = vadd.f32 %v5790, %v5911
        %v5913 = vpop.f32.mrf.mxu0
        %v5914 = vpop.f32.mrf.mxu0
        %v5915 = vadd.f32 %v5790, %v5914
        %v5916 = vpop.f32.mrf.mxu0
        %5917 = vdwg.mxu0
        %v5918 = vadd.f32 %v3167, %v5856
        %v5919 = vadd.f32 %v3168, %v5859
        %v5920 = vadd.f32 %v3169, %v5864
        %v5921 = vadd.f32 %v3170, %v5867
        %v5922 = vadd.f32 %v3171, %v5872
        %v5923 = vadd.f32 %v3172, %v5875
        %v5924 = vadd.f32 %v3173, %v5880
        %v5925 = vadd.f32 %v3174, %v5883
        %v5934 = vrot.slane %v5919, 7
        %vm5935 = vcmask 1041409
        %v5936 = vsel %vm5935, %v5934, %v5918
        %v5937 = vrot.slane %v5920, 6
        %vm5938 = vcmask 1042434
        %v5939 = vsel %vm5938, %v5937, %v5936
        %v5940 = vrot.slane %v5921, 5
        %vm5941 = vcmask 1043459
        %v5942 = vsel %vm5941, %v5940, %v5939
        %v5943 = vrot.slane %v5922, 4
        %vm5944 = vcmask 1044484
        %v5945 = vsel %vm5944, %v5943, %v5942
        %v5946 = vrot.slane %v5923, 3
        %vm5947 = vcmask 1045509
        %v5948 = vsel %vm5947, %v5946, %v5945
        %v5949 = vrot.slane %v5924, 2
        %vm5950 = vcmask 1046534
        %v5951 = vsel %vm5950, %v5949, %v5948
        %v5952 = vrot.slane %v5925, 1
        %vm5953 = vcmask 1047559
        %v5954 = vsel %vm5953, %v5952, %v5951
        %5956 = vst.msk [vmem:[%s302] sm:$0xff] %vm348, %v5954
        %v5957 = vrot.slane %v5918, 1
        %v5958 = vsel %vm5935, %v5919, %v5957
        %v5959 = vrot.slane %v5920, 7
        %v5960 = vsel %vm5938, %v5959, %v5958
        %v5961 = vrot.slane %v5921, 6
        %v5962 = vsel %vm5941, %v5961, %v5960
        %v5963 = vrot.slane %v5922, 5
        %v5964 = vsel %vm5944, %v5963, %v5962
        %v5965 = vrot.slane %v5923, 4
        %v5966 = vsel %vm5947, %v5965, %v5964
        %v5967 = vrot.slane %v5924, 3
        %v5968 = vsel %vm5950, %v5967, %v5966
        %v5969 = vrot.slane %v5925, 2
        %v5970 = vsel %vm5953, %v5969, %v5968
        %5971 = vrot.lane.b32.xlu0 %v5970, 32
        %v5972 = vpop.permute.xlu0 %5971
        %vm5974 = vcmask 523520
        %5975 = vst.msk [vmem:[%s302] sm:$0xff] %vm5974, %v5972
        %v5976 = vrot.slane %v5918, 2
        %v5977 = vrot.slane %v5919, 1
        %v5978 = vsel %vm5935, %v5977, %v5976
        %v5979 = vsel %vm5938, %v5920, %v5978
        %v5980 = vrot.slane %v5921, 7
        %v5981 = vsel %vm5941, %v5980, %v5979
        %v5982 = vrot.slane %v5922, 6
        %v5983 = vsel %vm5944, %v5982, %v5981
        %v5984 = vrot.slane %v5923, 5
        %v5985 = vsel %vm5947, %v5984, %v5983
        %v5986 = vrot.slane %v5924, 4
        %v5987 = vsel %vm5950, %v5986, %v5985
        %v5988 = vrot.slane %v5925, 3
        %v5989 = vsel %vm5953, %v5988, %v5987
        %5990 = vrot.lane.b32.xlu0 %v5989, 64
        %v5991 = vpop.permute.xlu0 %5990
        %vm5993 = vcmask 785920
        %5994 = vst.msk [vmem:[%s302] sm:$0xff] %vm5993, %v5991
        %v5995 = vrot.slane %v5918, 3
        %v5996 = vrot.slane %v5919, 2
        %v5997 = vsel %vm5935, %v5996, %v5995
        %v5998 = vrot.slane %v5920, 1
        %v5999 = vsel %vm5938, %v5998, %v5997
        %v6000 = vsel %vm5941, %v5921, %v5999
        %v6001 = vrot.slane %v5922, 7
        %v6002 = vsel %vm5944, %v6001, %v6000
        %v6003 = vrot.slane %v5923, 6
        %v6004 = vsel %vm5947, %v6003, %v6002
        %v6005 = vrot.slane %v5924, 5
        %v6006 = vsel %vm5950, %v6005, %v6004
        %v6007 = vrot.slane %v5925, 4
        %v6008 = vsel %vm5953, %v6007, %v6006
        %6009 = vrot.lane.b32.xlu0 %v6008, 96
        %v6010 = vpop.permute.xlu0 %6009
        %vm6012 = vcmask 1048320
        %6013 = vst.msk [vmem:[%s302] sm:$0xff] %vm6012, %v6010
        %v6014 = vrot.slane %v5918, 4
        %v6015 = vrot.slane %v5919, 3
        %v6016 = vsel %vm5935, %v6015, %v6014
        %v6017 = vrot.slane %v5920, 2
        %v6018 = vsel %vm5938, %v6017, %v6016
        %v6019 = vrot.slane %v5921, 1
        %v6020 = vsel %vm5941, %v6019, %v6018
        %v6021 = vsel %vm5944, %v5922, %v6020
        %v6022 = vrot.slane %v5923, 7
        %v6023 = vsel %vm5947, %v6022, %v6021
        %v6024 = vrot.slane %v5924, 6
        %v6025 = vsel %vm5950, %v6024, %v6023
        %v6026 = vrot.slane %v5925, 5
        %v6027 = vsel %vm5953, %v6026, %v6025
        %6029 = vst.msk [vmem:[%s302 + $0x8] sm:$0xff] %vm348, %v6027
        %v6030 = vrot.slane %v5918, 5
        %v6031 = vrot.slane %v5919, 4
        %v6032 = vsel %vm5935, %v6031, %v6030
        %v6033 = vrot.slane %v5920, 3
        %v6034 = vsel %vm5938, %v6033, %v6032
        %v6035 = vrot.slane %v5921, 2
        %v6036 = vsel %vm5941, %v6035, %v6034
        %v6037 = vrot.slane %v5922, 1
        %v6038 = vsel %vm5944, %v6037, %v6036
        %v6039 = vsel %vm5947, %v5923, %v6038
        %v6040 = vrot.slane %v5924, 7
        %v6041 = vsel %vm5950, %v6040, %v6039
        %v6042 = vrot.slane %v5925, 6
        %v6043 = vsel %vm5953, %v6042, %v6041
        %6044 = vrot.lane.b32.xlu0 %v6043, 32
        %v6045 = vpop.permute.xlu0 %6044
        %6047 = vst.msk [vmem:[%s302 + $0x8] sm:$0xff] %vm5974, %v6045
        %v6048 = vrot.slane %v5918, 6
        %v6049 = vrot.slane %v5919, 5
        %v6050 = vsel %vm5935, %v6049, %v6048
        %v6051 = vrot.slane %v5920, 4
        %v6052 = vsel %vm5938, %v6051, %v6050
        %v6053 = vrot.slane %v5921, 3
        %v6054 = vsel %vm5941, %v6053, %v6052
        %v6055 = vrot.slane %v5922, 2
        %v6056 = vsel %vm5944, %v6055, %v6054
        %v6057 = vrot.slane %v5923, 1
        %v6058 = vsel %vm5947, %v6057, %v6056
        %v6059 = vsel %vm5950, %v5924, %v6058
        %v6060 = vrot.slane %v5925, 7
        %v6061 = vsel %vm5953, %v6060, %v6059
        %6062 = vrot.lane.b32.xlu0 %v6061, 64
        %v6063 = vpop.permute.xlu0 %6062
        %6065 = vst.msk [vmem:[%s302 + $0x8] sm:$0xff] %vm5993, %v6063
        %v6066 = vrot.slane %v5918, 7
        %v6067 = vrot.slane %v5919, 6
        %v6068 = vsel %vm5935, %v6067, %v6066
        %v6069 = vrot.slane %v5920, 5
        %v6070 = vsel %vm5938, %v6069, %v6068
        %v6071 = vrot.slane %v5921, 4
        %v6072 = vsel %vm5941, %v6071, %v6070
        %v6073 = vrot.slane %v5922, 3
        %v6074 = vsel %vm5944, %v6073, %v6072
        %v6075 = vrot.slane %v5923, 2
        %v6076 = vsel %vm5947, %v6075, %v6074
        %v6077 = vrot.slane %v5924, 1
        %v6078 = vsel %vm5950, %v6077, %v6076
        %v6079 = vsel %vm5953, %v5925, %v6078
        %6080 = vrot.lane.b32.xlu0 %v6079, 96
        %v6081 = vpop.permute.xlu0 %6080
        %6083 = vst.msk [vmem:[%s302 + $0x8] sm:$0xff] %vm6012, %v6081
        %v6084 = vadd.f32 %v5740, %v5888
        %v6085 = vadd.f32 %v5741, %v5891
        %v6086 = vadd.f32 %v5742, %v5896
        %v6087 = vadd.f32 %v5743, %v5899
        %v6088 = vadd.f32 %v5744, %v5904
        %v6089 = vadd.f32 %v5745, %v5907
        %v6090 = vadd.f32 %v5746, %v5912
        %v6091 = vadd.f32 %v5747, %v5915
        %v6100 = vrot.slane %v6085, 7
        %v6101 = vsel %vm5935, %v6100, %v6084
        %v6102 = vrot.slane %v6086, 6
        %v6103 = vsel %vm5938, %v6102, %v6101
        %v6104 = vrot.slane %v6087, 5
        %v6105 = vsel %vm5941, %v6104, %v6103
        %v6106 = vrot.slane %v6088, 4
        %v6107 = vsel %vm5944, %v6106, %v6105
        %v6108 = vrot.slane %v6089, 3
        %v6109 = vsel %vm5947, %v6108, %v6107
        %v6110 = vrot.slane %v6090, 2
        %v6111 = vsel %vm5950, %v6110, %v6109
        %v6112 = vrot.slane %v6091, 1
        %v6113 = vsel %vm5953, %v6112, %v6111
        %s6115 = scalar_lea.vmem %s302, 16
        %6116 = vst.msk [vmem:[%s6115] sm:$0xff] %vm348, %v6113
        %v6117 = vrot.slane %v6084, 1
        %v6118 = vsel %vm5935, %v6085, %v6117
        %v6119 = vrot.slane %v6086, 7
        %v6120 = vsel %vm5938, %v6119, %v6118
        %v6121 = vrot.slane %v6087, 6
        %v6122 = vsel %vm5941, %v6121, %v6120
        %v6123 = vrot.slane %v6088, 5
        %v6124 = vsel %vm5944, %v6123, %v6122
        %v6125 = vrot.slane %v6089, 4
        %v6126 = vsel %vm5947, %v6125, %v6124
        %v6127 = vrot.slane %v6090, 3
        %v6128 = vsel %vm5950, %v6127, %v6126
        %v6129 = vrot.slane %v6091, 2
        %v6130 = vsel %vm5953, %v6129, %v6128
        %6131 = vrot.lane.b32.xlu0 %v6130, 32
        %v6132 = vpop.permute.xlu0 %6131
        %6134 = vst.msk [vmem:[%s6115] sm:$0xff] %vm5974, %v6132
        %v6135 = vrot.slane %v6084, 2
        %v6136 = vrot.slane %v6085, 1
        %v6137 = vsel %vm5935, %v6136, %v6135
        %v6138 = vsel %vm5938, %v6086, %v6137
        %v6139 = vrot.slane %v6087, 7
        %v6140 = vsel %vm5941, %v6139, %v6138
        %v6141 = vrot.slane %v6088, 6
        %v6142 = vsel %vm5944, %v6141, %v6140
        %v6143 = vrot.slane %v6089, 5
        %v6144 = vsel %vm5947, %v6143, %v6142
        %v6145 = vrot.slane %v6090, 4
        %v6146 = vsel %vm5950, %v6145, %v6144
        %v6147 = vrot.slane %v6091, 3
        %v6148 = vsel %vm5953, %v6147, %v6146
        %6149 = vrot.lane.b32.xlu0 %v6148, 64
        %v6150 = vpop.permute.xlu0 %6149
        %6152 = vst.msk [vmem:[%s6115] sm:$0xff] %vm5993, %v6150
        %v6153 = vrot.slane %v6084, 3
        %v6154 = vrot.slane %v6085, 2
        %v6155 = vsel %vm5935, %v6154, %v6153
        %v6156 = vrot.slane %v6086, 1
        %v6157 = vsel %vm5938, %v6156, %v6155
        %v6158 = vsel %vm5941, %v6087, %v6157
        %v6159 = vrot.slane %v6088, 7
        %v6160 = vsel %vm5944, %v6159, %v6158
        %v6161 = vrot.slane %v6089, 6
        %v6162 = vsel %vm5947, %v6161, %v6160
        %v6163 = vrot.slane %v6090, 5
        %v6164 = vsel %vm5950, %v6163, %v6162
        %v6165 = vrot.slane %v6091, 4
        %v6166 = vsel %vm5953, %v6165, %v6164
        %6167 = vrot.lane.b32.xlu0 %v6166, 96
        %v6168 = vpop.permute.xlu0 %6167
        %6170 = vst.msk [vmem:[%s6115] sm:$0xff] %vm6012, %v6168
        %v6171 = vrot.slane %v6084, 4
        %v6172 = vrot.slane %v6085, 3
        %v6173 = vsel %vm5935, %v6172, %v6171
        %v6174 = vrot.slane %v6086, 2
        %v6175 = vsel %vm5938, %v6174, %v6173
        %v6176 = vrot.slane %v6087, 1
        %v6177 = vsel %vm5941, %v6176, %v6175
        %v6178 = vsel %vm5944, %v6088, %v6177
        %v6179 = vrot.slane %v6089, 7
        %v6180 = vsel %vm5947, %v6179, %v6178
        %v6181 = vrot.slane %v6090, 6
        %v6182 = vsel %vm5950, %v6181, %v6180
        %v6183 = vrot.slane %v6091, 5
        %v6184 = vsel %vm5953, %v6183, %v6182
        %6186 = vst.msk [vmem:[%s6115 + $0x8] sm:$0xff] %vm348, %v6184
        %v6187 = vrot.slane %v6084, 5
        %v6188 = vrot.slane %v6085, 4
        %v6189 = vsel %vm5935, %v6188, %v6187
        %v6190 = vrot.slane %v6086, 3
        %v6191 = vsel %vm5938, %v6190, %v6189
        %v6192 = vrot.slane %v6087, 2
        %v6193 = vsel %vm5941, %v6192, %v6191
        %v6194 = vrot.slane %v6088, 1
        %v6195 = vsel %vm5944, %v6194, %v6193
        %v6196 = vsel %vm5947, %v6089, %v6195
        %v6197 = vrot.slane %v6090, 7
        %v6198 = vsel %vm5950, %v6197, %v6196
        %v6199 = vrot.slane %v6091, 6
        %v6200 = vsel %vm5953, %v6199, %v6198
        %6201 = vrot.lane.b32.xlu0 %v6200, 32
        %v6202 = vpop.permute.xlu0 %6201
        %6204 = vst.msk [vmem:[%s6115 + $0x8] sm:$0xff] %vm5974, %v6202
        %v6205 = vrot.slane %v6084, 6
        %v6206 = vrot.slane %v6085, 5
        %v6207 = vsel %vm5935, %v6206, %v6205
        %v6208 = vrot.slane %v6086, 4
        %v6209 = vsel %vm5938, %v6208, %v6207
        %v6210 = vrot.slane %v6087, 3
        %v6211 = vsel %vm5941, %v6210, %v6209
        %v6212 = vrot.slane %v6088, 2
        %v6213 = vsel %vm5944, %v6212, %v6211
        %v6214 = vrot.slane %v6089, 1
        %v6215 = vsel %vm5947, %v6214, %v6213
        %v6216 = vsel %vm5950, %v6090, %v6215
        %v6217 = vrot.slane %v6091, 7
        %v6218 = vsel %vm5953, %v6217, %v6216
        %6219 = vrot.lane.b32.xlu0 %v6218, 64
        %v6220 = vpop.permute.xlu0 %6219
        %6222 = vst.msk [vmem:[%s6115 + $0x8] sm:$0xff] %vm5993, %v6220
        %v6223 = vrot.slane %v6084, 7
        %v6224 = vrot.slane %v6085, 6
        %v6225 = vsel %vm5935, %v6224, %v6223
        %v6226 = vrot.slane %v6086, 5
        %v6227 = vsel %vm5938, %v6226, %v6225
        %v6228 = vrot.slane %v6087, 4
        %v6229 = vsel %vm5941, %v6228, %v6227
        %v6230 = vrot.slane %v6088, 3
        %v6231 = vsel %vm5944, %v6230, %v6229
        %v6232 = vrot.slane %v6089, 2
        %v6233 = vsel %vm5947, %v6232, %v6231
        %v6234 = vrot.slane %v6090, 1
        %v6235 = vsel %vm5950, %v6234, %v6233
        %v6236 = vsel %vm5953, %v6091, %v6235
        %6237 = vrot.lane.b32.xlu0 %v6236, 96
        %v6238 = vpop.permute.xlu0 %6237
        %6240 = vst.msk [vmem:[%s6115 + $0x8] sm:$0xff] %vm6012, %v6238
        %s6241 = smul.u32 2, %s21
        %p6242 = scmp.lt.s32.totalorder %s6241, 3
        %s6243 = scalar_select %p6242, %s6241, 3
        %s6244 = smul.addr %s6243, 2
        %s6245 = smul.addr %s6244, 8
        %s6246 = scalar_lea.vmem %s7, %s6245
        // Predicated region
        $region53: #{block_forward.1} parent=47 // pred_check
          %p6247 = pneg %p191
        $region54: #{block_forward.1} parent=47 // pred_check_branch
          %6249 = sbr.rel (%p6247) target = $region56
        $region55: #{block_forward.1} parent=47 // pred_region
          %s6250 = smul.u32 2, %s21
        $region56: #{block_forward.1} parent=47 // pred_fallthru
          _
      $region48: #{block_forward.1} parent=5 // pred_fallthru
        _
      %p6251 = scmp.le.s32.totalorder 2, %s16
      // Predicated region
      $region57: #{block_forward.1} parent=5 // pred_check
        %p6252 = pneg %p6251
      $region58: #{block_forward.1} parent=5 // pred_check_branch
        %6254 = sbr.rel (%p6252) target = $region60
      $region59: #{block_forward.1} parent=5 // pred_region
        %s6255 = ssub.s32 %s16, 2
        // Predicated region
        $region61: #{block_forward.1} parent=59 // pred_check
          %p6256 = pneg %p197
        $region62: #{block_forward.1} parent=59 // pred_check_branch
          %6258 = sbr.rel (%p6256) target = $region64
        $region63: #{block_forward.1} parent=59 // pred_region
          %s6259 = smul.u32 2, %s22
          %p6260 = scmp.lt.s32.totalorder %s6259, 3
          %s6261 = scalar_select %p6260, %s6259, 3
          %s6262 = smul.addr %s6261, 2
          %s6263 = smul.addr %s6262, 8
          %s6264 = scalar_lea.vmem %s7, %s6263
        $region64: #{block_forward.1} parent=59 // pred_fallthru
          _
      $region60: #{block_forward.1} parent=5 // pred_fallthru
        _
    $region6: #{block_forward.1} parent=1 // loop_footer
      %s20 = sadd.s32 1, %s16
    $region7: #{block_forward.1} parent=1 // loop_footer_branch
      %15 = sbr.rel target = $region3
    $region8: #{block_forward.1} parent=1 // loop_exit
      _
    %6265 = vsyncpa [#allocation6], 1
    %s6266 = scalar_lea.sflag [#allocation6], 1
    %6267 = vsyncpa %s6266, 1

</llo_original>
